<compile_context>
chip_gen: v7x
topology: tpu7x:2x2x1
jax: 0.10.0
libtpu: 0.0.40
codegen_flags: <defaults>
</compile_context>

<pallas_src>
import math
import jax
import jax.numpy as jnp
from jax.experimental import pallas as pl
from jax.experimental.pallas import tpu as pltpu


# ---------------- theta-independent interpolation constants (hoisted) ----------

def _read_consts(Din, Hin, Win, Dout, Hout, Wout):
    """Constants for the separable (Mz, My⊗Mx) grid_sample formulation."""
    f32 = jnp.float32
    d_o = jnp.arange(Dout, dtype=f32)[:, None]
    rza = 0.5 * Din * ((2.0 * d_o + 1.0) / Dout - 1.0)               # (Dout, 1)
    rzc = (0.5 * Din - 0.5) - jnp.arange(Din, dtype=f32)[None, :]    # (1, Din)
    o = jnp.arange(Hout * Wout)
    ho = (o // Wout).astype(f32)[:, None]
    wo = (o % Wout).astype(f32)[:, None]
    rya = 0.5 * Hin * ((2.0 * ho + 1.0) / Hout - 1.0)                # (Hout*Wout, 1)
    rxa = 0.5 * Win * ((2.0 * wo + 1.0) / Wout - 1.0)                # (Hout*Wout, 1)
    r = jnp.arange(Hin * Win)
    hi = (r // Win).astype(f32)[None, :]
    wi = (r % Win).astype(f32)[None, :]
    ryc = (0.5 * Hin - 0.5) - hi                                     # (1, Hin*Win)
    rxc = (0.5 * Win - 0.5) - wi                                     # (1, Hin*Win)
    return rza, rzc, rya, ryc, rxa, rxc


def _write_consts(Din, Hin, Win, Dout, Hout, Wout):
    """Constants for the full (flat_in, flat_out) interpolation matrix (small write patch)."""
    f32 = jnp.float32
    o = jnp.arange(Dout * Hout * Wout)
    do = (o // (Hout * Wout)).astype(f32)[None, :]
    ho = ((o // Wout) % Hout).astype(f32)[None, :]
    wo = (o % Wout).astype(f32)[None, :]
    wza = 0.5 * Din * ((2.0 * do + 1.0) / Dout - 1.0)                # (1, Dout*Hout*Wout)
    wya = 0.5 * Hin * ((2.0 * ho + 1.0) / Hout - 1.0)
    wxa = 0.5 * Win * ((2.0 * wo + 1.0) / Wout - 1.0)
    r = jnp.arange(Din * Hin * Win)
    di = (r // (Hin * Win)).astype(f32)[:, None]
    hi = ((r // Win) % Hin).astype(f32)[:, None]
    wi = (r % Win).astype(f32)[:, None]
    wzc = (0.5 * Din - 0.5) - di                                     # (Din*Hin*Win, 1)
    wyc = (0.5 * Hin - 0.5) - hi
    wxc = (0.5 * Win - 0.5) - wi
    return wza, wzc, wya, wyc, wxa, wxc


# ----------------------------- fused forward kernel ----------------------------

def _make_draw_kernel(T, rN, enc, dec, zs,
                      half_rd, half_rh, half_rw,
                      half_wd, half_wh, half_ww):
    n_read = rN ** 3          # rows of enc_wih consumed by the read glimpse
    o_r = rN * rN             # columns of the read HxW interpolation matrix

    def kernel(x_ref, e_ref,
               rza_ref, rzc_ref, rya_ref, ryc_ref, rxa_ref, rxc_ref,
               wza_ref, wzc_ref, wya_ref, wyc_ref, wxa_ref, wxc_ref,
               enc_wih_ref, enc_b_ref,
               dec_wih_ref, dec_whh_ref, dec_b_ref,
               musg_w_ref, musg_b_ref, proj_w_ref, proj_b_ref,
               cs_ref, mu_ref, ls_ref, sg_ref):
        f32 = jnp.float32
        abc = cs_ref.shape[1]

        # ---- loads hoisted out of the time loop (VMEM resident) ----------------
        vol = x_ref[...]                                   # (32, 1024): this batch row
        rza = rza_ref[...]; rzc = rzc_ref[...]
        rya = rya_ref[...]; ryc = ryc_ref[...]
        rxa = rxa_ref[...]; rxc = rxc_ref[...]
        wza = wza_ref[...]; wzc = wzc_ref[...]
        wya = wya_ref[...]; wyc = wyc_ref[...]
        wxa = wxa_ref[...]; wxc = wxc_ref[...]
        # encoder input rows: [0:n_read]=r_t, [n_read:n_read+dec]=h_dec_prev,
        # remaining rows multiply `context` (== 0 in the reference) -> skipped.
        wih_r = [enc_wih_ref[d * o_r:(d + 1) * o_r, :] for d in range(rN)]
        wih_h = enc_wih_ref[n_read:n_read + dec, :]
        enc_b = enc_b_ref[...]
        dec_wih = dec_wih_ref[...]; dec_whh = dec_whh_ref[...]; dec_b = dec_b_ref[...]
        musg_w = musg_w_ref[...]; musg_b = musg_b_ref[...]
        proj_w = proj_w_ref[...]; proj_b = proj_b_ref[...]
        nw = proj_w.shape[1] - 8                           # write_N**3

        # ---- per-batch recurrent state (kept as values for the whole grid step)
        h_dec_prev = jnp.zeros((1, dec), f32)
        enc_c = jnp.zeros((1, enc), f32)
        dec_c = jnp.zeros((1, dec), f32)
        canvas = jnp.zeros((1, abc), f32)
        # fc_read(h_dec_prev = 0) = bias  -> read params for t = 0
        p_read = proj_b[0:1, nw:nw + 4]

        for t in range(T):
            # -------- read(): separable trilinear grid_sample (MXU matmuls) ------
            s = p_read[:, 0:1]
            tx = p_read[:, 1:2]
            ty = p_read[:, 2:3]
            tz = p_read[:, 3:4]
            mz = jnp.maximum(0.0, 1.0 - jnp.abs(s * rza + half_rd * tz + rzc))     # (rN, 32)
            mhw = (jnp.maximum(0.0, 1.0 - jnp.abs(s * rya + half_rh * ty + ryc))
                   * jnp.maximum(0.0, 1.0 - jnp.abs(s * rxa + half_rw * tx + rxc)))  # (rN*rN, 1024)
            t1 = jnp.dot(mz, vol, preferred_element_type=f32)                       # (rN, 1024)
            r_all = jax.lax.dot_general(t1, mhw, (((1,), (1,)), ((), ())),
                                        preferred_element_type=f32)                 # (rN, rN*rN)
            # read-glimpse contribution to the encoder gates (r_t never leaves vregs)
            gx = jnp.dot(r_all[0:1, :], wih_r[0], preferred_element_type=f32)
            for d in range(1, rN):
                gx = gx + jnp.dot(r_all[d:d + 1, :], wih_r[d],
                                  preferred_element_type=f32)

            # -------- encoder LSTMCell (h_enc_prev == 0, context == 0) ------------
            gates = gx + jnp.dot(h_dec_prev, wih_h, preferred_element_type=f32) + enc_b
            gi = jax.nn.sigmoid(gates[:, 0:enc])
            gf = jax.nn.sigmoid(gates[:, enc:2 * enc])
            gg = jnp.tanh(gates[:, 2 * enc:3 * enc])
            go = jax.nn.sigmoid(gates[:, 3 * enc:4 * enc])
            enc_c = gf * enc_c + gi * gg
            h_enc = go * jnp.tanh(enc_c)

            # -------- sampleQ (packed mu|log_sigma projection) --------------------
            ms = jnp.dot(h_enc, musg_w, preferred_element_type=f32) + musg_b        # (1, 2*zs)
            mu = ms[:, 0:zs]
            ls = ms[:, zs:2 * zs]
            sg = jnp.exp(ls)
            z = mu + e_ref[t:t + 1, :] * sg

            # -------- decoder LSTMCell --------------------------------------------
            dg = (jnp.dot(z, dec_wih, preferred_element_type=f32)
                  + jnp.dot(h_dec_prev, dec_whh, preferred_element_type=f32)
                  + dec_b)
            di = jax.nn.sigmoid(dg[:, 0:dec])
            df = jax.nn.sigmoid(dg[:, dec:2 * dec])
            dgg = jnp.tanh(dg[:, 2 * dec:3 * dec])
            do = jax.nn.sigmoid(dg[:, 3 * dec:4 * dec])
            dec_c = df * dec_c + di * dgg
            h_dec = do * jnp.tanh(dec_c)

            # -------- packed projections: fc_w2 | fc_read(next step) | fc_w1 ------
            proj = jnp.dot(h_dec, proj_w, preferred_element_type=f32) + proj_b      # (1, nw+8)
            xw = proj[:, 0:nw]                 # fc_w2(h_dec): write patch (write_N^3)
            p_read = proj[:, nw:nw + 4]        # fc_read(h_dec) == next step's fc_read(h_dec_prev)
            p_w1 = proj[:, nw + 4:nw + 8]      # fc_w1(h_dec): write affine params

            # -------- write(): inverse-affine grid_sample (full small matrix) -----
            denom = p_w1[:, 0:1] + 1e-9
            sw = 1.0 / denom
            txw = -p_w1[:, 1:2] / denom
            tyw = -p_w1[:, 2:3] / denom
            tzw = -p_w1[:, 3:4] / denom
            m_w = (jnp.maximum(0.0, 1.0 - jnp.abs(sw * wza + half_wd * tzw + wzc))
                   * jnp.maximum(0.0, 1.0 - jnp.abs(sw * wya + half_wh * tyw + wyc))
                   * jnp.maximum(0.0, 1.0 - jnp.abs(sw * wxa + half_ww * txw + wxc)))  # (wN^3, A*B*C)
            w_t = jnp.dot(xw, m_w, preferred_element_type=f32)                        # (1, A*B*C)
            canvas = canvas + w_t

            # -------- record this step's outputs ----------------------------------
            cs_ref[t:t + 1, :] = canvas
            mu_ref[t:t + 1, :] = mu
            ls_ref[t:t + 1, :] = ls
            sg_ref[t:t + 1, :] = sg
            h_dec_prev = h_dec

    return kernel


# ----------------------------- parameters --------------------------------------

def init_weights(key, p):
    enc, dec, zs = p['enc_size'], p['dec_size'], p['z_size']
    rN, wN, A, B_, ch = p['read_N'], p['write_N'], p['A'], p['B'], p['channel']
    enc_in = rN * rN * rN * ch + dec + A * B_
    keys = jax.random.split(key, 18)

    def u(k, shape, bound):
        return jax.random.uniform(k, shape, jnp.float32, -bound, bound)

    w = {}
    kb = 1.0 / math.sqrt(enc)
    w['enc_wih'] = u(keys[0], (enc_in, 4 * enc), kb)
    w['enc_whh'] = u(keys[1], (enc, 4 * enc), kb)   # kept for parity (h_enc_prev == 0 in forward)
    w['enc_b'] = u(keys[2], (1, 4 * enc), kb) + u(keys[3], (1, 4 * enc), kb)
    kb = 1.0 / math.sqrt(dec)
    w['dec_wih'] = u(keys[4], (zs, 4 * dec), kb)
    w['dec_whh'] = u(keys[5], (dec, 4 * dec), kb)
    w['dec_b'] = u(keys[6], (1, 4 * dec), kb) + u(keys[7], (1, 4 * dec), kb)
    kb = 1.0 / math.sqrt(enc)
    w['mu_w'] = u(keys[8], (enc, zs), kb)
    w['mu_b'] = u(keys[9], (1, zs), kb)
    w['sg_w'] = u(keys[10], (enc, zs), kb)
    w['sg_b'] = u(keys[11], (1, zs), kb)
    kb = 1.0 / math.sqrt(dec)
    w['w1_w'] = u(keys[12], (dec, 4), kb)
    w['w1_b'] = u(keys[13], (1, 4), kb)
    w['w2_w'] = u(keys[14], (dec, wN ** 3 * ch), kb)
    w['w2_b'] = u(keys[15], (1, wN ** 3 * ch), kb)
    w['read_w'] = u(keys[16], (dec, 4), kb)
    w['read_b'] = u(keys[17], (1, 4), kb)
    return w


# ----------------------------- forward pass ------------------------------------

def forward(x, w, p, key):
    Bn = x.shape[0]
    enc, dec, zs = p['enc_size'], p['dec_size'], p['z_size']
    rN, wN, A, B_, C = p['read_N'], p['write_N'], p['A'], p['B'], p['C']
    T = p['T']
    ABC = A * B_ * C
    f32 = jnp.float32

    # x.view(N, 1, 32, 32, 32) with C=1 -> (N, D, H*W); the reference hard-codes 32^3.
    x_vol = x.reshape(Bn, 32, 32 * 32).astype(f32)
    # reparameterization noise drawn up-front (one (T, zs) row per batch element)
    e_all = jax.random.normal(key, (Bn, T, zs), f32)

    # packed projections (wider matmuls, fewer MXU pushes)
    musg_w = jnp.concatenate([w['mu_w'], w['sg_w']], axis=1)         # (enc, 2*zs)
    musg_b = jnp.concatenate([w['mu_b'], w['sg_b']], axis=1)
    proj_w = jnp.concatenate([w['w2_w'], w['read_w'], w['w1_w']], axis=1)  # (dec, wN^3+8)
    proj_b = jnp.concatenate([w['w2_b'], w['read_b'], w['w1_b']], axis=1)

    # theta-independent interpolation constants (hoisted out of the kernel)
    r_consts = _read_consts(32, 32, 32, rN, rN, rN)
    w_consts = _write_consts(wN, wN, wN, A, B_, C)

    kernel = _make_draw_kernel(T=T, rN=rN, enc=enc, dec=dec, zs=zs,
                               half_rd=0.5 * 32, half_rh=0.5 * 32, half_rw=0.5 * 32,
                               half_wd=0.5 * wN, half_wh=0.5 * wN, half_ww=0.5 * wN)

    vmem = pl.BlockSpec(memory_space=pltpu.MemorySpace.VMEM)
    cs, mus, lss, sgs = pl.pallas_call(
        kernel,
        out_shape=(jax.ShapeDtypeStruct((Bn, T, ABC), f32),
                   jax.ShapeDtypeStruct((Bn, T, zs), f32),
                   jax.ShapeDtypeStruct((Bn, T, zs), f32),
                   jax.ShapeDtypeStruct((Bn, T, zs), f32)),
        grid=(Bn,),
        in_specs=[pl.BlockSpec((None, 32, 32 * 32), lambda b: (b, 0, 0)),   # x volume (per batch row)
                  pl.BlockSpec((None, T, zs), lambda b: (b, 0, 0))]          # noise (per batch row)
                 + [vmem] * (len(r_consts) + len(w_consts) + 9),             # constants + weights
        out_specs=(pl.BlockSpec((None, T, ABC), lambda b: (b, 0, 0)),
                   pl.BlockSpec((None, T, zs), lambda b: (b, 0, 0)),
                   pl.BlockSpec((None, T, zs), lambda b: (b, 0, 0)),
                   pl.BlockSpec((None, T, zs), lambda b: (b, 0, 0))),
        compiler_params=pltpu.CompilerParams(
            dimension_semantics=("parallel",)),   # batch rows are independent (uses both v7x TCs)
    )(x_vol, e_all, *r_consts, *w_consts,
      w['enc_wih'], w['enc_b'],
      w['dec_wih'], w['dec_whh'], w['dec_b'],
      musg_w, musg_b, proj_w, proj_b)

    # match the (T, batch, ...) stacking convention of the previous wrapper
    return (jnp.transpose(cs, (1, 0, 2)), jnp.transpose(mus, (1, 0, 2)),
            jnp.transpose(lss, (1, 0, 2)), jnp.transpose(sgs, (1, 0, 2)))


# ----------------------------------- main --------------------------------------

if __name__ == "__main__":
    # write_N must be 5 and channel must be 1 (hard-coded views in the reference);
    # the read() view hard-codes a 32^3 input volume.
    params = dict(T=2, A=8, B=8, C=8, z_size=10, read_N=4, write_N=5,
                  enc_size=32, dec_size=32, channel=1, device=None)

    key = jax.random.PRNGKey(0)
    kx, kw, ke = jax.random.split(key, 3)
    x = jax.random.normal(kx, (2, 32, 32, 32), jnp.float32)
    weights = init_weights(kw, params)

    cs, mus, logsigmas, sigmas = forward(x, weights, params, ke)
    jax.block_until_ready((cs, mus, logsigmas, sigmas))
    print("KERNEL_OK")
</pallas_src>

<mosaic_0001>
module attributes {stable_mosaic.version = 11 : i64} {
  func.func @kernel(%arg0: i32, %arg1: memref<1x32x1024xf32, #tpu.memory_space<vmem>>, %arg2: memref<1x2x10xf32, #tpu.memory_space<vmem>>, %arg3: memref<4x1xf32, #tpu.memory_space<vmem>>, %arg4: memref<1x32xf32, #tpu.memory_space<vmem>>, %arg5: memref<16x1xf32, #tpu.memory_space<vmem>>, %arg6: memref<1x1024xf32, #tpu.memory_space<vmem>>, %arg7: memref<16x1xf32, #tpu.memory_space<vmem>>, %arg8: memref<1x1024xf32, #tpu.memory_space<vmem>>, %arg9: memref<1x512xf32, #tpu.memory_space<vmem>>, %arg10: memref<125x1xf32, #tpu.memory_space<vmem>>, %arg11: memref<1x512xf32, #tpu.memory_space<vmem>>, %arg12: memref<125x1xf32, #tpu.memory_space<vmem>>, %arg13: memref<1x512xf32, #tpu.memory_space<vmem>>, %arg14: memref<125x1xf32, #tpu.memory_space<vmem>>, %arg15: memref<160x128xf32, #tpu.memory_space<vmem>>, %arg16: memref<1x128xf32, #tpu.memory_space<vmem>>, %arg17: memref<10x128xf32, #tpu.memory_space<vmem>>, %arg18: memref<32x128xf32, #tpu.memory_space<vmem>>, %arg19: memref<1x128xf32, #tpu.memory_space<vmem>>, %arg20: memref<32x20xf32, #tpu.memory_space<vmem>>, %arg21: memref<1x20xf32, #tpu.memory_space<vmem>>, %arg22: memref<32x133xf32, #tpu.memory_space<vmem>>, %arg23: memref<1x133xf32, #tpu.memory_space<vmem>>, %arg24: memref<1x2x512xf32, #tpu.memory_space<vmem>>, %arg25: memref<1x2x10xf32, #tpu.memory_space<vmem>>, %arg26: memref<1x2x10xf32, #tpu.memory_space<vmem>>, %arg27: memref<1x2x10xf32, #tpu.memory_space<vmem>>) attributes {dimension_semantics = [#tpu.dimension_semantics<parallel>], iteration_bounds = array<i64: 2>, scalar_prefetch = 0 : i64, scratch_operands = 0 : i64, tpu.core_type = #tpu.core_type<tc>, window_params = [{transform_indices = @transform_0, window_bounds = array<i64: 1, 32, 1024>}, {transform_indices = @transform_1, window_bounds = array<i64: 1, 2, 10>}, {pipeline_mode = #tpu.pipeline_mode<synchronous>, transform_indices = @transform_2, window_bounds = array<i64: 4, 1>}, {pipeline_mode = #tpu.pipeline_mode<synchronous>, transform_indices = @transform_3, window_bounds = array<i64: 1, 32>}, {pipeline_mode = #tpu.pipeline_mode<synchronous>, transform_indices = @transform_4, window_bounds = array<i64: 16, 1>}, {pipeline_mode = #tpu.pipeline_mode<synchronous>, transform_indices = @transform_5, window_bounds = array<i64: 1, 1024>}, {pipeline_mode = #tpu.pipeline_mode<synchronous>, transform_indices = @transform_6, window_bounds = array<i64: 16, 1>}, {pipeline_mode = #tpu.pipeline_mode<synchronous>, transform_indices = @transform_7, window_bounds = array<i64: 1, 1024>}, {pipeline_mode = #tpu.pipeline_mode<synchronous>, transform_indices = @transform_8, window_bounds = array<i64: 1, 512>}, {pipeline_mode = #tpu.pipeline_mode<synchronous>, transform_indices = @transform_9, window_bounds = array<i64: 125, 1>}, {pipeline_mode = #tpu.pipeline_mode<synchronous>, transform_indices = @transform_10, window_bounds = array<i64: 1, 512>}, {pipeline_mode = #tpu.pipeline_mode<synchronous>, transform_indices = @transform_11, window_bounds = array<i64: 125, 1>}, {pipeline_mode = #tpu.pipeline_mode<synchronous>, transform_indices = @transform_12, window_bounds = array<i64: 1, 512>}, {pipeline_mode = #tpu.pipeline_mode<synchronous>, transform_indices = @transform_13, window_bounds = array<i64: 125, 1>}, {pipeline_mode = #tpu.pipeline_mode<synchronous>, transform_indices = @transform_14, window_bounds = array<i64: 160, 128>}, {pipeline_mode = #tpu.pipeline_mode<synchronous>, transform_indices = @transform_15, window_bounds = array<i64: 1, 128>}, {pipeline_mode = #tpu.pipeline_mode<synchronous>, transform_indices = @transform_16, window_bounds = array<i64: 10, 128>}, {pipeline_mode = #tpu.pipeline_mode<synchronous>, transform_indices = @transform_17, window_bounds = array<i64: 32, 128>}, {pipeline_mode = #tpu.pipeline_mode<synchronous>, transform_indices = @transform_18, window_bounds = array<i64: 1, 128>}, {pipeline_mode = #tpu.pipeline_mode<synchronous>, transform_indices = @transform_19, window_bounds = array<i64: 32, 20>}, {pipeline_mode = #tpu.pipeline_mode<synchronous>, transform_indices = @transform_20, window_bounds = array<i64: 1, 20>}, {pipeline_mode = #tpu.pipeline_mode<synchronous>, transform_indices = @transform_21, window_bounds = array<i64: 32, 133>}, {pipeline_mode = #tpu.pipeline_mode<synchronous>, transform_indices = @transform_22, window_bounds = array<i64: 1, 133>}, {transform_indices = @transform_23, window_bounds = array<i64: 1, 2, 512>}, {transform_indices = @transform_24, window_bounds = array<i64: 1, 2, 10>}, {transform_indices = @transform_25, window_bounds = array<i64: 1, 2, 10>}, {transform_indices = @transform_26, window_bounds = array<i64: 1, 2, 10>}]} {
    %c0 = arith.constant 0 : index
    %c0_0 = arith.constant 0 : index
    %c0_1 = arith.constant 0 : index
    %0 = vector.load %arg1[%c0, %c0_0, %c0_1] : memref<1x32x1024xf32, #tpu.memory_space<vmem>>, vector<1x32x1024xf32>
    %1 = vector.shape_cast %0 : vector<1x32x1024xf32> to vector<32x1024xf32>
    %c0_2 = arith.constant 0 : index
    %c0_3 = arith.constant 0 : index
    %2 = vector.load %arg3[%c0_2, %c0_3] : memref<4x1xf32, #tpu.memory_space<vmem>>, vector<4x1xf32>
    %c0_4 = arith.constant 0 : index
    %c0_5 = arith.constant 0 : index
    %3 = vector.load %arg4[%c0_4, %c0_5] : memref<1x32xf32, #tpu.memory_space<vmem>>, vector<1x32xf32>
    %c0_6 = arith.constant 0 : index
    %c0_7 = arith.constant 0 : index
    %4 = vector.load %arg5[%c0_6, %c0_7] : memref<16x1xf32, #tpu.memory_space<vmem>>, vector<16x1xf32>
    %c0_8 = arith.constant 0 : index
    %c0_9 = arith.constant 0 : index
    %5 = vector.load %arg6[%c0_8, %c0_9] : memref<1x1024xf32, #tpu.memory_space<vmem>>, vector<1x1024xf32>
    %c0_10 = arith.constant 0 : index
    %c0_11 = arith.constant 0 : index
    %6 = vector.load %arg7[%c0_10, %c0_11] : memref<16x1xf32, #tpu.memory_space<vmem>>, vector<16x1xf32>
    %c0_12 = arith.constant 0 : index
    %c0_13 = arith.constant 0 : index
    %7 = vector.load %arg8[%c0_12, %c0_13] : memref<1x1024xf32, #tpu.memory_space<vmem>>, vector<1x1024xf32>
    %c0_14 = arith.constant 0 : index
    %c0_15 = arith.constant 0 : index
    %8 = vector.load %arg9[%c0_14, %c0_15] : memref<1x512xf32, #tpu.memory_space<vmem>>, vector<1x512xf32>
    %c0_16 = arith.constant 0 : index
    %c0_17 = arith.constant 0 : index
    %9 = vector.load %arg10[%c0_16, %c0_17] : memref<125x1xf32, #tpu.memory_space<vmem>>, vector<125x1xf32>
    %c0_18 = arith.constant 0 : index
    %c0_19 = arith.constant 0 : index
    %10 = vector.load %arg11[%c0_18, %c0_19] : memref<1x512xf32, #tpu.memory_space<vmem>>, vector<1x512xf32>
    %c0_20 = arith.constant 0 : index
    %c0_21 = arith.constant 0 : index
    %11 = vector.load %arg12[%c0_20, %c0_21] : memref<125x1xf32, #tpu.memory_space<vmem>>, vector<125x1xf32>
    %c0_22 = arith.constant 0 : index
    %c0_23 = arith.constant 0 : index
    %12 = vector.load %arg13[%c0_22, %c0_23] : memref<1x512xf32, #tpu.memory_space<vmem>>, vector<1x512xf32>
    %c0_24 = arith.constant 0 : index
    %c0_25 = arith.constant 0 : index
    %13 = vector.load %arg14[%c0_24, %c0_25] : memref<125x1xf32, #tpu.memory_space<vmem>>, vector<125x1xf32>
    %c0_26 = arith.constant 0 : index
    %c0_27 = arith.constant 0 : index
    %14 = vector.load %arg15[%c0_26, %c0_27] : memref<160x128xf32, #tpu.memory_space<vmem>>, vector<16x128xf32>
    %c16 = arith.constant 16 : index
    %c0_28 = arith.constant 0 : index
    %15 = vector.load %arg15[%c16, %c0_28] : memref<160x128xf32, #tpu.memory_space<vmem>>, vector<16x128xf32>
    %c32 = arith.constant 32 : index
    %c0_29 = arith.constant 0 : index
    %16 = vector.load %arg15[%c32, %c0_29] : memref<160x128xf32, #tpu.memory_space<vmem>>, vector<16x128xf32>
    %c48 = arith.constant 48 : index
    %c0_30 = arith.constant 0 : index
    %17 = vector.load %arg15[%c48, %c0_30] : memref<160x128xf32, #tpu.memory_space<vmem>>, vector<16x128xf32>
    %c64 = arith.constant 64 : index
    %c0_31 = arith.constant 0 : index
    %18 = vector.load %arg15[%c64, %c0_31] : memref<160x128xf32, #tpu.memory_space<vmem>>, vector<32x128xf32>
    %c0_32 = arith.constant 0 : index
    %c0_33 = arith.constant 0 : index
    %19 = vector.load %arg16[%c0_32, %c0_33] : memref<1x128xf32, #tpu.memory_space<vmem>>, vector<1x128xf32>
    %c0_34 = arith.constant 0 : index
    %c0_35 = arith.constant 0 : index
    %20 = vector.load %arg17[%c0_34, %c0_35] : memref<10x128xf32, #tpu.memory_space<vmem>>, vector<10x128xf32>
    %c0_36 = arith.constant 0 : index
    %c0_37 = arith.constant 0 : index
    %21 = vector.load %arg18[%c0_36, %c0_37] : memref<32x128xf32, #tpu.memory_space<vmem>>, vector<32x128xf32>
    %c0_38 = arith.constant 0 : index
    %c0_39 = arith.constant 0 : index
    %22 = vector.load %arg19[%c0_38, %c0_39] : memref<1x128xf32, #tpu.memory_space<vmem>>, vector<1x128xf32>
    %c0_40 = arith.constant 0 : index
    %c0_41 = arith.constant 0 : index
    %23 = vector.load %arg20[%c0_40, %c0_41] : memref<32x20xf32, #tpu.memory_space<vmem>>, vector<32x20xf32>
    %c0_42 = arith.constant 0 : index
    %c0_43 = arith.constant 0 : index
    %24 = vector.load %arg21[%c0_42, %c0_43] : memref<1x20xf32, #tpu.memory_space<vmem>>, vector<1x20xf32>
    %c0_44 = arith.constant 0 : index
    %c0_45 = arith.constant 0 : index
    %25 = vector.load %arg22[%c0_44, %c0_45] : memref<32x133xf32, #tpu.memory_space<vmem>>, vector<32x133xf32>
    %c0_46 = arith.constant 0 : index
    %c0_47 = arith.constant 0 : index
    %26 = vector.load %arg23[%c0_46, %c0_47] : memref<1x133xf32, #tpu.memory_space<vmem>>, vector<1x133xf32>
    %cst = arith.constant 0.000000e+00 : f32
    %27 = vector.broadcast %cst : f32 to vector<1x32xf32>
    %cst_48 = arith.constant 0.000000e+00 : f32
    %28 = vector.broadcast %cst_48 : f32 to vector<1x32xf32>
    %cst_49 = arith.constant 0.000000e+00 : f32
    %29 = vector.broadcast %cst_49 : f32 to vector<1x32xf32>
    %cst_50 = arith.constant 0.000000e+00 : f32
    %30 = vector.broadcast %cst_50 : f32 to vector<1x512xf32>
    %31 = vector.extract_strided_slice %26 {offsets = [0, 125], sizes = [1, 4], strides = [1, 1]} : vector<1x133xf32> to vector<1x4xf32>
    %32 = vector.extract_strided_slice %31 {offsets = [0, 0], sizes = [1, 1], strides = [1, 1]} : vector<1x4xf32> to vector<1x1xf32>
    %33 = vector.extract_strided_slice %31 {offsets = [0, 1], sizes = [1, 1], strides = [1, 1]} : vector<1x4xf32> to vector<1x1xf32>
    %34 = vector.extract_strided_slice %31 {offsets = [0, 2], sizes = [1, 1], strides = [1, 1]} : vector<1x4xf32> to vector<1x1xf32>
    %35 = vector.extract_strided_slice %31 {offsets = [0, 3], sizes = [1, 1], strides = [1, 1]} : vector<1x4xf32> to vector<1x1xf32>
    %36 = vector.broadcast %32 : vector<1x1xf32> to vector<4x1xf32>
    %37 = arith.mulf %36, %2 : vector<4x1xf32>
    %cst_51 = arith.constant 1.600000e+01 : f32
    %38 = vector.broadcast %cst_51 : f32 to vector<1x1xf32>
    %39 = arith.mulf %38, %35 : vector<1x1xf32>
    %40 = vector.broadcast %39 : vector<1x1xf32> to vector<4x1xf32>
    %41 = arith.addf %37, %40 : vector<4x1xf32>
    %42 = vector.broadcast %41 : vector<4x1xf32> to vector<4x32xf32>
    %43 = vector.broadcast %3 : vector<1x32xf32> to vector<4x32xf32>
    %44 = arith.addf %42, %43 : vector<4x32xf32>
    %45 = math.absf %44 : vector<4x32xf32>
    %cst_52 = arith.constant 1.000000e+00 : f32
    %46 = vector.broadcast %cst_52 : f32 to vector<4x32xf32>
    %47 = arith.subf %46, %45 : vector<4x32xf32>
    %cst_53 = arith.constant 0.000000e+00 : f32
    %48 = vector.broadcast %cst_53 : f32 to vector<4x32xf32>
    %49 = arith.maximumf %48, %47 : vector<4x32xf32>
    %50 = vector.broadcast %32 : vector<1x1xf32> to vector<16x1xf32>
    %51 = arith.mulf %50, %4 : vector<16x1xf32>
    %cst_54 = arith.constant 1.600000e+01 : f32
    %52 = vector.broadcast %cst_54 : f32 to vector<1x1xf32>
    %53 = arith.mulf %52, %34 : vector<1x1xf32>
    %54 = vector.broadcast %53 : vector<1x1xf32> to vector<16x1xf32>
    %55 = arith.addf %51, %54 : vector<16x1xf32>
    %56 = vector.broadcast %55 : vector<16x1xf32> to vector<16x1024xf32>
    %57 = vector.broadcast %5 : vector<1x1024xf32> to vector<16x1024xf32>
    %58 = arith.addf %56, %57 : vector<16x1024xf32>
    %59 = math.absf %58 : vector<16x1024xf32>
    %cst_55 = arith.constant 1.000000e+00 : f32
    %60 = vector.broadcast %cst_55 : f32 to vector<16x1024xf32>
    %61 = arith.subf %60, %59 : vector<16x1024xf32>
    %cst_56 = arith.constant 0.000000e+00 : f32
    %62 = vector.broadcast %cst_56 : f32 to vector<16x1024xf32>
    %63 = arith.maximumf %62, %61 : vector<16x1024xf32>
    %64 = vector.broadcast %32 : vector<1x1xf32> to vector<16x1xf32>
    %65 = arith.mulf %64, %6 : vector<16x1xf32>
    %cst_57 = arith.constant 1.600000e+01 : f32
    %66 = vector.broadcast %cst_57 : f32 to vector<1x1xf32>
    %67 = arith.mulf %66, %33 : vector<1x1xf32>
    %68 = vector.broadcast %67 : vector<1x1xf32> to vector<16x1xf32>
    %69 = arith.addf %65, %68 : vector<16x1xf32>
    %70 = vector.broadcast %69 : vector<16x1xf32> to vector<16x1024xf32>
    %71 = vector.broadcast %7 : vector<1x1024xf32> to vector<16x1024xf32>
    %72 = arith.addf %70, %71 : vector<16x1024xf32>
    %73 = math.absf %72 : vector<16x1024xf32>
    %cst_58 = arith.constant 1.000000e+00 : f32
    %74 = vector.broadcast %cst_58 : f32 to vector<16x1024xf32>
    %75 = arith.subf %74, %73 : vector<16x1024xf32>
    %cst_59 = arith.constant 0.000000e+00 : f32
    %76 = vector.broadcast %cst_59 : f32 to vector<16x1024xf32>
    %77 = arith.maximumf %76, %75 : vector<16x1024xf32>
    %78 = arith.mulf %63, %77 : vector<16x1024xf32>
    %cst_60 = arith.constant dense<0.000000e+00> : vector<4x1024xf32>
    %79 = tpu.matmul %49, %1, %cst_60 {dimension_numbers = #tpu.dot_dimension_numbers<[1], [0], [0], [1], [0, 0, 1, 1], [], []>} : vector<4x32xf32>, vector<32x1024xf32>, vector<4x1024xf32> -> vector<4x1024xf32>
    %cst_61 = arith.constant dense<0.000000e+00> : vector<4x16xf32>
    %80 = tpu.matmul %79, %78, %cst_61 {dimension_numbers = #tpu.dot_dimension_numbers<[1], [1], [0], [0], [0, 0, 1, 0], [], []>} : vector<4x1024xf32>, vector<16x1024xf32>, vector<4x16xf32> -> vector<4x16xf32>
    %81 = vector.extract_strided_slice %80 {offsets = [0, 0], sizes = [1, 16], strides = [1, 1]} : vector<4x16xf32> to vector<1x16xf32>
    %cst_62 = arith.constant dense<0.000000e+00> : vector<1x128xf32>
    %82 = tpu.matmul %81, %14, %cst_62 {dimension_numbers = #tpu.dot_dimension_numbers<[1], [0], [0], [1], [0, 0, 1, 1], [], []>} : vector<1x16xf32>, vector<16x128xf32>, vector<1x128xf32> -> vector<1x128xf32>
    %83 = vector.extract_strided_slice %80 {offsets = [1, 0], sizes = [1, 16], strides = [1, 1]} : vector<4x16xf32> to vector<1x16xf32>
    %cst_63 = arith.constant dense<0.000000e+00> : vector<1x128xf32>
    %84 = tpu.matmul %83, %15, %cst_63 {dimension_numbers = #tpu.dot_dimension_numbers<[1], [0], [0], [1], [0, 0, 1, 1], [], []>} : vector<1x16xf32>, vector<16x128xf32>, vector<1x128xf32> -> vector<1x128xf32>
    %85 = arith.addf %82, %84 : vector<1x128xf32>
    %86 = vector.extract_strided_slice %80 {offsets = [2, 0], sizes = [1, 16], strides = [1, 1]} : vector<4x16xf32> to vector<1x16xf32>
    %cst_64 = arith.constant dense<0.000000e+00> : vector<1x128xf32>
    %87 = tpu.matmul %86, %16, %cst_64 {dimension_numbers = #tpu.dot_dimension_numbers<[1], [0], [0], [1], [0, 0, 1, 1], [], []>} : vector<1x16xf32>, vector<16x128xf32>, vector<1x128xf32> -> vector<1x128xf32>
    %88 = arith.addf %85, %87 : vector<1x128xf32>
    %89 = vector.extract_strided_slice %80 {offsets = [3, 0], sizes = [1, 16], strides = [1, 1]} : vector<4x16xf32> to vector<1x16xf32>
    %cst_65 = arith.constant dense<0.000000e+00> : vector<1x128xf32>
    %90 = tpu.matmul %89, %17, %cst_65 {dimension_numbers = #tpu.dot_dimension_numbers<[1], [0], [0], [1], [0, 0, 1, 1], [], []>} : vector<1x16xf32>, vector<16x128xf32>, vector<1x128xf32> -> vector<1x128xf32>
    %91 = arith.addf %88, %90 : vector<1x128xf32>
    %cst_66 = arith.constant dense<0.000000e+00> : vector<1x128xf32>
    %92 = tpu.matmul %27, %18, %cst_66 {dimension_numbers = #tpu.dot_dimension_numbers<[1], [0], [0], [1], [0, 0, 1, 1], [], []>} : vector<1x32xf32>, vector<32x128xf32>, vector<1x128xf32> -> vector<1x128xf32>
    %93 = arith.addf %91, %92 : vector<1x128xf32>
    %94 = arith.addf %93, %19 : vector<1x128xf32>
    %95 = vector.extract_strided_slice %94 {offsets = [0, 0], sizes = [1, 32], strides = [1, 1]} : vector<1x128xf32> to vector<1x32xf32>
    %96 = arith.negf %95 : vector<1x32xf32>
    %97 = math.exp %96 : vector<1x32xf32>
    %cst_67 = arith.constant 1.000000e+00 : f32
    %98 = vector.broadcast %cst_67 : f32 to vector<1x32xf32>
    %99 = arith.addf %98, %97 : vector<1x32xf32>
    %100 = arith.divf %98, %99 : vector<1x32xf32>
    %101 = vector.extract_strided_slice %94 {offsets = [0, 32], sizes = [1, 32], strides = [1, 1]} : vector<1x128xf32> to vector<1x32xf32>
    %102 = arith.negf %101 : vector<1x32xf32>
    %103 = math.exp %102 : vector<1x32xf32>
    %cst_68 = arith.constant 1.000000e+00 : f32
    %104 = vector.broadcast %cst_68 : f32 to vector<1x32xf32>
    %105 = arith.addf %104, %103 : vector<1x32xf32>
    %106 = arith.divf %104, %105 : vector<1x32xf32>
    %107 = vector.extract_strided_slice %94 {offsets = [0, 64], sizes = [1, 32], strides = [1, 1]} : vector<1x128xf32> to vector<1x32xf32>
    %108 = math.tanh %107 : vector<1x32xf32>
    %109 = vector.extract_strided_slice %94 {offsets = [0, 96], sizes = [1, 32], strides = [1, 1]} : vector<1x128xf32> to vector<1x32xf32>
    %110 = arith.negf %109 : vector<1x32xf32>
    %111 = math.exp %110 : vector<1x32xf32>
    %cst_69 = arith.constant 1.000000e+00 : f32
    %112 = vector.broadcast %cst_69 : f32 to vector<1x32xf32>
    %113 = arith.addf %112, %111 : vector<1x32xf32>
    %114 = arith.divf %112, %113 : vector<1x32xf32>
    %115 = arith.mulf %106, %28 : vector<1x32xf32>
    %116 = arith.mulf %100, %108 : vector<1x32xf32>
    %117 = arith.addf %115, %116 : vector<1x32xf32>
    %118 = math.tanh %117 : vector<1x32xf32>
    %119 = arith.mulf %114, %118 : vector<1x32xf32>
    %cst_70 = arith.constant dense<0.000000e+00> : vector<1x20xf32>
    %120 = tpu.matmul %119, %23, %cst_70 {dimension_numbers = #tpu.dot_dimension_numbers<[1], [0], [0], [1], [0, 0, 1, 1], [], []>} : vector<1x32xf32>, vector<32x20xf32>, vector<1x20xf32> -> vector<1x20xf32>
    %121 = arith.addf %120, %24 : vector<1x20xf32>
    %122 = vector.extract_strided_slice %121 {offsets = [0, 0], sizes = [1, 10], strides = [1, 1]} : vector<1x20xf32> to vector<1x10xf32>
    %123 = vector.extract_strided_slice %121 {offsets = [0, 10], sizes = [1, 10], strides = [1, 1]} : vector<1x20xf32> to vector<1x10xf32>
    %124 = math.exp %123 : vector<1x10xf32>
    %c0_71 = arith.constant 0 : index
    %c0_72 = arith.constant 0 : index
    %c0_73 = arith.constant 0 : index
    %125 = vector.load %arg2[%c0_71, %c0_72, %c0_73] : memref<1x2x10xf32, #tpu.memory_space<vmem>>, vector<1x1x10xf32>
    %126 = vector.shape_cast %125 : vector<1x1x10xf32> to vector<1x10xf32>
    %127 = arith.mulf %126, %124 : vector<1x10xf32>
    %128 = arith.addf %122, %127 : vector<1x10xf32>
    %cst_74 = arith.constant dense<0.000000e+00> : vector<1x128xf32>
    %129 = tpu.matmul %128, %20, %cst_74 {dimension_numbers = #tpu.dot_dimension_numbers<[1], [0], [0], [1], [0, 0, 1, 1], [], []>} : vector<1x10xf32>, vector<10x128xf32>, vector<1x128xf32> -> vector<1x128xf32>
    %cst_75 = arith.constant dense<0.000000e+00> : vector<1x128xf32>
    %130 = tpu.matmul %27, %21, %cst_75 {dimension_numbers = #tpu.dot_dimension_numbers<[1], [0], [0], [1], [0, 0, 1, 1], [], []>} : vector<1x32xf32>, vector<32x128xf32>, vector<1x128xf32> -> vector<1x128xf32>
    %131 = arith.addf %129, %130 : vector<1x128xf32>
    %132 = arith.addf %131, %22 : vector<1x128xf32>
    %133 = vector.extract_strided_slice %132 {offsets = [0, 0], sizes = [1, 32], strides = [1, 1]} : vector<1x128xf32> to vector<1x32xf32>
    %134 = arith.negf %133 : vector<1x32xf32>
    %135 = math.exp %134 : vector<1x32xf32>
    %cst_76 = arith.constant 1.000000e+00 : f32
    %136 = vector.broadcast %cst_76 : f32 to vector<1x32xf32>
    %137 = arith.addf %136, %135 : vector<1x32xf32>
    %138 = arith.divf %136, %137 : vector<1x32xf32>
    %139 = vector.extract_strided_slice %132 {offsets = [0, 32], sizes = [1, 32], strides = [1, 1]} : vector<1x128xf32> to vector<1x32xf32>
    %140 = arith.negf %139 : vector<1x32xf32>
    %141 = math.exp %140 : vector<1x32xf32>
    %cst_77 = arith.constant 1.000000e+00 : f32
    %142 = vector.broadcast %cst_77 : f32 to vector<1x32xf32>
    %143 = arith.addf %142, %141 : vector<1x32xf32>
    %144 = arith.divf %142, %143 : vector<1x32xf32>
    %145 = vector.extract_strided_slice %132 {offsets = [0, 64], sizes = [1, 32], strides = [1, 1]} : vector<1x128xf32> to vector<1x32xf32>
    %146 = math.tanh %145 : vector<1x32xf32>
    %147 = vector.extract_strided_slice %132 {offsets = [0, 96], sizes = [1, 32], strides = [1, 1]} : vector<1x128xf32> to vector<1x32xf32>
    %148 = arith.negf %147 : vector<1x32xf32>
    %149 = math.exp %148 : vector<1x32xf32>
    %cst_78 = arith.constant 1.000000e+00 : f32
    %150 = vector.broadcast %cst_78 : f32 to vector<1x32xf32>
    %151 = arith.addf %150, %149 : vector<1x32xf32>
    %152 = arith.divf %150, %151 : vector<1x32xf32>
    %153 = arith.mulf %144, %29 : vector<1x32xf32>
    %154 = arith.mulf %138, %146 : vector<1x32xf32>
    %155 = arith.addf %153, %154 : vector<1x32xf32>
    %156 = math.tanh %155 : vector<1x32xf32>
    %157 = arith.mulf %152, %156 : vector<1x32xf32>
    %cst_79 = arith.constant dense<0.000000e+00> : vector<1x133xf32>
    %158 = tpu.matmul %157, %25, %cst_79 {dimension_numbers = #tpu.dot_dimension_numbers<[1], [0], [0], [1], [0, 0, 1, 1], [], []>} : vector<1x32xf32>, vector<32x133xf32>, vector<1x133xf32> -> vector<1x133xf32>
    %159 = arith.addf %158, %26 : vector<1x133xf32>
    %160 = vector.extract_strided_slice %159 {offsets = [0, 0], sizes = [1, 125], strides = [1, 1]} : vector<1x133xf32> to vector<1x125xf32>
    %161 = vector.extract_strided_slice %159 {offsets = [0, 125], sizes = [1, 4], strides = [1, 1]} : vector<1x133xf32> to vector<1x4xf32>
    %162 = vector.extract_strided_slice %159 {offsets = [0, 129], sizes = [1, 4], strides = [1, 1]} : vector<1x133xf32> to vector<1x4xf32>
    %163 = vector.extract_strided_slice %162 {offsets = [0, 0], sizes = [1, 1], strides = [1, 1]} : vector<1x4xf32> to vector<1x1xf32>
    %cst_80 = arith.constant 9.99999971E-10 : f32
    %164 = vector.broadcast %cst_80 : f32 to vector<1x1xf32>
    %165 = arith.addf %163, %164 : vector<1x1xf32>
    %cst_81 = arith.constant 1.000000e+00 : f32
    %166 = vector.broadcast %cst_81 : f32 to vector<1x1xf32>
    %167 = arith.divf %166, %165 : vector<1x1xf32>
    %168 = vector.extract_strided_slice %162 {offsets = [0, 1], sizes = [1, 1], strides = [1, 1]} : vector<1x4xf32> to vector<1x1xf32>
    %cst_82 = arith.constant 0.000000e+00 : f32
    %169 = vector.broadcast %cst_82 : f32 to vector<1x1xf32>
    %170 = arith.subf %169, %168 : vector<1x1xf32>
    %171 = arith.divf %170, %165 : vector<1x1xf32>
    %172 = vector.extract_strided_slice %162 {offsets = [0, 2], sizes = [1, 1], strides = [1, 1]} : vector<1x4xf32> to vector<1x1xf32>
    %cst_83 = arith.constant 0.000000e+00 : f32
    %173 = vector.broadcast %cst_83 : f32 to vector<1x1xf32>
    %174 = arith.subf %173, %172 : vector<1x1xf32>
    %175 = arith.divf %174, %165 : vector<1x1xf32>
    %176 = vector.extract_strided_slice %162 {offsets = [0, 3], sizes = [1, 1], strides = [1, 1]} : vector<1x4xf32> to vector<1x1xf32>
    %cst_84 = arith.constant 0.000000e+00 : f32
    %177 = vector.broadcast %cst_84 : f32 to vector<1x1xf32>
    %178 = arith.subf %177, %176 : vector<1x1xf32>
    %179 = arith.divf %178, %165 : vector<1x1xf32>
    %180 = vector.broadcast %167 : vector<1x1xf32> to vector<1x512xf32>
    %181 = arith.mulf %180, %8 : vector<1x512xf32>
    %cst_85 = arith.constant 2.500000e+00 : f32
    %182 = vector.broadcast %cst_85 : f32 to vector<1x1xf32>
    %183 = arith.mulf %182, %179 : vector<1x1xf32>
    %184 = vector.broadcast %183 : vector<1x1xf32> to vector<1x512xf32>
    %185 = arith.addf %181, %184 : vector<1x512xf32>
    %186 = vector.broadcast %185 : vector<1x512xf32> to vector<125x512xf32>
    %187 = vector.broadcast %9 : vector<125x1xf32> to vector<125x512xf32>
    %188 = arith.addf %186, %187 : vector<125x512xf32>
    %189 = math.absf %188 : vector<125x512xf32>
    %cst_86 = arith.constant 1.000000e+00 : f32
    %190 = vector.broadcast %cst_86 : f32 to vector<125x512xf32>
    %191 = arith.subf %190, %189 : vector<125x512xf32>
    %cst_87 = arith.constant 0.000000e+00 : f32
    %192 = vector.broadcast %cst_87 : f32 to vector<125x512xf32>
    %193 = arith.maximumf %192, %191 : vector<125x512xf32>
    %194 = vector.broadcast %167 : vector<1x1xf32> to vector<1x512xf32>
    %195 = arith.mulf %194, %10 : vector<1x512xf32>
    %cst_88 = arith.constant 2.500000e+00 : f32
    %196 = vector.broadcast %cst_88 : f32 to vector<1x1xf32>
    %197 = arith.mulf %196, %175 : vector<1x1xf32>
    %198 = vector.broadcast %197 : vector<1x1xf32> to vector<1x512xf32>
    %199 = arith.addf %195, %198 : vector<1x512xf32>
    %200 = vector.broadcast %199 : vector<1x512xf32> to vector<125x512xf32>
    %201 = vector.broadcast %11 : vector<125x1xf32> to vector<125x512xf32>
    %202 = arith.addf %200, %201 : vector<125x512xf32>
    %203 = math.absf %202 : vector<125x512xf32>
    %cst_89 = arith.constant 1.000000e+00 : f32
    %204 = vector.broadcast %cst_89 : f32 to vector<125x512xf32>
    %205 = arith.subf %204, %203 : vector<125x512xf32>
    %cst_90 = arith.constant 0.000000e+00 : f32
    %206 = vector.broadcast %cst_90 : f32 to vector<125x512xf32>
    %207 = arith.maximumf %206, %205 : vector<125x512xf32>
    %208 = arith.mulf %193, %207 : vector<125x512xf32>
    %209 = vector.broadcast %167 : vector<1x1xf32> to vector<1x512xf32>
    %210 = arith.mulf %209, %12 : vector<1x512xf32>
    %cst_91 = arith.constant 2.500000e+00 : f32
    %211 = vector.broadcast %cst_91 : f32 to vector<1x1xf32>
    %212 = arith.mulf %211, %171 : vector<1x1xf32>
    %213 = vector.broadcast %212 : vector<1x1xf32> to vector<1x512xf32>
    %214 = arith.addf %210, %213 : vector<1x512xf32>
    %215 = vector.broadcast %214 : vector<1x512xf32> to vector<125x512xf32>
    %216 = vector.broadcast %13 : vector<125x1xf32> to vector<125x512xf32>
    %217 = arith.addf %215, %216 : vector<125x512xf32>
    %218 = math.absf %217 : vector<125x512xf32>
    %cst_92 = arith.constant 1.000000e+00 : f32
    %219 = vector.broadcast %cst_92 : f32 to vector<125x512xf32>
    %220 = arith.subf %219, %218 : vector<125x512xf32>
    %cst_93 = arith.constant 0.000000e+00 : f32
    %221 = vector.broadcast %cst_93 : f32 to vector<125x512xf32>
    %222 = arith.maximumf %221, %220 : vector<125x512xf32>
    %223 = arith.mulf %208, %222 : vector<125x512xf32>
    %cst_94 = arith.constant dense<0.000000e+00> : vector<1x512xf32>
    %224 = tpu.matmul %160, %223, %cst_94 {dimension_numbers = #tpu.dot_dimension_numbers<[1], [0], [0], [1], [0, 0, 1, 1], [], []>} : vector<1x125xf32>, vector<125x512xf32>, vector<1x512xf32> -> vector<1x512xf32>
    %225 = arith.addf %30, %224 : vector<1x512xf32>
    %c0_95 = arith.constant 0 : index
    %c0_96 = arith.constant 0 : index
    %c0_97 = arith.constant 0 : index
    %226 = vector.load %arg24[%c0_95, %c0_96, %c0_97] : memref<1x2x512xf32, #tpu.memory_space<vmem>>, vector<1x1x512xf32>
    %227 = vector.shape_cast %226 : vector<1x1x512xf32> to vector<1x512xf32>
    %228 = vector.shape_cast %225 : vector<1x512xf32> to vector<1x1x512xf32>
    tpu.vector_store %arg24[%c0_95, %c0_96, %c0_97], %228 {strides = array<i32>} : memref<1x2x512xf32, #tpu.memory_space<vmem>>, vector<1x1x512xf32>,
    %c0_98 = arith.constant 0 : index
    %c0_99 = arith.constant 0 : index
    %c0_100 = arith.constant 0 : index
    %229 = vector.load %arg25[%c0_98, %c0_99, %c0_100] : memref<1x2x10xf32, #tpu.memory_space<vmem>>, vector<1x1x10xf32>
    %230 = vector.shape_cast %229 : vector<1x1x10xf32> to vector<1x10xf32>
    %231 = vector.shape_cast %122 : vector<1x10xf32> to vector<1x1x10xf32>
    tpu.vector_store %arg25[%c0_98, %c0_99, %c0_100], %231 {strides = array<i32>} : memref<1x2x10xf32, #tpu.memory_space<vmem>>, vector<1x1x10xf32>,
    %c0_101 = arith.constant 0 : index
    %c0_102 = arith.constant 0 : index
    %c0_103 = arith.constant 0 : index
    %232 = vector.load %arg26[%c0_101, %c0_102, %c0_103] : memref<1x2x10xf32, #tpu.memory_space<vmem>>, vector<1x1x10xf32>
    %233 = vector.shape_cast %232 : vector<1x1x10xf32> to vector<1x10xf32>
    %234 = vector.shape_cast %123 : vector<1x10xf32> to vector<1x1x10xf32>
    tpu.vector_store %arg26[%c0_101, %c0_102, %c0_103], %234 {strides = array<i32>} : memref<1x2x10xf32, #tpu.memory_space<vmem>>, vector<1x1x10xf32>,
    %c0_104 = arith.constant 0 : index
    %c0_105 = arith.constant 0 : index
    %c0_106 = arith.constant 0 : index
    %235 = vector.load %arg27[%c0_104, %c0_105, %c0_106] : memref<1x2x10xf32, #tpu.memory_space<vmem>>, vector<1x1x10xf32>
    %236 = vector.shape_cast %235 : vector<1x1x10xf32> to vector<1x10xf32>
    %237 = vector.shape_cast %124 : vector<1x10xf32> to vector<1x1x10xf32>
    tpu.vector_store %arg27[%c0_104, %c0_105, %c0_106], %237 {strides = array<i32>} : memref<1x2x10xf32, #tpu.memory_space<vmem>>, vector<1x1x10xf32>,
    %238 = vector.extract_strided_slice %161 {offsets = [0, 0], sizes = [1, 1], strides = [1, 1]} : vector<1x4xf32> to vector<1x1xf32>
    %239 = vector.extract_strided_slice %161 {offsets = [0, 1], sizes = [1, 1], strides = [1, 1]} : vector<1x4xf32> to vector<1x1xf32>
    %240 = vector.extract_strided_slice %161 {offsets = [0, 2], sizes = [1, 1], strides = [1, 1]} : vector<1x4xf32> to vector<1x1xf32>
    %241 = vector.extract_strided_slice %161 {offsets = [0, 3], sizes = [1, 1], strides = [1, 1]} : vector<1x4xf32> to vector<1x1xf32>
    %242 = vector.broadcast %238 : vector<1x1xf32> to vector<4x1xf32>
    %243 = arith.mulf %242, %2 : vector<4x1xf32>
    %cst_107 = arith.constant 1.600000e+01 : f32
    %244 = vector.broadcast %cst_107 : f32 to vector<1x1xf32>
    %245 = arith.mulf %244, %241 : vector<1x1xf32>
    %246 = vector.broadcast %245 : vector<1x1xf32> to vector<4x1xf32>
    %247 = arith.addf %243, %246 : vector<4x1xf32>
    %248 = vector.broadcast %247 : vector<4x1xf32> to vector<4x32xf32>
    %249 = vector.broadcast %3 : vector<1x32xf32> to vector<4x32xf32>
    %250 = arith.addf %248, %249 : vector<4x32xf32>
    %251 = math.absf %250 : vector<4x32xf32>
    %cst_108 = arith.constant 1.000000e+00 : f32
    %252 = vector.broadcast %cst_108 : f32 to vector<4x32xf32>
    %253 = arith.subf %252, %251 : vector<4x32xf32>
    %cst_109 = arith.constant 0.000000e+00 : f32
    %254 = vector.broadcast %cst_109 : f32 to vector<4x32xf32>
    %255 = arith.maximumf %254, %253 : vector<4x32xf32>
    %256 = vector.broadcast %238 : vector<1x1xf32> to vector<16x1xf32>
    %257 = arith.mulf %256, %4 : vector<16x1xf32>
    %cst_110 = arith.constant 1.600000e+01 : f32
    %258 = vector.broadcast %cst_110 : f32 to vector<1x1xf32>
    %259 = arith.mulf %258, %240 : vector<1x1xf32>
    %260 = vector.broadcast %259 : vector<1x1xf32> to vector<16x1xf32>
    %261 = arith.addf %257, %260 : vector<16x1xf32>
    %262 = vector.broadcast %261 : vector<16x1xf32> to vector<16x1024xf32>
    %263 = vector.broadcast %5 : vector<1x1024xf32> to vector<16x1024xf32>
    %264 = arith.addf %262, %263 : vector<16x1024xf32>
    %265 = math.absf %264 : vector<16x1024xf32>
    %cst_111 = arith.constant 1.000000e+00 : f32
    %266 = vector.broadcast %cst_111 : f32 to vector<16x1024xf32>
    %267 = arith.subf %266, %265 : vector<16x1024xf32>
    %cst_112 = arith.constant 0.000000e+00 : f32
    %268 = vector.broadcast %cst_112 : f32 to vector<16x1024xf32>
    %269 = arith.maximumf %268, %267 : vector<16x1024xf32>
    %270 = vector.broadcast %238 : vector<1x1xf32> to vector<16x1xf32>
    %271 = arith.mulf %270, %6 : vector<16x1xf32>
    %cst_113 = arith.constant 1.600000e+01 : f32
    %272 = vector.broadcast %cst_113 : f32 to vector<1x1xf32>
    %273 = arith.mulf %272, %239 : vector<1x1xf32>
    %274 = vector.broadcast %273 : vector<1x1xf32> to vector<16x1xf32>
    %275 = arith.addf %271, %274 : vector<16x1xf32>
    %276 = vector.broadcast %275 : vector<16x1xf32> to vector<16x1024xf32>
    %277 = vector.broadcast %7 : vector<1x1024xf32> to vector<16x1024xf32>
    %278 = arith.addf %276, %277 : vector<16x1024xf32>
    %279 = math.absf %278 : vector<16x1024xf32>
    %cst_114 = arith.constant 1.000000e+00 : f32
    %280 = vector.broadcast %cst_114 : f32 to vector<16x1024xf32>
    %281 = arith.subf %280, %279 : vector<16x1024xf32>
    %cst_115 = arith.constant 0.000000e+00 : f32
    %282 = vector.broadcast %cst_115 : f32 to vector<16x1024xf32>
    %283 = arith.maximumf %282, %281 : vector<16x1024xf32>
    %284 = arith.mulf %269, %283 : vector<16x1024xf32>
    %cst_116 = arith.constant dense<0.000000e+00> : vector<4x1024xf32>
    %285 = tpu.matmul %255, %1, %cst_116 {dimension_numbers = #tpu.dot_dimension_numbers<[1], [0], [0], [1], [0, 0, 1, 1], [], []>} : vector<4x32xf32>, vector<32x1024xf32>, vector<4x1024xf32> -> vector<4x1024xf32>
    %cst_117 = arith.constant dense<0.000000e+00> : vector<4x16xf32>
    %286 = tpu.matmul %285, %284, %cst_117 {dimension_numbers = #tpu.dot_dimension_numbers<[1], [1], [0], [0], [0, 0, 1, 0], [], []>} : vector<4x1024xf32>, vector<16x1024xf32>, vector<4x16xf32> -> vector<4x16xf32>
    %287 = vector.extract_strided_slice %286 {offsets = [0, 0], sizes = [1, 16], strides = [1, 1]} : vector<4x16xf32> to vector<1x16xf32>
    %cst_118 = arith.constant dense<0.000000e+00> : vector<1x128xf32>
    %288 = tpu.matmul %287, %14, %cst_118 {dimension_numbers = #tpu.dot_dimension_numbers<[1], [0], [0], [1], [0, 0, 1, 1], [], []>} : vector<1x16xf32>, vector<16x128xf32>, vector<1x128xf32> -> vector<1x128xf32>
    %289 = vector.extract_strided_slice %286 {offsets = [1, 0], sizes = [1, 16], strides = [1, 1]} : vector<4x16xf32> to vector<1x16xf32>
    %cst_119 = arith.constant dense<0.000000e+00> : vector<1x128xf32>
    %290 = tpu.matmul %289, %15, %cst_119 {dimension_numbers = #tpu.dot_dimension_numbers<[1], [0], [0], [1], [0, 0, 1, 1], [], []>} : vector<1x16xf32>, vector<16x128xf32>, vector<1x128xf32> -> vector<1x128xf32>
    %291 = arith.addf %288, %290 : vector<1x128xf32>
    %292 = vector.extract_strided_slice %286 {offsets = [2, 0], sizes = [1, 16], strides = [1, 1]} : vector<4x16xf32> to vector<1x16xf32>
    %cst_120 = arith.constant dense<0.000000e+00> : vector<1x128xf32>
    %293 = tpu.matmul %292, %16, %cst_120 {dimension_numbers = #tpu.dot_dimension_numbers<[1], [0], [0], [1], [0, 0, 1, 1], [], []>} : vector<1x16xf32>, vector<16x128xf32>, vector<1x128xf32> -> vector<1x128xf32>
    %294 = arith.addf %291, %293 : vector<1x128xf32>
    %295 = vector.extract_strided_slice %286 {offsets = [3, 0], sizes = [1, 16], strides = [1, 1]} : vector<4x16xf32> to vector<1x16xf32>
    %cst_121 = arith.constant dense<0.000000e+00> : vector<1x128xf32>
    %296 = tpu.matmul %295, %17, %cst_121 {dimension_numbers = #tpu.dot_dimension_numbers<[1], [0], [0], [1], [0, 0, 1, 1], [], []>} : vector<1x16xf32>, vector<16x128xf32>, vector<1x128xf32> -> vector<1x128xf32>
    %297 = arith.addf %294, %296 : vector<1x128xf32>
    %cst_122 = arith.constant dense<0.000000e+00> : vector<1x128xf32>
    %298 = tpu.matmul %157, %18, %cst_122 {dimension_numbers = #tpu.dot_dimension_numbers<[1], [0], [0], [1], [0, 0, 1, 1], [], []>} : vector<1x32xf32>, vector<32x128xf32>, vector<1x128xf32> -> vector<1x128xf32>
    %299 = arith.addf %297, %298 : vector<1x128xf32>
    %300 = arith.addf %299, %19 : vector<1x128xf32>
    %301 = vector.extract_strided_slice %300 {offsets = [0, 0], sizes = [1, 32], strides = [1, 1]} : vector<1x128xf32> to vector<1x32xf32>
    %302 = arith.negf %301 : vector<1x32xf32>
    %303 = math.exp %302 : vector<1x32xf32>
    %cst_123 = arith.constant 1.000000e+00 : f32
    %304 = vector.broadcast %cst_123 : f32 to vector<1x32xf32>
    %305 = arith.addf %304, %303 : vector<1x32xf32>
    %306 = arith.divf %304, %305 : vector<1x32xf32>
    %307 = vector.extract_strided_slice %300 {offsets = [0, 32], sizes = [1, 32], strides = [1, 1]} : vector<1x128xf32> to vector<1x32xf32>
    %308 = arith.negf %307 : vector<1x32xf32>
    %309 = math.exp %308 : vector<1x32xf32>
    %cst_124 = arith.constant 1.000000e+00 : f32
    %310 = vector.broadcast %cst_124 : f32 to vector<1x32xf32>
    %311 = arith.addf %310, %309 : vector<1x32xf32>
    %312 = arith.divf %310, %311 : vector<1x32xf32>
    %313 = vector.extract_strided_slice %300 {offsets = [0, 64], sizes = [1, 32], strides = [1, 1]} : vector<1x128xf32> to vector<1x32xf32>
    %314 = math.tanh %313 : vector<1x32xf32>
    %315 = vector.extract_strided_slice %300 {offsets = [0, 96], sizes = [1, 32], strides = [1, 1]} : vector<1x128xf32> to vector<1x32xf32>
    %316 = arith.negf %315 : vector<1x32xf32>
    %317 = math.exp %316 : vector<1x32xf32>
    %cst_125 = arith.constant 1.000000e+00 : f32
    %318 = vector.broadcast %cst_125 : f32 to vector<1x32xf32>
    %319 = arith.addf %318, %317 : vector<1x32xf32>
    %320 = arith.divf %318, %319 : vector<1x32xf32>
    %321 = arith.mulf %312, %117 : vector<1x32xf32>
    %322 = arith.mulf %306, %314 : vector<1x32xf32>
    %323 = arith.addf %321, %322 : vector<1x32xf32>
    %324 = math.tanh %323 : vector<1x32xf32>
    %325 = arith.mulf %320, %324 : vector<1x32xf32>
    %cst_126 = arith.constant dense<0.000000e+00> : vector<1x20xf32>
    %326 = tpu.matmul %325, %23, %cst_126 {dimension_numbers = #tpu.dot_dimension_numbers<[1], [0], [0], [1], [0, 0, 1, 1], [], []>} : vector<1x32xf32>, vector<32x20xf32>, vector<1x20xf32> -> vector<1x20xf32>
    %327 = arith.addf %326, %24 : vector<1x20xf32>
    %328 = vector.extract_strided_slice %327 {offsets = [0, 0], sizes = [1, 10], strides = [1, 1]} : vector<1x20xf32> to vector<1x10xf32>
    %329 = vector.extract_strided_slice %327 {offsets = [0, 10], sizes = [1, 10], strides = [1, 1]} : vector<1x20xf32> to vector<1x10xf32>
    %330 = math.exp %329 : vector<1x10xf32>
    %c0_127 = arith.constant 0 : index
    %c1 = arith.constant 1 : index
    %c0_128 = arith.constant 0 : index
    %331 = vector.load %arg2[%c0_127, %c1, %c0_128] : memref<1x2x10xf32, #tpu.memory_space<vmem>>, vector<1x1x10xf32>
    %332 = vector.shape_cast %331 : vector<1x1x10xf32> to vector<1x10xf32>
    %333 = arith.mulf %332, %330 : vector<1x10xf32>
    %334 = arith.addf %328, %333 : vector<1x10xf32>
    %cst_129 = arith.constant dense<0.000000e+00> : vector<1x128xf32>
    %335 = tpu.matmul %334, %20, %cst_129 {dimension_numbers = #tpu.dot_dimension_numbers<[1], [0], [0], [1], [0, 0, 1, 1], [], []>} : vector<1x10xf32>, vector<10x128xf32>, vector<1x128xf32> -> vector<1x128xf32>
    %cst_130 = arith.constant dense<0.000000e+00> : vector<1x128xf32>
    %336 = tpu.matmul %157, %21, %cst_130 {dimension_numbers = #tpu.dot_dimension_numbers<[1], [0], [0], [1], [0, 0, 1, 1], [], []>} : vector<1x32xf32>, vector<32x128xf32>, vector<1x128xf32> -> vector<1x128xf32>
    %337 = arith.addf %335, %336 : vector<1x128xf32>
    %338 = arith.addf %337, %22 : vector<1x128xf32>
    %339 = vector.extract_strided_slice %338 {offsets = [0, 0], sizes = [1, 32], strides = [1, 1]} : vector<1x128xf32> to vector<1x32xf32>
    %340 = arith.negf %339 : vector<1x32xf32>
    %341 = math.exp %340 : vector<1x32xf32>
    %cst_131 = arith.constant 1.000000e+00 : f32
    %342 = vector.broadcast %cst_131 : f32 to vector<1x32xf32>
    %343 = arith.addf %342, %341 : vector<1x32xf32>
    %344 = arith.divf %342, %343 : vector<1x32xf32>
    %345 = vector.extract_strided_slice %338 {offsets = [0, 32], sizes = [1, 32], strides = [1, 1]} : vector<1x128xf32> to vector<1x32xf32>
    %346 = arith.negf %345 : vector<1x32xf32>
    %347 = math.exp %346 : vector<1x32xf32>
    %cst_132 = arith.constant 1.000000e+00 : f32
    %348 = vector.broadcast %cst_132 : f32 to vector<1x32xf32>
    %349 = arith.addf %348, %347 : vector<1x32xf32>
    %350 = arith.divf %348, %349 : vector<1x32xf32>
    %351 = vector.extract_strided_slice %338 {offsets = [0, 64], sizes = [1, 32], strides = [1, 1]} : vector<1x128xf32> to vector<1x32xf32>
    %352 = math.tanh %351 : vector<1x32xf32>
    %353 = vector.extract_strided_slice %338 {offsets = [0, 96], sizes = [1, 32], strides = [1, 1]} : vector<1x128xf32> to vector<1x32xf32>
    %354 = arith.negf %353 : vector<1x32xf32>
    %355 = math.exp %354 : vector<1x32xf32>
    %cst_133 = arith.constant 1.000000e+00 : f32
    %356 = vector.broadcast %cst_133 : f32 to vector<1x32xf32>
    %357 = arith.addf %356, %355 : vector<1x32xf32>
    %358 = arith.divf %356, %357 : vector<1x32xf32>
    %359 = arith.mulf %350, %155 : vector<1x32xf32>
    %360 = arith.mulf %344, %352 : vector<1x32xf32>
    %361 = arith.addf %359, %360 : vector<1x32xf32>
    %362 = math.tanh %361 : vector<1x32xf32>
    %363 = arith.mulf %358, %362 : vector<1x32xf32>
    %cst_134 = arith.constant dense<0.000000e+00> : vector<1x133xf32>
    %364 = tpu.matmul %363, %25, %cst_134 {dimension_numbers = #tpu.dot_dimension_numbers<[1], [0], [0], [1], [0, 0, 1, 1], [], []>} : vector<1x32xf32>, vector<32x133xf32>, vector<1x133xf32> -> vector<1x133xf32>
    %365 = arith.addf %364, %26 : vector<1x133xf32>
    %366 = vector.extract_strided_slice %365 {offsets = [0, 0], sizes = [1, 125], strides = [1, 1]} : vector<1x133xf32> to vector<1x125xf32>
    %367 = vector.extract_strided_slice %365 {offsets = [0, 129], sizes = [1, 4], strides = [1, 1]} : vector<1x133xf32> to vector<1x4xf32>
    %368 = vector.extract_strided_slice %367 {offsets = [0, 0], sizes = [1, 1], strides = [1, 1]} : vector<1x4xf32> to vector<1x1xf32>
    %cst_135 = arith.constant 9.99999971E-10 : f32
    %369 = vector.broadcast %cst_135 : f32 to vector<1x1xf32>
    %370 = arith.addf %368, %369 : vector<1x1xf32>
    %cst_136 = arith.constant 1.000000e+00 : f32
    %371 = vector.broadcast %cst_136 : f32 to vector<1x1xf32>
    %372 = arith.divf %371, %370 : vector<1x1xf32>
    %373 = vector.extract_strided_slice %367 {offsets = [0, 1], sizes = [1, 1], strides = [1, 1]} : vector<1x4xf32> to vector<1x1xf32>
    %cst_137 = arith.constant 0.000000e+00 : f32
    %374 = vector.broadcast %cst_137 : f32 to vector<1x1xf32>
    %375 = arith.subf %374, %373 : vector<1x1xf32>
    %376 = arith.divf %375, %370 : vector<1x1xf32>
    %377 = vector.extract_strided_slice %367 {offsets = [0, 2], sizes = [1, 1], strides = [1, 1]} : vector<1x4xf32> to vector<1x1xf32>
    %cst_138 = arith.constant 0.000000e+00 : f32
    %378 = vector.broadcast %cst_138 : f32 to vector<1x1xf32>
    %379 = arith.subf %378, %377 : vector<1x1xf32>
    %380 = arith.divf %379, %370 : vector<1x1xf32>
    %381 = vector.extract_strided_slice %367 {offsets = [0, 3], sizes = [1, 1], strides = [1, 1]} : vector<1x4xf32> to vector<1x1xf32>
    %cst_139 = arith.constant 0.000000e+00 : f32
    %382 = vector.broadcast %cst_139 : f32 to vector<1x1xf32>
    %383 = arith.subf %382, %381 : vector<1x1xf32>
    %384 = arith.divf %383, %370 : vector<1x1xf32>
    %385 = vector.broadcast %372 : vector<1x1xf32> to vector<1x512xf32>
    %386 = arith.mulf %385, %8 : vector<1x512xf32>
    %cst_140 = arith.constant 2.500000e+00 : f32
    %387 = vector.broadcast %cst_140 : f32 to vector<1x1xf32>
    %388 = arith.mulf %387, %384 : vector<1x1xf32>
    %389 = vector.broadcast %388 : vector<1x1xf32> to vector<1x512xf32>
    %390 = arith.addf %386, %389 : vector<1x512xf32>
    %391 = vector.broadcast %390 : vector<1x512xf32> to vector<125x512xf32>
    %392 = vector.broadcast %9 : vector<125x1xf32> to vector<125x512xf32>
    %393 = arith.addf %391, %392 : vector<125x512xf32>
    %394 = math.absf %393 : vector<125x512xf32>
    %cst_141 = arith.constant 1.000000e+00 : f32
    %395 = vector.broadcast %cst_141 : f32 to vector<125x512xf32>
    %396 = arith.subf %395, %394 : vector<125x512xf32>
    %cst_142 = arith.constant 0.000000e+00 : f32
    %397 = vector.broadcast %cst_142 : f32 to vector<125x512xf32>
    %398 = arith.maximumf %397, %396 : vector<125x512xf32>
    %399 = vector.broadcast %372 : vector<1x1xf32> to vector<1x512xf32>
    %400 = arith.mulf %399, %10 : vector<1x512xf32>
    %cst_143 = arith.constant 2.500000e+00 : f32
    %401 = vector.broadcast %cst_143 : f32 to vector<1x1xf32>
    %402 = arith.mulf %401, %380 : vector<1x1xf32>
    %403 = vector.broadcast %402 : vector<1x1xf32> to vector<1x512xf32>
    %404 = arith.addf %400, %403 : vector<1x512xf32>
    %405 = vector.broadcast %404 : vector<1x512xf32> to vector<125x512xf32>
    %406 = vector.broadcast %11 : vector<125x1xf32> to vector<125x512xf32>
    %407 = arith.addf %405, %406 : vector<125x512xf32>
    %408 = math.absf %407 : vector<125x512xf32>
    %cst_144 = arith.constant 1.000000e+00 : f32
    %409 = vector.broadcast %cst_144 : f32 to vector<125x512xf32>
    %410 = arith.subf %409, %408 : vector<125x512xf32>
    %cst_145 = arith.constant 0.000000e+00 : f32
    %411 = vector.broadcast %cst_145 : f32 to vector<125x512xf32>
    %412 = arith.maximumf %411, %410 : vector<125x512xf32>
    %413 = arith.mulf %398, %412 : vector<125x512xf32>
    %414 = vector.broadcast %372 : vector<1x1xf32> to vector<1x512xf32>
    %415 = arith.mulf %414, %12 : vector<1x512xf32>
    %cst_146 = arith.constant 2.500000e+00 : f32
    %416 = vector.broadcast %cst_146 : f32 to vector<1x1xf32>
    %417 = arith.mulf %416, %376 : vector<1x1xf32>
    %418 = vector.broadcast %417 : vector<1x1xf32> to vector<1x512xf32>
    %419 = arith.addf %415, %418 : vector<1x512xf32>
    %420 = vector.broadcast %419 : vector<1x512xf32> to vector<125x512xf32>
    %421 = vector.broadcast %13 : vector<125x1xf32> to vector<125x512xf32>
    %422 = arith.addf %420, %421 : vector<125x512xf32>
    %423 = math.absf %422 : vector<125x512xf32>
    %cst_147 = arith.constant 1.000000e+00 : f32
    %424 = vector.broadcast %cst_147 : f32 to vector<125x512xf32>
    %425 = arith.subf %424, %423 : vector<125x512xf32>
    %cst_148 = arith.constant 0.000000e+00 : f32
    %426 = vector.broadcast %cst_148 : f32 to vector<125x512xf32>
    %427 = arith.maximumf %426, %425 : vector<125x512xf32>
    %428 = arith.mulf %413, %427 : vector<125x512xf32>
    %cst_149 = arith.constant dense<0.000000e+00> : vector<1x512xf32>
    %429 = tpu.matmul %366, %428, %cst_149 {dimension_numbers = #tpu.dot_dimension_numbers<[1], [0], [0], [1], [0, 0, 1, 1], [], []>} : vector<1x125xf32>, vector<125x512xf32>, vector<1x512xf32> -> vector<1x512xf32>
    %430 = arith.addf %225, %429 : vector<1x512xf32>
    %c0_150 = arith.constant 0 : index
    %c1_151 = arith.constant 1 : index
    %c0_152 = arith.constant 0 : index
    %431 = vector.load %arg24[%c0_150, %c1_151, %c0_152] : memref<1x2x512xf32, #tpu.memory_space<vmem>>, vector<1x1x512xf32>
    %432 = vector.shape_cast %431 : vector<1x1x512xf32> to vector<1x512xf32>
    %433 = vector.shape_cast %430 : vector<1x512xf32> to vector<1x1x512xf32>
    tpu.vector_store %arg24[%c0_150, %c1_151, %c0_152], %433 {strides = array<i32>} : memref<1x2x512xf32, #tpu.memory_space<vmem>>, vector<1x1x512xf32>,
    %c0_153 = arith.constant 0 : index
    %c1_154 = arith.constant 1 : index
    %c0_155 = arith.constant 0 : index
    %434 = vector.load %arg25[%c0_153, %c1_154, %c0_155] : memref<1x2x10xf32, #tpu.memory_space<vmem>>, vector<1x1x10xf32>
    %435 = vector.shape_cast %434 : vector<1x1x10xf32> to vector<1x10xf32>
    %436 = vector.shape_cast %328 : vector<1x10xf32> to vector<1x1x10xf32>
    tpu.vector_store %arg25[%c0_153, %c1_154, %c0_155], %436 {strides = array<i32>} : memref<1x2x10xf32, #tpu.memory_space<vmem>>, vector<1x1x10xf32>,
    %c0_156 = arith.constant 0 : index
    %c1_157 = arith.constant 1 : index
    %c0_158 = arith.constant 0 : index
    %437 = vector.load %arg26[%c0_156, %c1_157, %c0_158] : memref<1x2x10xf32, #tpu.memory_space<vmem>>, vector<1x1x10xf32>
    %438 = vector.shape_cast %437 : vector<1x1x10xf32> to vector<1x10xf32>
    %439 = vector.shape_cast %329 : vector<1x10xf32> to vector<1x1x10xf32>
    tpu.vector_store %arg26[%c0_156, %c1_157, %c0_158], %439 {strides = array<i32>} : memref<1x2x10xf32, #tpu.memory_space<vmem>>, vector<1x1x10xf32>,
    %c0_159 = arith.constant 0 : index
    %c1_160 = arith.constant 1 : index
    %c0_161 = arith.constant 0 : index
    %440 = vector.load %arg27[%c0_159, %c1_160, %c0_161] : memref<1x2x10xf32, #tpu.memory_space<vmem>>, vector<1x1x10xf32>
    %441 = vector.shape_cast %440 : vector<1x1x10xf32> to vector<1x10xf32>
    %442 = vector.shape_cast %330 : vector<1x10xf32> to vector<1x1x10xf32>
    tpu.vector_store %arg27[%c0_159, %c1_160, %c0_161], %442 {strides = array<i32>} : memref<1x2x10xf32, #tpu.memory_space<vmem>>, vector<1x1x10xf32>,
    return
  }
  func.func @transform_0(%arg0: i32) -> (i32, i32, i32) {
    %c0_i32 = arith.constant 0 : i32
    %c0_i32_0 = arith.constant 0 : i32
    %c0_i32_1 = arith.constant 0 : i32
    return %arg0, %c0_i32, %c0_i32_0 : i32, i32, i32
  }
  func.func @transform_1(%arg0: i32) -> (i32, i32, i32) {
    %c0_i32 = arith.constant 0 : i32
    %c0_i32_0 = arith.constant 0 : i32
    %c0_i32_1 = arith.constant 0 : i32
    return %arg0, %c0_i32, %c0_i32_0 : i32, i32, i32
  }
  func.func @transform_2(%arg0: i32) -> (i32, i32) {
    %c0_i32 = arith.constant 0 : i32
    %c0_i32_0 = arith.constant 0 : i32
    %c0_i32_1 = arith.constant 0 : i32
    return %c0_i32, %c0_i32_0 : i32, i32
  }
  func.func @transform_3(%arg0: i32) -> (i32, i32) {
    %c0_i32 = arith.constant 0 : i32
    %c0_i32_0 = arith.constant 0 : i32
    %c0_i32_1 = arith.constant 0 : i32
    return %c0_i32, %c0_i32_0 : i32, i32
  }
  func.func @transform_4(%arg0: i32) -> (i32, i32) {
    %c0_i32 = arith.constant 0 : i32
    %c0_i32_0 = arith.constant 0 : i32
    %c0_i32_1 = arith.constant 0 : i32
    return %c0_i32, %c0_i32_0 : i32, i32
  }
  func.func @transform_5(%arg0: i32) -> (i32, i32) {
    %c0_i32 = arith.constant 0 : i32
    %c0_i32_0 = arith.constant 0 : i32
    %c0_i32_1 = arith.constant 0 : i32
    return %c0_i32, %c0_i32_0 : i32, i32
  }
  func.func @transform_6(%arg0: i32) -> (i32, i32) {
    %c0_i32 = arith.constant 0 : i32
    %c0_i32_0 = arith.constant 0 : i32
    %c0_i32_1 = arith.constant 0 : i32
    return %c0_i32, %c0_i32_0 : i32, i32
  }
  func.func @transform_7(%arg0: i32) -> (i32, i32) {
    %c0_i32 = arith.constant 0 : i32
    %c0_i32_0 = arith.constant 0 : i32
    %c0_i32_1 = arith.constant 0 : i32
    return %c0_i32, %c0_i32_0 : i32, i32
  }
  func.func @transform_8(%arg0: i32) -> (i32, i32) {
    %c0_i32 = arith.constant 0 : i32
    %c0_i32_0 = arith.constant 0 : i32
    %c0_i32_1 = arith.constant 0 : i32
    return %c0_i32, %c0_i32_0 : i32, i32
  }
  func.func @transform_9(%arg0: i32) -> (i32, i32) {
    %c0_i32 = arith.constant 0 : i32
    %c0_i32_0 = arith.constant 0 : i32
    %c0_i32_1 = arith.constant 0 : i32
    return %c0_i32, %c0_i32_0 : i32, i32
  }
  func.func @transform_10(%arg0: i32) -> (i32, i32) {
    %c0_i32 = arith.constant 0 : i32
    %c0_i32_0 = arith.constant 0 : i32
    %c0_i32_1 = arith.constant 0 : i32
    return %c0_i32, %c0_i32_0 : i32, i32
  }
  func.func @transform_11(%arg0: i32) -> (i32, i32) {
    %c0_i32 = arith.constant 0 : i32
    %c0_i32_0 = arith.constant 0 : i32
    %c0_i32_1 = arith.constant 0 : i32
    return %c0_i32, %c0_i32_0 : i32, i32
  }
  func.func @transform_12(%arg0: i32) -> (i32, i32) {
    %c0_i32 = arith.constant 0 : i32
    %c0_i32_0 = arith.constant 0 : i32
    %c0_i32_1 = arith.constant 0 : i32
    return %c0_i32, %c0_i32_0 : i32, i32
  }
  func.func @transform_13(%arg0: i32) -> (i32, i32) {
    %c0_i32 = arith.constant 0 : i32
    %c0_i32_0 = arith.constant 0 : i32
    %c0_i32_1 = arith.constant 0 : i32
    return %c0_i32, %c0_i32_0 : i32, i32
  }
  func.func @transform_14(%arg0: i32) -> (i32, i32) {
    %c0_i32 = arith.constant 0 : i32
    %c0_i32_0 = arith.constant 0 : i32
    %c0_i32_1 = arith.constant 0 : i32
    return %c0_i32, %c0_i32_0 : i32, i32
  }
  func.func @transform_15(%arg0: i32) -> (i32, i32) {
    %c0_i32 = arith.constant 0 : i32
    %c0_i32_0 = arith.constant 0 : i32
    %c0_i32_1 = arith.constant 0 : i32
    return %c0_i32, %c0_i32_0 : i32, i32
  }
  func.func @transform_16(%arg0: i32) -> (i32, i32) {
    %c0_i32 = arith.constant 0 : i32
    %c0_i32_0 = arith.constant 0 : i32
    %c0_i32_1 = arith.constant 0 : i32
    return %c0_i32, %c0_i32_0 : i32, i32
  }
  func.func @transform_17(%arg0: i32) -> (i32, i32) {
    %c0_i32 = arith.constant 0 : i32
    %c0_i32_0 = arith.constant 0 : i32
    %c0_i32_1 = arith.constant 0 : i32
    return %c0_i32, %c0_i32_0 : i32, i32
  }
  func.func @transform_18(%arg0: i32) -> (i32, i32) {
    %c0_i32 = arith.constant 0 : i32
    %c0_i32_0 = arith.constant 0 : i32
    %c0_i32_1 = arith.constant 0 : i32
    return %c0_i32, %c0_i32_0 : i32, i32
  }
  func.func @transform_19(%arg0: i32) -> (i32, i32) {
    %c0_i32 = arith.constant 0 : i32
    %c0_i32_0 = arith.constant 0 : i32
    %c0_i32_1 = arith.constant 0 : i32
    return %c0_i32, %c0_i32_0 : i32, i32
  }
  func.func @transform_20(%arg0: i32) -> (i32, i32) {
    %c0_i32 = arith.constant 0 : i32
    %c0_i32_0 = arith.constant 0 : i32
    %c0_i32_1 = arith.constant 0 : i32
    return %c0_i32, %c0_i32_0 : i32, i32
  }
  func.func @transform_21(%arg0: i32) -> (i32, i32) {
    %c0_i32 = arith.constant 0 : i32
    %c0_i32_0 = arith.constant 0 : i32
    %c0_i32_1 = arith.constant 0 : i32
    return %c0_i32, %c0_i32_0 : i32, i32
  }
  func.func @transform_22(%arg0: i32) -> (i32, i32) {
    %c0_i32 = arith.constant 0 : i32
    %c0_i32_0 = arith.constant 0 : i32
    %c0_i32_1 = arith.constant 0 : i32
    return %c0_i32, %c0_i32_0 : i32, i32
  }
  func.func @transform_23(%arg0: i32) -> (i32, i32, i32) {
    %c0_i32 = arith.constant 0 : i32
    %c0_i32_0 = arith.constant 0 : i32
    %c0_i32_1 = arith.constant 0 : i32
    return %arg0, %c0_i32, %c0_i32_0 : i32, i32, i32
  }
  func.func @transform_24(%arg0: i32) -> (i32, i32, i32) {
    %c0_i32 = arith.constant 0 : i32
    %c0_i32_0 = arith.constant 0 : i32
    %c0_i32_1 = arith.constant 0 : i32
    return %arg0, %c0_i32, %c0_i32_0 : i32, i32, i32
  }
  func.func @transform_25(%arg0: i32) -> (i32, i32, i32) {
    %c0_i32 = arith.constant 0 : i32
    %c0_i32_0 = arith.constant 0 : i32
    %c0_i32_1 = arith.constant 0 : i32
    return %arg0, %c0_i32, %c0_i32_0 : i32, i32, i32
  }
  func.func @transform_26(%arg0: i32) -> (i32, i32, i32) {
    %c0_i32 = arith.constant 0 : i32
    %c0_i32_0 = arith.constant 0 : i32
    %c0_i32_1 = arith.constant 0 : i32
    return %arg0, %c0_i32, %c0_i32_0 : i32, i32, i32
  }
}

</mosaic_0001>

<llo_original>
// kernel: tpu_custom_call.1
$region0: #{tpu_custom_call.1}
  #allocation0 [shape = 'u32[]', space=smem, size = 0x4, offset = 0x4, fixed_abs, tag = 'smem constant byte address 0x4 - core index']
  #allocation1 [shape = 'u32[144,128]{1,0:T(1,128)}', space=vmem, size = 0x12000, scoped, tag = 'internal scratch']
  %s0 = inlined_call_operand.hbm [shape: f32[2,32,1024], index: 0, kind: input, shape index: {}]
  %s1 = inlined_call_operand.vmem [shape: f32[2,2,10], index: 1, kind: input, shape index: {}]
  %s2 = inlined_call_operand.vmem [shape: f32[4,1], index: 2, kind: input, shape index: {}]
  %s3 = inlined_call_operand.vmem [shape: f32[1,32], index: 3, kind: input, shape index: {}]
  %s4 = inlined_call_operand.vmem [shape: f32[16,1], index: 4, kind: input, shape index: {}]
  %s5 = inlined_call_operand.vmem [shape: f32[1,1024], index: 5, kind: input, shape index: {}]
  %s6 = inlined_call_operand.vmem [shape: f32[16,1], index: 6, kind: input, shape index: {}]
  %s7 = inlined_call_operand.vmem [shape: f32[1,1024], index: 7, kind: input, shape index: {}]
  %s8 = inlined_call_operand.vmem [shape: f32[1,512], index: 8, kind: input, shape index: {}]
  %s9 = inlined_call_operand.vmem [shape: f32[125,1], index: 9, kind: input, shape index: {}]
  %s10 = inlined_call_operand.vmem [shape: f32[1,512], index: 10, kind: input, shape index: {}]
  %s11 = inlined_call_operand.vmem [shape: f32[125,1], index: 11, kind: input, shape index: {}]
  %s12 = inlined_call_operand.vmem [shape: f32[1,512], index: 12, kind: input, shape index: {}]
  %s13 = inlined_call_operand.vmem [shape: f32[125,1], index: 13, kind: input, shape index: {}]
  %s14 = inlined_call_operand.vmem [shape: f32[160,128], index: 14, kind: input, shape index: {}]
  %s15 = inlined_call_operand.vmem [shape: f32[1,128], index: 15, kind: input, shape index: {}]
  %s16 = inlined_call_operand.vmem [shape: f32[10,128], index: 16, kind: input, shape index: {}]
  %s17 = inlined_call_operand.vmem [shape: f32[32,128], index: 17, kind: input, shape index: {}]
  %s18 = inlined_call_operand.vmem [shape: f32[1,128], index: 18, kind: input, shape index: {}]
  %s19 = inlined_call_operand.vmem [shape: f32[32,20], index: 19, kind: input, shape index: {}]
  %s20 = inlined_call_operand.vmem [shape: f32[1,20], index: 20, kind: input, shape index: {}]
  %s21 = inlined_call_operand.vmem [shape: f32[32,133], index: 21, kind: input, shape index: {}]
  %s22 = inlined_call_operand.vmem [shape: f32[1,133], index: 22, kind: input, shape index: {}]
  %s23 = inlined_call_operand.hbm [shape: f32[2,2,512], index: 23, kind: output, shape index: {0}]
  %s24 = inlined_call_operand.hbm [shape: f32[2,2,10], index: 24, kind: output, shape index: {1}]
  %s25 = inlined_call_operand.hbm [shape: f32[2,2,10], index: 25, kind: output, shape index: {2}]
  %s26 = inlined_call_operand.hbm [shape: f32[2,2,10], index: 26, kind: output, shape index: {3}]
  %27 = xla_tuple %s23, %s24, %s25, %s26
  %s28 = sld [smem:[#allocation0]]
  $region153: #{tpu_custom_call.1} parent=0
    _
  %s30 = ssub.s32 1, %s28
  %s31 = scalar_select 0, %s30, %s28
  $region1: #{tpu_custom_call.1} parent=0
    #allocation2 [shape = 'u8[262144]{0}', space=vmem, size = 0x40000, scoped, tag = 'input window, operand 0']
    #allocation3 [shape = 's32[2]{0}', space=sflag, size = 0x8, scoped, tag = 'scoped memory for tpu_custom_call.1']
    #allocation4 [shape = 's32[2]{0}', space=sflag, size = 0x8, scoped, tag = 'scoped memory for tpu_custom_call.1']
    #allocation5 [shape = 'u8[8192]{0}', space=vmem, size = 0x2000, scoped, tag = 'output window, operand 0']
    #allocation6 [shape = 'u8[2048]{0}', space=vmem, size = 0x800, scoped, tag = 'output window, operand 1']
    #allocation7 [shape = 's32[2]{0}', space=sflag, size = 0x8, scoped, tag = 'scoped memory for tpu_custom_call.1']
    #allocation8 [shape = 'u8[2048]{0}', space=vmem, size = 0x800, scoped, tag = 'output window, operand 2']
    #allocation9 [shape = 'u8[2048]{0}', space=vmem, size = 0x800, scoped, tag = 'output window, operand 3']
    #allocation10 [shape = 's32[2]{0}', space=sflag, size = 0x8, scoped, tag = 'scoped memory for tpu_custom_call.1']
    %32 = vsyncpa [#allocation3], 0
    %s33 = scalar_lea.sflag [#allocation3], 1
    %34 = vsyncpa %s33, 0
    %35 = vsyncpa [#allocation4], 0
    %s36 = scalar_lea.sflag [#allocation4], 1
    %37 = vsyncpa %s36, 0
    %38 = vsyncpa [#allocation7], 0
    %s39 = scalar_lea.sflag [#allocation7], 1
    %40 = vsyncpa %s39, 0
    %41 = vsyncpa [#allocation10], 0
    %s42 = scalar_lea.sflag [#allocation10], 1
    %43 = vsyncpa %s42, 0
    loop: start=0, step=1, limit=4
    $region2: #{tpu_custom_call.1} parent=1 // loop_pre_header
      _
    $region3: #{tpu_custom_call.1} parent=1 // loop_header
      %s45 = sphi 0, %s49
      %p46 = scmp.ge.s32.totalorder %s45, 4
      %s55 = sphi 0, %s57
      %s58 = sphi 0, %s55
      %s59 = sphi 0, %s58
      %s75 = sphi 0, %s59
      %s81 = sphi 0, %s83
      %s84 = sphi 0, %s81
      %s85 = sphi 0, %s84
      %s101 = sphi 0, %s85
      %s105 = sphi 0, %s105
      %s107 = sphi 0, %s105
      %s108 = sphi 0, %s107
      %s122 = sphi 0, %s108
      %s126 = sphi 0, %s126
      %s128 = sphi 0, %s126
      %s129 = sphi 0, %s128
      %s143 = sphi 0, %s129
      %s147 = sphi 0, %s147
      %s149 = sphi 0, %s147
      %s150 = sphi 0, %s149
      %s164 = sphi 0, %s150
      %s168 = sphi 0, %s168
      %s170 = sphi 0, %s168
      %s171 = sphi 0, %s170
      %s185 = sphi 0, %s171
      %s189 = sphi 0, %s189
      %s191 = sphi 0, %s189
      %s192 = sphi 0, %s191
      %s206 = sphi 0, %s192
      %s210 = sphi 0, %s210
      %s212 = sphi 0, %s210
      %s213 = sphi 0, %s212
      %s227 = sphi 0, %s213
      %s231 = sphi 0, %s231
      %s233 = sphi 0, %s231
      %s234 = sphi 0, %s233
      %s248 = sphi 0, %s234
      %s252 = sphi 0, %s252
      %s254 = sphi 0, %s252
      %s255 = sphi 0, %s254
      %s269 = sphi 0, %s255
      %s273 = sphi 0, %s273
      %s275 = sphi 0, %s273
      %s276 = sphi 0, %s275
      %s290 = sphi 0, %s276
      %s294 = sphi 0, %s294
      %s296 = sphi 0, %s294
      %s297 = sphi 0, %s296
      %s311 = sphi 0, %s297
      %s315 = sphi 0, %s315
      %s317 = sphi 0, %s315
      %s318 = sphi 0, %s317
      %s332 = sphi 0, %s318
      %s336 = sphi 0, %s336
      %s338 = sphi 0, %s336
      %s339 = sphi 0, %s338
      %s353 = sphi 0, %s339
      %s357 = sphi 0, %s357
      %s359 = sphi 0, %s357
      %s360 = sphi 0, %s359
      %s374 = sphi 0, %s360
      %s378 = sphi 0, %s378
      %s380 = sphi 0, %s378
      %s381 = sphi 0, %s380
      %s395 = sphi 0, %s381
      %s399 = sphi 0, %s399
      %s401 = sphi 0, %s399
      %s402 = sphi 0, %s401
      %s416 = sphi 0, %s402
      %s420 = sphi 0, %s420
      %s422 = sphi 0, %s420
      %s423 = sphi 0, %s422
      %s437 = sphi 0, %s423
      %s441 = sphi 0, %s441
      %s443 = sphi 0, %s441
      %s444 = sphi 0, %s443
      %s458 = sphi 0, %s444
      %s462 = sphi 0, %s462
      %s464 = sphi 0, %s462
      %s465 = sphi 0, %s464
      %s479 = sphi 0, %s465
      %s483 = sphi 0, %s483
      %s485 = sphi 0, %s483
      %s486 = sphi 0, %s485
      %s500 = sphi 0, %s486
      %s504 = sphi 0, %s504
      %s506 = sphi 0, %s504
      %s507 = sphi 0, %s506
      %s521 = sphi 0, %s507
      %s525 = sphi 0, %s525
      %s527 = sphi 0, %s525
      %s528 = sphi 0, %s527
      %s542 = sphi 0, %s528
      %s548 = sphi 0, %s550
      %s551 = sphi 0, %s548
      %s552 = sphi 0, %s551
      %s568 = sphi 0, %s552
      %s574 = sphi 0, %s576
      %s577 = sphi 0, %s574
      %s578 = sphi 0, %s577
      %s594 = sphi 0, %s578
      %s600 = sphi 0, %s602
      %s603 = sphi 0, %s600
      %s604 = sphi 0, %s603
      %s620 = sphi 0, %s604
      %s626 = sphi 0, %s628
      %s629 = sphi 0, %s626
      %s630 = sphi 0, %s629
      %s646 = sphi 0, %s630
    $region4: #{tpu_custom_call.1} parent=1 // loop_header_branch
      %48 = sbr.rel (%p46) target = $region8
    $region5: #{tpu_custom_call.1} parent=1 // loop_body
      %s50 = ssub.s32 %s45, 1
      %s51 = ssub.s32 %s45, 2
      %s52 = sadd.s32 %s45, 1
      %s53 = ssub.s32 %s45, %s52
      %p54 = scmp.eq.s32.totalorder %s53, 0
      %s56 = sadd.s32 %s55, 1
      %s57 = scalar_select %p54, %s55, %s56
      %p60 = pneg %p54
      %p61 = scmp.eq.s32.totalorder %s45, 1
      %p62 = por %p60, %p61
      %p63 = scmp.ne.s32.totalorder %s55, %s58
      %p64 = scmp.eq.s32.totalorder %s45, 0
      %p65 = por %p63, %p64
      %p66 = scmp.ne.s32.totalorder %s55, %s58
      %p67 = scmp.eq.s32.totalorder %s50, 1
      %p68 = por %p66, %p67
      %p69 = scmp.ne.s32.totalorder %s58, %s59
      %p70 = scmp.eq.s32.totalorder %s50, 0
      %p71 = por %p69, %p70
      %p72 = scmp.ne.s32.totalorder %s58, %s59
      %p73 = scmp.eq.s32.totalorder %s51, 1
      %p74 = por %p72, %p73
      %p76 = scmp.ne.s32.totalorder %s59, %s75
      %p77 = scmp.eq.s32.totalorder %s51, 0
      %p78 = por %p76, %p77
      %s79 = ssub.s32 %s45, %s52
      %p80 = scmp.eq.s32.totalorder %s79, 0
      %s82 = sadd.s32 %s81, 1
      %s83 = scalar_select %p80, %s81, %s82
      %p86 = pneg %p80
      %p87 = scmp.eq.s32.totalorder %s45, 1
      %p88 = por %p86, %p87
      %p89 = scmp.ne.s32.totalorder %s81, %s84
      %p90 = scmp.eq.s32.totalorder %s45, 0
      %p91 = por %p89, %p90
      %p92 = scmp.ne.s32.totalorder %s81, %s84
      %p93 = scmp.eq.s32.totalorder %s50, 1
      %p94 = por %p92, %p93
      %p95 = scmp.ne.s32.totalorder %s84, %s85
      %p96 = scmp.eq.s32.totalorder %s50, 0
      %p97 = por %p95, %p96
      %p98 = scmp.ne.s32.totalorder %s84, %s85
      %p99 = scmp.eq.s32.totalorder %s51, 1
      %p100 = por %p98, %p99
      %p102 = scmp.ne.s32.totalorder %s85, %s101
      %p103 = scmp.eq.s32.totalorder %s51, 0
      %p104 = por %p102, %p103
      %s106 = sadd.s32 %s105, 1
      %p109 = scmp.eq.s32.totalorder %s45, 1
      %p110 = scmp.ne.s32.totalorder %s105, %s107
      %p111 = scmp.eq.s32.totalorder %s45, 0
      %p112 = por %p110, %p111
      %p113 = scmp.ne.s32.totalorder %s105, %s107
      %p114 = scmp.eq.s32.totalorder %s50, 1
      %p115 = por %p113, %p114
      %p116 = scmp.ne.s32.totalorder %s107, %s108
      %p117 = scmp.eq.s32.totalorder %s50, 0
      %p118 = por %p116, %p117
      %p119 = scmp.ne.s32.totalorder %s107, %s108
      %p120 = scmp.eq.s32.totalorder %s51, 1
      %p121 = por %p119, %p120
      %p123 = scmp.ne.s32.totalorder %s108, %s122
      %p124 = scmp.eq.s32.totalorder %s51, 0
      %p125 = por %p123, %p124
      %s127 = sadd.s32 %s126, 1
      %p130 = scmp.eq.s32.totalorder %s45, 1
      %p131 = scmp.ne.s32.totalorder %s126, %s128
      %p132 = scmp.eq.s32.totalorder %s45, 0
      %p133 = por %p131, %p132
      %p134 = scmp.ne.s32.totalorder %s126, %s128
      %p135 = scmp.eq.s32.totalorder %s50, 1
      %p136 = por %p134, %p135
      %p137 = scmp.ne.s32.totalorder %s128, %s129
      %p138 = scmp.eq.s32.totalorder %s50, 0
      %p139 = por %p137, %p138
      %p140 = scmp.ne.s32.totalorder %s128, %s129
      %p141 = scmp.eq.s32.totalorder %s51, 1
      %p142 = por %p140, %p141
      %p144 = scmp.ne.s32.totalorder %s129, %s143
      %p145 = scmp.eq.s32.totalorder %s51, 0
      %p146 = por %p144, %p145
      %s148 = sadd.s32 %s147, 1
      %p151 = scmp.eq.s32.totalorder %s45, 1
      %p152 = scmp.ne.s32.totalorder %s147, %s149
      %p153 = scmp.eq.s32.totalorder %s45, 0
      %p154 = por %p152, %p153
      %p155 = scmp.ne.s32.totalorder %s147, %s149
      %p156 = scmp.eq.s32.totalorder %s50, 1
      %p157 = por %p155, %p156
      %p158 = scmp.ne.s32.totalorder %s149, %s150
      %p159 = scmp.eq.s32.totalorder %s50, 0
      %p160 = por %p158, %p159
      %p161 = scmp.ne.s32.totalorder %s149, %s150
      %p162 = scmp.eq.s32.totalorder %s51, 1
      %p163 = por %p161, %p162
      %p165 = scmp.ne.s32.totalorder %s150, %s164
      %p166 = scmp.eq.s32.totalorder %s51, 0
      %p167 = por %p165, %p166
      %s169 = sadd.s32 %s168, 1
      %p172 = scmp.eq.s32.totalorder %s45, 1
      %p173 = scmp.ne.s32.totalorder %s168, %s170
      %p174 = scmp.eq.s32.totalorder %s45, 0
      %p175 = por %p173, %p174
      %p176 = scmp.ne.s32.totalorder %s168, %s170
      %p177 = scmp.eq.s32.totalorder %s50, 1
      %p178 = por %p176, %p177
      %p179 = scmp.ne.s32.totalorder %s170, %s171
      %p180 = scmp.eq.s32.totalorder %s50, 0
      %p181 = por %p179, %p180
      %p182 = scmp.ne.s32.totalorder %s170, %s171
      %p183 = scmp.eq.s32.totalorder %s51, 1
      %p184 = por %p182, %p183
      %p186 = scmp.ne.s32.totalorder %s171, %s185
      %p187 = scmp.eq.s32.totalorder %s51, 0
      %p188 = por %p186, %p187
      %s190 = sadd.s32 %s189, 1
      %p193 = scmp.eq.s32.totalorder %s45, 1
      %p194 = scmp.ne.s32.totalorder %s189, %s191
      %p195 = scmp.eq.s32.totalorder %s45, 0
      %p196 = por %p194, %p195
      %p197 = scmp.ne.s32.totalorder %s189, %s191
      %p198 = scmp.eq.s32.totalorder %s50, 1
      %p199 = por %p197, %p198
      %p200 = scmp.ne.s32.totalorder %s191, %s192
      %p201 = scmp.eq.s32.totalorder %s50, 0
      %p202 = por %p200, %p201
      %p203 = scmp.ne.s32.totalorder %s191, %s192
      %p204 = scmp.eq.s32.totalorder %s51, 1
      %p205 = por %p203, %p204
      %p207 = scmp.ne.s32.totalorder %s192, %s206
      %p208 = scmp.eq.s32.totalorder %s51, 0
      %p209 = por %p207, %p208
      %s211 = sadd.s32 %s210, 1
      %p214 = scmp.eq.s32.totalorder %s45, 1
      %p215 = scmp.ne.s32.totalorder %s210, %s212
      %p216 = scmp.eq.s32.totalorder %s45, 0
      %p217 = por %p215, %p216
      %p218 = scmp.ne.s32.totalorder %s210, %s212
      %p219 = scmp.eq.s32.totalorder %s50, 1
      %p220 = por %p218, %p219
      %p221 = scmp.ne.s32.totalorder %s212, %s213
      %p222 = scmp.eq.s32.totalorder %s50, 0
      %p223 = por %p221, %p222
      %p224 = scmp.ne.s32.totalorder %s212, %s213
      %p225 = scmp.eq.s32.totalorder %s51, 1
      %p226 = por %p224, %p225
      %p228 = scmp.ne.s32.totalorder %s213, %s227
      %p229 = scmp.eq.s32.totalorder %s51, 0
      %p230 = por %p228, %p229
      %s232 = sadd.s32 %s231, 1
      %p235 = scmp.eq.s32.totalorder %s45, 1
      %p236 = scmp.ne.s32.totalorder %s231, %s233
      %p237 = scmp.eq.s32.totalorder %s45, 0
      %p238 = por %p236, %p237
      %p239 = scmp.ne.s32.totalorder %s231, %s233
      %p240 = scmp.eq.s32.totalorder %s50, 1
      %p241 = por %p239, %p240
      %p242 = scmp.ne.s32.totalorder %s233, %s234
      %p243 = scmp.eq.s32.totalorder %s50, 0
      %p244 = por %p242, %p243
      %p245 = scmp.ne.s32.totalorder %s233, %s234
      %p246 = scmp.eq.s32.totalorder %s51, 1
      %p247 = por %p245, %p246
      %p249 = scmp.ne.s32.totalorder %s234, %s248
      %p250 = scmp.eq.s32.totalorder %s51, 0
      %p251 = por %p249, %p250
      %s253 = sadd.s32 %s252, 1
      %p256 = scmp.eq.s32.totalorder %s45, 1
      %p257 = scmp.ne.s32.totalorder %s252, %s254
      %p258 = scmp.eq.s32.totalorder %s45, 0
      %p259 = por %p257, %p258
      %p260 = scmp.ne.s32.totalorder %s252, %s254
      %p261 = scmp.eq.s32.totalorder %s50, 1
      %p262 = por %p260, %p261
      %p263 = scmp.ne.s32.totalorder %s254, %s255
      %p264 = scmp.eq.s32.totalorder %s50, 0
      %p265 = por %p263, %p264
      %p266 = scmp.ne.s32.totalorder %s254, %s255
      %p267 = scmp.eq.s32.totalorder %s51, 1
      %p268 = por %p266, %p267
      %p270 = scmp.ne.s32.totalorder %s255, %s269
      %p271 = scmp.eq.s32.totalorder %s51, 0
      %p272 = por %p270, %p271
      %s274 = sadd.s32 %s273, 1
      %p277 = scmp.eq.s32.totalorder %s45, 1
      %p278 = scmp.ne.s32.totalorder %s273, %s275
      %p279 = scmp.eq.s32.totalorder %s45, 0
      %p280 = por %p278, %p279
      %p281 = scmp.ne.s32.totalorder %s273, %s275
      %p282 = scmp.eq.s32.totalorder %s50, 1
      %p283 = por %p281, %p282
      %p284 = scmp.ne.s32.totalorder %s275, %s276
      %p285 = scmp.eq.s32.totalorder %s50, 0
      %p286 = por %p284, %p285
      %p287 = scmp.ne.s32.totalorder %s275, %s276
      %p288 = scmp.eq.s32.totalorder %s51, 1
      %p289 = por %p287, %p288
      %p291 = scmp.ne.s32.totalorder %s276, %s290
      %p292 = scmp.eq.s32.totalorder %s51, 0
      %p293 = por %p291, %p292
      %s295 = sadd.s32 %s294, 1
      %p298 = scmp.eq.s32.totalorder %s45, 1
      %p299 = scmp.ne.s32.totalorder %s294, %s296
      %p300 = scmp.eq.s32.totalorder %s45, 0
      %p301 = por %p299, %p300
      %p302 = scmp.ne.s32.totalorder %s294, %s296
      %p303 = scmp.eq.s32.totalorder %s50, 1
      %p304 = por %p302, %p303
      %p305 = scmp.ne.s32.totalorder %s296, %s297
      %p306 = scmp.eq.s32.totalorder %s50, 0
      %p307 = por %p305, %p306
      %p308 = scmp.ne.s32.totalorder %s296, %s297
      %p309 = scmp.eq.s32.totalorder %s51, 1
      %p310 = por %p308, %p309
      %p312 = scmp.ne.s32.totalorder %s297, %s311
      %p313 = scmp.eq.s32.totalorder %s51, 0
      %p314 = por %p312, %p313
      %s316 = sadd.s32 %s315, 1
      %p319 = scmp.eq.s32.totalorder %s45, 1
      %p320 = scmp.ne.s32.totalorder %s315, %s317
      %p321 = scmp.eq.s32.totalorder %s45, 0
      %p322 = por %p320, %p321
      %p323 = scmp.ne.s32.totalorder %s315, %s317
      %p324 = scmp.eq.s32.totalorder %s50, 1
      %p325 = por %p323, %p324
      %p326 = scmp.ne.s32.totalorder %s317, %s318
      %p327 = scmp.eq.s32.totalorder %s50, 0
      %p328 = por %p326, %p327
      %p329 = scmp.ne.s32.totalorder %s317, %s318
      %p330 = scmp.eq.s32.totalorder %s51, 1
      %p331 = por %p329, %p330
      %p333 = scmp.ne.s32.totalorder %s318, %s332
      %p334 = scmp.eq.s32.totalorder %s51, 0
      %p335 = por %p333, %p334
      %s337 = sadd.s32 %s336, 1
      %p340 = scmp.eq.s32.totalorder %s45, 1
      %p341 = scmp.ne.s32.totalorder %s336, %s338
      %p342 = scmp.eq.s32.totalorder %s45, 0
      %p343 = por %p341, %p342
      %p344 = scmp.ne.s32.totalorder %s336, %s338
      %p345 = scmp.eq.s32.totalorder %s50, 1
      %p346 = por %p344, %p345
      %p347 = scmp.ne.s32.totalorder %s338, %s339
      %p348 = scmp.eq.s32.totalorder %s50, 0
      %p349 = por %p347, %p348
      %p350 = scmp.ne.s32.totalorder %s338, %s339
      %p351 = scmp.eq.s32.totalorder %s51, 1
      %p352 = por %p350, %p351
      %p354 = scmp.ne.s32.totalorder %s339, %s353
      %p355 = scmp.eq.s32.totalorder %s51, 0
      %p356 = por %p354, %p355
      %s358 = sadd.s32 %s357, 1
      %p361 = scmp.eq.s32.totalorder %s45, 1
      %p362 = scmp.ne.s32.totalorder %s357, %s359
      %p363 = scmp.eq.s32.totalorder %s45, 0
      %p364 = por %p362, %p363
      %p365 = scmp.ne.s32.totalorder %s357, %s359
      %p366 = scmp.eq.s32.totalorder %s50, 1
      %p367 = por %p365, %p366
      %p368 = scmp.ne.s32.totalorder %s359, %s360
      %p369 = scmp.eq.s32.totalorder %s50, 0
      %p370 = por %p368, %p369
      %p371 = scmp.ne.s32.totalorder %s359, %s360
      %p372 = scmp.eq.s32.totalorder %s51, 1
      %p373 = por %p371, %p372
      %p375 = scmp.ne.s32.totalorder %s360, %s374
      %p376 = scmp.eq.s32.totalorder %s51, 0
      %p377 = por %p375, %p376
      %s379 = sadd.s32 %s378, 1
      %p382 = scmp.eq.s32.totalorder %s45, 1
      %p383 = scmp.ne.s32.totalorder %s378, %s380
      %p384 = scmp.eq.s32.totalorder %s45, 0
      %p385 = por %p383, %p384
      %p386 = scmp.ne.s32.totalorder %s378, %s380
      %p387 = scmp.eq.s32.totalorder %s50, 1
      %p388 = por %p386, %p387
      %p389 = scmp.ne.s32.totalorder %s380, %s381
      %p390 = scmp.eq.s32.totalorder %s50, 0
      %p391 = por %p389, %p390
      %p392 = scmp.ne.s32.totalorder %s380, %s381
      %p393 = scmp.eq.s32.totalorder %s51, 1
      %p394 = por %p392, %p393
      %p396 = scmp.ne.s32.totalorder %s381, %s395
      %p397 = scmp.eq.s32.totalorder %s51, 0
      %p398 = por %p396, %p397
      %s400 = sadd.s32 %s399, 1
      %p403 = scmp.eq.s32.totalorder %s45, 1
      %p404 = scmp.ne.s32.totalorder %s399, %s401
      %p405 = scmp.eq.s32.totalorder %s45, 0
      %p406 = por %p404, %p405
      %p407 = scmp.ne.s32.totalorder %s399, %s401
      %p408 = scmp.eq.s32.totalorder %s50, 1
      %p409 = por %p407, %p408
      %p410 = scmp.ne.s32.totalorder %s401, %s402
      %p411 = scmp.eq.s32.totalorder %s50, 0
      %p412 = por %p410, %p411
      %p413 = scmp.ne.s32.totalorder %s401, %s402
      %p414 = scmp.eq.s32.totalorder %s51, 1
      %p415 = por %p413, %p414
      %p417 = scmp.ne.s32.totalorder %s402, %s416
      %p418 = scmp.eq.s32.totalorder %s51, 0
      %p419 = por %p417, %p418
      %s421 = sadd.s32 %s420, 1
      %p424 = scmp.eq.s32.totalorder %s45, 1
      %p425 = scmp.ne.s32.totalorder %s420, %s422
      %p426 = scmp.eq.s32.totalorder %s45, 0
      %p427 = por %p425, %p426
      %p428 = scmp.ne.s32.totalorder %s420, %s422
      %p429 = scmp.eq.s32.totalorder %s50, 1
      %p430 = por %p428, %p429
      %p431 = scmp.ne.s32.totalorder %s422, %s423
      %p432 = scmp.eq.s32.totalorder %s50, 0
      %p433 = por %p431, %p432
      %p434 = scmp.ne.s32.totalorder %s422, %s423
      %p435 = scmp.eq.s32.totalorder %s51, 1
      %p436 = por %p434, %p435
      %p438 = scmp.ne.s32.totalorder %s423, %s437
      %p439 = scmp.eq.s32.totalorder %s51, 0
      %p440 = por %p438, %p439
      %s442 = sadd.s32 %s441, 1
      %p445 = scmp.eq.s32.totalorder %s45, 1
      %p446 = scmp.ne.s32.totalorder %s441, %s443
      %p447 = scmp.eq.s32.totalorder %s45, 0
      %p448 = por %p446, %p447
      %p449 = scmp.ne.s32.totalorder %s441, %s443
      %p450 = scmp.eq.s32.totalorder %s50, 1
      %p451 = por %p449, %p450
      %p452 = scmp.ne.s32.totalorder %s443, %s444
      %p453 = scmp.eq.s32.totalorder %s50, 0
      %p454 = por %p452, %p453
      %p455 = scmp.ne.s32.totalorder %s443, %s444
      %p456 = scmp.eq.s32.totalorder %s51, 1
      %p457 = por %p455, %p456
      %p459 = scmp.ne.s32.totalorder %s444, %s458
      %p460 = scmp.eq.s32.totalorder %s51, 0
      %p461 = por %p459, %p460
      %s463 = sadd.s32 %s462, 1
      %p466 = scmp.eq.s32.totalorder %s45, 1
      %p467 = scmp.ne.s32.totalorder %s462, %s464
      %p468 = scmp.eq.s32.totalorder %s45, 0
      %p469 = por %p467, %p468
      %p470 = scmp.ne.s32.totalorder %s462, %s464
      %p471 = scmp.eq.s32.totalorder %s50, 1
      %p472 = por %p470, %p471
      %p473 = scmp.ne.s32.totalorder %s464, %s465
      %p474 = scmp.eq.s32.totalorder %s50, 0
      %p475 = por %p473, %p474
      %p476 = scmp.ne.s32.totalorder %s464, %s465
      %p477 = scmp.eq.s32.totalorder %s51, 1
      %p478 = por %p476, %p477
      %p480 = scmp.ne.s32.totalorder %s465, %s479
      %p481 = scmp.eq.s32.totalorder %s51, 0
      %p482 = por %p480, %p481
      %s484 = sadd.s32 %s483, 1
      %p487 = scmp.eq.s32.totalorder %s45, 1
      %p488 = scmp.ne.s32.totalorder %s483, %s485
      %p489 = scmp.eq.s32.totalorder %s45, 0
      %p490 = por %p488, %p489
      %p491 = scmp.ne.s32.totalorder %s483, %s485
      %p492 = scmp.eq.s32.totalorder %s50, 1
      %p493 = por %p491, %p492
      %p494 = scmp.ne.s32.totalorder %s485, %s486
      %p495 = scmp.eq.s32.totalorder %s50, 0
      %p496 = por %p494, %p495
      %p497 = scmp.ne.s32.totalorder %s485, %s486
      %p498 = scmp.eq.s32.totalorder %s51, 1
      %p499 = por %p497, %p498
      %p501 = scmp.ne.s32.totalorder %s486, %s500
      %p502 = scmp.eq.s32.totalorder %s51, 0
      %p503 = por %p501, %p502
      %s505 = sadd.s32 %s504, 1
      %p508 = scmp.eq.s32.totalorder %s45, 1
      %p509 = scmp.ne.s32.totalorder %s504, %s506
      %p510 = scmp.eq.s32.totalorder %s45, 0
      %p511 = por %p509, %p510
      %p512 = scmp.ne.s32.totalorder %s504, %s506
      %p513 = scmp.eq.s32.totalorder %s50, 1
      %p514 = por %p512, %p513
      %p515 = scmp.ne.s32.totalorder %s506, %s507
      %p516 = scmp.eq.s32.totalorder %s50, 0
      %p517 = por %p515, %p516
      %p518 = scmp.ne.s32.totalorder %s506, %s507
      %p519 = scmp.eq.s32.totalorder %s51, 1
      %p520 = por %p518, %p519
      %p522 = scmp.ne.s32.totalorder %s507, %s521
      %p523 = scmp.eq.s32.totalorder %s51, 0
      %p524 = por %p522, %p523
      %s526 = sadd.s32 %s525, 1
      %p529 = scmp.eq.s32.totalorder %s45, 1
      %p530 = scmp.ne.s32.totalorder %s525, %s527
      %p531 = scmp.eq.s32.totalorder %s45, 0
      %p532 = por %p530, %p531
      %p533 = scmp.ne.s32.totalorder %s525, %s527
      %p534 = scmp.eq.s32.totalorder %s50, 1
      %p535 = por %p533, %p534
      %p536 = scmp.ne.s32.totalorder %s527, %s528
      %p537 = scmp.eq.s32.totalorder %s50, 0
      %p538 = por %p536, %p537
      %p539 = scmp.ne.s32.totalorder %s527, %s528
      %p540 = scmp.eq.s32.totalorder %s51, 1
      %p541 = por %p539, %p540
      %p543 = scmp.ne.s32.totalorder %s528, %s542
      %p544 = scmp.eq.s32.totalorder %s51, 0
      %p545 = por %p543, %p544
      %s546 = ssub.s32 %s45, %s52
      %p547 = scmp.eq.s32.totalorder %s546, 0
      %s549 = sadd.s32 %s548, 1
      %s550 = scalar_select %p547, %s548, %s549
      %p553 = pneg %p547
      %p554 = scmp.eq.s32.totalorder %s45, 1
      %p555 = por %p553, %p554
      %p556 = scmp.ne.s32.totalorder %s548, %s551
      %p557 = scmp.eq.s32.totalorder %s45, 0
      %p558 = por %p556, %p557
      %p559 = scmp.ne.s32.totalorder %s548, %s551
      %p560 = scmp.eq.s32.totalorder %s50, 1
      %p561 = por %p559, %p560
      %p562 = scmp.ne.s32.totalorder %s551, %s552
      %p563 = scmp.eq.s32.totalorder %s50, 0
      %p564 = por %p562, %p563
      %p565 = scmp.ne.s32.totalorder %s551, %s552
      %p566 = scmp.eq.s32.totalorder %s51, 1
      %p567 = por %p565, %p566
      %p569 = scmp.ne.s32.totalorder %s552, %s568
      %p570 = scmp.eq.s32.totalorder %s51, 0
      %p571 = por %p569, %p570
      %s572 = ssub.s32 %s45, %s52
      %p573 = scmp.eq.s32.totalorder %s572, 0
      %s575 = sadd.s32 %s574, 1
      %s576 = scalar_select %p573, %s574, %s575
      %p579 = pneg %p573
      %p580 = scmp.eq.s32.totalorder %s45, 1
      %p581 = por %p579, %p580
      %p582 = scmp.ne.s32.totalorder %s574, %s577
      %p583 = scmp.eq.s32.totalorder %s45, 0
      %p584 = por %p582, %p583
      %p585 = scmp.ne.s32.totalorder %s574, %s577
      %p586 = scmp.eq.s32.totalorder %s50, 1
      %p587 = por %p585, %p586
      %p588 = scmp.ne.s32.totalorder %s577, %s578
      %p589 = scmp.eq.s32.totalorder %s50, 0
      %p590 = por %p588, %p589
      %p591 = scmp.ne.s32.totalorder %s577, %s578
      %p592 = scmp.eq.s32.totalorder %s51, 1
      %p593 = por %p591, %p592
      %p595 = scmp.ne.s32.totalorder %s578, %s594
      %p596 = scmp.eq.s32.totalorder %s51, 0
      %p597 = por %p595, %p596
      %s598 = ssub.s32 %s45, %s52
      %p599 = scmp.eq.s32.totalorder %s598, 0
      %s601 = sadd.s32 %s600, 1
      %s602 = scalar_select %p599, %s600, %s601
      %p605 = pneg %p599
      %p606 = scmp.eq.s32.totalorder %s45, 1
      %p607 = por %p605, %p606
      %p608 = scmp.ne.s32.totalorder %s600, %s603
      %p609 = scmp.eq.s32.totalorder %s45, 0
      %p610 = por %p608, %p609
      %p611 = scmp.ne.s32.totalorder %s600, %s603
      %p612 = scmp.eq.s32.totalorder %s50, 1
      %p613 = por %p611, %p612
      %p614 = scmp.ne.s32.totalorder %s603, %s604
      %p615 = scmp.eq.s32.totalorder %s50, 0
      %p616 = por %p614, %p615
      %p617 = scmp.ne.s32.totalorder %s603, %s604
      %p618 = scmp.eq.s32.totalorder %s51, 1
      %p619 = por %p617, %p618
      %p621 = scmp.ne.s32.totalorder %s604, %s620
      %p622 = scmp.eq.s32.totalorder %s51, 0
      %p623 = por %p621, %p622
      %s624 = ssub.s32 %s45, %s52
      %p625 = scmp.eq.s32.totalorder %s624, 0
      %s627 = sadd.s32 %s626, 1
      %s628 = scalar_select %p625, %s626, %s627
      %p631 = pneg %p625
      %p632 = scmp.eq.s32.totalorder %s45, 1
      %p633 = por %p631, %p632
      %p634 = scmp.ne.s32.totalorder %s626, %s629
      %p635 = scmp.eq.s32.totalorder %s45, 0
      %p636 = por %p634, %p635
      %p637 = scmp.ne.s32.totalorder %s626, %s629
      %p638 = scmp.eq.s32.totalorder %s50, 1
      %p639 = por %p637, %p638
      %p640 = scmp.ne.s32.totalorder %s629, %s630
      %p641 = scmp.eq.s32.totalorder %s50, 0
      %p642 = por %p640, %p641
      %p643 = scmp.ne.s32.totalorder %s629, %s630
      %p644 = scmp.eq.s32.totalorder %s51, 1
      %p645 = por %p643, %p644
      %p647 = scmp.ne.s32.totalorder %s630, %s646
      %p648 = scmp.eq.s32.totalorder %s51, 0
      %p649 = por %p647, %p648
      %p650 = scmp.le.s32.totalorder 1, %s45
      %p651 = scmp.lt.s32.totalorder %s45, 3
      %p652 = pnand %p650, %p651
      %p653 = pneg %p652
      // Predicated region
      $region9: #{tpu_custom_call.1} parent=5 // pred_check
        _
      $region10: #{tpu_custom_call.1} parent=5 // pred_check_branch
        %655 = sbr.rel (%p652) target = $region12
      $region11: #{tpu_custom_call.1} parent=5 // pred_region
        %s656 = ssub.s32 %s45, 1
        // Predicated region
        $region13: #{tpu_custom_call.1} parent=11 // pred_check
          %p657 = pneg %p118
        $region14: #{tpu_custom_call.1} parent=11 // pred_check_branch
          %659 = sbr.rel (%p657) target = $region16
        $region15: #{tpu_custom_call.1} parent=11 // pred_region
          _
        $region16: #{tpu_custom_call.1} parent=11 // pred_fallthru
          _
        // Predicated region
        $region17: #{tpu_custom_call.1} parent=11 // pred_check
          %p660 = pneg %p139
        $region18: #{tpu_custom_call.1} parent=11 // pred_check_branch
          %662 = sbr.rel (%p660) target = $region20
        $region19: #{tpu_custom_call.1} parent=11 // pred_region
          _
        $region20: #{tpu_custom_call.1} parent=11 // pred_fallthru
          _
        // Predicated region
        $region21: #{tpu_custom_call.1} parent=11 // pred_check
          %p663 = pneg %p160
        $region22: #{tpu_custom_call.1} parent=11 // pred_check_branch
          %665 = sbr.rel (%p663) target = $region24
        $region23: #{tpu_custom_call.1} parent=11 // pred_region
          _
        $region24: #{tpu_custom_call.1} parent=11 // pred_fallthru
          _
        // Predicated region
        $region25: #{tpu_custom_call.1} parent=11 // pred_check
          %p666 = pneg %p181
        $region26: #{tpu_custom_call.1} parent=11 // pred_check_branch
          %668 = sbr.rel (%p666) target = $region28
        $region27: #{tpu_custom_call.1} parent=11 // pred_region
          _
        $region28: #{tpu_custom_call.1} parent=11 // pred_fallthru
          _
        // Predicated region
        $region29: #{tpu_custom_call.1} parent=11 // pred_check
          %p669 = pneg %p202
        $region30: #{tpu_custom_call.1} parent=11 // pred_check_branch
          %671 = sbr.rel (%p669) target = $region32
        $region31: #{tpu_custom_call.1} parent=11 // pred_region
          _
        $region32: #{tpu_custom_call.1} parent=11 // pred_fallthru
          _
        // Predicated region
        $region33: #{tpu_custom_call.1} parent=11 // pred_check
          %p672 = pneg %p223
        $region34: #{tpu_custom_call.1} parent=11 // pred_check_branch
          %674 = sbr.rel (%p672) target = $region36
        $region35: #{tpu_custom_call.1} parent=11 // pred_region
          _
        $region36: #{tpu_custom_call.1} parent=11 // pred_fallthru
          _
        // Predicated region
        $region37: #{tpu_custom_call.1} parent=11 // pred_check
          %p675 = pneg %p244
        $region38: #{tpu_custom_call.1} parent=11 // pred_check_branch
          %677 = sbr.rel (%p675) target = $region40
        $region39: #{tpu_custom_call.1} parent=11 // pred_region
          _
        $region40: #{tpu_custom_call.1} parent=11 // pred_fallthru
          _
        // Predicated region
        $region41: #{tpu_custom_call.1} parent=11 // pred_check
          %p678 = pneg %p265
        $region42: #{tpu_custom_call.1} parent=11 // pred_check_branch
          %680 = sbr.rel (%p678) target = $region44
        $region43: #{tpu_custom_call.1} parent=11 // pred_region
          _
        $region44: #{tpu_custom_call.1} parent=11 // pred_fallthru
          _
        // Predicated region
        $region45: #{tpu_custom_call.1} parent=11 // pred_check
          %p681 = pneg %p286
        $region46: #{tpu_custom_call.1} parent=11 // pred_check_branch
          %683 = sbr.rel (%p681) target = $region48
        $region47: #{tpu_custom_call.1} parent=11 // pred_region
          _
        $region48: #{tpu_custom_call.1} parent=11 // pred_fallthru
          _
        // Predicated region
        $region49: #{tpu_custom_call.1} parent=11 // pred_check
          %p684 = pneg %p307
        $region50: #{tpu_custom_call.1} parent=11 // pred_check_branch
          %686 = sbr.rel (%p684) target = $region52
        $region51: #{tpu_custom_call.1} parent=11 // pred_region
          _
        $region52: #{tpu_custom_call.1} parent=11 // pred_fallthru
          _
        // Predicated region
        $region53: #{tpu_custom_call.1} parent=11 // pred_check
          %p687 = pneg %p328
        $region54: #{tpu_custom_call.1} parent=11 // pred_check_branch
          %689 = sbr.rel (%p687) target = $region56
        $region55: #{tpu_custom_call.1} parent=11 // pred_region
          _
        $region56: #{tpu_custom_call.1} parent=11 // pred_fallthru
          _
        // Predicated region
        $region57: #{tpu_custom_call.1} parent=11 // pred_check
          %p690 = pneg %p349
        $region58: #{tpu_custom_call.1} parent=11 // pred_check_branch
          %692 = sbr.rel (%p690) target = $region60
        $region59: #{tpu_custom_call.1} parent=11 // pred_region
          _
        $region60: #{tpu_custom_call.1} parent=11 // pred_fallthru
          _
        // Predicated region
        $region61: #{tpu_custom_call.1} parent=11 // pred_check
          %p693 = pneg %p370
        $region62: #{tpu_custom_call.1} parent=11 // pred_check_branch
          %695 = sbr.rel (%p693) target = $region64
        $region63: #{tpu_custom_call.1} parent=11 // pred_region
          _
        $region64: #{tpu_custom_call.1} parent=11 // pred_fallthru
          _
        // Predicated region
        $region65: #{tpu_custom_call.1} parent=11 // pred_check
          %p696 = pneg %p391
        $region66: #{tpu_custom_call.1} parent=11 // pred_check_branch
          %698 = sbr.rel (%p696) target = $region68
        $region67: #{tpu_custom_call.1} parent=11 // pred_region
          _
        $region68: #{tpu_custom_call.1} parent=11 // pred_fallthru
          _
        // Predicated region
        $region69: #{tpu_custom_call.1} parent=11 // pred_check
          %p699 = pneg %p412
        $region70: #{tpu_custom_call.1} parent=11 // pred_check_branch
          %701 = sbr.rel (%p699) target = $region72
        $region71: #{tpu_custom_call.1} parent=11 // pred_region
          _
        $region72: #{tpu_custom_call.1} parent=11 // pred_fallthru
          _
        // Predicated region
        $region73: #{tpu_custom_call.1} parent=11 // pred_check
          %p702 = pneg %p433
        $region74: #{tpu_custom_call.1} parent=11 // pred_check_branch
          %704 = sbr.rel (%p702) target = $region76
        $region75: #{tpu_custom_call.1} parent=11 // pred_region
          _
        $region76: #{tpu_custom_call.1} parent=11 // pred_fallthru
          _
        // Predicated region
        $region77: #{tpu_custom_call.1} parent=11 // pred_check
          %p705 = pneg %p454
        $region78: #{tpu_custom_call.1} parent=11 // pred_check_branch
          %707 = sbr.rel (%p705) target = $region80
        $region79: #{tpu_custom_call.1} parent=11 // pred_region
          _
        $region80: #{tpu_custom_call.1} parent=11 // pred_fallthru
          _
        // Predicated region
        $region81: #{tpu_custom_call.1} parent=11 // pred_check
          %p708 = pneg %p475
        $region82: #{tpu_custom_call.1} parent=11 // pred_check_branch
          %710 = sbr.rel (%p708) target = $region84
        $region83: #{tpu_custom_call.1} parent=11 // pred_region
          _
        $region84: #{tpu_custom_call.1} parent=11 // pred_fallthru
          _
        // Predicated region
        $region85: #{tpu_custom_call.1} parent=11 // pred_check
          %p711 = pneg %p496
        $region86: #{tpu_custom_call.1} parent=11 // pred_check_branch
          %713 = sbr.rel (%p711) target = $region88
        $region87: #{tpu_custom_call.1} parent=11 // pred_region
          _
        $region88: #{tpu_custom_call.1} parent=11 // pred_fallthru
          _
        // Predicated region
        $region89: #{tpu_custom_call.1} parent=11 // pred_check
          %p714 = pneg %p517
        $region90: #{tpu_custom_call.1} parent=11 // pred_check_branch
          %716 = sbr.rel (%p714) target = $region92
        $region91: #{tpu_custom_call.1} parent=11 // pred_region
          _
        $region92: #{tpu_custom_call.1} parent=11 // pred_fallthru
          _
        // Predicated region
        $region93: #{tpu_custom_call.1} parent=11 // pred_check
          %p717 = pneg %p538
        $region94: #{tpu_custom_call.1} parent=11 // pred_check_branch
          %719 = sbr.rel (%p717) target = $region96
        $region95: #{tpu_custom_call.1} parent=11 // pred_region
          _
        $region96: #{tpu_custom_call.1} parent=11 // pred_fallthru
          _
      $region12: #{tpu_custom_call.1} parent=5 // pred_fallthru
        _
      %p720 = scmp.lt.s32.totalorder %s45, 2
      // Predicated region
      $region97: #{tpu_custom_call.1} parent=5 // pred_check
        %p721 = pneg %p720
      $region98: #{tpu_custom_call.1} parent=5 // pred_check_branch
        %723 = sbr.rel (%p721) target = $region100
      $region99: #{tpu_custom_call.1} parent=5 // pred_region
        // Predicated region
        $region101: #{tpu_custom_call.1} parent=99 // pred_check
          %p724 = pneg %p65
        $region102: #{tpu_custom_call.1} parent=99 // pred_check_branch
          %726 = sbr.rel (%p724) target = $region104
        $region103: #{tpu_custom_call.1} parent=99 // pred_region
          %s727 = sand.u32 %s55, 1
          %s728 = scalar_lea.sflag [#allocation3], %s727
          %s729 = sand.u32 %s55, 1
          %s730 = smul.addr %s729, 256
          %s731 = scalar_lea.vmem [#allocation2], %s730
          %s733 = ssub.s32 4096, 4096
          %734 = vsyncadd %s728, %s733
          %s735 = smul.addr %s45, 32
          %s736 = smul.addr %s735, 128
          %s737 = scalar_lea.hbm %s0, %s736
          %s738 = sshll.u32 %s731, 4
          %s739 = int_to_ptr.vmem [resolvable:$true] %s738
          %744 = dma.hbm_to_vmem [thread:$0]  %s737, 4096, %s739, %s728, 1024, 1024, 64
        $region104: #{tpu_custom_call.1} parent=99 // pred_fallthru
          _
        // Predicated region
        $region105: #{tpu_custom_call.1} parent=99 // pred_check
          %p745 = pneg %p91
        $region106: #{tpu_custom_call.1} parent=99 // pred_check_branch
          %747 = sbr.rel (%p745) target = $region108
        $region107: #{tpu_custom_call.1} parent=99 // pred_region
          %p748 = scmp.lt.s32.totalorder %s45, 1
          %s749 = scalar_select %p748, %s45, 1
          %s750 = smul.addr %s749, 2
          %s751 = scalar_lea.vmem %s1, %s750
        $region108: #{tpu_custom_call.1} parent=99 // pred_fallthru
          _
      $region100: #{tpu_custom_call.1} parent=5 // pred_fallthru
        _
      %p752 = scmp.le.s32.totalorder 1, %s45
      %p753 = scmp.lt.s32.totalorder %s45, 3
      %p754 = pnand %p752, %p753
      %p755 = pneg %p754
      // Predicated region
      $region109: #{tpu_custom_call.1} parent=5 // pred_check
        _
      $region110: #{tpu_custom_call.1} parent=5 // pred_check_branch
        %757 = sbr.rel (%p754) target = $region112
      $region111: #{tpu_custom_call.1} parent=5 // pred_region
        %s758 = ssub.s32 %s45, 1
        %s759 = sand.u32 %s58, 1
        %s760 = scalar_lea.sflag [#allocation3], %s759
        %s761 = sand.u32 %s58, 1
        %s762 = smul.addr %s761, 256
        %s763 = scalar_lea.vmem [#allocation2], %s762
        // Predicated region
        $region113: #{tpu_custom_call.1} parent=111 // pred_check
          %p764 = pneg %p71
        $region114: #{tpu_custom_call.1} parent=111 // pred_check_branch
          %766 = sbr.rel (%p764) target = $region116
        $region115: #{tpu_custom_call.1} parent=111 // pred_region
          %767 = dma.done %s760, 4096
        $region116: #{tpu_custom_call.1} parent=111 // pred_fallthru
          _
        %s768 = sand.u32 %s58, 1
        %s769 = scalar_lea.sflag [#allocation3], %s768
        %s770 = sand.u32 %s58, 1
        %s771 = smul.addr %s770, 256
        %s772 = scalar_lea.vmem [#allocation2], %s771
        %p773 = pneg %p71
        %p774 = pneg %p68
        %p775 = scmp.lt.s32.totalorder %s50, 1
        %s776 = scalar_select %p775, %s50, 1
        %s777 = smul.addr %s776, 2
        %s778 = scalar_lea.vmem %s1, %s777
        %p779 = pneg %p97
        %p780 = pneg %p94
        %p781 = pneg %p118
        %p782 = pneg %p115
        %p783 = pneg %p139
        %p784 = pneg %p136
        %p785 = pneg %p160
        %p786 = pneg %p157
        %p787 = pneg %p181
        %p788 = pneg %p178
        %p789 = pneg %p202
        %p790 = pneg %p199
        %p791 = pneg %p223
        %p792 = pneg %p220
        %p793 = pneg %p244
        %p794 = pneg %p241
        %p795 = pneg %p265
        %p796 = pneg %p262
        %p797 = pneg %p286
        %p798 = pneg %p283
        %p799 = pneg %p307
        %p800 = pneg %p304
        %p801 = pneg %p328
        %p802 = pneg %p325
        %p803 = pneg %p349
        %p804 = pneg %p346
        %p805 = pneg %p370
        %p806 = pneg %p367
        %p807 = pneg %p391
        %p808 = pneg %p388
        %p809 = pneg %p412
        %p810 = pneg %p409
        %p811 = pneg %p433
        %p812 = pneg %p430
        %p813 = pneg %p454
        %p814 = pneg %p451
        %p815 = pneg %p475
        %p816 = pneg %p472
        %p817 = pneg %p496
        %p818 = pneg %p493
        %p819 = pneg %p517
        %p820 = pneg %p514
        %p821 = pneg %p538
        %p822 = pneg %p535
        %p823 = pneg %p564
        %p824 = pneg %p561
        %s825 = sand.u32 %s551, 1
        %s826 = scalar_lea.sflag [#allocation4], %s825
        %s827 = sand.u32 %s551, 1
        %s828 = smul.addr %s827, 8
        %s829 = scalar_lea.vmem [#allocation5], %s828
        %p830 = pneg %p590
        %p831 = pneg %p587
        %s832 = sand.u32 %s50, 1
        %s833 = scalar_lea.sflag [#allocation7], %s832
        %s834 = sand.u32 %s577, 1
        %s835 = smul.addr %s834, 2
        %s836 = scalar_lea.vmem [#allocation6], %s835
        %p837 = pneg %p616
        %p838 = pneg %p613
        %s839 = sand.u32 %s50, 1
        %s840 = scalar_lea.sflag [#allocation7], %s839
        %s841 = sand.u32 %s603, 1
        %s842 = smul.addr %s841, 2
        %s843 = scalar_lea.vmem [#allocation8], %s842
        %p844 = pneg %p642
        %p845 = pneg %p639
        %s846 = sand.u32 %s629, 1
        %s847 = scalar_lea.sflag [#allocation10], %s846
        %s848 = sand.u32 %s629, 1
        %s849 = smul.addr %s848, 2
        %s850 = scalar_lea.vmem [#allocation9], %s849
        %p851 = scmp.lt.s32.totalorder %s50, 1
        %s852 = scalar_select %p851, %s50, 1
        %s853 = smul.addr %s852, 2
        %s854 = scalar_lea.vmem %s1, %s853
        %v855 = vld [vmem:[%s763] sm:$0xff]
        %v856 = vld [vmem:[%s763 + $0x8] sm:$0xff]
        %v857 = vld [vmem:[%s763 + $0x10] sm:$0xff]
        %v858 = vld [vmem:[%s763 + $0x18] sm:$0xff]
        %v859 = vld [vmem:[%s763 + $0x20] sm:$0xff]
        %v860 = vld [vmem:[%s763 + $0x28] sm:$0xff]
        %v861 = vld [vmem:[%s763 + $0x30] sm:$0xff]
        %v862 = vld [vmem:[%s763 + $0x38] sm:$0xff]
        %v863 = vld [vmem:[%s763 + $0x40] sm:$0xff]
        %v864 = vld [vmem:[%s763 + $0x48] sm:$0xff]
        %v865 = vld [vmem:[%s763 + $0x50] sm:$0xff]
        %v866 = vld [vmem:[%s763 + $0x58] sm:$0xff]
        %v867 = vld [vmem:[%s763 + $0x60] sm:$0xff]
        %v868 = vld [vmem:[%s763 + $0x68] sm:$0xff]
        %v869 = vld [vmem:[%s763 + $0x70] sm:$0xff]
        %v870 = vld [vmem:[%s763 + $0x78] sm:$0xff]
        %v871 = vld [vmem:[%s763 + $0x80] sm:$0xff]
        %v872 = vld [vmem:[%s763 + $0x88] sm:$0xff]
        %v873 = vld [vmem:[%s763 + $0x90] sm:$0xff]
        %v874 = vld [vmem:[%s763 + $0x98] sm:$0xff]
        %v875 = vld [vmem:[%s763 + $0xa0] sm:$0xff]
        %v876 = vld [vmem:[%s763 + $0xa8] sm:$0xff]
        %v877 = vld [vmem:[%s763 + $0xb0] sm:$0xff]
        %v878 = vld [vmem:[%s763 + $0xb8] sm:$0xff]
        %v879 = vld [vmem:[%s763 + $0xc0] sm:$0xff]
        %v880 = vld [vmem:[%s763 + $0xc8] sm:$0xff]
        %v881 = vld [vmem:[%s763 + $0xd0] sm:$0xff]
        %v882 = vld [vmem:[%s763 + $0xd8] sm:$0xff]
        %v883 = vld [vmem:[%s763 + $0xe0] sm:$0xff]
        %v884 = vld [vmem:[%s763 + $0xe8] sm:$0xff]
        %v885 = vld [vmem:[%s763 + $0xf0] sm:$0xff]
        %v886 = vld [vmem:[%s763 + $0xf8] sm:$0xff]
        %v887 = vld [vmem:[%s2] sm:$0xf]
        %v888 = vld [vmem:[%s3] sm:$0x1]
        %v889 = vld [vmem:[%s4] sm:$0xff]
        %v890 = vld [vmem:[%s4 + $0x8] sm:$0xff]
        %v891 = vld [vmem:[%s5] sm:$0xff]
        %v892 = vld [vmem:[%s6] sm:$0xff]
        %v893 = vld [vmem:[%s6 + $0x8] sm:$0xff]
        %v894 = vld [vmem:[%s7] sm:$0xff]
        %v895 = vld [vmem:[%s8] sm:$0xf]
        %v896 = vld [vmem:[%s9] sm:$0xff]
        %v897 = vld [vmem:[%s9 + $0x8] sm:$0xff]
        %v898 = vld [vmem:[%s9 + $0x10] sm:$0xff]
        %v899 = vld [vmem:[%s9 + $0x18] sm:$0xff]
        %v900 = vld [vmem:[%s9 + $0x20] sm:$0xff]
        %v901 = vld [vmem:[%s9 + $0x28] sm:$0xff]
        %v902 = vld [vmem:[%s9 + $0x30] sm:$0xff]
        %v903 = vld [vmem:[%s9 + $0x38] sm:$0xff]
        %v904 = vld [vmem:[%s9 + $0x40] sm:$0xff]
        %v905 = vld [vmem:[%s9 + $0x48] sm:$0xff]
        %v906 = vld [vmem:[%s9 + $0x50] sm:$0xff]
        %v907 = vld [vmem:[%s9 + $0x58] sm:$0xff]
        %v908 = vld [vmem:[%s9 + $0x60] sm:$0xff]
        %v909 = vld [vmem:[%s9 + $0x68] sm:$0xff]
        %v910 = vld [vmem:[%s9 + $0x70] sm:$0xff]
        %v911 = vld [vmem:[%s9 + $0x78] sm:$0x1f]
        %v912 = vld [vmem:[%s10] sm:$0xf]
        %v913 = vld [vmem:[%s11] sm:$0xff]
        %v914 = vld [vmem:[%s11 + $0x8] sm:$0xff]
        %v915 = vld [vmem:[%s11 + $0x10] sm:$0xff]
        %v916 = vld [vmem:[%s11 + $0x18] sm:$0xff]
        %v917 = vld [vmem:[%s11 + $0x20] sm:$0xff]
        %v918 = vld [vmem:[%s11 + $0x28] sm:$0xff]
        %v919 = vld [vmem:[%s11 + $0x30] sm:$0xff]
        %v920 = vld [vmem:[%s11 + $0x38] sm:$0xff]
        %v921 = vld [vmem:[%s11 + $0x40] sm:$0xff]
        %v922 = vld [vmem:[%s11 + $0x48] sm:$0xff]
        %v923 = vld [vmem:[%s11 + $0x50] sm:$0xff]
        %v924 = vld [vmem:[%s11 + $0x58] sm:$0xff]
        %v925 = vld [vmem:[%s11 + $0x60] sm:$0xff]
        %v926 = vld [vmem:[%s11 + $0x68] sm:$0xff]
        %v927 = vld [vmem:[%s11 + $0x70] sm:$0xff]
        %v928 = vld [vmem:[%s11 + $0x78] sm:$0x1f]
        %v929 = vld [vmem:[%s12] sm:$0xf]
        %v930 = vld [vmem:[%s13] sm:$0xff]
        %v931 = vld [vmem:[%s13 + $0x8] sm:$0xff]
        %v932 = vld [vmem:[%s13 + $0x10] sm:$0xff]
        %v933 = vld [vmem:[%s13 + $0x18] sm:$0xff]
        %v934 = vld [vmem:[%s13 + $0x20] sm:$0xff]
        %v935 = vld [vmem:[%s13 + $0x28] sm:$0xff]
        %v936 = vld [vmem:[%s13 + $0x30] sm:$0xff]
        %v937 = vld [vmem:[%s13 + $0x38] sm:$0xff]
        %v938 = vld [vmem:[%s13 + $0x40] sm:$0xff]
        %v939 = vld [vmem:[%s13 + $0x48] sm:$0xff]
        %v940 = vld [vmem:[%s13 + $0x50] sm:$0xff]
        %v941 = vld [vmem:[%s13 + $0x58] sm:$0xff]
        %v942 = vld [vmem:[%s13 + $0x60] sm:$0xff]
        %v943 = vld [vmem:[%s13 + $0x68] sm:$0xff]
        %v944 = vld [vmem:[%s13 + $0x70] sm:$0xff]
        %v945 = vld [vmem:[%s13 + $0x78] sm:$0x1f]
        %v946 = vld [vmem:[%s14] sm:$0xff]
        %v947 = vld [vmem:[%s14 + $0x8] sm:$0xff]
        %v948 = vld [vmem:[%s14 + $0x10] sm:$0xff]
        %v949 = vld [vmem:[%s14 + $0x18] sm:$0xff]
        %v950 = vld [vmem:[%s14 + $0x20] sm:$0xff]
        %v951 = vld [vmem:[%s14 + $0x28] sm:$0xff]
        %v952 = vld [vmem:[%s14 + $0x30] sm:$0xff]
        %v953 = vld [vmem:[%s14 + $0x38] sm:$0xff]
        %v954 = vld [vmem:[%s14 + $0x40] sm:$0xff]
        %v955 = vld [vmem:[%s14 + $0x48] sm:$0xff]
        %v956 = vld [vmem:[%s14 + $0x50] sm:$0xff]
        %v957 = vld [vmem:[%s14 + $0x58] sm:$0xff]
        %v958 = vld [vmem:[%s15] sm:$0x1]
        %v959 = vld [vmem:[%s16] sm:$0xff]
        %v960 = vld [vmem:[%s16 + $0x8] sm:$0x3]
        %v961 = vld [vmem:[%s17] sm:$0xff]
        %v962 = vld [vmem:[%s17 + $0x8] sm:$0xff]
        %v963 = vld [vmem:[%s17 + $0x10] sm:$0xff]
        %v964 = vld [vmem:[%s17 + $0x18] sm:$0xff]
        %v965 = vld [vmem:[%s18] sm:$0x1]
        %v966 = vld [vmem:[%s19] sm:$0xff]
        %v967 = vld [vmem:[%s19 + $0x8] sm:$0xff]
        %v968 = vld [vmem:[%s19 + $0x10] sm:$0xff]
        %v969 = vld [vmem:[%s19 + $0x18] sm:$0xff]
        %v970 = vld [vmem:[%s20] sm:$0x1]
        %v971 = vld [vmem:[%s21] sm:$0xff]
        %v972 = vld [vmem:[%s21 + $0x8] sm:$0xff]
        %v973 = vld [vmem:[%s21 + $0x10] sm:$0xff]
        %v974 = vld [vmem:[%s21 + $0x18] sm:$0xff]
        %v975 = vld [vmem:[%s21 + $0x20] sm:$0xff]
        %v976 = vld [vmem:[%s21 + $0x28] sm:$0xff]
        %v977 = vld [vmem:[%s21 + $0x30] sm:$0xff]
        %v978 = vld [vmem:[%s21 + $0x38] sm:$0xff]
        %v979 = vld [vmem:[%s22] sm:$0x3]
        %v981 = vlaneseq
        %v982 = vshrl.u32 %v981, 7
        %v983 = vsub.s32 0, %v982
        %v984 = vrot.slane %v979, %v983
        %987 = vrot.lane.b32.xlu0 %v887, 125
        %v988 = vpop.permute.xlu0 %987
        %v990 = vmul.f32 %v984, %v988
        %v991 = vrot.slane %v979, 1
        %v993 = vmul.f32 %v991, 16.0
        %v995 = vlaneseq
        %v996 = vshrl.u32 %v995, 7
        %v997 = vsub.s32 0, %v996
        %v998 = vrot.slane %v993, %v997
        %999 = vrot.lane.b32.xlu0 %v998, 125
        %v1000 = vpop.permute.xlu0 %999
        %v1002 = vadd.f32 %v990, %v1000
        %1004 = vset.pattern.permute.xlu0 125
        %1005 = vperm.xlu0 %1004, %v1002
        %v1006 = vpop.permute.xlu0 %1005
        %v1009 = vlaneseq
        %v1010 = vshrl.u32 %v1009, 7
        %v1011 = vsub.s32 0, %v1010
        %v1012 = vrot.slane %v888, %v1011
        %v1014 = vadd.f32 %v1006, %v1012
        %v1015 = vand.u32 2147483647, %v1014
        %v1016 = vsub.f32 1.0, %v1015
        %v1017 = vmax.f32 %v1016, 0.0
        %1020 = vrot.lane.b32.xlu0 %v889, 125
        %v1021 = vpop.permute.xlu0 %1020
        %1022 = vrot.lane.b32.xlu0 %v890, 125
        %v1023 = vpop.permute.xlu0 %1022
        %v1026 = vmul.f32 %v984, %v1021
        %v1027 = vmul.f32 %v984, %v1023
        %v1028 = vmul.f32 %v979, 16.0
        %v1030 = vlaneseq
        %v1031 = vshrl.u32 %v1030, 7
        %v1032 = vsub.s32 0, %v1031
        %v1033 = vrot.slane %v1028, %v1032
        %1034 = vrot.lane.b32.xlu0 %v1033, 126
        %v1035 = vpop.permute.xlu0 %1034
        %v1037 = vadd.f32 %v1026, %v1035
        %v1038 = vadd.f32 %v1027, %v1035
        %1040 = vset.pattern.permute.xlu0 125
        %1041 = vperm.xlu0 %1040, %v1037
        %v1042 = vpop.permute.xlu0 %1041
        %1045 = vset.pattern.permute.xlu0 125
        %1046 = vperm.xlu0 %1045, %v1038
        %v1047 = vpop.permute.xlu0 %1046
        %v1050 = vlaneseq
        %v1051 = vshrl.u32 %v1050, 7
        %v1052 = vsub.s32 0, %v1051
        %v1053 = vrot.slane %v891, %v1052
        %v1054 = vlaneseq
        %v1055 = vshrl.u32 %v1054, 7
        %v1056 = vsub.s32 1, %v1055
        %v1057 = vrot.slane %v891, %v1056
        %v1058 = vlaneseq
        %v1059 = vshrl.u32 %v1058, 7
        %v1060 = vsub.s32 2, %v1059
        %v1061 = vrot.slane %v891, %v1060
        %v1062 = vlaneseq
        %v1063 = vshrl.u32 %v1062, 7
        %v1064 = vsub.s32 3, %v1063
        %v1065 = vrot.slane %v891, %v1064
        %v1066 = vlaneseq
        %v1067 = vshrl.u32 %v1066, 7
        %v1068 = vsub.s32 4, %v1067
        %v1069 = vrot.slane %v891, %v1068
        %v1070 = vlaneseq
        %v1071 = vshrl.u32 %v1070, 7
        %v1072 = vsub.s32 5, %v1071
        %v1073 = vrot.slane %v891, %v1072
        %v1074 = vlaneseq
        %v1075 = vshrl.u32 %v1074, 7
        %v1076 = vsub.s32 6, %v1075
        %v1077 = vrot.slane %v891, %v1076
        %v1078 = vlaneseq
        %v1079 = vshrl.u32 %v1078, 7
        %v1080 = vsub.s32 7, %v1079
        %v1081 = vrot.slane %v891, %v1080
        %v1090 = vadd.f32 %v1042, %v1053
        %v1091 = vadd.f32 %v1042, %v1057
        %v1092 = vadd.f32 %v1042, %v1061
        %v1093 = vadd.f32 %v1042, %v1065
        %v1094 = vadd.f32 %v1042, %v1069
        %v1095 = vadd.f32 %v1042, %v1073
        %v1096 = vadd.f32 %v1042, %v1077
        %v1097 = vadd.f32 %v1042, %v1081
        %v1098 = vadd.f32 %v1047, %v1053
        %v1099 = vadd.f32 %v1047, %v1057
        %v1100 = vadd.f32 %v1047, %v1061
        %v1101 = vadd.f32 %v1047, %v1065
        %v1102 = vadd.f32 %v1047, %v1069
        %v1103 = vadd.f32 %v1047, %v1073
        %v1104 = vadd.f32 %v1047, %v1077
        %v1105 = vadd.f32 %v1047, %v1081
        %v1106 = vand.u32 2147483647, %v1090
        %v1107 = vand.u32 2147483647, %v1091
        %v1108 = vand.u32 2147483647, %v1092
        %v1109 = vand.u32 2147483647, %v1093
        %v1110 = vand.u32 2147483647, %v1094
        %v1111 = vand.u32 2147483647, %v1095
        %v1112 = vand.u32 2147483647, %v1096
        %v1113 = vand.u32 2147483647, %v1097
        %v1114 = vand.u32 2147483647, %v1098
        %v1115 = vand.u32 2147483647, %v1099
        %v1116 = vand.u32 2147483647, %v1100
        %v1117 = vand.u32 2147483647, %v1101
        %v1118 = vand.u32 2147483647, %v1102
        %v1119 = vand.u32 2147483647, %v1103
        %v1120 = vand.u32 2147483647, %v1104
        %v1121 = vand.u32 2147483647, %v1105
        %v1122 = vsub.f32 1.0, %v1106
        %v1123 = vsub.f32 1.0, %v1107
        %v1124 = vsub.f32 1.0, %v1108
        %v1125 = vsub.f32 1.0, %v1109
        %v1126 = vsub.f32 1.0, %v1110
        %v1127 = vsub.f32 1.0, %v1111
        %v1128 = vsub.f32 1.0, %v1112
        %v1129 = vsub.f32 1.0, %v1113
        %v1130 = vsub.f32 1.0, %v1114
        %v1131 = vsub.f32 1.0, %v1115
        %v1132 = vsub.f32 1.0, %v1116
        %v1133 = vsub.f32 1.0, %v1117
        %v1134 = vsub.f32 1.0, %v1118
        %v1135 = vsub.f32 1.0, %v1119
        %v1136 = vsub.f32 1.0, %v1120
        %v1137 = vsub.f32 1.0, %v1121
        %v1138 = vmax.f32 %v1122, 0.0
        %v1139 = vmax.f32 %v1123, 0.0
        %v1140 = vmax.f32 %v1124, 0.0
        %v1141 = vmax.f32 %v1125, 0.0
        %v1142 = vmax.f32 %v1126, 0.0
        %v1143 = vmax.f32 %v1127, 0.0
        %v1144 = vmax.f32 %v1128, 0.0
        %v1145 = vmax.f32 %v1129, 0.0
        %v1146 = vmax.f32 %v1130, 0.0
        %v1147 = vmax.f32 %v1131, 0.0
        %v1148 = vmax.f32 %v1132, 0.0
        %v1149 = vmax.f32 %v1133, 0.0
        %v1150 = vmax.f32 %v1134, 0.0
        %v1151 = vmax.f32 %v1135, 0.0
        %v1152 = vmax.f32 %v1136, 0.0
        %v1153 = vmax.f32 %v1137, 0.0
        %1156 = vrot.lane.b32.xlu0 %v892, 125
        %v1157 = vpop.permute.xlu0 %1156
        %1158 = vrot.lane.b32.xlu0 %v893, 125
        %v1159 = vpop.permute.xlu0 %1158
        %v1162 = vmul.f32 %v984, %v1157
        %v1163 = vmul.f32 %v984, %v1159
        %1164 = vrot.lane.b32.xlu0 %v1033, 127
        %v1165 = vpop.permute.xlu0 %1164
        %v1167 = vadd.f32 %v1162, %v1165
        %v1168 = vadd.f32 %v1163, %v1165
        %1170 = vset.pattern.permute.xlu0 125
        %1171 = vperm.xlu0 %1170, %v1167
        %v1172 = vpop.permute.xlu0 %1171
        %1175 = vset.pattern.permute.xlu0 125
        %1176 = vperm.xlu0 %1175, %v1168
        %v1177 = vpop.permute.xlu0 %1176
        %v1180 = vlaneseq
        %v1181 = vshrl.u32 %v1180, 7
        %v1182 = vsub.s32 0, %v1181
        %v1183 = vrot.slane %v894, %v1182
        %v1184 = vlaneseq
        %v1185 = vshrl.u32 %v1184, 7
        %v1186 = vsub.s32 1, %v1185
        %v1187 = vrot.slane %v894, %v1186
        %v1188 = vlaneseq
        %v1189 = vshrl.u32 %v1188, 7
        %v1190 = vsub.s32 2, %v1189
        %v1191 = vrot.slane %v894, %v1190
        %v1192 = vlaneseq
        %v1193 = vshrl.u32 %v1192, 7
        %v1194 = vsub.s32 3, %v1193
        %v1195 = vrot.slane %v894, %v1194
        %v1196 = vlaneseq
        %v1197 = vshrl.u32 %v1196, 7
        %v1198 = vsub.s32 4, %v1197
        %v1199 = vrot.slane %v894, %v1198
        %v1200 = vlaneseq
        %v1201 = vshrl.u32 %v1200, 7
        %v1202 = vsub.s32 5, %v1201
        %v1203 = vrot.slane %v894, %v1202
        %v1204 = vlaneseq
        %v1205 = vshrl.u32 %v1204, 7
        %v1206 = vsub.s32 6, %v1205
        %v1207 = vrot.slane %v894, %v1206
        %v1208 = vlaneseq
        %v1209 = vshrl.u32 %v1208, 7
        %v1210 = vsub.s32 7, %v1209
        %v1211 = vrot.slane %v894, %v1210
        %v1220 = vadd.f32 %v1172, %v1183
        %v1221 = vadd.f32 %v1172, %v1187
        %v1222 = vadd.f32 %v1172, %v1191
        %v1223 = vadd.f32 %v1172, %v1195
        %v1224 = vadd.f32 %v1172, %v1199
        %v1225 = vadd.f32 %v1172, %v1203
        %v1226 = vadd.f32 %v1172, %v1207
        %v1227 = vadd.f32 %v1172, %v1211
        %v1228 = vadd.f32 %v1177, %v1183
        %v1229 = vadd.f32 %v1177, %v1187
        %v1230 = vadd.f32 %v1177, %v1191
        %v1231 = vadd.f32 %v1177, %v1195
        %v1232 = vadd.f32 %v1177, %v1199
        %v1233 = vadd.f32 %v1177, %v1203
        %v1234 = vadd.f32 %v1177, %v1207
        %v1235 = vadd.f32 %v1177, %v1211
        %v1236 = vand.u32 2147483647, %v1220
        %v1237 = vand.u32 2147483647, %v1221
        %v1238 = vand.u32 2147483647, %v1222
        %v1239 = vand.u32 2147483647, %v1223
        %v1240 = vand.u32 2147483647, %v1224
        %v1241 = vand.u32 2147483647, %v1225
        %v1242 = vand.u32 2147483647, %v1226
        %v1243 = vand.u32 2147483647, %v1227
        %v1244 = vand.u32 2147483647, %v1228
        %v1245 = vand.u32 2147483647, %v1229
        %v1246 = vand.u32 2147483647, %v1230
        %v1247 = vand.u32 2147483647, %v1231
        %v1248 = vand.u32 2147483647, %v1232
        %v1249 = vand.u32 2147483647, %v1233
        %v1250 = vand.u32 2147483647, %v1234
        %v1251 = vand.u32 2147483647, %v1235
        %v1252 = vsub.f32 1.0, %v1236
        %v1253 = vsub.f32 1.0, %v1237
        %v1254 = vsub.f32 1.0, %v1238
        %v1255 = vsub.f32 1.0, %v1239
        %v1256 = vsub.f32 1.0, %v1240
        %v1257 = vsub.f32 1.0, %v1241
        %v1258 = vsub.f32 1.0, %v1242
        %v1259 = vsub.f32 1.0, %v1243
        %v1260 = vsub.f32 1.0, %v1244
        %v1261 = vsub.f32 1.0, %v1245
        %v1262 = vsub.f32 1.0, %v1246
        %v1263 = vsub.f32 1.0, %v1247
        %v1264 = vsub.f32 1.0, %v1248
        %v1265 = vsub.f32 1.0, %v1249
        %v1266 = vsub.f32 1.0, %v1250
        %v1267 = vsub.f32 1.0, %v1251
        %v1268 = vmax.f32 %v1252, 0.0
        %v1269 = vmax.f32 %v1253, 0.0
        %v1270 = vmax.f32 %v1254, 0.0
        %v1271 = vmax.f32 %v1255, 0.0
        %v1272 = vmax.f32 %v1256, 0.0
        %v1273 = vmax.f32 %v1257, 0.0
        %v1274 = vmax.f32 %v1258, 0.0
        %v1275 = vmax.f32 %v1259, 0.0
        %v1276 = vmax.f32 %v1260, 0.0
        %v1277 = vmax.f32 %v1261, 0.0
        %v1278 = vmax.f32 %v1262, 0.0
        %v1279 = vmax.f32 %v1263, 0.0
        %v1280 = vmax.f32 %v1264, 0.0
        %v1281 = vmax.f32 %v1265, 0.0
        %v1282 = vmax.f32 %v1266, 0.0
        %v1283 = vmax.f32 %v1267, 0.0
        %v1284 = vmul.f32 %v1138, %v1268
        %v1285 = vmul.f32 %v1139, %v1269
        %v1286 = vmul.f32 %v1140, %v1270
        %v1287 = vmul.f32 %v1141, %v1271
        %v1288 = vmul.f32 %v1142, %v1272
        %v1289 = vmul.f32 %v1143, %v1273
        %v1290 = vmul.f32 %v1144, %v1274
        %v1291 = vmul.f32 %v1145, %v1275
        %v1292 = vmul.f32 %v1146, %v1276
        %v1293 = vmul.f32 %v1147, %v1277
        %v1294 = vmul.f32 %v1148, %v1278
        %v1295 = vmul.f32 %v1149, %v1279
        %v1296 = vmul.f32 %v1150, %v1280
        %v1297 = vmul.f32 %v1151, %v1281
        %v1298 = vmul.f32 %v1152, %v1282
        %v1299 = vmul.f32 %v1153, %v1283
        %vm1300 = vcmask 261120
        %v1302 = vsel %vm1300, %v1017, 0
        %1304 = vmatprep.subr.mxu0 %v856
        %1305 = vmatpush1.msra.mxu0 %v855
        %1306 = vmatprep.subr.mxu0 %v864
        %1307 = vmatpush1.msra.mxu0 %v863
        %1308 = vmatprep.subr.mxu0 %v872
        %1309 = vmatpush1.msra.mxu0 %v871
        %1310 = vmatprep.subr.mxu0 %v880
        %1311 = vmatpush1.msra.mxu0 %v879
        %1312 = vmatprep.subr.mxu0 0.0
        %1313 = vmatpush1.msra.mxu0 0.0
        %1314 = vmatprep.subr.mxu0 0.0
        %1315 = vmatpush1.msra.mxu0 0.0
        %1316 = vmatprep.subr.mxu0 0.0
        %1317 = vmatpush1.msra.mxu0 0.0
        %1318 = vmatprep.subr.mxu0 0.0
        %1319 = vmatpush1.msra.mxu0 0.0
        %1320 = vmatprep.subr.mxu0 0.0
        %1321 = vmatpush1.msra.mxu0 0.0
        %1322 = vmatprep.subr.mxu0 0.0
        %1323 = vmatpush1.msra.mxu0 0.0
        %1324 = vmatprep.subr.mxu0 0.0
        %1325 = vmatpush1.msra.mxu0 0.0
        %1326 = vmatprep.subr.mxu0 0.0
        %1327 = vmatpush1.msra.mxu0 0.0
        %1328 = vmatprep.subr.mxu0 0.0
        %1329 = vmatpush1.msra.mxu0 0.0
        %1330 = vmatprep.subr.mxu0 0.0
        %1331 = vmatpush1.msra.mxu0 0.0
        %1332 = vmatprep.subr.mxu0 0.0
        %1333 = vmatpush1.msra.mxu0 0.0
        %1334 = vmatprep.subr.mxu0 0.0
        %1335 = vmatpush1.msra.mxu0 0.0
        %1336 = vmatprep.subr.mxu0 0.0
        %1337 = vmatpush1.msra.mxu0 0.0
        %1338 = vmatprep.subr.mxu0 0.0
        %1339 = vmatpush1.msra.mxu0 0.0
        %1340 = vmatprep.subr.mxu0 0.0
        %1341 = vmatpush1.msra.mxu0 0.0
        %1342 = vmatprep.subr.mxu0 0.0
        %1343 = vmatpush1.msra.mxu0 0.0
        %1344 = vmatprep.subr.mxu0 0.0
        %1345 = vmatpush1.msra.mxu0 0.0
        %1346 = vmatprep.subr.mxu0 0.0
        %1347 = vmatpush1.msra.mxu0 0.0
        %1348 = vmatprep.subr.mxu0 0.0
        %1349 = vmatpush1.msra.mxu0 0.0
        %1350 = vmatprep.subr.mxu0 0.0
        %1351 = vmatpush1.msra.mxu0 0.0
        %1352 = vmatprep.subr.mxu0 0.0
        %1353 = vmatpush1.msra.mxu0 0.0
        %1354 = vmatprep.subr.mxu0 0.0
        %1355 = vmatpush1.msra.mxu0 0.0
        %1356 = vmatprep.subr.mxu0 0.0
        %1357 = vmatpush1.msra.mxu0 0.0
        %1358 = vmatprep.subr.mxu0 0.0
        %1359 = vmatpush1.msra.mxu0 0.0
        %1360 = vmatprep.subr.mxu0 0.0
        %1361 = vmatpush1.msra.mxu0 0.0
        %1362 = vmatprep.subr.mxu0 0.0
        %1363 = vmatpush1.msra.mxu0 0.0
        %1364 = vmatprep.subr.mxu0 0.0
        %1365 = vmatpush1.msra.mxu0 0.0
        %1366 = vmatprep.subr.mxu0 0.0
        %1367 = vmatpush1.msra.mxu0 0.0
        %1368 = vmatprep.mubr.f32.mxu0 0.0
        %1369 = vmatmul.mubr.f32.gmra.mrb[0].mxu0 %v1302
        %v1370 = vpop.f32.mrb[0].mxu0
        %v1371 = vadd.f32 0.0, %v1370
        %v1372 = vpop.f32.mrb[0].mxu0
        %v1373 = vadd.f32 0.0, %v1372
        %1374 = vdwg.mxu0
        %1375 = vmatprep.subr.mxu0 %v858
        %1376 = vmatpush1.msra.mxu0 %v857
        %1377 = vmatprep.subr.mxu0 %v866
        %1378 = vmatpush1.msra.mxu0 %v865
        %1379 = vmatprep.subr.mxu0 %v874
        %1380 = vmatpush1.msra.mxu0 %v873
        %1381 = vmatprep.subr.mxu0 %v882
        %1382 = vmatpush1.msra.mxu0 %v881
        %1383 = vmatprep.subr.mxu0 0.0
        %1384 = vmatpush1.msra.mxu0 0.0
        %1385 = vmatprep.subr.mxu0 0.0
        %1386 = vmatpush1.msra.mxu0 0.0
        %1387 = vmatprep.subr.mxu0 0.0
        %1388 = vmatpush1.msra.mxu0 0.0
        %1389 = vmatprep.subr.mxu0 0.0
        %1390 = vmatpush1.msra.mxu0 0.0
        %1391 = vmatprep.subr.mxu0 0.0
        %1392 = vmatpush1.msra.mxu0 0.0
        %1393 = vmatprep.subr.mxu0 0.0
        %1394 = vmatpush1.msra.mxu0 0.0
        %1395 = vmatprep.subr.mxu0 0.0
        %1396 = vmatpush1.msra.mxu0 0.0
        %1397 = vmatprep.subr.mxu0 0.0
        %1398 = vmatpush1.msra.mxu0 0.0
        %1399 = vmatprep.subr.mxu0 0.0
        %1400 = vmatpush1.msra.mxu0 0.0
        %1401 = vmatprep.subr.mxu0 0.0
        %1402 = vmatpush1.msra.mxu0 0.0
        %1403 = vmatprep.subr.mxu0 0.0
        %1404 = vmatpush1.msra.mxu0 0.0
        %1405 = vmatprep.subr.mxu0 0.0
        %1406 = vmatpush1.msra.mxu0 0.0
        %1407 = vmatprep.subr.mxu0 0.0
        %1408 = vmatpush1.msra.mxu0 0.0
        %1409 = vmatprep.subr.mxu0 0.0
        %1410 = vmatpush1.msra.mxu0 0.0
        %1411 = vmatprep.subr.mxu0 0.0
        %1412 = vmatpush1.msra.mxu0 0.0
        %1413 = vmatprep.subr.mxu0 0.0
        %1414 = vmatpush1.msra.mxu0 0.0
        %1415 = vmatprep.subr.mxu0 0.0
        %1416 = vmatpush1.msra.mxu0 0.0
        %1417 = vmatprep.subr.mxu0 0.0
        %1418 = vmatpush1.msra.mxu0 0.0
        %1419 = vmatprep.subr.mxu0 0.0
        %1420 = vmatpush1.msra.mxu0 0.0
        %1421 = vmatprep.subr.mxu0 0.0
        %1422 = vmatpush1.msra.mxu0 0.0
        %1423 = vmatprep.subr.mxu0 0.0
        %1424 = vmatpush1.msra.mxu0 0.0
        %1425 = vmatprep.subr.mxu0 0.0
        %1426 = vmatpush1.msra.mxu0 0.0
        %1427 = vmatprep.subr.mxu0 0.0
        %1428 = vmatpush1.msra.mxu0 0.0
        %1429 = vmatprep.subr.mxu0 0.0
        %1430 = vmatpush1.msra.mxu0 0.0
        %1431 = vmatprep.subr.mxu0 0.0
        %1432 = vmatpush1.msra.mxu0 0.0
        %1433 = vmatprep.subr.mxu0 0.0
        %1434 = vmatpush1.msra.mxu0 0.0
        %1435 = vmatprep.subr.mxu0 0.0
        %1436 = vmatpush1.msra.mxu0 0.0
        %1437 = vmatprep.subr.mxu0 0.0
        %1438 = vmatpush1.msra.mxu0 0.0
        %1439 = vmatprep.mubr.f32.mxu0 0.0
        %1440 = vmatmul.mubr.f32.gmra.mrb[0].mxu0 %v1302
        %v1441 = vpop.f32.mrb[0].mxu0
        %v1442 = vadd.f32 0.0, %v1441
        %v1443 = vpop.f32.mrb[0].mxu0
        %v1444 = vadd.f32 0.0, %v1443
        %1445 = vdwg.mxu0
        %1446 = vmatprep.subr.mxu0 %v860
        %1447 = vmatpush1.msra.mxu0 %v859
        %1448 = vmatprep.subr.mxu0 %v868
        %1449 = vmatpush1.msra.mxu0 %v867
        %1450 = vmatprep.subr.mxu0 %v876
        %1451 = vmatpush1.msra.mxu0 %v875
        %1452 = vmatprep.subr.mxu0 %v884
        %1453 = vmatpush1.msra.mxu0 %v883
        %1454 = vmatprep.subr.mxu0 0.0
        %1455 = vmatpush1.msra.mxu0 0.0
        %1456 = vmatprep.subr.mxu0 0.0
        %1457 = vmatpush1.msra.mxu0 0.0
        %1458 = vmatprep.subr.mxu0 0.0
        %1459 = vmatpush1.msra.mxu0 0.0
        %1460 = vmatprep.subr.mxu0 0.0
        %1461 = vmatpush1.msra.mxu0 0.0
        %1462 = vmatprep.subr.mxu0 0.0
        %1463 = vmatpush1.msra.mxu0 0.0
        %1464 = vmatprep.subr.mxu0 0.0
        %1465 = vmatpush1.msra.mxu0 0.0
        %1466 = vmatprep.subr.mxu0 0.0
        %1467 = vmatpush1.msra.mxu0 0.0
        %1468 = vmatprep.subr.mxu0 0.0
        %1469 = vmatpush1.msra.mxu0 0.0
        %1470 = vmatprep.subr.mxu0 0.0
        %1471 = vmatpush1.msra.mxu0 0.0
        %1472 = vmatprep.subr.mxu0 0.0
        %1473 = vmatpush1.msra.mxu0 0.0
        %1474 = vmatprep.subr.mxu0 0.0
        %1475 = vmatpush1.msra.mxu0 0.0
        %1476 = vmatprep.subr.mxu0 0.0
        %1477 = vmatpush1.msra.mxu0 0.0
        %1478 = vmatprep.subr.mxu0 0.0
        %1479 = vmatpush1.msra.mxu0 0.0
        %1480 = vmatprep.subr.mxu0 0.0
        %1481 = vmatpush1.msra.mxu0 0.0
        %1482 = vmatprep.subr.mxu0 0.0
        %1483 = vmatpush1.msra.mxu0 0.0
        %1484 = vmatprep.subr.mxu0 0.0
        %1485 = vmatpush1.msra.mxu0 0.0
        %1486 = vmatprep.subr.mxu0 0.0
        %1487 = vmatpush1.msra.mxu0 0.0
        %1488 = vmatprep.subr.mxu0 0.0
        %1489 = vmatpush1.msra.mxu0 0.0
        %1490 = vmatprep.subr.mxu0 0.0
        %1491 = vmatpush1.msra.mxu0 0.0
        %1492 = vmatprep.subr.mxu0 0.0
        %1493 = vmatpush1.msra.mxu0 0.0
        %1494 = vmatprep.subr.mxu0 0.0
        %1495 = vmatpush1.msra.mxu0 0.0
        %1496 = vmatprep.subr.mxu0 0.0
        %1497 = vmatpush1.msra.mxu0 0.0
        %1498 = vmatprep.subr.mxu0 0.0
        %1499 = vmatpush1.msra.mxu0 0.0
        %1500 = vmatprep.subr.mxu0 0.0
        %1501 = vmatpush1.msra.mxu0 0.0
        %1502 = vmatprep.subr.mxu0 0.0
        %1503 = vmatpush1.msra.mxu0 0.0
        %1504 = vmatprep.subr.mxu0 0.0
        %1505 = vmatpush1.msra.mxu0 0.0
        %1506 = vmatprep.subr.mxu0 0.0
        %1507 = vmatpush1.msra.mxu0 0.0
        %1508 = vmatprep.subr.mxu0 0.0
        %1509 = vmatpush1.msra.mxu0 0.0
        %1510 = vmatprep.mubr.f32.mxu0 0.0
        %1511 = vmatmul.mubr.f32.gmra.mrb[0].mxu0 %v1302
        %v1512 = vpop.f32.mrb[0].mxu0
        %v1513 = vadd.f32 0.0, %v1512
        %v1514 = vpop.f32.mrb[0].mxu0
        %v1515 = vadd.f32 0.0, %v1514
        %1516 = vdwg.mxu0
        %1517 = vmatprep.subr.mxu0 %v862
        %1518 = vmatpush1.msra.mxu0 %v861
        %1519 = vmatprep.subr.mxu0 %v870
        %1520 = vmatpush1.msra.mxu0 %v869
        %1521 = vmatprep.subr.mxu0 %v878
        %1522 = vmatpush1.msra.mxu0 %v877
        %1523 = vmatprep.subr.mxu0 %v886
        %1524 = vmatpush1.msra.mxu0 %v885
        %1525 = vmatprep.subr.mxu0 0.0
        %1526 = vmatpush1.msra.mxu0 0.0
        %1527 = vmatprep.subr.mxu0 0.0
        %1528 = vmatpush1.msra.mxu0 0.0
        %1529 = vmatprep.subr.mxu0 0.0
        %1530 = vmatpush1.msra.mxu0 0.0
        %1531 = vmatprep.subr.mxu0 0.0
        %1532 = vmatpush1.msra.mxu0 0.0
        %1533 = vmatprep.subr.mxu0 0.0
        %1534 = vmatpush1.msra.mxu0 0.0
        %1535 = vmatprep.subr.mxu0 0.0
        %1536 = vmatpush1.msra.mxu0 0.0
        %1537 = vmatprep.subr.mxu0 0.0
        %1538 = vmatpush1.msra.mxu0 0.0
        %1539 = vmatprep.subr.mxu0 0.0
        %1540 = vmatpush1.msra.mxu0 0.0
        %1541 = vmatprep.subr.mxu0 0.0
        %1542 = vmatpush1.msra.mxu0 0.0
        %1543 = vmatprep.subr.mxu0 0.0
        %1544 = vmatpush1.msra.mxu0 0.0
        %1545 = vmatprep.subr.mxu0 0.0
        %1546 = vmatpush1.msra.mxu0 0.0
        %1547 = vmatprep.subr.mxu0 0.0
        %1548 = vmatpush1.msra.mxu0 0.0
        %1549 = vmatprep.subr.mxu0 0.0
        %1550 = vmatpush1.msra.mxu0 0.0
        %1551 = vmatprep.subr.mxu0 0.0
        %1552 = vmatpush1.msra.mxu0 0.0
        %1553 = vmatprep.subr.mxu0 0.0
        %1554 = vmatpush1.msra.mxu0 0.0
        %1555 = vmatprep.subr.mxu0 0.0
        %1556 = vmatpush1.msra.mxu0 0.0
        %1557 = vmatprep.subr.mxu0 0.0
        %1558 = vmatpush1.msra.mxu0 0.0
        %1559 = vmatprep.subr.mxu0 0.0
        %1560 = vmatpush1.msra.mxu0 0.0
        %1561 = vmatprep.subr.mxu0 0.0
        %1562 = vmatpush1.msra.mxu0 0.0
        %1563 = vmatprep.subr.mxu0 0.0
        %1564 = vmatpush1.msra.mxu0 0.0
        %1565 = vmatprep.subr.mxu0 0.0
        %1566 = vmatpush1.msra.mxu0 0.0
        %1567 = vmatprep.subr.mxu0 0.0
        %1568 = vmatpush1.msra.mxu0 0.0
        %1569 = vmatprep.subr.mxu0 0.0
        %1570 = vmatpush1.msra.mxu0 0.0
        %1571 = vmatprep.subr.mxu0 0.0
        %1572 = vmatpush1.msra.mxu0 0.0
        %1573 = vmatprep.subr.mxu0 0.0
        %1574 = vmatpush1.msra.mxu0 0.0
        %1575 = vmatprep.subr.mxu0 0.0
        %1576 = vmatpush1.msra.mxu0 0.0
        %1577 = vmatprep.subr.mxu0 0.0
        %1578 = vmatpush1.msra.mxu0 0.0
        %1579 = vmatprep.subr.mxu0 0.0
        %1580 = vmatpush1.msra.mxu0 0.0
        %1581 = vmatprep.mubr.f32.mxu0 0.0
        %1582 = vmatmul.mubr.f32.gmra.mrb[0].mxu0 %v1302
        %v1583 = vpop.f32.mrb[0].mxu0
        %v1584 = vadd.f32 0.0, %v1583
        %v1585 = vpop.f32.mrb[0].mxu0
        %v1586 = vadd.f32 0.0, %v1585
        %1587 = vdwg.mxu0
        %1588 = vmatprep.subr.mxu0 %v1285
        %1589 = vmatpush1.xpose.msra.mxu0 %v1284
        %1590 = vmatprep.subr.mxu0 %v1293
        %1591 = vmatpush1.xpose.msra.mxu0 %v1292
        %1592 = vmatprep.subr.mxu0 0.0
        %1593 = vmatpush1.xpose.msra.mxu0 0.0
        %1594 = vmatprep.subr.mxu0 0.0
        %1595 = vmatpush1.xpose.msra.mxu0 0.0
        %1596 = vmatprep.subr.mxu0 0.0
        %1597 = vmatpush1.xpose.msra.mxu0 0.0
        %1598 = vmatprep.subr.mxu0 0.0
        %1599 = vmatpush1.xpose.msra.mxu0 0.0
        %1600 = vmatprep.subr.mxu0 0.0
        %1601 = vmatpush1.xpose.msra.mxu0 0.0
        %1602 = vmatprep.subr.mxu0 0.0
        %1603 = vmatpush1.xpose.msra.mxu0 0.0
        %1604 = vmatprep.subr.mxu0 0.0
        %1605 = vmatpush1.xpose.msra.mxu0 0.0
        %1606 = vmatprep.subr.mxu0 0.0
        %1607 = vmatpush1.xpose.msra.mxu0 0.0
        %1608 = vmatprep.subr.mxu0 0.0
        %1609 = vmatpush1.xpose.msra.mxu0 0.0
        %1610 = vmatprep.subr.mxu0 0.0
        %1611 = vmatpush1.xpose.msra.mxu0 0.0
        %1612 = vmatprep.subr.mxu0 0.0
        %1613 = vmatpush1.xpose.msra.mxu0 0.0
        %1614 = vmatprep.subr.mxu0 0.0
        %1615 = vmatpush1.xpose.msra.mxu0 0.0
        %1616 = vmatprep.subr.mxu0 0.0
        %1617 = vmatpush1.xpose.msra.mxu0 0.0
        %1618 = vmatprep.subr.mxu0 0.0
        %1619 = vmatpush1.xpose.msra.mxu0 0.0
        %1620 = vmatprep.subr.mxu0 0.0
        %1621 = vmatpush1.xpose.msra.mxu0 0.0
        %1622 = vmatprep.subr.mxu0 0.0
        %1623 = vmatpush1.xpose.msra.mxu0 0.0
        %1624 = vmatprep.subr.mxu0 0.0
        %1625 = vmatpush1.xpose.msra.mxu0 0.0
        %1626 = vmatprep.subr.mxu0 0.0
        %1627 = vmatpush1.xpose.msra.mxu0 0.0
        %1628 = vmatprep.subr.mxu0 0.0
        %1629 = vmatpush1.xpose.msra.mxu0 0.0
        %1630 = vmatprep.subr.mxu0 0.0
        %1631 = vmatpush1.xpose.msra.mxu0 0.0
        %1632 = vmatprep.subr.mxu0 0.0
        %1633 = vmatpush1.xpose.msra.mxu0 0.0
        %1634 = vmatprep.subr.mxu0 0.0
        %1635 = vmatpush1.xpose.msra.mxu0 0.0
        %1636 = vmatprep.subr.mxu0 0.0
        %1637 = vmatpush1.xpose.msra.mxu0 0.0
        %1638 = vmatprep.subr.mxu0 0.0
        %1639 = vmatpush1.xpose.msra.mxu0 0.0
        %1640 = vmatprep.subr.mxu0 0.0
        %1641 = vmatpush1.xpose.msra.mxu0 0.0
        %1642 = vmatprep.subr.mxu0 0.0
        %1643 = vmatpush1.xpose.msra.mxu0 0.0
        %1644 = vmatprep.subr.mxu0 0.0
        %1645 = vmatpush1.xpose.msra.mxu0 0.0
        %1646 = vmatprep.subr.mxu0 0.0
        %1647 = vmatpush1.xpose.msra.mxu0 0.0
        %1648 = vmatprep.subr.mxu0 0.0
        %1649 = vmatpush1.xpose.msra.mxu0 0.0
        %1650 = vmatprep.subr.mxu0 0.0
        %1651 = vmatpush1.xpose.msra.mxu0 0.0
        %1652 = vmatprep.mubr.f32.mxu0 %v1373
        %1653 = vmatmul.mubr.f32.gmra.mrb[0].mxu0 %v1371
        %v1654 = vpop.f32.mrb[0].mxu0
        %v1655 = vadd.f32 0.0, %v1654
        %v1656 = vpop.f32.mrb[0].mxu0
        %1657 = vdwg.mxu0
        %1658 = vmatprep.subr.mxu0 %v1287
        %1659 = vmatpush1.xpose.msra.mxu0 %v1286
        %1660 = vmatprep.subr.mxu0 %v1295
        %1661 = vmatpush1.xpose.msra.mxu0 %v1294
        %1662 = vmatprep.subr.mxu0 0.0
        %1663 = vmatpush1.xpose.msra.mxu0 0.0
        %1664 = vmatprep.subr.mxu0 0.0
        %1665 = vmatpush1.xpose.msra.mxu0 0.0
        %1666 = vmatprep.subr.mxu0 0.0
        %1667 = vmatpush1.xpose.msra.mxu0 0.0
        %1668 = vmatprep.subr.mxu0 0.0
        %1669 = vmatpush1.xpose.msra.mxu0 0.0
        %1670 = vmatprep.subr.mxu0 0.0
        %1671 = vmatpush1.xpose.msra.mxu0 0.0
        %1672 = vmatprep.subr.mxu0 0.0
        %1673 = vmatpush1.xpose.msra.mxu0 0.0
        %1674 = vmatprep.subr.mxu0 0.0
        %1675 = vmatpush1.xpose.msra.mxu0 0.0
        %1676 = vmatprep.subr.mxu0 0.0
        %1677 = vmatpush1.xpose.msra.mxu0 0.0
        %1678 = vmatprep.subr.mxu0 0.0
        %1679 = vmatpush1.xpose.msra.mxu0 0.0
        %1680 = vmatprep.subr.mxu0 0.0
        %1681 = vmatpush1.xpose.msra.mxu0 0.0
        %1682 = vmatprep.subr.mxu0 0.0
        %1683 = vmatpush1.xpose.msra.mxu0 0.0
        %1684 = vmatprep.subr.mxu0 0.0
        %1685 = vmatpush1.xpose.msra.mxu0 0.0
        %1686 = vmatprep.subr.mxu0 0.0
        %1687 = vmatpush1.xpose.msra.mxu0 0.0
        %1688 = vmatprep.subr.mxu0 0.0
        %1689 = vmatpush1.xpose.msra.mxu0 0.0
        %1690 = vmatprep.subr.mxu0 0.0
        %1691 = vmatpush1.xpose.msra.mxu0 0.0
        %1692 = vmatprep.subr.mxu0 0.0
        %1693 = vmatpush1.xpose.msra.mxu0 0.0
        %1694 = vmatprep.subr.mxu0 0.0
        %1695 = vmatpush1.xpose.msra.mxu0 0.0
        %1696 = vmatprep.subr.mxu0 0.0
        %1697 = vmatpush1.xpose.msra.mxu0 0.0
        %1698 = vmatprep.subr.mxu0 0.0
        %1699 = vmatpush1.xpose.msra.mxu0 0.0
        %1700 = vmatprep.subr.mxu0 0.0
        %1701 = vmatpush1.xpose.msra.mxu0 0.0
        %1702 = vmatprep.subr.mxu0 0.0
        %1703 = vmatpush1.xpose.msra.mxu0 0.0
        %1704 = vmatprep.subr.mxu0 0.0
        %1705 = vmatpush1.xpose.msra.mxu0 0.0
        %1706 = vmatprep.subr.mxu0 0.0
        %1707 = vmatpush1.xpose.msra.mxu0 0.0
        %1708 = vmatprep.subr.mxu0 0.0
        %1709 = vmatpush1.xpose.msra.mxu0 0.0
        %1710 = vmatprep.subr.mxu0 0.0
        %1711 = vmatpush1.xpose.msra.mxu0 0.0
        %1712 = vmatprep.subr.mxu0 0.0
        %1713 = vmatpush1.xpose.msra.mxu0 0.0
        %1714 = vmatprep.subr.mxu0 0.0
        %1715 = vmatpush1.xpose.msra.mxu0 0.0
        %1716 = vmatprep.subr.mxu0 0.0
        %1717 = vmatpush1.xpose.msra.mxu0 0.0
        %1718 = vmatprep.subr.mxu0 0.0
        %1719 = vmatpush1.xpose.msra.mxu0 0.0
        %1720 = vmatprep.subr.mxu0 0.0
        %1721 = vmatpush1.xpose.msra.mxu0 0.0
        %1722 = vmatprep.mubr.f32.mxu0 %v1444
        %1723 = vmatmul.mubr.f32.gmra.mrb[0].mxu0 %v1442
        %v1724 = vpop.f32.mrb[0].mxu0
        %v1725 = vadd.f32 %v1655, %v1724
        %v1726 = vpop.f32.mrb[0].mxu0
        %1727 = vdwg.mxu0
        %1728 = vmatprep.subr.mxu0 %v1289
        %1729 = vmatpush1.xpose.msra.mxu0 %v1288
        %1730 = vmatprep.subr.mxu0 %v1297
        %1731 = vmatpush1.xpose.msra.mxu0 %v1296
        %1732 = vmatprep.subr.mxu0 0.0
        %1733 = vmatpush1.xpose.msra.mxu0 0.0
        %1734 = vmatprep.subr.mxu0 0.0
        %1735 = vmatpush1.xpose.msra.mxu0 0.0
        %1736 = vmatprep.subr.mxu0 0.0
        %1737 = vmatpush1.xpose.msra.mxu0 0.0
        %1738 = vmatprep.subr.mxu0 0.0
        %1739 = vmatpush1.xpose.msra.mxu0 0.0
        %1740 = vmatprep.subr.mxu0 0.0
        %1741 = vmatpush1.xpose.msra.mxu0 0.0
        %1742 = vmatprep.subr.mxu0 0.0
        %1743 = vmatpush1.xpose.msra.mxu0 0.0
        %1744 = vmatprep.subr.mxu0 0.0
        %1745 = vmatpush1.xpose.msra.mxu0 0.0
        %1746 = vmatprep.subr.mxu0 0.0
        %1747 = vmatpush1.xpose.msra.mxu0 0.0
        %1748 = vmatprep.subr.mxu0 0.0
        %1749 = vmatpush1.xpose.msra.mxu0 0.0
        %1750 = vmatprep.subr.mxu0 0.0
        %1751 = vmatpush1.xpose.msra.mxu0 0.0
        %1752 = vmatprep.subr.mxu0 0.0
        %1753 = vmatpush1.xpose.msra.mxu0 0.0
        %1754 = vmatprep.subr.mxu0 0.0
        %1755 = vmatpush1.xpose.msra.mxu0 0.0
        %1756 = vmatprep.subr.mxu0 0.0
        %1757 = vmatpush1.xpose.msra.mxu0 0.0
        %1758 = vmatprep.subr.mxu0 0.0
        %1759 = vmatpush1.xpose.msra.mxu0 0.0
        %1760 = vmatprep.subr.mxu0 0.0
        %1761 = vmatpush1.xpose.msra.mxu0 0.0
        %1762 = vmatprep.subr.mxu0 0.0
        %1763 = vmatpush1.xpose.msra.mxu0 0.0
        %1764 = vmatprep.subr.mxu0 0.0
        %1765 = vmatpush1.xpose.msra.mxu0 0.0
        %1766 = vmatprep.subr.mxu0 0.0
        %1767 = vmatpush1.xpose.msra.mxu0 0.0
        %1768 = vmatprep.subr.mxu0 0.0
        %1769 = vmatpush1.xpose.msra.mxu0 0.0
        %1770 = vmatprep.subr.mxu0 0.0
        %1771 = vmatpush1.xpose.msra.mxu0 0.0
        %1772 = vmatprep.subr.mxu0 0.0
        %1773 = vmatpush1.xpose.msra.mxu0 0.0
        %1774 = vmatprep.subr.mxu0 0.0
        %1775 = vmatpush1.xpose.msra.mxu0 0.0
        %1776 = vmatprep.subr.mxu0 0.0
        %1777 = vmatpush1.xpose.msra.mxu0 0.0
        %1778 = vmatprep.subr.mxu0 0.0
        %1779 = vmatpush1.xpose.msra.mxu0 0.0
        %1780 = vmatprep.subr.mxu0 0.0
        %1781 = vmatpush1.xpose.msra.mxu0 0.0
        %1782 = vmatprep.subr.mxu0 0.0
        %1783 = vmatpush1.xpose.msra.mxu0 0.0
        %1784 = vmatprep.subr.mxu0 0.0
        %1785 = vmatpush1.xpose.msra.mxu0 0.0
        %1786 = vmatprep.subr.mxu0 0.0
        %1787 = vmatpush1.xpose.msra.mxu0 0.0
        %1788 = vmatprep.subr.mxu0 0.0
        %1789 = vmatpush1.xpose.msra.mxu0 0.0
        %1790 = vmatprep.subr.mxu0 0.0
        %1791 = vmatpush1.xpose.msra.mxu0 0.0
        %1792 = vmatprep.mubr.f32.mxu0 %v1515
        %1793 = vmatmul.mubr.f32.gmra.mrb[0].mxu0 %v1513
        %v1794 = vpop.f32.mrb[0].mxu0
        %v1795 = vadd.f32 %v1725, %v1794
        %v1796 = vpop.f32.mrb[0].mxu0
        %1797 = vdwg.mxu0
        %1798 = vmatprep.subr.mxu0 %v1291
        %1799 = vmatpush1.xpose.msra.mxu0 %v1290
        %1800 = vmatprep.subr.mxu0 %v1299
        %1801 = vmatpush1.xpose.msra.mxu0 %v1298
        %1802 = vmatprep.subr.mxu0 0.0
        %1803 = vmatpush1.xpose.msra.mxu0 0.0
        %1804 = vmatprep.subr.mxu0 0.0
        %1805 = vmatpush1.xpose.msra.mxu0 0.0
        %1806 = vmatprep.subr.mxu0 0.0
        %1807 = vmatpush1.xpose.msra.mxu0 0.0
        %1808 = vmatprep.subr.mxu0 0.0
        %1809 = vmatpush1.xpose.msra.mxu0 0.0
        %1810 = vmatprep.subr.mxu0 0.0
        %1811 = vmatpush1.xpose.msra.mxu0 0.0
        %1812 = vmatprep.subr.mxu0 0.0
        %1813 = vmatpush1.xpose.msra.mxu0 0.0
        %1814 = vmatprep.subr.mxu0 0.0
        %1815 = vmatpush1.xpose.msra.mxu0 0.0
        %1816 = vmatprep.subr.mxu0 0.0
        %1817 = vmatpush1.xpose.msra.mxu0 0.0
        %1818 = vmatprep.subr.mxu0 0.0
        %1819 = vmatpush1.xpose.msra.mxu0 0.0
        %1820 = vmatprep.subr.mxu0 0.0
        %1821 = vmatpush1.xpose.msra.mxu0 0.0
        %1822 = vmatprep.subr.mxu0 0.0
        %1823 = vmatpush1.xpose.msra.mxu0 0.0
        %1824 = vmatprep.subr.mxu0 0.0
        %1825 = vmatpush1.xpose.msra.mxu0 0.0
        %1826 = vmatprep.subr.mxu0 0.0
        %1827 = vmatpush1.xpose.msra.mxu0 0.0
        %1828 = vmatprep.subr.mxu0 0.0
        %1829 = vmatpush1.xpose.msra.mxu0 0.0
        %1830 = vmatprep.subr.mxu0 0.0
        %1831 = vmatpush1.xpose.msra.mxu0 0.0
        %1832 = vmatprep.subr.mxu0 0.0
        %1833 = vmatpush1.xpose.msra.mxu0 0.0
        %1834 = vmatprep.subr.mxu0 0.0
        %1835 = vmatpush1.xpose.msra.mxu0 0.0
        %1836 = vmatprep.subr.mxu0 0.0
        %1837 = vmatpush1.xpose.msra.mxu0 0.0
        %1838 = vmatprep.subr.mxu0 0.0
        %1839 = vmatpush1.xpose.msra.mxu0 0.0
        %1840 = vmatprep.subr.mxu0 0.0
        %1841 = vmatpush1.xpose.msra.mxu0 0.0
        %1842 = vmatprep.subr.mxu0 0.0
        %1843 = vmatpush1.xpose.msra.mxu0 0.0
        %1844 = vmatprep.subr.mxu0 0.0
        %1845 = vmatpush1.xpose.msra.mxu0 0.0
        %1846 = vmatprep.subr.mxu0 0.0
        %1847 = vmatpush1.xpose.msra.mxu0 0.0
        %1848 = vmatprep.subr.mxu0 0.0
        %1849 = vmatpush1.xpose.msra.mxu0 0.0
        %1850 = vmatprep.subr.mxu0 0.0
        %1851 = vmatpush1.xpose.msra.mxu0 0.0
        %1852 = vmatprep.subr.mxu0 0.0
        %1853 = vmatpush1.xpose.msra.mxu0 0.0
        %1854 = vmatprep.subr.mxu0 0.0
        %1855 = vmatpush1.xpose.msra.mxu0 0.0
        %1856 = vmatprep.subr.mxu0 0.0
        %1857 = vmatpush1.xpose.msra.mxu0 0.0
        %1858 = vmatprep.subr.mxu0 0.0
        %1859 = vmatpush1.xpose.msra.mxu0 0.0
        %1860 = vmatprep.subr.mxu0 0.0
        %1861 = vmatpush1.xpose.msra.mxu0 0.0
        %1862 = vmatprep.mubr.f32.mxu0 %v1586
        %1863 = vmatmul.mubr.f32.gmra.mrb[0].mxu0 %v1584
        %v1864 = vpop.f32.mrb[0].mxu0
        %v1865 = vadd.f32 %v1795, %v1864
        %v1866 = vpop.f32.mrb[0].mxu0
        %1867 = vdwg.mxu0
        %v1869 = vrot.slane %v1865, 1
        %vm1870 = vcmask 130048
        %v1871 = vsel %vm1870, %v1869, 0
        %1873 = vmatprep.subr.mxu0 0.0
        %1874 = vmatpush1.msra.mxu0 %v948
        %1875 = vmatprep.subr.mxu0 0.0
        %1876 = vmatpush1.msra.mxu0 %v949
        %1877 = vmatprep.subr.mxu0 0.0
        %1878 = vmatpush1.msra.mxu0 0.0
        %1879 = vmatprep.subr.mxu0 0.0
        %1880 = vmatpush1.msra.mxu0 0.0
        %1881 = vmatprep.subr.mxu0 0.0
        %1882 = vmatpush1.msra.mxu0 0.0
        %1883 = vmatprep.subr.mxu0 0.0
        %1884 = vmatpush1.msra.mxu0 0.0
        %1885 = vmatprep.subr.mxu0 0.0
        %1886 = vmatpush1.msra.mxu0 0.0
        %1887 = vmatprep.subr.mxu0 0.0
        %1888 = vmatpush1.msra.mxu0 0.0
        %1889 = vmatprep.subr.mxu0 0.0
        %1890 = vmatpush1.msra.mxu0 0.0
        %1891 = vmatprep.subr.mxu0 0.0
        %1892 = vmatpush1.msra.mxu0 0.0
        %1893 = vmatprep.subr.mxu0 0.0
        %1894 = vmatpush1.msra.mxu0 0.0
        %1895 = vmatprep.subr.mxu0 0.0
        %1896 = vmatpush1.msra.mxu0 0.0
        %1897 = vmatprep.subr.mxu0 0.0
        %1898 = vmatpush1.msra.mxu0 0.0
        %1899 = vmatprep.subr.mxu0 0.0
        %1900 = vmatpush1.msra.mxu0 0.0
        %1901 = vmatprep.subr.mxu0 0.0
        %1902 = vmatpush1.msra.mxu0 0.0
        %1903 = vmatprep.subr.mxu0 0.0
        %1904 = vmatpush1.msra.mxu0 0.0
        %1905 = vmatprep.subr.mxu0 0.0
        %1906 = vmatpush1.msra.mxu0 0.0
        %1907 = vmatprep.subr.mxu0 0.0
        %1908 = vmatpush1.msra.mxu0 0.0
        %1909 = vmatprep.subr.mxu0 0.0
        %1910 = vmatpush1.msra.mxu0 0.0
        %1911 = vmatprep.subr.mxu0 0.0
        %1912 = vmatpush1.msra.mxu0 0.0
        %1913 = vmatprep.subr.mxu0 0.0
        %1914 = vmatpush1.msra.mxu0 0.0
        %1915 = vmatprep.subr.mxu0 0.0
        %1916 = vmatpush1.msra.mxu0 0.0
        %1917 = vmatprep.subr.mxu0 0.0
        %1918 = vmatpush1.msra.mxu0 0.0
        %1919 = vmatprep.subr.mxu0 0.0
        %1920 = vmatpush1.msra.mxu0 0.0
        %1921 = vmatprep.subr.mxu0 0.0
        %1922 = vmatpush1.msra.mxu0 0.0
        %1923 = vmatprep.subr.mxu0 0.0
        %1924 = vmatpush1.msra.mxu0 0.0
        %1925 = vmatprep.subr.mxu0 0.0
        %1926 = vmatpush1.msra.mxu0 0.0
        %1927 = vmatprep.subr.mxu0 0.0
        %1928 = vmatpush1.msra.mxu0 0.0
        %1929 = vmatprep.subr.mxu0 0.0
        %1930 = vmatpush1.msra.mxu0 0.0
        %1931 = vmatprep.subr.mxu0 0.0
        %1932 = vmatpush1.msra.mxu0 0.0
        %1933 = vmatprep.subr.mxu0 0.0
        %1934 = vmatpush1.msra.mxu0 0.0
        %1935 = vmatprep.subr.mxu0 0.0
        %1936 = vmatpush1.msra.mxu0 0.0
        %1937 = vmatprep.mubr.f32.mxu0 0.0
        %1938 = vmatmul.mubr.f32.gmra.mrb[0].mxu0 %v1871
        %v1939 = vpop.f32.mrb[0].mxu0
        %v1940 = vadd.f32 0.0, %v1939
        %v1941 = vpop.f32.mrb[0].mxu0
        %1942 = vdwg.mxu0
        %v1943 = vsel %vm1870, %v1865, 0
        %1945 = vmatprep.subr.mxu0 0.0
        %1946 = vmatpush1.msra.mxu0 %v946
        %1947 = vmatprep.subr.mxu0 0.0
        %1948 = vmatpush1.msra.mxu0 %v947
        %1949 = vmatprep.subr.mxu0 0.0
        %1950 = vmatpush1.msra.mxu0 0.0
        %1951 = vmatprep.subr.mxu0 0.0
        %1952 = vmatpush1.msra.mxu0 0.0
        %1953 = vmatprep.subr.mxu0 0.0
        %1954 = vmatpush1.msra.mxu0 0.0
        %1955 = vmatprep.subr.mxu0 0.0
        %1956 = vmatpush1.msra.mxu0 0.0
        %1957 = vmatprep.subr.mxu0 0.0
        %1958 = vmatpush1.msra.mxu0 0.0
        %1959 = vmatprep.subr.mxu0 0.0
        %1960 = vmatpush1.msra.mxu0 0.0
        %1961 = vmatprep.subr.mxu0 0.0
        %1962 = vmatpush1.msra.mxu0 0.0
        %1963 = vmatprep.subr.mxu0 0.0
        %1964 = vmatpush1.msra.mxu0 0.0
        %1965 = vmatprep.subr.mxu0 0.0
        %1966 = vmatpush1.msra.mxu0 0.0
        %1967 = vmatprep.subr.mxu0 0.0
        %1968 = vmatpush1.msra.mxu0 0.0
        %1969 = vmatprep.subr.mxu0 0.0
        %1970 = vmatpush1.msra.mxu0 0.0
        %1971 = vmatprep.subr.mxu0 0.0
        %1972 = vmatpush1.msra.mxu0 0.0
        %1973 = vmatprep.subr.mxu0 0.0
        %1974 = vmatpush1.msra.mxu0 0.0
        %1975 = vmatprep.subr.mxu0 0.0
        %1976 = vmatpush1.msra.mxu0 0.0
        %1977 = vmatprep.subr.mxu0 0.0
        %1978 = vmatpush1.msra.mxu0 0.0
        %1979 = vmatprep.subr.mxu0 0.0
        %1980 = vmatpush1.msra.mxu0 0.0
        %1981 = vmatprep.subr.mxu0 0.0
        %1982 = vmatpush1.msra.mxu0 0.0
        %1983 = vmatprep.subr.mxu0 0.0
        %1984 = vmatpush1.msra.mxu0 0.0
        %1985 = vmatprep.subr.mxu0 0.0
        %1986 = vmatpush1.msra.mxu0 0.0
        %1987 = vmatprep.subr.mxu0 0.0
        %1988 = vmatpush1.msra.mxu0 0.0
        %1989 = vmatprep.subr.mxu0 0.0
        %1990 = vmatpush1.msra.mxu0 0.0
        %1991 = vmatprep.subr.mxu0 0.0
        %1992 = vmatpush1.msra.mxu0 0.0
        %1993 = vmatprep.subr.mxu0 0.0
        %1994 = vmatpush1.msra.mxu0 0.0
        %1995 = vmatprep.subr.mxu0 0.0
        %1996 = vmatpush1.msra.mxu0 0.0
        %1997 = vmatprep.subr.mxu0 0.0
        %1998 = vmatpush1.msra.mxu0 0.0
        %1999 = vmatprep.subr.mxu0 0.0
        %2000 = vmatpush1.msra.mxu0 0.0
        %2001 = vmatprep.subr.mxu0 0.0
        %2002 = vmatpush1.msra.mxu0 0.0
        %2003 = vmatprep.subr.mxu0 0.0
        %2004 = vmatpush1.msra.mxu0 0.0
        %2005 = vmatprep.subr.mxu0 0.0
        %2006 = vmatpush1.msra.mxu0 0.0
        %2007 = vmatprep.subr.mxu0 0.0
        %2008 = vmatpush1.msra.mxu0 0.0
        %2009 = vmatprep.mubr.f32.mxu0 0.0
        %2010 = vmatmul.mubr.f32.gmra.mrb[0].mxu0 %v1943
        %v2011 = vpop.f32.mrb[0].mxu0
        %v2012 = vadd.f32 %v1940, %v2011
        %v2013 = vpop.f32.mrb[0].mxu0
        %2014 = vdwg.mxu0
        %v2015 = vrot.slane %v1865, 2
        %v2016 = vsel %vm1870, %v2015, 0
        %2018 = vmatprep.subr.mxu0 0.0
        %2019 = vmatpush1.msra.mxu0 %v950
        %2020 = vmatprep.subr.mxu0 0.0
        %2021 = vmatpush1.msra.mxu0 %v951
        %2022 = vmatprep.subr.mxu0 0.0
        %2023 = vmatpush1.msra.mxu0 0.0
        %2024 = vmatprep.subr.mxu0 0.0
        %2025 = vmatpush1.msra.mxu0 0.0
        %2026 = vmatprep.subr.mxu0 0.0
        %2027 = vmatpush1.msra.mxu0 0.0
        %2028 = vmatprep.subr.mxu0 0.0
        %2029 = vmatpush1.msra.mxu0 0.0
        %2030 = vmatprep.subr.mxu0 0.0
        %2031 = vmatpush1.msra.mxu0 0.0
        %2032 = vmatprep.subr.mxu0 0.0
        %2033 = vmatpush1.msra.mxu0 0.0
        %2034 = vmatprep.subr.mxu0 0.0
        %2035 = vmatpush1.msra.mxu0 0.0
        %2036 = vmatprep.subr.mxu0 0.0
        %2037 = vmatpush1.msra.mxu0 0.0
        %2038 = vmatprep.subr.mxu0 0.0
        %2039 = vmatpush1.msra.mxu0 0.0
        %2040 = vmatprep.subr.mxu0 0.0
        %2041 = vmatpush1.msra.mxu0 0.0
        %2042 = vmatprep.subr.mxu0 0.0
        %2043 = vmatpush1.msra.mxu0 0.0
        %2044 = vmatprep.subr.mxu0 0.0
        %2045 = vmatpush1.msra.mxu0 0.0
        %2046 = vmatprep.subr.mxu0 0.0
        %2047 = vmatpush1.msra.mxu0 0.0
        %2048 = vmatprep.subr.mxu0 0.0
        %2049 = vmatpush1.msra.mxu0 0.0
        %2050 = vmatprep.subr.mxu0 0.0
        %2051 = vmatpush1.msra.mxu0 0.0
        %2052 = vmatprep.subr.mxu0 0.0
        %2053 = vmatpush1.msra.mxu0 0.0
        %2054 = vmatprep.subr.mxu0 0.0
        %2055 = vmatpush1.msra.mxu0 0.0
        %2056 = vmatprep.subr.mxu0 0.0
        %2057 = vmatpush1.msra.mxu0 0.0
        %2058 = vmatprep.subr.mxu0 0.0
        %2059 = vmatpush1.msra.mxu0 0.0
        %2060 = vmatprep.subr.mxu0 0.0
        %2061 = vmatpush1.msra.mxu0 0.0
        %2062 = vmatprep.subr.mxu0 0.0
        %2063 = vmatpush1.msra.mxu0 0.0
        %2064 = vmatprep.subr.mxu0 0.0
        %2065 = vmatpush1.msra.mxu0 0.0
        %2066 = vmatprep.subr.mxu0 0.0
        %2067 = vmatpush1.msra.mxu0 0.0
        %2068 = vmatprep.subr.mxu0 0.0
        %2069 = vmatpush1.msra.mxu0 0.0
        %2070 = vmatprep.subr.mxu0 0.0
        %2071 = vmatpush1.msra.mxu0 0.0
        %2072 = vmatprep.subr.mxu0 0.0
        %2073 = vmatpush1.msra.mxu0 0.0
        %2074 = vmatprep.subr.mxu0 0.0
        %2075 = vmatpush1.msra.mxu0 0.0
        %2076 = vmatprep.subr.mxu0 0.0
        %2077 = vmatpush1.msra.mxu0 0.0
        %2078 = vmatprep.subr.mxu0 0.0
        %2079 = vmatpush1.msra.mxu0 0.0
        %2080 = vmatprep.subr.mxu0 0.0
        %2081 = vmatpush1.msra.mxu0 0.0
        %2082 = vmatprep.mubr.f32.mxu0 0.0
        %2083 = vmatmul.mubr.f32.gmra.mrb[0].mxu0 %v2016
        %v2084 = vpop.f32.mrb[0].mxu0
        %v2085 = vadd.f32 0.0, %v2084
        %v2086 = vpop.f32.mrb[0].mxu0
        %2087 = vdwg.mxu0
        %v2088 = vadd.f32 %v2012, %v2085
        %v2089 = vrot.slane %v1865, 3
        %v2090 = vsel %vm1870, %v2089, 0
        %2092 = vmatprep.subr.mxu0 0.0
        %2093 = vmatpush1.msra.mxu0 %v952
        %2094 = vmatprep.subr.mxu0 0.0
        %2095 = vmatpush1.msra.mxu0 %v953
        %2096 = vmatprep.subr.mxu0 0.0
        %2097 = vmatpush1.msra.mxu0 0.0
        %2098 = vmatprep.subr.mxu0 0.0
        %2099 = vmatpush1.msra.mxu0 0.0
        %2100 = vmatprep.subr.mxu0 0.0
        %2101 = vmatpush1.msra.mxu0 0.0
        %2102 = vmatprep.subr.mxu0 0.0
        %2103 = vmatpush1.msra.mxu0 0.0
        %2104 = vmatprep.subr.mxu0 0.0
        %2105 = vmatpush1.msra.mxu0 0.0
        %2106 = vmatprep.subr.mxu0 0.0
        %2107 = vmatpush1.msra.mxu0 0.0
        %2108 = vmatprep.subr.mxu0 0.0
        %2109 = vmatpush1.msra.mxu0 0.0
        %2110 = vmatprep.subr.mxu0 0.0
        %2111 = vmatpush1.msra.mxu0 0.0
        %2112 = vmatprep.subr.mxu0 0.0
        %2113 = vmatpush1.msra.mxu0 0.0
        %2114 = vmatprep.subr.mxu0 0.0
        %2115 = vmatpush1.msra.mxu0 0.0
        %2116 = vmatprep.subr.mxu0 0.0
        %2117 = vmatpush1.msra.mxu0 0.0
        %2118 = vmatprep.subr.mxu0 0.0
        %2119 = vmatpush1.msra.mxu0 0.0
        %2120 = vmatprep.subr.mxu0 0.0
        %2121 = vmatpush1.msra.mxu0 0.0
        %2122 = vmatprep.subr.mxu0 0.0
        %2123 = vmatpush1.msra.mxu0 0.0
        %2124 = vmatprep.subr.mxu0 0.0
        %2125 = vmatpush1.msra.mxu0 0.0
        %2126 = vmatprep.subr.mxu0 0.0
        %2127 = vmatpush1.msra.mxu0 0.0
        %2128 = vmatprep.subr.mxu0 0.0
        %2129 = vmatpush1.msra.mxu0 0.0
        %2130 = vmatprep.subr.mxu0 0.0
        %2131 = vmatpush1.msra.mxu0 0.0
        %2132 = vmatprep.subr.mxu0 0.0
        %2133 = vmatpush1.msra.mxu0 0.0
        %2134 = vmatprep.subr.mxu0 0.0
        %2135 = vmatpush1.msra.mxu0 0.0
        %2136 = vmatprep.subr.mxu0 0.0
        %2137 = vmatpush1.msra.mxu0 0.0
        %2138 = vmatprep.subr.mxu0 0.0
        %2139 = vmatpush1.msra.mxu0 0.0
        %2140 = vmatprep.subr.mxu0 0.0
        %2141 = vmatpush1.msra.mxu0 0.0
        %2142 = vmatprep.subr.mxu0 0.0
        %2143 = vmatpush1.msra.mxu0 0.0
        %2144 = vmatprep.subr.mxu0 0.0
        %2145 = vmatpush1.msra.mxu0 0.0
        %2146 = vmatprep.subr.mxu0 0.0
        %2147 = vmatpush1.msra.mxu0 0.0
        %2148 = vmatprep.subr.mxu0 0.0
        %2149 = vmatpush1.msra.mxu0 0.0
        %2150 = vmatprep.subr.mxu0 0.0
        %2151 = vmatpush1.msra.mxu0 0.0
        %2152 = vmatprep.subr.mxu0 0.0
        %2153 = vmatpush1.msra.mxu0 0.0
        %2154 = vmatprep.subr.mxu0 0.0
        %2155 = vmatpush1.msra.mxu0 0.0
        %2156 = vmatprep.mubr.f32.mxu0 0.0
        %2157 = vmatmul.mubr.f32.gmra.mrb[0].mxu0 %v2090
        %v2158 = vpop.f32.mrb[0].mxu0
        %v2159 = vadd.f32 0.0, %v2158
        %v2160 = vpop.f32.mrb[0].mxu0
        %2161 = vdwg.mxu0
        %v2162 = vadd.f32 %v2088, %v2159
        %v2164 = vsel %vm1300, 0.0, 0
        %2166 = vmatprep.subr.mxu0 0.0
        %2167 = vmatpush1.msra.mxu0 %v954
        %2168 = vmatprep.subr.mxu0 0.0
        %2169 = vmatpush1.msra.mxu0 %v955
        %2170 = vmatprep.subr.mxu0 0.0
        %2171 = vmatpush1.msra.mxu0 %v956
        %2172 = vmatprep.subr.mxu0 0.0
        %2173 = vmatpush1.msra.mxu0 %v957
        %2174 = vmatprep.subr.mxu0 0.0
        %2175 = vmatpush1.msra.mxu0 0.0
        %2176 = vmatprep.subr.mxu0 0.0
        %2177 = vmatpush1.msra.mxu0 0.0
        %2178 = vmatprep.subr.mxu0 0.0
        %2179 = vmatpush1.msra.mxu0 0.0
        %2180 = vmatprep.subr.mxu0 0.0
        %2181 = vmatpush1.msra.mxu0 0.0
        %2182 = vmatprep.subr.mxu0 0.0
        %2183 = vmatpush1.msra.mxu0 0.0
        %2184 = vmatprep.subr.mxu0 0.0
        %2185 = vmatpush1.msra.mxu0 0.0
        %2186 = vmatprep.subr.mxu0 0.0
        %2187 = vmatpush1.msra.mxu0 0.0
        %2188 = vmatprep.subr.mxu0 0.0
        %2189 = vmatpush1.msra.mxu0 0.0
        %2190 = vmatprep.subr.mxu0 0.0
        %2191 = vmatpush1.msra.mxu0 0.0
        %2192 = vmatprep.subr.mxu0 0.0
        %2193 = vmatpush1.msra.mxu0 0.0
        %2194 = vmatprep.subr.mxu0 0.0
        %2195 = vmatpush1.msra.mxu0 0.0
        %2196 = vmatprep.subr.mxu0 0.0
        %2197 = vmatpush1.msra.mxu0 0.0
        %2198 = vmatprep.subr.mxu0 0.0
        %2199 = vmatpush1.msra.mxu0 0.0
        %2200 = vmatprep.subr.mxu0 0.0
        %2201 = vmatpush1.msra.mxu0 0.0
        %2202 = vmatprep.subr.mxu0 0.0
        %2203 = vmatpush1.msra.mxu0 0.0
        %2204 = vmatprep.subr.mxu0 0.0
        %2205 = vmatpush1.msra.mxu0 0.0
        %2206 = vmatprep.subr.mxu0 0.0
        %2207 = vmatpush1.msra.mxu0 0.0
        %2208 = vmatprep.subr.mxu0 0.0
        %2209 = vmatpush1.msra.mxu0 0.0
        %2210 = vmatprep.subr.mxu0 0.0
        %2211 = vmatpush1.msra.mxu0 0.0
        %2212 = vmatprep.subr.mxu0 0.0
        %2213 = vmatpush1.msra.mxu0 0.0
        %2214 = vmatprep.subr.mxu0 0.0
        %2215 = vmatpush1.msra.mxu0 0.0
        %2216 = vmatprep.subr.mxu0 0.0
        %2217 = vmatpush1.msra.mxu0 0.0
        %2218 = vmatprep.subr.mxu0 0.0
        %2219 = vmatpush1.msra.mxu0 0.0
        %2220 = vmatprep.subr.mxu0 0.0
        %2221 = vmatpush1.msra.mxu0 0.0
        %2222 = vmatprep.subr.mxu0 0.0
        %2223 = vmatpush1.msra.mxu0 0.0
        %2224 = vmatprep.subr.mxu0 0.0
        %2225 = vmatpush1.msra.mxu0 0.0
        %2226 = vmatprep.subr.mxu0 0.0
        %2227 = vmatpush1.msra.mxu0 0.0
        %2228 = vmatprep.subr.mxu0 0.0
        %2229 = vmatpush1.msra.mxu0 0.0
        %2230 = vmatprep.mubr.f32.mxu0 0.0
        %2231 = vmatmul.mubr.f32.gmra.mrb[0].mxu0 %v2164
        %v2232 = vpop.f32.mrb[0].mxu0
        %v2233 = vadd.f32 0.0, %v2232
        %v2234 = vpop.f32.mrb[0].mxu0
        %2235 = vdwg.mxu0
        %v2236 = vadd.f32 %v2162, %v2233
        %v2237 = vadd.f32 %v2236, %v958
        %v2238 = vxor.u32 %v2237, 2147483648
        %v2239 = vmul.f32 %v2238, 1.442695
        %v2240 = vpow.pop %v2239
        %v2241 = vadd.f32 %v2240, 1.0
        %v2242 = vrcp.pop %v2241
        %v2243 = vmul.f32 1.0, %v2242
        %v2244 = vtanh.pop %v2237
        %v2245 = vmul.f32 %v2243, 0.0
        %2247 = vrot.lane.b32.xlu0 %v2244, 64
        %v2248 = vpop.permute.xlu0 %2247
        %v2250 = vmul.f32 %v2243, %v2248
        %2252 = vrot.lane.b32.xlu0 %v2250, 32
        %v2253 = vpop.permute.xlu0 %2252
        %v2255 = vadd.f32 %v2245, %v2253
        %v2256 = vtanh.pop %v2255
        %2258 = vrot.lane.b32.xlu0 %v2256, 64
        %v2259 = vpop.permute.xlu0 %2258
        %v2261 = vmul.f32 %v2243, %v2259
        %2263 = vrot.lane.b32.xlu0 %v2261, 32
        %v2264 = vpop.permute.xlu0 %2263
        %v2265 = vsel %vm1300, %v2264, 0
        %2267 = vmatprep.subr.mxu0 0.0
        %2268 = vmatpush1.msra.mxu0 %v966
        %2269 = vmatprep.subr.mxu0 0.0
        %2270 = vmatpush1.msra.mxu0 %v967
        %2271 = vmatprep.subr.mxu0 0.0
        %2272 = vmatpush1.msra.mxu0 %v968
        %2273 = vmatprep.subr.mxu0 0.0
        %2274 = vmatpush1.msra.mxu0 %v969
        %2275 = vmatprep.subr.mxu0 0.0
        %2276 = vmatpush1.msra.mxu0 0.0
        %2277 = vmatprep.subr.mxu0 0.0
        %2278 = vmatpush1.msra.mxu0 0.0
        %2279 = vmatprep.subr.mxu0 0.0
        %2280 = vmatpush1.msra.mxu0 0.0
        %2281 = vmatprep.subr.mxu0 0.0
        %2282 = vmatpush1.msra.mxu0 0.0
        %2283 = vmatprep.subr.mxu0 0.0
        %2284 = vmatpush1.msra.mxu0 0.0
        %2285 = vmatprep.subr.mxu0 0.0
        %2286 = vmatpush1.msra.mxu0 0.0
        %2287 = vmatprep.subr.mxu0 0.0
        %2288 = vmatpush1.msra.mxu0 0.0
        %2289 = vmatprep.subr.mxu0 0.0
        %2290 = vmatpush1.msra.mxu0 0.0
        %2291 = vmatprep.subr.mxu0 0.0
        %2292 = vmatpush1.msra.mxu0 0.0
        %2293 = vmatprep.subr.mxu0 0.0
        %2294 = vmatpush1.msra.mxu0 0.0
        %2295 = vmatprep.subr.mxu0 0.0
        %2296 = vmatpush1.msra.mxu0 0.0
        %2297 = vmatprep.subr.mxu0 0.0
        %2298 = vmatpush1.msra.mxu0 0.0
        %2299 = vmatprep.subr.mxu0 0.0
        %2300 = vmatpush1.msra.mxu0 0.0
        %2301 = vmatprep.subr.mxu0 0.0
        %2302 = vmatpush1.msra.mxu0 0.0
        %2303 = vmatprep.subr.mxu0 0.0
        %2304 = vmatpush1.msra.mxu0 0.0
        %2305 = vmatprep.subr.mxu0 0.0
        %2306 = vmatpush1.msra.mxu0 0.0
        %2307 = vmatprep.subr.mxu0 0.0
        %2308 = vmatpush1.msra.mxu0 0.0
        %2309 = vmatprep.subr.mxu0 0.0
        %2310 = vmatpush1.msra.mxu0 0.0
        %2311 = vmatprep.subr.mxu0 0.0
        %2312 = vmatpush1.msra.mxu0 0.0
        %2313 = vmatprep.subr.mxu0 0.0
        %2314 = vmatpush1.msra.mxu0 0.0
        %2315 = vmatprep.subr.mxu0 0.0
        %2316 = vmatpush1.msra.mxu0 0.0
        %2317 = vmatprep.subr.mxu0 0.0
        %2318 = vmatpush1.msra.mxu0 0.0
        %2319 = vmatprep.subr.mxu0 0.0
        %2320 = vmatpush1.msra.mxu0 0.0
        %2321 = vmatprep.subr.mxu0 0.0
        %2322 = vmatpush1.msra.mxu0 0.0
        %2323 = vmatprep.subr.mxu0 0.0
        %2324 = vmatpush1.msra.mxu0 0.0
        %2325 = vmatprep.subr.mxu0 0.0
        %2326 = vmatpush1.msra.mxu0 0.0
        %2327 = vmatprep.subr.mxu0 0.0
        %2328 = vmatpush1.msra.mxu0 0.0
        %2329 = vmatprep.subr.mxu0 0.0
        %2330 = vmatpush1.msra.mxu0 0.0
        %2331 = vmatprep.mubr.f32.mxu0 0.0
        %2332 = vmatmul.mubr.f32.gmra.mrb[0].mxu0 %v2265
        %v2333 = vpop.f32.mrb[0].mxu0
        %v2334 = vadd.f32 %v970, %v2333
        %v2335 = vpop.f32.mrb[0].mxu0
        %2336 = vdwg.mxu0
        %v2337 = vmul.f32 %v2334, 1.442695
        %v2338 = vpow.pop %v2337
        %v2339 = vld [vmem:[%s854] sm:$0x1]
        %2341 = vrot.lane.b32.xlu0 %v2338, 118
        %v2342 = vpop.permute.xlu0 %2341
        %v2344 = vmul.f32 %v2339, %v2342
        %v2345 = vadd.f32 %v2334, %v2344
        %2346 = vmatprep.subr.mxu0 0.0
        %2347 = vmatpush1.msra.mxu0 %v961
        %2348 = vmatprep.subr.mxu0 0.0
        %2349 = vmatpush1.msra.mxu0 %v962
        %2350 = vmatprep.subr.mxu0 0.0
        %2351 = vmatpush1.msra.mxu0 %v963
        %2352 = vmatprep.subr.mxu0 0.0
        %2353 = vmatpush1.msra.mxu0 %v964
        %2354 = vmatprep.subr.mxu0 0.0
        %2355 = vmatpush1.msra.mxu0 0.0
        %2356 = vmatprep.subr.mxu0 0.0
        %2357 = vmatpush1.msra.mxu0 0.0
        %2358 = vmatprep.subr.mxu0 0.0
        %2359 = vmatpush1.msra.mxu0 0.0
        %2360 = vmatprep.subr.mxu0 0.0
        %2361 = vmatpush1.msra.mxu0 0.0
        %2362 = vmatprep.subr.mxu0 0.0
        %2363 = vmatpush1.msra.mxu0 0.0
        %2364 = vmatprep.subr.mxu0 0.0
        %2365 = vmatpush1.msra.mxu0 0.0
        %2366 = vmatprep.subr.mxu0 0.0
        %2367 = vmatpush1.msra.mxu0 0.0
        %2368 = vmatprep.subr.mxu0 0.0
        %2369 = vmatpush1.msra.mxu0 0.0
        %2370 = vmatprep.subr.mxu0 0.0
        %2371 = vmatpush1.msra.mxu0 0.0
        %2372 = vmatprep.subr.mxu0 0.0
        %2373 = vmatpush1.msra.mxu0 0.0
        %2374 = vmatprep.subr.mxu0 0.0
        %2375 = vmatpush1.msra.mxu0 0.0
        %2376 = vmatprep.subr.mxu0 0.0
        %2377 = vmatpush1.msra.mxu0 0.0
        %2378 = vmatprep.subr.mxu0 0.0
        %2379 = vmatpush1.msra.mxu0 0.0
        %2380 = vmatprep.subr.mxu0 0.0
        %2381 = vmatpush1.msra.mxu0 0.0
        %2382 = vmatprep.subr.mxu0 0.0
        %2383 = vmatpush1.msra.mxu0 0.0
        %2384 = vmatprep.subr.mxu0 0.0
        %2385 = vmatpush1.msra.mxu0 0.0
        %2386 = vmatprep.subr.mxu0 0.0
        %2387 = vmatpush1.msra.mxu0 0.0
        %2388 = vmatprep.subr.mxu0 0.0
        %2389 = vmatpush1.msra.mxu0 0.0
        %2390 = vmatprep.subr.mxu0 0.0
        %2391 = vmatpush1.msra.mxu0 0.0
        %2392 = vmatprep.subr.mxu0 0.0
        %2393 = vmatpush1.msra.mxu0 0.0
        %2394 = vmatprep.subr.mxu0 0.0
        %2395 = vmatpush1.msra.mxu0 0.0
        %2396 = vmatprep.subr.mxu0 0.0
        %2397 = vmatpush1.msra.mxu0 0.0
        %2398 = vmatprep.subr.mxu0 0.0
        %2399 = vmatpush1.msra.mxu0 0.0
        %2400 = vmatprep.subr.mxu0 0.0
        %2401 = vmatpush1.msra.mxu0 0.0
        %2402 = vmatprep.subr.mxu0 0.0
        %2403 = vmatpush1.msra.mxu0 0.0
        %2404 = vmatprep.subr.mxu0 0.0
        %2405 = vmatpush1.msra.mxu0 0.0
        %2406 = vmatprep.subr.mxu0 0.0
        %2407 = vmatpush1.msra.mxu0 0.0
        %2408 = vmatprep.subr.mxu0 0.0
        %2409 = vmatpush1.msra.mxu0 0.0
        %2410 = vmatprep.mubr.f32.mxu0 0.0
        %2411 = vmatmul.mubr.f32.gmra.mrb[0].mxu0 %v2164
        %v2412 = vpop.f32.mrb[0].mxu0
        %v2413 = vadd.f32 0.0, %v2412
        %v2414 = vpop.f32.mrb[0].mxu0
        %2415 = vdwg.mxu0
        %vm2416 = vcmask 80896
        %v2418 = vsel %vm2416, %v2345, 0
        %vm2420 = vcmask 1041408
        %v2422 = vsel %vm2420, %v960, 0
        %2424 = vmatprep.subr.mxu0 0.0
        %2425 = vmatpush1.msra.mxu0 %v959
        %2426 = vmatprep.subr.mxu0 0.0
        %2427 = vmatpush1.msra.mxu0 %v2422
        %2428 = vmatprep.subr.mxu0 0.0
        %2429 = vmatpush1.msra.mxu0 0.0
        %2430 = vmatprep.subr.mxu0 0.0
        %2431 = vmatpush1.msra.mxu0 0.0
        %2432 = vmatprep.subr.mxu0 0.0
        %2433 = vmatpush1.msra.mxu0 0.0
        %2434 = vmatprep.subr.mxu0 0.0
        %2435 = vmatpush1.msra.mxu0 0.0
        %2436 = vmatprep.subr.mxu0 0.0
        %2437 = vmatpush1.msra.mxu0 0.0
        %2438 = vmatprep.subr.mxu0 0.0
        %2439 = vmatpush1.msra.mxu0 0.0
        %2440 = vmatprep.subr.mxu0 0.0
        %2441 = vmatpush1.msra.mxu0 0.0
        %2442 = vmatprep.subr.mxu0 0.0
        %2443 = vmatpush1.msra.mxu0 0.0
        %2444 = vmatprep.subr.mxu0 0.0
        %2445 = vmatpush1.msra.mxu0 0.0
        %2446 = vmatprep.subr.mxu0 0.0
        %2447 = vmatpush1.msra.mxu0 0.0
        %2448 = vmatprep.subr.mxu0 0.0
        %2449 = vmatpush1.msra.mxu0 0.0
        %2450 = vmatprep.subr.mxu0 0.0
        %2451 = vmatpush1.msra.mxu0 0.0
        %2452 = vmatprep.subr.mxu0 0.0
        %2453 = vmatpush1.msra.mxu0 0.0
        %2454 = vmatprep.subr.mxu0 0.0
        %2455 = vmatpush1.msra.mxu0 0.0
        %2456 = vmatprep.subr.mxu0 0.0
        %2457 = vmatpush1.msra.mxu0 0.0
        %2458 = vmatprep.subr.mxu0 0.0
        %2459 = vmatpush1.msra.mxu0 0.0
        %2460 = vmatprep.subr.mxu0 0.0
        %2461 = vmatpush1.msra.mxu0 0.0
        %2462 = vmatprep.subr.mxu0 0.0
        %2463 = vmatpush1.msra.mxu0 0.0
        %2464 = vmatprep.subr.mxu0 0.0
        %2465 = vmatpush1.msra.mxu0 0.0
        %2466 = vmatprep.subr.mxu0 0.0
        %2467 = vmatpush1.msra.mxu0 0.0
        %2468 = vmatprep.subr.mxu0 0.0
        %2469 = vmatpush1.msra.mxu0 0.0
        %2470 = vmatprep.subr.mxu0 0.0
        %2471 = vmatpush1.msra.mxu0 0.0
        %2472 = vmatprep.subr.mxu0 0.0
        %2473 = vmatpush1.msra.mxu0 0.0
        %2474 = vmatprep.subr.mxu0 0.0
        %2475 = vmatpush1.msra.mxu0 0.0
        %2476 = vmatprep.subr.mxu0 0.0
        %2477 = vmatpush1.msra.mxu0 0.0
        %2478 = vmatprep.subr.mxu0 0.0
        %2479 = vmatpush1.msra.mxu0 0.0
        %2480 = vmatprep.subr.mxu0 0.0
        %2481 = vmatpush1.msra.mxu0 0.0
        %2482 = vmatprep.subr.mxu0 0.0
        %2483 = vmatpush1.msra.mxu0 0.0
        %2484 = vmatprep.subr.mxu0 0.0
        %2485 = vmatpush1.msra.mxu0 0.0
        %2486 = vmatprep.subr.mxu0 0.0
        %2487 = vmatpush1.msra.mxu0 0.0
        %2488 = vmatprep.mubr.f32.mxu0 0.0
        %2489 = vmatmul.mubr.f32.gmra.mrb[0].mxu0 %v2418
        %v2490 = vpop.f32.mrb[0].mxu0
        %v2491 = vadd.f32 %v2413, %v2490
        %v2492 = vpop.f32.mrb[0].mxu0
        %2493 = vdwg.mxu0
        %v2494 = vadd.f32 %v2491, %v965
        %v2495 = vxor.u32 %v2494, 2147483648
        %v2496 = vmul.f32 %v2495, 1.442695
        %v2497 = vpow.pop %v2496
        %v2498 = vadd.f32 %v2497, 1.0
        %v2499 = vrcp.pop %v2498
        %v2500 = vmul.f32 1.0, %v2499
        %v2501 = vtanh.pop %v2494
        %v2502 = vmul.f32 %v2500, 0.0
        %2504 = vrot.lane.b32.xlu0 %v2501, 64
        %v2505 = vpop.permute.xlu0 %2504
        %v2507 = vmul.f32 %v2500, %v2505
        %2509 = vrot.lane.b32.xlu0 %v2507, 32
        %v2510 = vpop.permute.xlu0 %2509
        %v2512 = vadd.f32 %v2502, %v2510
        %v2513 = vtanh.pop %v2512
        %2515 = vrot.lane.b32.xlu0 %v2513, 64
        %v2516 = vpop.permute.xlu0 %2515
        %v2518 = vmul.f32 %v2500, %v2516
        %2520 = vrot.lane.b32.xlu0 %v2518, 32
        %v2521 = vpop.permute.xlu0 %2520
        %v2522 = vlaneseq
        %v2523 = vshrl.u32 %v2522, 7
        %v2524 = vsub.s32 1, %v2523
        %v2525 = vrot.slane %v979, %v2524
        %v2527 = vsel %vm1300, %v2521, 0
        %2529 = vmatprep.subr.mxu0 %v972
        %2530 = vmatpush1.msra.mxu0 %v971
        %2531 = vmatprep.subr.mxu0 %v974
        %2532 = vmatpush1.msra.mxu0 %v973
        %2533 = vmatprep.subr.mxu0 %v976
        %2534 = vmatpush1.msra.mxu0 %v975
        %2535 = vmatprep.subr.mxu0 %v978
        %2536 = vmatpush1.msra.mxu0 %v977
        %2537 = vmatprep.subr.mxu0 0.0
        %2538 = vmatpush1.msra.mxu0 0.0
        %2539 = vmatprep.subr.mxu0 0.0
        %2540 = vmatpush1.msra.mxu0 0.0
        %2541 = vmatprep.subr.mxu0 0.0
        %2542 = vmatpush1.msra.mxu0 0.0
        %2543 = vmatprep.subr.mxu0 0.0
        %2544 = vmatpush1.msra.mxu0 0.0
        %2545 = vmatprep.subr.mxu0 0.0
        %2546 = vmatpush1.msra.mxu0 0.0
        %2547 = vmatprep.subr.mxu0 0.0
        %2548 = vmatpush1.msra.mxu0 0.0
        %2549 = vmatprep.subr.mxu0 0.0
        %2550 = vmatpush1.msra.mxu0 0.0
        %2551 = vmatprep.subr.mxu0 0.0
        %2552 = vmatpush1.msra.mxu0 0.0
        %2553 = vmatprep.subr.mxu0 0.0
        %2554 = vmatpush1.msra.mxu0 0.0
        %2555 = vmatprep.subr.mxu0 0.0
        %2556 = vmatpush1.msra.mxu0 0.0
        %2557 = vmatprep.subr.mxu0 0.0
        %2558 = vmatpush1.msra.mxu0 0.0
        %2559 = vmatprep.subr.mxu0 0.0
        %2560 = vmatpush1.msra.mxu0 0.0
        %2561 = vmatprep.subr.mxu0 0.0
        %2562 = vmatpush1.msra.mxu0 0.0
        %2563 = vmatprep.subr.mxu0 0.0
        %2564 = vmatpush1.msra.mxu0 0.0
        %2565 = vmatprep.subr.mxu0 0.0
        %2566 = vmatpush1.msra.mxu0 0.0
        %2567 = vmatprep.subr.mxu0 0.0
        %2568 = vmatpush1.msra.mxu0 0.0
        %2569 = vmatprep.subr.mxu0 0.0
        %2570 = vmatpush1.msra.mxu0 0.0
        %2571 = vmatprep.subr.mxu0 0.0
        %2572 = vmatpush1.msra.mxu0 0.0
        %2573 = vmatprep.subr.mxu0 0.0
        %2574 = vmatpush1.msra.mxu0 0.0
        %2575 = vmatprep.subr.mxu0 0.0
        %2576 = vmatpush1.msra.mxu0 0.0
        %2577 = vmatprep.subr.mxu0 0.0
        %2578 = vmatpush1.msra.mxu0 0.0
        %2579 = vmatprep.subr.mxu0 0.0
        %2580 = vmatpush1.msra.mxu0 0.0
        %2581 = vmatprep.subr.mxu0 0.0
        %2582 = vmatpush1.msra.mxu0 0.0
        %2583 = vmatprep.subr.mxu0 0.0
        %2584 = vmatpush1.msra.mxu0 0.0
        %2585 = vmatprep.subr.mxu0 0.0
        %2586 = vmatpush1.msra.mxu0 0.0
        %2587 = vmatprep.subr.mxu0 0.0
        %2588 = vmatpush1.msra.mxu0 0.0
        %2589 = vmatprep.subr.mxu0 0.0
        %2590 = vmatpush1.msra.mxu0 0.0
        %2591 = vmatprep.subr.mxu0 0.0
        %2592 = vmatpush1.msra.mxu0 0.0
        %2593 = vmatprep.mubr.f32.mxu0 0.0
        %2594 = vmatmul.mubr.f32.gmra.mrb[0].mxu0 %v2527
        %v2595 = vpop.f32.mrb[0].mxu0
        %v2596 = vadd.f32 %v984, %v2595
        %v2597 = vpop.f32.mrb[0].mxu0
        %v2598 = vadd.f32 %v2525, %v2597
        %2599 = vdwg.mxu0
        %v2600 = vadd.f32 %v2598, 1e-09
        %v2601 = vrcp.pop %v2600
        %v2602 = vmul.f32 1.0, %v2601
        %v2603 = vsub.f32 0.0, %v2598
        %2605 = vrot.lane.b32.xlu0 %v2600, 1
        %v2606 = vpop.permute.xlu0 %2605
        %v2608 = vrcp.pop %v2606
        %v2609 = vmul.f32 %v2603, %v2608
        %2610 = vrot.lane.b32.xlu0 %v2600, 2
        %v2611 = vpop.permute.xlu0 %2610
        %v2613 = vrcp.pop %v2611
        %v2614 = vmul.f32 %v2603, %v2613
        %2615 = vrot.lane.b32.xlu0 %v2600, 3
        %v2616 = vpop.permute.xlu0 %2615
        %v2618 = vrcp.pop %v2616
        %v2619 = vmul.f32 %v2603, %v2618
        %2621 = vset.pattern.permute.xlu0 1
        %2622 = vperm.xlu0 %2621, %v2602
        %v2623 = vpop.permute.xlu0 %2622
        %v2626 = vlaneseq
        %v2627 = vshrl.u32 %v2626, 7
        %v2628 = vsub.s32 0, %v2627
        %v2629 = vrot.slane %v895, %v2628
        %v2630 = vlaneseq
        %v2631 = vshrl.u32 %v2630, 7
        %v2632 = vsub.s32 1, %v2631
        %v2633 = vrot.slane %v895, %v2632
        %v2634 = vlaneseq
        %v2635 = vshrl.u32 %v2634, 7
        %v2636 = vsub.s32 2, %v2635
        %v2637 = vrot.slane %v895, %v2636
        %v2638 = vlaneseq
        %v2639 = vshrl.u32 %v2638, 7
        %v2640 = vsub.s32 3, %v2639
        %v2641 = vrot.slane %v895, %v2640
        %v2646 = vmul.f32 %v2623, %v2629
        %v2647 = vmul.f32 %v2623, %v2633
        %v2648 = vmul.f32 %v2623, %v2637
        %v2649 = vmul.f32 %v2623, %v2641
        %v2650 = vmul.f32 %v2619, 2.5
        %2652 = vset.pattern.permute.xlu0 4
        %2653 = vperm.xlu0 %2652, %v2650
        %v2654 = vpop.permute.xlu0 %2653
        %v2656 = vadd.f32 %v2646, %v2654
        %v2657 = vadd.f32 %v2647, %v2654
        %v2658 = vadd.f32 %v2648, %v2654
        %v2659 = vadd.f32 %v2649, %v2654
        %v2660 = vlaneseq
        %v2661 = vshrl.u32 %v2660, 7
        %v2662 = vsub.s32 0, %v2661
        %v2663 = vrot.slane %v2656, %v2662
        %v2664 = vlaneseq
        %v2665 = vshrl.u32 %v2664, 7
        %v2666 = vsub.s32 0, %v2665
        %v2667 = vrot.slane %v2657, %v2666
        %v2668 = vlaneseq
        %v2669 = vshrl.u32 %v2668, 7
        %v2670 = vsub.s32 0, %v2669
        %v2671 = vrot.slane %v2658, %v2670
        %v2672 = vlaneseq
        %v2673 = vshrl.u32 %v2672, 7
        %v2674 = vsub.s32 0, %v2673
        %v2675 = vrot.slane %v2659, %v2674
        %2677 = vset.pattern.permute.xlu0 0
        %2678 = vperm.xlu0 %2677, %v896
        %v2679 = vpop.permute.xlu0 %2678
        %2682 = vset.pattern.permute.xlu0 0
        %2683 = vperm.xlu0 %2682, %v897
        %v2684 = vpop.permute.xlu0 %2683
        %2687 = vset.pattern.permute.xlu0 0
        %2688 = vperm.xlu0 %2687, %v898
        %v2689 = vpop.permute.xlu0 %2688
        %2692 = vset.pattern.permute.xlu0 0
        %2693 = vperm.xlu0 %2692, %v899
        %v2694 = vpop.permute.xlu0 %2693
        %2697 = vset.pattern.permute.xlu0 0
        %2698 = vperm.xlu0 %2697, %v900
        %v2699 = vpop.permute.xlu0 %2698
        %2702 = vset.pattern.permute.xlu0 0
        %2703 = vperm.xlu0 %2702, %v901
        %v2704 = vpop.permute.xlu0 %2703
        %2707 = vset.pattern.permute.xlu0 0
        %2708 = vperm.xlu0 %2707, %v902
        %v2709 = vpop.permute.xlu0 %2708
        %2712 = vset.pattern.permute.xlu0 0
        %2713 = vperm.xlu0 %2712, %v903
        %v2714 = vpop.permute.xlu0 %2713
        %2717 = vset.pattern.permute.xlu0 0
        %2718 = vperm.xlu0 %2717, %v904
        %v2719 = vpop.permute.xlu0 %2718
        %2722 = vset.pattern.permute.xlu0 0
        %2723 = vperm.xlu0 %2722, %v905
        %v2724 = vpop.permute.xlu0 %2723
        %2727 = vset.pattern.permute.xlu0 0
        %2728 = vperm.xlu0 %2727, %v906
        %v2729 = vpop.permute.xlu0 %2728
        %2732 = vset.pattern.permute.xlu0 0
        %2733 = vperm.xlu0 %2732, %v907
        %v2734 = vpop.permute.xlu0 %2733
        %2737 = vset.pattern.permute.xlu0 0
        %2738 = vperm.xlu0 %2737, %v908
        %v2739 = vpop.permute.xlu0 %2738
        %2742 = vset.pattern.permute.xlu0 0
        %2743 = vperm.xlu0 %2742, %v909
        %v2744 = vpop.permute.xlu0 %2743
        %2747 = vset.pattern.permute.xlu0 0
        %2748 = vperm.xlu0 %2747, %v910
        %v2749 = vpop.permute.xlu0 %2748
        %2752 = vset.pattern.permute.xlu0 0
        %2753 = vperm.xlu0 %2752, %v911
        %v2754 = vpop.permute.xlu0 %2753
        %v2756 = vadd.f32 %v2663, %v2679
        %v2757 = vadd.f32 %v2667, %v2679
        %v2758 = vadd.f32 %v2671, %v2679
        %v2759 = vadd.f32 %v2675, %v2679
        %v2760 = vadd.f32 %v2663, %v2684
        %v2761 = vadd.f32 %v2667, %v2684
        %v2762 = vadd.f32 %v2671, %v2684
        %v2763 = vadd.f32 %v2675, %v2684
        %v2764 = vadd.f32 %v2663, %v2689
        %v2765 = vadd.f32 %v2667, %v2689
        %v2766 = vadd.f32 %v2671, %v2689
        %v2767 = vadd.f32 %v2675, %v2689
        %v2768 = vadd.f32 %v2663, %v2694
        %v2769 = vadd.f32 %v2667, %v2694
        %v2770 = vadd.f32 %v2671, %v2694
        %v2771 = vadd.f32 %v2675, %v2694
        %v2772 = vadd.f32 %v2663, %v2699
        %v2773 = vadd.f32 %v2667, %v2699
        %v2774 = vadd.f32 %v2671, %v2699
        %v2775 = vadd.f32 %v2675, %v2699
        %v2776 = vadd.f32 %v2663, %v2704
        %v2777 = vadd.f32 %v2667, %v2704
        %v2778 = vadd.f32 %v2671, %v2704
        %v2779 = vadd.f32 %v2675, %v2704
        %v2780 = vadd.f32 %v2663, %v2709
        %v2781 = vadd.f32 %v2667, %v2709
        %v2782 = vadd.f32 %v2671, %v2709
        %v2783 = vadd.f32 %v2675, %v2709
        %v2784 = vadd.f32 %v2663, %v2714
        %v2785 = vadd.f32 %v2667, %v2714
        %v2786 = vadd.f32 %v2671, %v2714
        %v2787 = vadd.f32 %v2675, %v2714
        %v2788 = vadd.f32 %v2663, %v2719
        %v2789 = vadd.f32 %v2667, %v2719
        %v2790 = vadd.f32 %v2671, %v2719
        %v2791 = vadd.f32 %v2675, %v2719
        %v2792 = vadd.f32 %v2663, %v2724
        %v2793 = vadd.f32 %v2667, %v2724
        %v2794 = vadd.f32 %v2671, %v2724
        %v2795 = vadd.f32 %v2675, %v2724
        %v2796 = vadd.f32 %v2663, %v2729
        %v2797 = vadd.f32 %v2667, %v2729
        %v2798 = vadd.f32 %v2671, %v2729
        %v2799 = vadd.f32 %v2675, %v2729
        %v2800 = vadd.f32 %v2663, %v2734
        %v2801 = vadd.f32 %v2667, %v2734
        %v2802 = vadd.f32 %v2671, %v2734
        %v2803 = vadd.f32 %v2675, %v2734
        %v2804 = vadd.f32 %v2663, %v2739
        %v2805 = vadd.f32 %v2667, %v2739
        %v2806 = vadd.f32 %v2671, %v2739
        %v2807 = vadd.f32 %v2675, %v2739
        %v2808 = vadd.f32 %v2663, %v2744
        %v2809 = vadd.f32 %v2667, %v2744
        %v2810 = vadd.f32 %v2671, %v2744
        %v2811 = vadd.f32 %v2675, %v2744
        %v2812 = vadd.f32 %v2663, %v2749
        %v2813 = vadd.f32 %v2667, %v2749
        %v2814 = vadd.f32 %v2671, %v2749
        %v2815 = vadd.f32 %v2675, %v2749
        %v2816 = vadd.f32 %v2663, %v2754
        %v2817 = vadd.f32 %v2667, %v2754
        %v2818 = vadd.f32 %v2671, %v2754
        %v2819 = vadd.f32 %v2675, %v2754
        %v2820 = vand.u32 2147483647, %v2756
        %v2821 = vand.u32 2147483647, %v2757
        %v2822 = vand.u32 2147483647, %v2758
        %v2823 = vand.u32 2147483647, %v2759
        %v2824 = vand.u32 2147483647, %v2760
        %v2825 = vand.u32 2147483647, %v2761
        %v2826 = vand.u32 2147483647, %v2762
        %v2827 = vand.u32 2147483647, %v2763
        %v2828 = vand.u32 2147483647, %v2764
        %v2829 = vand.u32 2147483647, %v2765
        %v2830 = vand.u32 2147483647, %v2766
        %v2831 = vand.u32 2147483647, %v2767
        %v2832 = vand.u32 2147483647, %v2768
        %v2833 = vand.u32 2147483647, %v2769
        %v2834 = vand.u32 2147483647, %v2770
        %v2835 = vand.u32 2147483647, %v2771
        %v2836 = vand.u32 2147483647, %v2772
        %v2837 = vand.u32 2147483647, %v2773
        %v2838 = vand.u32 2147483647, %v2774
        %v2839 = vand.u32 2147483647, %v2775
        %v2840 = vand.u32 2147483647, %v2776
        %v2841 = vand.u32 2147483647, %v2777
        %v2842 = vand.u32 2147483647, %v2778
        %v2843 = vand.u32 2147483647, %v2779
        %v2844 = vand.u32 2147483647, %v2780
        %v2845 = vand.u32 2147483647, %v2781
        %v2846 = vand.u32 2147483647, %v2782
        %v2847 = vand.u32 2147483647, %v2783
        %v2848 = vand.u32 2147483647, %v2784
        %v2849 = vand.u32 2147483647, %v2785
        %v2850 = vand.u32 2147483647, %v2786
        %v2851 = vand.u32 2147483647, %v2787
        %v2852 = vand.u32 2147483647, %v2788
        %v2853 = vand.u32 2147483647, %v2789
        %v2854 = vand.u32 2147483647, %v2790
        %v2855 = vand.u32 2147483647, %v2791
        %v2856 = vand.u32 2147483647, %v2792
        %v2857 = vand.u32 2147483647, %v2793
        %v2858 = vand.u32 2147483647, %v2794
        %v2859 = vand.u32 2147483647, %v2795
        %v2860 = vand.u32 2147483647, %v2796
        %v2861 = vand.u32 2147483647, %v2797
        %v2862 = vand.u32 2147483647, %v2798
        %v2863 = vand.u32 2147483647, %v2799
        %v2864 = vand.u32 2147483647, %v2800
        %v2865 = vand.u32 2147483647, %v2801
        %v2866 = vand.u32 2147483647, %v2802
        %v2867 = vand.u32 2147483647, %v2803
        %v2868 = vand.u32 2147483647, %v2804
        %v2869 = vand.u32 2147483647, %v2805
        %v2870 = vand.u32 2147483647, %v2806
        %v2871 = vand.u32 2147483647, %v2807
        %v2872 = vand.u32 2147483647, %v2808
        %v2873 = vand.u32 2147483647, %v2809
        %v2874 = vand.u32 2147483647, %v2810
        %v2875 = vand.u32 2147483647, %v2811
        %v2876 = vand.u32 2147483647, %v2812
        %v2877 = vand.u32 2147483647, %v2813
        %v2878 = vand.u32 2147483647, %v2814
        %v2879 = vand.u32 2147483647, %v2815
        %v2880 = vand.u32 2147483647, %v2816
        %v2881 = vand.u32 2147483647, %v2817
        %v2882 = vand.u32 2147483647, %v2818
        %v2883 = vand.u32 2147483647, %v2819
        %v2884 = vsub.f32 1.0, %v2820
        %v2885 = vsub.f32 1.0, %v2821
        %v2886 = vsub.f32 1.0, %v2822
        %v2887 = vsub.f32 1.0, %v2823
        %v2888 = vsub.f32 1.0, %v2824
        %v2889 = vsub.f32 1.0, %v2825
        %v2890 = vsub.f32 1.0, %v2826
        %v2891 = vsub.f32 1.0, %v2827
        %v2892 = vsub.f32 1.0, %v2828
        %v2893 = vsub.f32 1.0, %v2829
        %v2894 = vsub.f32 1.0, %v2830
        %v2895 = vsub.f32 1.0, %v2831
        %v2896 = vsub.f32 1.0, %v2832
        %v2897 = vsub.f32 1.0, %v2833
        %v2898 = vsub.f32 1.0, %v2834
        %v2899 = vsub.f32 1.0, %v2835
        %v2900 = vsub.f32 1.0, %v2836
        %v2901 = vsub.f32 1.0, %v2837
        %v2902 = vsub.f32 1.0, %v2838
        %v2903 = vsub.f32 1.0, %v2839
        %v2904 = vsub.f32 1.0, %v2840
        %v2905 = vsub.f32 1.0, %v2841
        %v2906 = vsub.f32 1.0, %v2842
        %v2907 = vsub.f32 1.0, %v2843
        %v2908 = vsub.f32 1.0, %v2844
        %v2909 = vsub.f32 1.0, %v2845
        %v2910 = vsub.f32 1.0, %v2846
        %v2911 = vsub.f32 1.0, %v2847
        %v2912 = vsub.f32 1.0, %v2848
        %v2913 = vsub.f32 1.0, %v2849
        %v2914 = vsub.f32 1.0, %v2850
        %v2915 = vsub.f32 1.0, %v2851
        %v2916 = vsub.f32 1.0, %v2852
        %v2917 = vsub.f32 1.0, %v2853
        %v2918 = vsub.f32 1.0, %v2854
        %v2919 = vsub.f32 1.0, %v2855
        %v2920 = vsub.f32 1.0, %v2856
        %v2921 = vsub.f32 1.0, %v2857
        %v2922 = vsub.f32 1.0, %v2858
        %v2923 = vsub.f32 1.0, %v2859
        %v2924 = vsub.f32 1.0, %v2860
        %v2925 = vsub.f32 1.0, %v2861
        %v2926 = vsub.f32 1.0, %v2862
        %v2927 = vsub.f32 1.0, %v2863
        %v2928 = vsub.f32 1.0, %v2864
        %v2929 = vsub.f32 1.0, %v2865
        %v2930 = vsub.f32 1.0, %v2866
        %v2931 = vsub.f32 1.0, %v2867
        %v2932 = vsub.f32 1.0, %v2868
        %v2933 = vsub.f32 1.0, %v2869
        %v2934 = vsub.f32 1.0, %v2870
        %v2935 = vsub.f32 1.0, %v2871
        %v2936 = vsub.f32 1.0, %v2872
        %v2937 = vsub.f32 1.0, %v2873
        %v2938 = vsub.f32 1.0, %v2874
        %v2939 = vsub.f32 1.0, %v2875
        %v2940 = vsub.f32 1.0, %v2876
        %v2941 = vsub.f32 1.0, %v2877
        %v2942 = vsub.f32 1.0, %v2878
        %v2943 = vsub.f32 1.0, %v2879
        %v2944 = vsub.f32 1.0, %v2880
        %v2945 = vsub.f32 1.0, %v2881
        %v2946 = vsub.f32 1.0, %v2882
        %v2947 = vsub.f32 1.0, %v2883
        %v2948 = vmax.f32 %v2884, 0.0
        %v2949 = vmax.f32 %v2885, 0.0
        %v2950 = vmax.f32 %v2886, 0.0
        %v2951 = vmax.f32 %v2887, 0.0
        %v2952 = vmax.f32 %v2888, 0.0
        %v2953 = vmax.f32 %v2889, 0.0
        %v2954 = vmax.f32 %v2890, 0.0
        %v2955 = vmax.f32 %v2891, 0.0
        %v2956 = vmax.f32 %v2892, 0.0
        %v2957 = vmax.f32 %v2893, 0.0
        %v2958 = vmax.f32 %v2894, 0.0
        %v2959 = vmax.f32 %v2895, 0.0
        %v2960 = vmax.f32 %v2896, 0.0
        %v2961 = vmax.f32 %v2897, 0.0
        %v2962 = vmax.f32 %v2898, 0.0
        %v2963 = vmax.f32 %v2899, 0.0
        %v2964 = vmax.f32 %v2900, 0.0
        %v2965 = vmax.f32 %v2901, 0.0
        %v2966 = vmax.f32 %v2902, 0.0
        %v2967 = vmax.f32 %v2903, 0.0
        %v2968 = vmax.f32 %v2904, 0.0
        %v2969 = vmax.f32 %v2905, 0.0
        %v2970 = vmax.f32 %v2906, 0.0
        %v2971 = vmax.f32 %v2907, 0.0
        %v2972 = vmax.f32 %v2908, 0.0
        %v2973 = vmax.f32 %v2909, 0.0
        %v2974 = vmax.f32 %v2910, 0.0
        %v2975 = vmax.f32 %v2911, 0.0
        %v2976 = vmax.f32 %v2912, 0.0
        %v2977 = vmax.f32 %v2913, 0.0
        %v2978 = vmax.f32 %v2914, 0.0
        %v2979 = vmax.f32 %v2915, 0.0
        %v2980 = vmax.f32 %v2916, 0.0
        %v2981 = vmax.f32 %v2917, 0.0
        %v2982 = vmax.f32 %v2918, 0.0
        %v2983 = vmax.f32 %v2919, 0.0
        %v2984 = vmax.f32 %v2920, 0.0
        %v2985 = vmax.f32 %v2921, 0.0
        %v2986 = vmax.f32 %v2922, 0.0
        %v2987 = vmax.f32 %v2923, 0.0
        %v2988 = vmax.f32 %v2924, 0.0
        %v2989 = vmax.f32 %v2925, 0.0
        %v2990 = vmax.f32 %v2926, 0.0
        %v2991 = vmax.f32 %v2927, 0.0
        %v2992 = vmax.f32 %v2928, 0.0
        %v2993 = vmax.f32 %v2929, 0.0
        %v2994 = vmax.f32 %v2930, 0.0
        %v2995 = vmax.f32 %v2931, 0.0
        %v2996 = vmax.f32 %v2932, 0.0
        %v2997 = vmax.f32 %v2933, 0.0
        %v2998 = vmax.f32 %v2934, 0.0
        %v2999 = vmax.f32 %v2935, 0.0
        %v3000 = vmax.f32 %v2936, 0.0
        %v3001 = vmax.f32 %v2937, 0.0
        %v3002 = vmax.f32 %v2938, 0.0
        %v3003 = vmax.f32 %v2939, 0.0
        %v3004 = vmax.f32 %v2940, 0.0
        %v3005 = vmax.f32 %v2941, 0.0
        %v3006 = vmax.f32 %v2942, 0.0
        %v3007 = vmax.f32 %v2943, 0.0
        %v3008 = vmax.f32 %v2944, 0.0
        %v3009 = vmax.f32 %v2945, 0.0
        %v3010 = vmax.f32 %v2946, 0.0
        %v3011 = vmax.f32 %v2947, 0.0
        %v3013 = vlaneseq
        %v3014 = vshrl.u32 %v3013, 7
        %v3015 = vsub.s32 0, %v3014
        %v3016 = vrot.slane %v912, %v3015
        %v3017 = vlaneseq
        %v3018 = vshrl.u32 %v3017, 7
        %v3019 = vsub.s32 1, %v3018
        %v3020 = vrot.slane %v912, %v3019
        %v3021 = vlaneseq
        %v3022 = vshrl.u32 %v3021, 7
        %v3023 = vsub.s32 2, %v3022
        %v3024 = vrot.slane %v912, %v3023
        %v3025 = vlaneseq
        %v3026 = vshrl.u32 %v3025, 7
        %v3027 = vsub.s32 3, %v3026
        %v3028 = vrot.slane %v912, %v3027
        %v3033 = vmul.f32 %v2623, %v3016
        %v3034 = vmul.f32 %v2623, %v3020
        %v3035 = vmul.f32 %v2623, %v3024
        %v3036 = vmul.f32 %v2623, %v3028
        %v3037 = vmul.f32 %v2614, 2.5
        %3039 = vset.pattern.permute.xlu0 3
        %3040 = vperm.xlu0 %3039, %v3037
        %v3041 = vpop.permute.xlu0 %3040
        %v3043 = vadd.f32 %v3033, %v3041
        %v3044 = vadd.f32 %v3034, %v3041
        %v3045 = vadd.f32 %v3035, %v3041
        %v3046 = vadd.f32 %v3036, %v3041
        %v3047 = vlaneseq
        %v3048 = vshrl.u32 %v3047, 7
        %v3049 = vsub.s32 0, %v3048
        %v3050 = vrot.slane %v3043, %v3049
        %v3051 = vlaneseq
        %v3052 = vshrl.u32 %v3051, 7
        %v3053 = vsub.s32 0, %v3052
        %v3054 = vrot.slane %v3044, %v3053
        %v3055 = vlaneseq
        %v3056 = vshrl.u32 %v3055, 7
        %v3057 = vsub.s32 0, %v3056
        %v3058 = vrot.slane %v3045, %v3057
        %v3059 = vlaneseq
        %v3060 = vshrl.u32 %v3059, 7
        %v3061 = vsub.s32 0, %v3060
        %v3062 = vrot.slane %v3046, %v3061
        %3064 = vset.pattern.permute.xlu0 0
        %3065 = vperm.xlu0 %3064, %v913
        %v3066 = vpop.permute.xlu0 %3065
        %3069 = vset.pattern.permute.xlu0 0
        %3070 = vperm.xlu0 %3069, %v914
        %v3071 = vpop.permute.xlu0 %3070
        %3074 = vset.pattern.permute.xlu0 0
        %3075 = vperm.xlu0 %3074, %v915
        %v3076 = vpop.permute.xlu0 %3075
        %3079 = vset.pattern.permute.xlu0 0
        %3080 = vperm.xlu0 %3079, %v916
        %v3081 = vpop.permute.xlu0 %3080
        %3084 = vset.pattern.permute.xlu0 0
        %3085 = vperm.xlu0 %3084, %v917
        %v3086 = vpop.permute.xlu0 %3085
        %3089 = vset.pattern.permute.xlu0 0
        %3090 = vperm.xlu0 %3089, %v918
        %v3091 = vpop.permute.xlu0 %3090
        %3094 = vset.pattern.permute.xlu0 0
        %3095 = vperm.xlu0 %3094, %v919
        %v3096 = vpop.permute.xlu0 %3095
        %3099 = vset.pattern.permute.xlu0 0
        %3100 = vperm.xlu0 %3099, %v920
        %v3101 = vpop.permute.xlu0 %3100
        %3104 = vset.pattern.permute.xlu0 0
        %3105 = vperm.xlu0 %3104, %v921
        %v3106 = vpop.permute.xlu0 %3105
        %3109 = vset.pattern.permute.xlu0 0
        %3110 = vperm.xlu0 %3109, %v922
        %v3111 = vpop.permute.xlu0 %3110
        %3114 = vset.pattern.permute.xlu0 0
        %3115 = vperm.xlu0 %3114, %v923
        %v3116 = vpop.permute.xlu0 %3115
        %3119 = vset.pattern.permute.xlu0 0
        %3120 = vperm.xlu0 %3119, %v924
        %v3121 = vpop.permute.xlu0 %3120
        %3124 = vset.pattern.permute.xlu0 0
        %3125 = vperm.xlu0 %3124, %v925
        %v3126 = vpop.permute.xlu0 %3125
        %3129 = vset.pattern.permute.xlu0 0
        %3130 = vperm.xlu0 %3129, %v926
        %v3131 = vpop.permute.xlu0 %3130
        %3134 = vset.pattern.permute.xlu0 0
        %3135 = vperm.xlu0 %3134, %v927
        %v3136 = vpop.permute.xlu0 %3135
        %3139 = vset.pattern.permute.xlu0 0
        %3140 = vperm.xlu0 %3139, %v928
        %v3141 = vpop.permute.xlu0 %3140
        %v3143 = vadd.f32 %v3050, %v3066
        %v3144 = vadd.f32 %v3054, %v3066
        %v3145 = vadd.f32 %v3058, %v3066
        %v3146 = vadd.f32 %v3062, %v3066
        %v3147 = vadd.f32 %v3050, %v3071
        %v3148 = vadd.f32 %v3054, %v3071
        %v3149 = vadd.f32 %v3058, %v3071
        %v3150 = vadd.f32 %v3062, %v3071
        %v3151 = vadd.f32 %v3050, %v3076
        %v3152 = vadd.f32 %v3054, %v3076
        %v3153 = vadd.f32 %v3058, %v3076
        %v3154 = vadd.f32 %v3062, %v3076
        %v3155 = vadd.f32 %v3050, %v3081
        %v3156 = vadd.f32 %v3054, %v3081
        %v3157 = vadd.f32 %v3058, %v3081
        %v3158 = vadd.f32 %v3062, %v3081
        %v3159 = vadd.f32 %v3050, %v3086
        %v3160 = vadd.f32 %v3054, %v3086
        %v3161 = vadd.f32 %v3058, %v3086
        %v3162 = vadd.f32 %v3062, %v3086
        %v3163 = vadd.f32 %v3050, %v3091
        %v3164 = vadd.f32 %v3054, %v3091
        %v3165 = vadd.f32 %v3058, %v3091
        %v3166 = vadd.f32 %v3062, %v3091
        %v3167 = vadd.f32 %v3050, %v3096
        %v3168 = vadd.f32 %v3054, %v3096
        %v3169 = vadd.f32 %v3058, %v3096
        %v3170 = vadd.f32 %v3062, %v3096
        %v3171 = vadd.f32 %v3050, %v3101
        %v3172 = vadd.f32 %v3054, %v3101
        %v3173 = vadd.f32 %v3058, %v3101
        %v3174 = vadd.f32 %v3062, %v3101
        %v3175 = vadd.f32 %v3050, %v3106
        %v3176 = vadd.f32 %v3054, %v3106
        %v3177 = vadd.f32 %v3058, %v3106
        %v3178 = vadd.f32 %v3062, %v3106
        %v3179 = vadd.f32 %v3050, %v3111
        %v3180 = vadd.f32 %v3054, %v3111
        %v3181 = vadd.f32 %v3058, %v3111
        %v3182 = vadd.f32 %v3062, %v3111
        %v3183 = vadd.f32 %v3050, %v3116
        %v3184 = vadd.f32 %v3054, %v3116
        %v3185 = vadd.f32 %v3058, %v3116
        %v3186 = vadd.f32 %v3062, %v3116
        %v3187 = vadd.f32 %v3050, %v3121
        %v3188 = vadd.f32 %v3054, %v3121
        %v3189 = vadd.f32 %v3058, %v3121
        %v3190 = vadd.f32 %v3062, %v3121
        %v3191 = vadd.f32 %v3050, %v3126
        %v3192 = vadd.f32 %v3054, %v3126
        %v3193 = vadd.f32 %v3058, %v3126
        %v3194 = vadd.f32 %v3062, %v3126
        %v3195 = vadd.f32 %v3050, %v3131
        %v3196 = vadd.f32 %v3054, %v3131
        %v3197 = vadd.f32 %v3058, %v3131
        %v3198 = vadd.f32 %v3062, %v3131
        %v3199 = vadd.f32 %v3050, %v3136
        %v3200 = vadd.f32 %v3054, %v3136
        %v3201 = vadd.f32 %v3058, %v3136
        %v3202 = vadd.f32 %v3062, %v3136
        %v3203 = vadd.f32 %v3050, %v3141
        %v3204 = vadd.f32 %v3054, %v3141
        %v3205 = vadd.f32 %v3058, %v3141
        %v3206 = vadd.f32 %v3062, %v3141
        %v3207 = vand.u32 2147483647, %v3143
        %v3208 = vand.u32 2147483647, %v3144
        %v3209 = vand.u32 2147483647, %v3145
        %v3210 = vand.u32 2147483647, %v3146
        %v3211 = vand.u32 2147483647, %v3147
        %v3212 = vand.u32 2147483647, %v3148
        %v3213 = vand.u32 2147483647, %v3149
        %v3214 = vand.u32 2147483647, %v3150
        %v3215 = vand.u32 2147483647, %v3151
        %v3216 = vand.u32 2147483647, %v3152
        %v3217 = vand.u32 2147483647, %v3153
        %v3218 = vand.u32 2147483647, %v3154
        %v3219 = vand.u32 2147483647, %v3155
        %v3220 = vand.u32 2147483647, %v3156
        %v3221 = vand.u32 2147483647, %v3157
        %v3222 = vand.u32 2147483647, %v3158
        %v3223 = vand.u32 2147483647, %v3159
        %v3224 = vand.u32 2147483647, %v3160
        %v3225 = vand.u32 2147483647, %v3161
        %v3226 = vand.u32 2147483647, %v3162
        %v3227 = vand.u32 2147483647, %v3163
        %v3228 = vand.u32 2147483647, %v3164
        %v3229 = vand.u32 2147483647, %v3165
        %v3230 = vand.u32 2147483647, %v3166
        %v3231 = vand.u32 2147483647, %v3167
        %v3232 = vand.u32 2147483647, %v3168
        %v3233 = vand.u32 2147483647, %v3169
        %v3234 = vand.u32 2147483647, %v3170
        %v3235 = vand.u32 2147483647, %v3171
        %v3236 = vand.u32 2147483647, %v3172
        %v3237 = vand.u32 2147483647, %v3173
        %v3238 = vand.u32 2147483647, %v3174
        %v3239 = vand.u32 2147483647, %v3175
        %v3240 = vand.u32 2147483647, %v3176
        %v3241 = vand.u32 2147483647, %v3177
        %v3242 = vand.u32 2147483647, %v3178
        %v3243 = vand.u32 2147483647, %v3179
        %v3244 = vand.u32 2147483647, %v3180
        %v3245 = vand.u32 2147483647, %v3181
        %v3246 = vand.u32 2147483647, %v3182
        %v3247 = vand.u32 2147483647, %v3183
        %v3248 = vand.u32 2147483647, %v3184
        %v3249 = vand.u32 2147483647, %v3185
        %v3250 = vand.u32 2147483647, %v3186
        %v3251 = vand.u32 2147483647, %v3187
        %v3252 = vand.u32 2147483647, %v3188
        %v3253 = vand.u32 2147483647, %v3189
        %v3254 = vand.u32 2147483647, %v3190
        %v3255 = vand.u32 2147483647, %v3191
        %v3256 = vand.u32 2147483647, %v3192
        %v3257 = vand.u32 2147483647, %v3193
        %v3258 = vand.u32 2147483647, %v3194
        %v3259 = vand.u32 2147483647, %v3195
        %v3260 = vand.u32 2147483647, %v3196
        %v3261 = vand.u32 2147483647, %v3197
        %v3262 = vand.u32 2147483647, %v3198
        %v3263 = vand.u32 2147483647, %v3199
        %v3264 = vand.u32 2147483647, %v3200
        %v3265 = vand.u32 2147483647, %v3201
        %v3266 = vand.u32 2147483647, %v3202
        %v3267 = vand.u32 2147483647, %v3203
        %v3268 = vand.u32 2147483647, %v3204
        %v3269 = vand.u32 2147483647, %v3205
        %v3270 = vand.u32 2147483647, %v3206
        %v3271 = vsub.f32 1.0, %v3207
        %v3272 = vsub.f32 1.0, %v3208
        %v3273 = vsub.f32 1.0, %v3209
        %v3274 = vsub.f32 1.0, %v3210
        %v3275 = vsub.f32 1.0, %v3211
        %v3276 = vsub.f32 1.0, %v3212
        %v3277 = vsub.f32 1.0, %v3213
        %v3278 = vsub.f32 1.0, %v3214
        %v3279 = vsub.f32 1.0, %v3215
        %v3280 = vsub.f32 1.0, %v3216
        %v3281 = vsub.f32 1.0, %v3217
        %v3282 = vsub.f32 1.0, %v3218
        %v3283 = vsub.f32 1.0, %v3219
        %v3284 = vsub.f32 1.0, %v3220
        %v3285 = vsub.f32 1.0, %v3221
        %v3286 = vsub.f32 1.0, %v3222
        %v3287 = vsub.f32 1.0, %v3223
        %v3288 = vsub.f32 1.0, %v3224
        %v3289 = vsub.f32 1.0, %v3225
        %v3290 = vsub.f32 1.0, %v3226
        %v3291 = vsub.f32 1.0, %v3227
        %v3292 = vsub.f32 1.0, %v3228
        %v3293 = vsub.f32 1.0, %v3229
        %v3294 = vsub.f32 1.0, %v3230
        %v3295 = vsub.f32 1.0, %v3231
        %v3296 = vsub.f32 1.0, %v3232
        %v3297 = vsub.f32 1.0, %v3233
        %v3298 = vsub.f32 1.0, %v3234
        %v3299 = vsub.f32 1.0, %v3235
        %v3300 = vsub.f32 1.0, %v3236
        %v3301 = vsub.f32 1.0, %v3237
        %v3302 = vsub.f32 1.0, %v3238
        %v3303 = vsub.f32 1.0, %v3239
        %v3304 = vsub.f32 1.0, %v3240
        %v3305 = vsub.f32 1.0, %v3241
        %v3306 = vsub.f32 1.0, %v3242
        %v3307 = vsub.f32 1.0, %v3243
        %v3308 = vsub.f32 1.0, %v3244
        %v3309 = vsub.f32 1.0, %v3245
        %v3310 = vsub.f32 1.0, %v3246
        %v3311 = vsub.f32 1.0, %v3247
        %v3312 = vsub.f32 1.0, %v3248
        %v3313 = vsub.f32 1.0, %v3249
        %v3314 = vsub.f32 1.0, %v3250
        %v3315 = vsub.f32 1.0, %v3251
        %v3316 = vsub.f32 1.0, %v3252
        %v3317 = vsub.f32 1.0, %v3253
        %v3318 = vsub.f32 1.0, %v3254
        %v3319 = vsub.f32 1.0, %v3255
        %v3320 = vsub.f32 1.0, %v3256
        %v3321 = vsub.f32 1.0, %v3257
        %v3322 = vsub.f32 1.0, %v3258
        %v3323 = vsub.f32 1.0, %v3259
        %v3324 = vsub.f32 1.0, %v3260
        %v3325 = vsub.f32 1.0, %v3261
        %v3326 = vsub.f32 1.0, %v3262
        %v3327 = vsub.f32 1.0, %v3263
        %v3328 = vsub.f32 1.0, %v3264
        %v3329 = vsub.f32 1.0, %v3265
        %v3330 = vsub.f32 1.0, %v3266
        %v3331 = vsub.f32 1.0, %v3267
        %v3332 = vsub.f32 1.0, %v3268
        %v3333 = vsub.f32 1.0, %v3269
        %v3334 = vsub.f32 1.0, %v3270
        %v3335 = vmax.f32 %v3271, 0.0
        %v3336 = vmax.f32 %v3272, 0.0
        %v3337 = vmax.f32 %v3273, 0.0
        %v3338 = vmax.f32 %v3274, 0.0
        %v3339 = vmax.f32 %v3275, 0.0
        %v3340 = vmax.f32 %v3276, 0.0
        %v3341 = vmax.f32 %v3277, 0.0
        %v3342 = vmax.f32 %v3278, 0.0
        %v3343 = vmax.f32 %v3279, 0.0
        %v3344 = vmax.f32 %v3280, 0.0
        %v3345 = vmax.f32 %v3281, 0.0
        %v3346 = vmax.f32 %v3282, 0.0
        %v3347 = vmax.f32 %v3283, 0.0
        %v3348 = vmax.f32 %v3284, 0.0
        %v3349 = vmax.f32 %v3285, 0.0
        %v3350 = vmax.f32 %v3286, 0.0
        %v3351 = vmax.f32 %v3287, 0.0
        %v3352 = vmax.f32 %v3288, 0.0
        %v3353 = vmax.f32 %v3289, 0.0
        %v3354 = vmax.f32 %v3290, 0.0
        %v3355 = vmax.f32 %v3291, 0.0
        %v3356 = vmax.f32 %v3292, 0.0
        %v3357 = vmax.f32 %v3293, 0.0
        %v3358 = vmax.f32 %v3294, 0.0
        %v3359 = vmax.f32 %v3295, 0.0
        %v3360 = vmax.f32 %v3296, 0.0
        %v3361 = vmax.f32 %v3297, 0.0
        %v3362 = vmax.f32 %v3298, 0.0
        %v3363 = vmax.f32 %v3299, 0.0
        %v3364 = vmax.f32 %v3300, 0.0
        %v3365 = vmax.f32 %v3301, 0.0
        %v3366 = vmax.f32 %v3302, 0.0
        %v3367 = vmax.f32 %v3303, 0.0
        %v3368 = vmax.f32 %v3304, 0.0
        %v3369 = vmax.f32 %v3305, 0.0
        %v3370 = vmax.f32 %v3306, 0.0
        %v3371 = vmax.f32 %v3307, 0.0
        %v3372 = vmax.f32 %v3308, 0.0
        %v3373 = vmax.f32 %v3309, 0.0
        %v3374 = vmax.f32 %v3310, 0.0
        %v3375 = vmax.f32 %v3311, 0.0
        %v3376 = vmax.f32 %v3312, 0.0
        %v3377 = vmax.f32 %v3313, 0.0
        %v3378 = vmax.f32 %v3314, 0.0
        %v3379 = vmax.f32 %v3315, 0.0
        %v3380 = vmax.f32 %v3316, 0.0
        %v3381 = vmax.f32 %v3317, 0.0
        %v3382 = vmax.f32 %v3318, 0.0
        %v3383 = vmax.f32 %v3319, 0.0
        %v3384 = vmax.f32 %v3320, 0.0
        %v3385 = vmax.f32 %v3321, 0.0
        %v3386 = vmax.f32 %v3322, 0.0
        %v3387 = vmax.f32 %v3323, 0.0
        %v3388 = vmax.f32 %v3324, 0.0
        %v3389 = vmax.f32 %v3325, 0.0
        %v3390 = vmax.f32 %v3326, 0.0
        %v3391 = vmax.f32 %v3327, 0.0
        %v3392 = vmax.f32 %v3328, 0.0
        %v3393 = vmax.f32 %v3329, 0.0
        %v3394 = vmax.f32 %v3330, 0.0
        %v3395 = vmax.f32 %v3331, 0.0
        %v3396 = vmax.f32 %v3332, 0.0
        %v3397 = vmax.f32 %v3333, 0.0
        %v3398 = vmax.f32 %v3334, 0.0
        %v3399 = vmul.f32 %v2948, %v3335
        %v3400 = vmul.f32 %v2949, %v3336
        %v3401 = vmul.f32 %v2950, %v3337
        %v3402 = vmul.f32 %v2951, %v3338
        %v3403 = vmul.f32 %v2952, %v3339
        %v3404 = vmul.f32 %v2953, %v3340
        %v3405 = vmul.f32 %v2954, %v3341
        %v3406 = vmul.f32 %v2955, %v3342
        %v3407 = vmul.f32 %v2956, %v3343
        %v3408 = vmul.f32 %v2957, %v3344
        %v3409 = vmul.f32 %v2958, %v3345
        %v3410 = vmul.f32 %v2959, %v3346
        %v3411 = vmul.f32 %v2960, %v3347
        %v3412 = vmul.f32 %v2961, %v3348
        %v3413 = vmul.f32 %v2962, %v3349
        %v3414 = vmul.f32 %v2963, %v3350
        %v3415 = vmul.f32 %v2964, %v3351
        %v3416 = vmul.f32 %v2965, %v3352
        %v3417 = vmul.f32 %v2966, %v3353
        %v3418 = vmul.f32 %v2967, %v3354
        %v3419 = vmul.f32 %v2968, %v3355
        %v3420 = vmul.f32 %v2969, %v3356
        %v3421 = vmul.f32 %v2970, %v3357
        %v3422 = vmul.f32 %v2971, %v3358
        %v3423 = vmul.f32 %v2972, %v3359
        %v3424 = vmul.f32 %v2973, %v3360
        %v3425 = vmul.f32 %v2974, %v3361
        %v3426 = vmul.f32 %v2975, %v3362
        %v3427 = vmul.f32 %v2976, %v3363
        %v3428 = vmul.f32 %v2977, %v3364
        %v3429 = vmul.f32 %v2978, %v3365
        %v3430 = vmul.f32 %v2979, %v3366
        %v3431 = vmul.f32 %v2980, %v3367
        %v3432 = vmul.f32 %v2981, %v3368
        %v3433 = vmul.f32 %v2982, %v3369
        %v3434 = vmul.f32 %v2983, %v3370
        %v3435 = vmul.f32 %v2984, %v3371
        %v3436 = vmul.f32 %v2985, %v3372
        %v3437 = vmul.f32 %v2986, %v3373
        %v3438 = vmul.f32 %v2987, %v3374
        %v3439 = vmul.f32 %v2988, %v3375
        %v3440 = vmul.f32 %v2989, %v3376
        %v3441 = vmul.f32 %v2990, %v3377
        %v3442 = vmul.f32 %v2991, %v3378
        %v3443 = vmul.f32 %v2992, %v3379
        %v3444 = vmul.f32 %v2993, %v3380
        %v3445 = vmul.f32 %v2994, %v3381
        %v3446 = vmul.f32 %v2995, %v3382
        %v3447 = vmul.f32 %v2996, %v3383
        %v3448 = vmul.f32 %v2997, %v3384
        %v3449 = vmul.f32 %v2998, %v3385
        %v3450 = vmul.f32 %v2999, %v3386
        %v3451 = vmul.f32 %v3000, %v3387
        %v3452 = vmul.f32 %v3001, %v3388
        %v3453 = vmul.f32 %v3002, %v3389
        %v3454 = vmul.f32 %v3003, %v3390
        %v3455 = vmul.f32 %v3004, %v3391
        %v3456 = vmul.f32 %v3005, %v3392
        %v3457 = vmul.f32 %v3006, %v3393
        %v3458 = vmul.f32 %v3007, %v3394
        %v3459 = vmul.f32 %v3008, %v3395
        %v3460 = vmul.f32 %v3009, %v3396
        %v3461 = vmul.f32 %v3010, %v3397
        %v3462 = vmul.f32 %v3011, %v3398
        %v3464 = vlaneseq
        %v3465 = vshrl.u32 %v3464, 7
        %v3466 = vsub.s32 0, %v3465
        %v3467 = vrot.slane %v929, %v3466
        %v3468 = vlaneseq
        %v3469 = vshrl.u32 %v3468, 7
        %v3470 = vsub.s32 1, %v3469
        %v3471 = vrot.slane %v929, %v3470
        %v3472 = vlaneseq
        %v3473 = vshrl.u32 %v3472, 7
        %v3474 = vsub.s32 2, %v3473
        %v3475 = vrot.slane %v929, %v3474
        %v3476 = vlaneseq
        %v3477 = vshrl.u32 %v3476, 7
        %v3478 = vsub.s32 3, %v3477
        %v3479 = vrot.slane %v929, %v3478
        %v3484 = vmul.f32 %v2623, %v3467
        %v3485 = vmul.f32 %v2623, %v3471
        %v3486 = vmul.f32 %v2623, %v3475
        %v3487 = vmul.f32 %v2623, %v3479
        %v3488 = vmul.f32 %v2609, 2.5
        %3490 = vset.pattern.permute.xlu0 2
        %3491 = vperm.xlu0 %3490, %v3488
        %v3492 = vpop.permute.xlu0 %3491
        %v3494 = vadd.f32 %v3484, %v3492
        %v3495 = vadd.f32 %v3485, %v3492
        %v3496 = vadd.f32 %v3486, %v3492
        %v3497 = vadd.f32 %v3487, %v3492
        %v3498 = vlaneseq
        %v3499 = vshrl.u32 %v3498, 7
        %v3500 = vsub.s32 0, %v3499
        %v3501 = vrot.slane %v3494, %v3500
        %v3502 = vlaneseq
        %v3503 = vshrl.u32 %v3502, 7
        %v3504 = vsub.s32 0, %v3503
        %v3505 = vrot.slane %v3495, %v3504
        %v3506 = vlaneseq
        %v3507 = vshrl.u32 %v3506, 7
        %v3508 = vsub.s32 0, %v3507
        %v3509 = vrot.slane %v3496, %v3508
        %v3510 = vlaneseq
        %v3511 = vshrl.u32 %v3510, 7
        %v3512 = vsub.s32 0, %v3511
        %v3513 = vrot.slane %v3497, %v3512
        %3515 = vset.pattern.permute.xlu0 0
        %3516 = vperm.xlu0 %3515, %v930
        %v3517 = vpop.permute.xlu0 %3516
        %3520 = vset.pattern.permute.xlu0 0
        %3521 = vperm.xlu0 %3520, %v931
        %v3522 = vpop.permute.xlu0 %3521
        %3525 = vset.pattern.permute.xlu0 0
        %3526 = vperm.xlu0 %3525, %v932
        %v3527 = vpop.permute.xlu0 %3526
        %3530 = vset.pattern.permute.xlu0 0
        %3531 = vperm.xlu0 %3530, %v933
        %v3532 = vpop.permute.xlu0 %3531
        %3535 = vset.pattern.permute.xlu0 0
        %3536 = vperm.xlu0 %3535, %v934
        %v3537 = vpop.permute.xlu0 %3536
        %3540 = vset.pattern.permute.xlu0 0
        %3541 = vperm.xlu0 %3540, %v935
        %v3542 = vpop.permute.xlu0 %3541
        %3545 = vset.pattern.permute.xlu0 0
        %3546 = vperm.xlu0 %3545, %v936
        %v3547 = vpop.permute.xlu0 %3546
        %3550 = vset.pattern.permute.xlu0 0
        %3551 = vperm.xlu0 %3550, %v937
        %v3552 = vpop.permute.xlu0 %3551
        %3555 = vset.pattern.permute.xlu0 0
        %3556 = vperm.xlu0 %3555, %v938
        %v3557 = vpop.permute.xlu0 %3556
        %3560 = vset.pattern.permute.xlu0 0
        %3561 = vperm.xlu0 %3560, %v939
        %v3562 = vpop.permute.xlu0 %3561
        %3565 = vset.pattern.permute.xlu0 0
        %3566 = vperm.xlu0 %3565, %v940
        %v3567 = vpop.permute.xlu0 %3566
        %3570 = vset.pattern.permute.xlu0 0
        %3571 = vperm.xlu0 %3570, %v941
        %v3572 = vpop.permute.xlu0 %3571
        %3575 = vset.pattern.permute.xlu0 0
        %3576 = vperm.xlu0 %3575, %v942
        %v3577 = vpop.permute.xlu0 %3576
        %3580 = vset.pattern.permute.xlu0 0
        %3581 = vperm.xlu0 %3580, %v943
        %v3582 = vpop.permute.xlu0 %3581
        %3585 = vset.pattern.permute.xlu0 0
        %3586 = vperm.xlu0 %3585, %v944
        %v3587 = vpop.permute.xlu0 %3586
        %3590 = vset.pattern.permute.xlu0 0
        %3591 = vperm.xlu0 %3590, %v945
        %v3592 = vpop.permute.xlu0 %3591
        %v3594 = vadd.f32 %v3501, %v3517
        %v3595 = vadd.f32 %v3505, %v3517
        %v3596 = vadd.f32 %v3509, %v3517
        %v3597 = vadd.f32 %v3513, %v3517
        %v3598 = vadd.f32 %v3501, %v3522
        %v3599 = vadd.f32 %v3505, %v3522
        %v3600 = vadd.f32 %v3509, %v3522
        %v3601 = vadd.f32 %v3513, %v3522
        %v3602 = vadd.f32 %v3501, %v3527
        %v3603 = vadd.f32 %v3505, %v3527
        %v3604 = vadd.f32 %v3509, %v3527
        %v3605 = vadd.f32 %v3513, %v3527
        %v3606 = vadd.f32 %v3501, %v3532
        %v3607 = vadd.f32 %v3505, %v3532
        %v3608 = vadd.f32 %v3509, %v3532
        %v3609 = vadd.f32 %v3513, %v3532
        %v3610 = vadd.f32 %v3501, %v3537
        %v3611 = vadd.f32 %v3505, %v3537
        %v3612 = vadd.f32 %v3509, %v3537
        %v3613 = vadd.f32 %v3513, %v3537
        %v3614 = vadd.f32 %v3501, %v3542
        %v3615 = vadd.f32 %v3505, %v3542
        %v3616 = vadd.f32 %v3509, %v3542
        %v3617 = vadd.f32 %v3513, %v3542
        %v3618 = vadd.f32 %v3501, %v3547
        %v3619 = vadd.f32 %v3505, %v3547
        %v3620 = vadd.f32 %v3509, %v3547
        %v3621 = vadd.f32 %v3513, %v3547
        %v3622 = vadd.f32 %v3501, %v3552
        %v3623 = vadd.f32 %v3505, %v3552
        %v3624 = vadd.f32 %v3509, %v3552
        %v3625 = vadd.f32 %v3513, %v3552
        %v3626 = vadd.f32 %v3501, %v3557
        %v3627 = vadd.f32 %v3505, %v3557
        %v3628 = vadd.f32 %v3509, %v3557
        %v3629 = vadd.f32 %v3513, %v3557
        %v3630 = vadd.f32 %v3501, %v3562
        %v3631 = vadd.f32 %v3505, %v3562
        %v3632 = vadd.f32 %v3509, %v3562
        %v3633 = vadd.f32 %v3513, %v3562
        %v3634 = vadd.f32 %v3501, %v3567
        %v3635 = vadd.f32 %v3505, %v3567
        %v3636 = vadd.f32 %v3509, %v3567
        %v3637 = vadd.f32 %v3513, %v3567
        %v3638 = vadd.f32 %v3501, %v3572
        %v3639 = vadd.f32 %v3505, %v3572
        %v3640 = vadd.f32 %v3509, %v3572
        %v3641 = vadd.f32 %v3513, %v3572
        %v3642 = vadd.f32 %v3501, %v3577
        %v3643 = vadd.f32 %v3505, %v3577
        %v3644 = vadd.f32 %v3509, %v3577
        %v3645 = vadd.f32 %v3513, %v3577
        %v3646 = vadd.f32 %v3501, %v3582
        %v3647 = vadd.f32 %v3505, %v3582
        %v3648 = vadd.f32 %v3509, %v3582
        %v3649 = vadd.f32 %v3513, %v3582
        %v3650 = vadd.f32 %v3501, %v3587
        %v3651 = vadd.f32 %v3505, %v3587
        %v3652 = vadd.f32 %v3509, %v3587
        %v3653 = vadd.f32 %v3513, %v3587
        %v3654 = vadd.f32 %v3501, %v3592
        %v3655 = vadd.f32 %v3505, %v3592
        %v3656 = vadd.f32 %v3509, %v3592
        %v3657 = vadd.f32 %v3513, %v3592
        %v3658 = vand.u32 2147483647, %v3594
        %v3659 = vand.u32 2147483647, %v3595
        %v3660 = vand.u32 2147483647, %v3596
        %v3661 = vand.u32 2147483647, %v3597
        %v3662 = vand.u32 2147483647, %v3598
        %v3663 = vand.u32 2147483647, %v3599
        %v3664 = vand.u32 2147483647, %v3600
        %v3665 = vand.u32 2147483647, %v3601
        %v3666 = vand.u32 2147483647, %v3602
        %v3667 = vand.u32 2147483647, %v3603
        %v3668 = vand.u32 2147483647, %v3604
        %v3669 = vand.u32 2147483647, %v3605
        %v3670 = vand.u32 2147483647, %v3606
        %v3671 = vand.u32 2147483647, %v3607
        %v3672 = vand.u32 2147483647, %v3608
        %v3673 = vand.u32 2147483647, %v3609
        %v3674 = vand.u32 2147483647, %v3610
        %v3675 = vand.u32 2147483647, %v3611
        %v3676 = vand.u32 2147483647, %v3612
        %v3677 = vand.u32 2147483647, %v3613
        %v3678 = vand.u32 2147483647, %v3614
        %v3679 = vand.u32 2147483647, %v3615
        %v3680 = vand.u32 2147483647, %v3616
        %v3681 = vand.u32 2147483647, %v3617
        %v3682 = vand.u32 2147483647, %v3618
        %v3683 = vand.u32 2147483647, %v3619
        %v3684 = vand.u32 2147483647, %v3620
        %v3685 = vand.u32 2147483647, %v3621
        %v3686 = vand.u32 2147483647, %v3622
        %v3687 = vand.u32 2147483647, %v3623
        %v3688 = vand.u32 2147483647, %v3624
        %v3689 = vand.u32 2147483647, %v3625
        %v3690 = vand.u32 2147483647, %v3626
        %v3691 = vand.u32 2147483647, %v3627
        %v3692 = vand.u32 2147483647, %v3628
        %v3693 = vand.u32 2147483647, %v3629
        %v3694 = vand.u32 2147483647, %v3630
        %v3695 = vand.u32 2147483647, %v3631
        %v3696 = vand.u32 2147483647, %v3632
        %v3697 = vand.u32 2147483647, %v3633
        %v3698 = vand.u32 2147483647, %v3634
        %v3699 = vand.u32 2147483647, %v3635
        %v3700 = vand.u32 2147483647, %v3636
        %v3701 = vand.u32 2147483647, %v3637
        %v3702 = vand.u32 2147483647, %v3638
        %v3703 = vand.u32 2147483647, %v3639
        %v3704 = vand.u32 2147483647, %v3640
        %v3705 = vand.u32 2147483647, %v3641
        %v3706 = vand.u32 2147483647, %v3642
        %v3707 = vand.u32 2147483647, %v3643
        %v3708 = vand.u32 2147483647, %v3644
        %v3709 = vand.u32 2147483647, %v3645
        %v3710 = vand.u32 2147483647, %v3646
        %v3711 = vand.u32 2147483647, %v3647
        %v3712 = vand.u32 2147483647, %v3648
        %v3713 = vand.u32 2147483647, %v3649
        %v3714 = vand.u32 2147483647, %v3650
        %v3715 = vand.u32 2147483647, %v3651
        %v3716 = vand.u32 2147483647, %v3652
        %v3717 = vand.u32 2147483647, %v3653
        %v3718 = vand.u32 2147483647, %v3654
        %v3719 = vand.u32 2147483647, %v3655
        %v3720 = vand.u32 2147483647, %v3656
        %v3721 = vand.u32 2147483647, %v3657
        %v3722 = vsub.f32 1.0, %v3658
        %v3723 = vsub.f32 1.0, %v3659
        %v3724 = vsub.f32 1.0, %v3660
        %v3725 = vsub.f32 1.0, %v3661
        %v3726 = vsub.f32 1.0, %v3662
        %v3727 = vsub.f32 1.0, %v3663
        %v3728 = vsub.f32 1.0, %v3664
        %v3729 = vsub.f32 1.0, %v3665
        %v3730 = vsub.f32 1.0, %v3666
        %v3731 = vsub.f32 1.0, %v3667
        %v3732 = vsub.f32 1.0, %v3668
        %v3733 = vsub.f32 1.0, %v3669
        %v3734 = vsub.f32 1.0, %v3670
        %v3735 = vsub.f32 1.0, %v3671
        %v3736 = vsub.f32 1.0, %v3672
        %v3737 = vsub.f32 1.0, %v3673
        %v3738 = vsub.f32 1.0, %v3674
        %v3739 = vsub.f32 1.0, %v3675
        %v3740 = vsub.f32 1.0, %v3676
        %v3741 = vsub.f32 1.0, %v3677
        %v3742 = vsub.f32 1.0, %v3678
        %v3743 = vsub.f32 1.0, %v3679
        %v3744 = vsub.f32 1.0, %v3680
        %v3745 = vsub.f32 1.0, %v3681
        %v3746 = vsub.f32 1.0, %v3682
        %v3747 = vsub.f32 1.0, %v3683
        %v3748 = vsub.f32 1.0, %v3684
        %v3749 = vsub.f32 1.0, %v3685
        %v3750 = vsub.f32 1.0, %v3686
        %v3751 = vsub.f32 1.0, %v3687
        %v3752 = vsub.f32 1.0, %v3688
        %v3753 = vsub.f32 1.0, %v3689
        %v3754 = vsub.f32 1.0, %v3690
        %v3755 = vsub.f32 1.0, %v3691
        %v3756 = vsub.f32 1.0, %v3692
        %v3757 = vsub.f32 1.0, %v3693
        %v3758 = vsub.f32 1.0, %v3694
        %v3759 = vsub.f32 1.0, %v3695
        %v3760 = vsub.f32 1.0, %v3696
        %v3761 = vsub.f32 1.0, %v3697
        %v3762 = vsub.f32 1.0, %v3698
        %v3763 = vsub.f32 1.0, %v3699
        %v3764 = vsub.f32 1.0, %v3700
        %v3765 = vsub.f32 1.0, %v3701
        %v3766 = vsub.f32 1.0, %v3702
        %v3767 = vsub.f32 1.0, %v3703
        %v3768 = vsub.f32 1.0, %v3704
        %v3769 = vsub.f32 1.0, %v3705
        %v3770 = vsub.f32 1.0, %v3706
        %v3771 = vsub.f32 1.0, %v3707
        %v3772 = vsub.f32 1.0, %v3708
        %v3773 = vsub.f32 1.0, %v3709
        %v3774 = vsub.f32 1.0, %v3710
        %v3775 = vsub.f32 1.0, %v3711
        %v3776 = vsub.f32 1.0, %v3712
        %v3777 = vsub.f32 1.0, %v3713
        %v3778 = vsub.f32 1.0, %v3714
        %v3779 = vsub.f32 1.0, %v3715
        %v3780 = vsub.f32 1.0, %v3716
        %v3781 = vsub.f32 1.0, %v3717
        %v3782 = vsub.f32 1.0, %v3718
        %v3783 = vsub.f32 1.0, %v3719
        %v3784 = vsub.f32 1.0, %v3720
        %v3785 = vsub.f32 1.0, %v3721
        %v3786 = vmax.f32 %v3722, 0.0
        %v3787 = vmax.f32 %v3723, 0.0
        %v3788 = vmax.f32 %v3724, 0.0
        %v3789 = vmax.f32 %v3725, 0.0
        %v3790 = vmax.f32 %v3726, 0.0
        %v3791 = vmax.f32 %v3727, 0.0
        %v3792 = vmax.f32 %v3728, 0.0
        %v3793 = vmax.f32 %v3729, 0.0
        %v3794 = vmax.f32 %v3730, 0.0
        %v3795 = vmax.f32 %v3731, 0.0
        %v3796 = vmax.f32 %v3732, 0.0
        %v3797 = vmax.f32 %v3733, 0.0
        %v3798 = vmax.f32 %v3734, 0.0
        %v3799 = vmax.f32 %v3735, 0.0
        %v3800 = vmax.f32 %v3736, 0.0
        %v3801 = vmax.f32 %v3737, 0.0
        %v3802 = vmax.f32 %v3738, 0.0
        %v3803 = vmax.f32 %v3739, 0.0
        %v3804 = vmax.f32 %v3740, 0.0
        %v3805 = vmax.f32 %v3741, 0.0
        %v3806 = vmax.f32 %v3742, 0.0
        %v3807 = vmax.f32 %v3743, 0.0
        %v3808 = vmax.f32 %v3744, 0.0
        %v3809 = vmax.f32 %v3745, 0.0
        %v3810 = vmax.f32 %v3746, 0.0
        %v3811 = vmax.f32 %v3747, 0.0
        %v3812 = vmax.f32 %v3748, 0.0
        %v3813 = vmax.f32 %v3749, 0.0
        %v3814 = vmax.f32 %v3750, 0.0
        %v3815 = vmax.f32 %v3751, 0.0
        %v3816 = vmax.f32 %v3752, 0.0
        %v3817 = vmax.f32 %v3753, 0.0
        %v3818 = vmax.f32 %v3754, 0.0
        %v3819 = vmax.f32 %v3755, 0.0
        %v3820 = vmax.f32 %v3756, 0.0
        %v3821 = vmax.f32 %v3757, 0.0
        %v3822 = vmax.f32 %v3758, 0.0
        %v3823 = vmax.f32 %v3759, 0.0
        %v3824 = vmax.f32 %v3760, 0.0
        %v3825 = vmax.f32 %v3761, 0.0
        %v3826 = vmax.f32 %v3762, 0.0
        %v3827 = vmax.f32 %v3763, 0.0
        %v3828 = vmax.f32 %v3764, 0.0
        %v3829 = vmax.f32 %v3765, 0.0
        %v3830 = vmax.f32 %v3766, 0.0
        %v3831 = vmax.f32 %v3767, 0.0
        %v3832 = vmax.f32 %v3768, 0.0
        %v3833 = vmax.f32 %v3769, 0.0
        %v3834 = vmax.f32 %v3770, 0.0
        %v3835 = vmax.f32 %v3771, 0.0
        %v3836 = vmax.f32 %v3772, 0.0
        %v3837 = vmax.f32 %v3773, 0.0
        %v3838 = vmax.f32 %v3774, 0.0
        %v3839 = vmax.f32 %v3775, 0.0
        %v3840 = vmax.f32 %v3776, 0.0
        %v3841 = vmax.f32 %v3777, 0.0
        %v3842 = vmax.f32 %v3778, 0.0
        %v3843 = vmax.f32 %v3779, 0.0
        %v3844 = vmax.f32 %v3780, 0.0
        %v3845 = vmax.f32 %v3781, 0.0
        %v3846 = vmax.f32 %v3782, 0.0
        %v3847 = vmax.f32 %v3783, 0.0
        %v3848 = vmax.f32 %v3784, 0.0
        %v3849 = vmax.f32 %v3785, 0.0
        %v3850 = vmul.f32 %v3399, %v3786
        %v3851 = vmul.f32 %v3400, %v3787
        %v3852 = vmul.f32 %v3401, %v3788
        %v3853 = vmul.f32 %v3402, %v3789
        %v3854 = vmul.f32 %v3403, %v3790
        %v3855 = vmul.f32 %v3404, %v3791
        %v3856 = vmul.f32 %v3405, %v3792
        %v3857 = vmul.f32 %v3406, %v3793
        %v3858 = vmul.f32 %v3407, %v3794
        %v3859 = vmul.f32 %v3408, %v3795
        %v3860 = vmul.f32 %v3409, %v3796
        %v3861 = vmul.f32 %v3410, %v3797
        %v3862 = vmul.f32 %v3411, %v3798
        %v3863 = vmul.f32 %v3412, %v3799
        %v3864 = vmul.f32 %v3413, %v3800
        %v3865 = vmul.f32 %v3414, %v3801
        %v3866 = vmul.f32 %v3415, %v3802
        %v3867 = vmul.f32 %v3416, %v3803
        %v3868 = vmul.f32 %v3417, %v3804
        %v3869 = vmul.f32 %v3418, %v3805
        %v3870 = vmul.f32 %v3419, %v3806
        %v3871 = vmul.f32 %v3420, %v3807
        %v3872 = vmul.f32 %v3421, %v3808
        %v3873 = vmul.f32 %v3422, %v3809
        %v3874 = vmul.f32 %v3423, %v3810
        %v3875 = vmul.f32 %v3424, %v3811
        %v3876 = vmul.f32 %v3425, %v3812
        %v3877 = vmul.f32 %v3426, %v3813
        %v3878 = vmul.f32 %v3427, %v3814
        %v3879 = vmul.f32 %v3428, %v3815
        %v3880 = vmul.f32 %v3429, %v3816
        %v3881 = vmul.f32 %v3430, %v3817
        %v3882 = vmul.f32 %v3431, %v3818
        %v3883 = vmul.f32 %v3432, %v3819
        %v3884 = vmul.f32 %v3433, %v3820
        %v3885 = vmul.f32 %v3434, %v3821
        %v3886 = vmul.f32 %v3435, %v3822
        %v3887 = vmul.f32 %v3436, %v3823
        %v3888 = vmul.f32 %v3437, %v3824
        %v3889 = vmul.f32 %v3438, %v3825
        %v3890 = vmul.f32 %v3439, %v3826
        %v3891 = vmul.f32 %v3440, %v3827
        %v3892 = vmul.f32 %v3441, %v3828
        %v3893 = vmul.f32 %v3442, %v3829
        %v3894 = vmul.f32 %v3443, %v3830
        %v3895 = vmul.f32 %v3444, %v3831
        %v3896 = vmul.f32 %v3445, %v3832
        %v3897 = vmul.f32 %v3446, %v3833
        %v3898 = vmul.f32 %v3447, %v3834
        %v3899 = vmul.f32 %v3448, %v3835
        %v3900 = vmul.f32 %v3449, %v3836
        %v3901 = vmul.f32 %v3450, %v3837
        %v3902 = vmul.f32 %v3451, %v3838
        %v3903 = vmul.f32 %v3452, %v3839
        %v3904 = vmul.f32 %v3453, %v3840
        %v3905 = vmul.f32 %v3454, %v3841
        %v3906 = vmul.f32 %v3455, %v3842
        %v3907 = vmul.f32 %v3456, %v3843
        %v3908 = vmul.f32 %v3457, %v3844
        %v3909 = vmul.f32 %v3458, %v3845
        %v3910 = vmul.f32 %v3459, %v3846
        %v3911 = vmul.f32 %v3460, %v3847
        %v3912 = vmul.f32 %v3461, %v3848
        %v3913 = vmul.f32 %v3462, %v3849
        %vm3914 = vcmask 1022976
        %v3916 = vsel %vm3914, %v2596, 0
        %vm3918 = vcmask 1044480
        %v3920 = vsel %vm3918, %v3910, 0
        %v3923 = vsel %vm3918, %v3911, 0
        %v3926 = vsel %vm3918, %v3912, 0
        %v3929 = vsel %vm3918, %v3913, 0
        %3931 = vmatprep.subr.mxu0 %v3851
        %3932 = vmatpush1.msra.mxu0 %v3850
        %3933 = vmatprep.subr.mxu0 %v3855
        %3934 = vmatpush1.msra.mxu0 %v3854
        %3935 = vmatprep.subr.mxu0 %v3859
        %3936 = vmatpush1.msra.mxu0 %v3858
        %3937 = vmatprep.subr.mxu0 %v3863
        %3938 = vmatpush1.msra.mxu0 %v3862
        %3939 = vmatprep.subr.mxu0 %v3867
        %3940 = vmatpush1.msra.mxu0 %v3866
        %3941 = vmatprep.subr.mxu0 %v3871
        %3942 = vmatpush1.msra.mxu0 %v3870
        %3943 = vmatprep.subr.mxu0 %v3875
        %3944 = vmatpush1.msra.mxu0 %v3874
        %3945 = vmatprep.subr.mxu0 %v3879
        %3946 = vmatpush1.msra.mxu0 %v3878
        %3947 = vmatprep.subr.mxu0 %v3883
        %3948 = vmatpush1.msra.mxu0 %v3882
        %3949 = vmatprep.subr.mxu0 %v3887
        %3950 = vmatpush1.msra.mxu0 %v3886
        %3951 = vmatprep.subr.mxu0 %v3891
        %3952 = vmatpush1.msra.mxu0 %v3890
        %3953 = vmatprep.subr.mxu0 %v3895
        %3954 = vmatpush1.msra.mxu0 %v3894
        %3955 = vmatprep.subr.mxu0 %v3899
        %3956 = vmatpush1.msra.mxu0 %v3898
        %3957 = vmatprep.subr.mxu0 %v3903
        %3958 = vmatpush1.msra.mxu0 %v3902
        %3959 = vmatprep.subr.mxu0 %v3907
        %3960 = vmatpush1.msra.mxu0 %v3906
        %3961 = vmatprep.subr.mxu0 %v3923
        %3962 = vmatpush1.msra.mxu0 %v3920
        %3963 = vmatprep.subr.mxu0 0.0
        %3964 = vmatpush1.msra.mxu0 0.0
        %3965 = vmatprep.subr.mxu0 0.0
        %3966 = vmatpush1.msra.mxu0 0.0
        %3967 = vmatprep.subr.mxu0 0.0
        %3968 = vmatpush1.msra.mxu0 0.0
        %3969 = vmatprep.subr.mxu0 0.0
        %3970 = vmatpush1.msra.mxu0 0.0
        %3971 = vmatprep.subr.mxu0 0.0
        %3972 = vmatpush1.msra.mxu0 0.0
        %3973 = vmatprep.subr.mxu0 0.0
        %3974 = vmatpush1.msra.mxu0 0.0
        %3975 = vmatprep.subr.mxu0 0.0
        %3976 = vmatpush1.msra.mxu0 0.0
        %3977 = vmatprep.subr.mxu0 0.0
        %3978 = vmatpush1.msra.mxu0 0.0
        %3979 = vmatprep.subr.mxu0 0.0
        %3980 = vmatpush1.msra.mxu0 0.0
        %3981 = vmatprep.subr.mxu0 0.0
        %3982 = vmatpush1.msra.mxu0 0.0
        %3983 = vmatprep.subr.mxu0 0.0
        %3984 = vmatpush1.msra.mxu0 0.0
        %3985 = vmatprep.subr.mxu0 0.0
        %3986 = vmatpush1.msra.mxu0 0.0
        %3987 = vmatprep.subr.mxu0 0.0
        %3988 = vmatpush1.msra.mxu0 0.0
        %3989 = vmatprep.subr.mxu0 0.0
        %3990 = vmatpush1.msra.mxu0 0.0
        %3991 = vmatprep.subr.mxu0 0.0
        %3992 = vmatpush1.msra.mxu0 0.0
        %3993 = vmatprep.subr.mxu0 0.0
        %3994 = vmatpush1.msra.mxu0 0.0
        %3995 = vmatprep.mubr.f32.mxu0 0.0
        %3996 = vmatmul.mubr.f32.gmra.mrb[0].mxu0 %v3916
        %v3997 = vpop.f32.mrb[0].mxu0
        %v3998 = vadd.f32 0.0, %v3997
        %v3999 = vpop.f32.mrb[0].mxu0
        %v4000 = vadd.f32 0.0, %v3999
        %4001 = vdwg.mxu0
        %4002 = vmatprep.subr.mxu0 %v3853
        %4003 = vmatpush1.msra.mxu0 %v3852
        %4004 = vmatprep.subr.mxu0 %v3857
        %4005 = vmatpush1.msra.mxu0 %v3856
        %4006 = vmatprep.subr.mxu0 %v3861
        %4007 = vmatpush1.msra.mxu0 %v3860
        %4008 = vmatprep.subr.mxu0 %v3865
        %4009 = vmatpush1.msra.mxu0 %v3864
        %4010 = vmatprep.subr.mxu0 %v3869
        %4011 = vmatpush1.msra.mxu0 %v3868
        %4012 = vmatprep.subr.mxu0 %v3873
        %4013 = vmatpush1.msra.mxu0 %v3872
        %4014 = vmatprep.subr.mxu0 %v3877
        %4015 = vmatpush1.msra.mxu0 %v3876
        %4016 = vmatprep.subr.mxu0 %v3881
        %4017 = vmatpush1.msra.mxu0 %v3880
        %4018 = vmatprep.subr.mxu0 %v3885
        %4019 = vmatpush1.msra.mxu0 %v3884
        %4020 = vmatprep.subr.mxu0 %v3889
        %4021 = vmatpush1.msra.mxu0 %v3888
        %4022 = vmatprep.subr.mxu0 %v3893
        %4023 = vmatpush1.msra.mxu0 %v3892
        %4024 = vmatprep.subr.mxu0 %v3897
        %4025 = vmatpush1.msra.mxu0 %v3896
        %4026 = vmatprep.subr.mxu0 %v3901
        %4027 = vmatpush1.msra.mxu0 %v3900
        %4028 = vmatprep.subr.mxu0 %v3905
        %4029 = vmatpush1.msra.mxu0 %v3904
        %4030 = vmatprep.subr.mxu0 %v3909
        %4031 = vmatpush1.msra.mxu0 %v3908
        %4032 = vmatprep.subr.mxu0 %v3929
        %4033 = vmatpush1.msra.mxu0 %v3926
        %4034 = vmatprep.subr.mxu0 0.0
        %4035 = vmatpush1.msra.mxu0 0.0
        %4036 = vmatprep.subr.mxu0 0.0
        %4037 = vmatpush1.msra.mxu0 0.0
        %4038 = vmatprep.subr.mxu0 0.0
        %4039 = vmatpush1.msra.mxu0 0.0
        %4040 = vmatprep.subr.mxu0 0.0
        %4041 = vmatpush1.msra.mxu0 0.0
        %4042 = vmatprep.subr.mxu0 0.0
        %4043 = vmatpush1.msra.mxu0 0.0
        %4044 = vmatprep.subr.mxu0 0.0
        %4045 = vmatpush1.msra.mxu0 0.0
        %4046 = vmatprep.subr.mxu0 0.0
        %4047 = vmatpush1.msra.mxu0 0.0
        %4048 = vmatprep.subr.mxu0 0.0
        %4049 = vmatpush1.msra.mxu0 0.0
        %4050 = vmatprep.subr.mxu0 0.0
        %4051 = vmatpush1.msra.mxu0 0.0
        %4052 = vmatprep.subr.mxu0 0.0
        %4053 = vmatpush1.msra.mxu0 0.0
        %4054 = vmatprep.subr.mxu0 0.0
        %4055 = vmatpush1.msra.mxu0 0.0
        %4056 = vmatprep.subr.mxu0 0.0
        %4057 = vmatpush1.msra.mxu0 0.0
        %4058 = vmatprep.subr.mxu0 0.0
        %4059 = vmatpush1.msra.mxu0 0.0
        %4060 = vmatprep.subr.mxu0 0.0
        %4061 = vmatpush1.msra.mxu0 0.0
        %4062 = vmatprep.subr.mxu0 0.0
        %4063 = vmatpush1.msra.mxu0 0.0
        %4064 = vmatprep.subr.mxu0 0.0
        %4065 = vmatpush1.msra.mxu0 0.0
        %4066 = vmatprep.mubr.f32.mxu0 0.0
        %4067 = vmatmul.mubr.f32.gmra.mrb[0].mxu0 %v3916
        %v4068 = vpop.f32.mrb[0].mxu0
        %v4069 = vadd.f32 0.0, %v4068
        %v4070 = vpop.f32.mrb[0].mxu0
        %v4071 = vadd.f32 0.0, %v4070
        %4072 = vdwg.mxu0
        %v4077 = vcombine.low %v3998, %v4000
        %v4078 = vcombine.low %v4069, %v4071
        %v4080 = vunpack.c.l.s4 1966171168
        %v4081 = vunpack.c.0.s8 %v4080
        %v4082 = vlaneseq
        %v4083 = vshrl.u32 %v4082, 7
        %v4084 = vsub.s32 %v4081, %v4083
        %v4085 = vrot.slane %v4077, %v4084
        %v4087 = vunpack.c.l.s4 1966171168
        %v4088 = vunpack.c.0.s8 %v4087
        %v4089 = vlaneseq
        %v4090 = vshrl.u32 %v4089, 7
        %v4091 = vsub.s32 %v4088, %v4090
        %v4092 = vrot.slane %v4078, %v4091
        %v4093 = vcombine.low %v4085, %v4092
        %v4095 = vunpack.c.l.s4 1966171168
        %v4096 = vunpack.c.0.s8 %v4095
        %v4097 = vlaneseq
        %v4098 = vshrl.u32 %v4097, 7
        %v4099 = vsub.s32 %v4096, %v4098
        %v4100 = vrot.slane %v4093, %v4099
        %v4102 = vlaneseq
        %vm4103 = vcmp.ge.s32.totalorder %v4102, 0
        %vm4104 = vcmp.lt.s32.totalorder %v4102, 512
        %vm4105 = vmand %vm4103, %vm4104
        %4106 = vst.msk [vmem:[%s829] ss:$2 sm:$0xf] %vm4105, %v4100
        %vm4107 = vcmask 73728
        %4108 = vst.msk [vmem:[%s836] sm:$0x1] %vm4107, %v2334
        %4110 = vrot.lane.b32.xlu0 %v2334, 118
        %v4111 = vpop.permute.xlu0 %4110
        %4113 = vst.msk [vmem:[%s843] sm:$0x1] %vm4107, %v4111
        %4114 = vst.msk [vmem:[%s850] sm:$0x1] %vm4107, %v2342
        %v4115 = vlaneseq
        %v4116 = vshrl.u32 %v4115, 7
        %v4117 = vsub.s32 0, %v4116
        %v4118 = vrot.slane %v2596, %v4117
        %v4119 = vmul.f32 %v4118, %v988
        %v4120 = vmul.f32 %v2598, 16.0
        %v4121 = vlaneseq
        %v4122 = vshrl.u32 %v4121, 7
        %v4123 = vsub.s32 0, %v4122
        %v4124 = vrot.slane %v4120, %v4123
        %4126 = vrot.lane.b32.xlu0 %v4124, 125
        %v4127 = vpop.permute.xlu0 %4126
        %v4129 = vadd.f32 %v4119, %v4127
        %4131 = vset.pattern.permute.xlu0 125
        %4132 = vperm.xlu0 %4131, %v4129
        %v4133 = vpop.permute.xlu0 %4132
        %v4135 = vadd.f32 %v4133, %v1012
        %v4136 = vand.u32 2147483647, %v4135
        %v4137 = vsub.f32 1.0, %v4136
        %v4138 = vmax.f32 %v4137, 0.0
        %v4139 = vmul.f32 %v4118, %v1021
        %v4140 = vmul.f32 %v4118, %v1023
        %v4141 = vmul.f32 %v2596, 16.0
        %v4142 = vlaneseq
        %v4143 = vshrl.u32 %v4142, 7
        %v4144 = vsub.s32 0, %v4143
        %v4145 = vrot.slane %v4141, %v4144
        %4147 = vrot.lane.b32.xlu0 %v4145, 126
        %v4148 = vpop.permute.xlu0 %4147
        %v4150 = vadd.f32 %v4139, %v4148
        %v4151 = vadd.f32 %v4140, %v4148
        %4153 = vset.pattern.permute.xlu0 125
        %4154 = vperm.xlu0 %4153, %v4150
        %v4155 = vpop.permute.xlu0 %4154
        %4158 = vset.pattern.permute.xlu0 125
        %4159 = vperm.xlu0 %4158, %v4151
        %v4160 = vpop.permute.xlu0 %4159
        %v4162 = vadd.f32 %v4155, %v1053
        %v4163 = vadd.f32 %v4155, %v1057
        %v4164 = vadd.f32 %v4155, %v1061
        %v4165 = vadd.f32 %v4155, %v1065
        %v4166 = vadd.f32 %v4155, %v1069
        %v4167 = vadd.f32 %v4155, %v1073
        %v4168 = vadd.f32 %v4155, %v1077
        %v4169 = vadd.f32 %v4155, %v1081
        %v4170 = vadd.f32 %v4160, %v1053
        %v4171 = vadd.f32 %v4160, %v1057
        %v4172 = vadd.f32 %v4160, %v1061
        %v4173 = vadd.f32 %v4160, %v1065
        %v4174 = vadd.f32 %v4160, %v1069
        %v4175 = vadd.f32 %v4160, %v1073
        %v4176 = vadd.f32 %v4160, %v1077
        %v4177 = vadd.f32 %v4160, %v1081
        %v4178 = vand.u32 2147483647, %v4162
        %v4179 = vand.u32 2147483647, %v4163
        %v4180 = vand.u32 2147483647, %v4164
        %v4181 = vand.u32 2147483647, %v4165
        %v4182 = vand.u32 2147483647, %v4166
        %v4183 = vand.u32 2147483647, %v4167
        %v4184 = vand.u32 2147483647, %v4168
        %v4185 = vand.u32 2147483647, %v4169
        %v4186 = vand.u32 2147483647, %v4170
        %v4187 = vand.u32 2147483647, %v4171
        %v4188 = vand.u32 2147483647, %v4172
        %v4189 = vand.u32 2147483647, %v4173
        %v4190 = vand.u32 2147483647, %v4174
        %v4191 = vand.u32 2147483647, %v4175
        %v4192 = vand.u32 2147483647, %v4176
        %v4193 = vand.u32 2147483647, %v4177
        %v4194 = vsub.f32 1.0, %v4178
        %v4195 = vsub.f32 1.0, %v4179
        %v4196 = vsub.f32 1.0, %v4180
        %v4197 = vsub.f32 1.0, %v4181
        %v4198 = vsub.f32 1.0, %v4182
        %v4199 = vsub.f32 1.0, %v4183
        %v4200 = vsub.f32 1.0, %v4184
        %v4201 = vsub.f32 1.0, %v4185
        %v4202 = vsub.f32 1.0, %v4186
        %v4203 = vsub.f32 1.0, %v4187
        %v4204 = vsub.f32 1.0, %v4188
        %v4205 = vsub.f32 1.0, %v4189
        %v4206 = vsub.f32 1.0, %v4190
        %v4207 = vsub.f32 1.0, %v4191
        %v4208 = vsub.f32 1.0, %v4192
        %v4209 = vsub.f32 1.0, %v4193
        %v4210 = vmax.f32 %v4194, 0.0
        %v4211 = vmax.f32 %v4195, 0.0
        %v4212 = vmax.f32 %v4196, 0.0
        %v4213 = vmax.f32 %v4197, 0.0
        %v4214 = vmax.f32 %v4198, 0.0
        %v4215 = vmax.f32 %v4199, 0.0
        %v4216 = vmax.f32 %v4200, 0.0
        %v4217 = vmax.f32 %v4201, 0.0
        %v4218 = vmax.f32 %v4202, 0.0
        %v4219 = vmax.f32 %v4203, 0.0
        %v4220 = vmax.f32 %v4204, 0.0
        %v4221 = vmax.f32 %v4205, 0.0
        %v4222 = vmax.f32 %v4206, 0.0
        %v4223 = vmax.f32 %v4207, 0.0
        %v4224 = vmax.f32 %v4208, 0.0
        %v4225 = vmax.f32 %v4209, 0.0
        %v4226 = vmul.f32 %v4118, %v1157
        %v4227 = vmul.f32 %v4118, %v1159
        %4228 = vrot.lane.b32.xlu0 %v4145, 127
        %v4229 = vpop.permute.xlu0 %4228
        %v4231 = vadd.f32 %v4226, %v4229
        %v4232 = vadd.f32 %v4227, %v4229
        %4234 = vset.pattern.permute.xlu0 125
        %4235 = vperm.xlu0 %4234, %v4231
        %v4236 = vpop.permute.xlu0 %4235
        %4239 = vset.pattern.permute.xlu0 125
        %4240 = vperm.xlu0 %4239, %v4232
        %v4241 = vpop.permute.xlu0 %4240
        %v4243 = vadd.f32 %v4236, %v1183
        %v4244 = vadd.f32 %v4236, %v1187
        %v4245 = vadd.f32 %v4236, %v1191
        %v4246 = vadd.f32 %v4236, %v1195
        %v4247 = vadd.f32 %v4236, %v1199
        %v4248 = vadd.f32 %v4236, %v1203
        %v4249 = vadd.f32 %v4236, %v1207
        %v4250 = vadd.f32 %v4236, %v1211
        %v4251 = vadd.f32 %v4241, %v1183
        %v4252 = vadd.f32 %v4241, %v1187
        %v4253 = vadd.f32 %v4241, %v1191
        %v4254 = vadd.f32 %v4241, %v1195
        %v4255 = vadd.f32 %v4241, %v1199
        %v4256 = vadd.f32 %v4241, %v1203
        %v4257 = vadd.f32 %v4241, %v1207
        %v4258 = vadd.f32 %v4241, %v1211
        %v4259 = vand.u32 2147483647, %v4243
        %v4260 = vand.u32 2147483647, %v4244
        %v4261 = vand.u32 2147483647, %v4245
        %v4262 = vand.u32 2147483647, %v4246
        %v4263 = vand.u32 2147483647, %v4247
        %v4264 = vand.u32 2147483647, %v4248
        %v4265 = vand.u32 2147483647, %v4249
        %v4266 = vand.u32 2147483647, %v4250
        %v4267 = vand.u32 2147483647, %v4251
        %v4268 = vand.u32 2147483647, %v4252
        %v4269 = vand.u32 2147483647, %v4253
        %v4270 = vand.u32 2147483647, %v4254
        %v4271 = vand.u32 2147483647, %v4255
        %v4272 = vand.u32 2147483647, %v4256
        %v4273 = vand.u32 2147483647, %v4257
        %v4274 = vand.u32 2147483647, %v4258
        %v4275 = vsub.f32 1.0, %v4259
        %v4276 = vsub.f32 1.0, %v4260
        %v4277 = vsub.f32 1.0, %v4261
        %v4278 = vsub.f32 1.0, %v4262
        %v4279 = vsub.f32 1.0, %v4263
        %v4280 = vsub.f32 1.0, %v4264
        %v4281 = vsub.f32 1.0, %v4265
        %v4282 = vsub.f32 1.0, %v4266
        %v4283 = vsub.f32 1.0, %v4267
        %v4284 = vsub.f32 1.0, %v4268
        %v4285 = vsub.f32 1.0, %v4269
        %v4286 = vsub.f32 1.0, %v4270
        %v4287 = vsub.f32 1.0, %v4271
        %v4288 = vsub.f32 1.0, %v4272
        %v4289 = vsub.f32 1.0, %v4273
        %v4290 = vsub.f32 1.0, %v4274
        %v4291 = vmax.f32 %v4275, 0.0
        %v4292 = vmax.f32 %v4276, 0.0
        %v4293 = vmax.f32 %v4277, 0.0
        %v4294 = vmax.f32 %v4278, 0.0
        %v4295 = vmax.f32 %v4279, 0.0
        %v4296 = vmax.f32 %v4280, 0.0
        %v4297 = vmax.f32 %v4281, 0.0
        %v4298 = vmax.f32 %v4282, 0.0
        %v4299 = vmax.f32 %v4283, 0.0
        %v4300 = vmax.f32 %v4284, 0.0
        %v4301 = vmax.f32 %v4285, 0.0
        %v4302 = vmax.f32 %v4286, 0.0
        %v4303 = vmax.f32 %v4287, 0.0
        %v4304 = vmax.f32 %v4288, 0.0
        %v4305 = vmax.f32 %v4289, 0.0
        %v4306 = vmax.f32 %v4290, 0.0
        %v4307 = vmul.f32 %v4210, %v4291
        %v4308 = vmul.f32 %v4211, %v4292
        %v4309 = vmul.f32 %v4212, %v4293
        %v4310 = vmul.f32 %v4213, %v4294
        %v4311 = vmul.f32 %v4214, %v4295
        %v4312 = vmul.f32 %v4215, %v4296
        %v4313 = vmul.f32 %v4216, %v4297
        %v4314 = vmul.f32 %v4217, %v4298
        %v4315 = vmul.f32 %v4218, %v4299
        %v4316 = vmul.f32 %v4219, %v4300
        %v4317 = vmul.f32 %v4220, %v4301
        %v4318 = vmul.f32 %v4221, %v4302
        %v4319 = vmul.f32 %v4222, %v4303
        %v4320 = vmul.f32 %v4223, %v4304
        %v4321 = vmul.f32 %v4224, %v4305
        %v4322 = vmul.f32 %v4225, %v4306
        %v4324 = vsel %vm1300, %v4138, 0
        %4326 = vmatprep.subr.mxu0 %v856
        %4327 = vmatpush1.msra.mxu0 %v855
        %4328 = vmatprep.subr.mxu0 %v864
        %4329 = vmatpush1.msra.mxu0 %v863
        %4330 = vmatprep.subr.mxu0 %v872
        %4331 = vmatpush1.msra.mxu0 %v871
        %4332 = vmatprep.subr.mxu0 %v880
        %4333 = vmatpush1.msra.mxu0 %v879
        %4334 = vmatprep.subr.mxu0 0.0
        %4335 = vmatpush1.msra.mxu0 0.0
        %4336 = vmatprep.subr.mxu0 0.0
        %4337 = vmatpush1.msra.mxu0 0.0
        %4338 = vmatprep.subr.mxu0 0.0
        %4339 = vmatpush1.msra.mxu0 0.0
        %4340 = vmatprep.subr.mxu0 0.0
        %4341 = vmatpush1.msra.mxu0 0.0
        %4342 = vmatprep.subr.mxu0 0.0
        %4343 = vmatpush1.msra.mxu0 0.0
        %4344 = vmatprep.subr.mxu0 0.0
        %4345 = vmatpush1.msra.mxu0 0.0
        %4346 = vmatprep.subr.mxu0 0.0
        %4347 = vmatpush1.msra.mxu0 0.0
        %4348 = vmatprep.subr.mxu0 0.0
        %4349 = vmatpush1.msra.mxu0 0.0
        %4350 = vmatprep.subr.mxu0 0.0
        %4351 = vmatpush1.msra.mxu0 0.0
        %4352 = vmatprep.subr.mxu0 0.0
        %4353 = vmatpush1.msra.mxu0 0.0
        %4354 = vmatprep.subr.mxu0 0.0
        %4355 = vmatpush1.msra.mxu0 0.0
        %4356 = vmatprep.subr.mxu0 0.0
        %4357 = vmatpush1.msra.mxu0 0.0
        %4358 = vmatprep.subr.mxu0 0.0
        %4359 = vmatpush1.msra.mxu0 0.0
        %4360 = vmatprep.subr.mxu0 0.0
        %4361 = vmatpush1.msra.mxu0 0.0
        %4362 = vmatprep.subr.mxu0 0.0
        %4363 = vmatpush1.msra.mxu0 0.0
        %4364 = vmatprep.subr.mxu0 0.0
        %4365 = vmatpush1.msra.mxu0 0.0
        %4366 = vmatprep.subr.mxu0 0.0
        %4367 = vmatpush1.msra.mxu0 0.0
        %4368 = vmatprep.subr.mxu0 0.0
        %4369 = vmatpush1.msra.mxu0 0.0
        %4370 = vmatprep.subr.mxu0 0.0
        %4371 = vmatpush1.msra.mxu0 0.0
        %4372 = vmatprep.subr.mxu0 0.0
        %4373 = vmatpush1.msra.mxu0 0.0
        %4374 = vmatprep.subr.mxu0 0.0
        %4375 = vmatpush1.msra.mxu0 0.0
        %4376 = vmatprep.subr.mxu0 0.0
        %4377 = vmatpush1.msra.mxu0 0.0
        %4378 = vmatprep.subr.mxu0 0.0
        %4379 = vmatpush1.msra.mxu0 0.0
        %4380 = vmatprep.subr.mxu0 0.0
        %4381 = vmatpush1.msra.mxu0 0.0
        %4382 = vmatprep.subr.mxu0 0.0
        %4383 = vmatpush1.msra.mxu0 0.0
        %4384 = vmatprep.subr.mxu0 0.0
        %4385 = vmatpush1.msra.mxu0 0.0
        %4386 = vmatprep.subr.mxu0 0.0
        %4387 = vmatpush1.msra.mxu0 0.0
        %4388 = vmatprep.subr.mxu0 0.0
        %4389 = vmatpush1.msra.mxu0 0.0
        %4390 = vmatprep.mubr.f32.mxu0 0.0
        %4391 = vmatmul.mubr.f32.gmra.mrb[0].mxu0 %v4324
        %v4392 = vpop.f32.mrb[0].mxu0
        %v4393 = vadd.f32 0.0, %v4392
        %v4394 = vpop.f32.mrb[0].mxu0
        %v4395 = vadd.f32 0.0, %v4394
        %4396 = vdwg.mxu0
        %4397 = vmatprep.subr.mxu0 %v858
        %4398 = vmatpush1.msra.mxu0 %v857
        %4399 = vmatprep.subr.mxu0 %v866
        %4400 = vmatpush1.msra.mxu0 %v865
        %4401 = vmatprep.subr.mxu0 %v874
        %4402 = vmatpush1.msra.mxu0 %v873
        %4403 = vmatprep.subr.mxu0 %v882
        %4404 = vmatpush1.msra.mxu0 %v881
        %4405 = vmatprep.subr.mxu0 0.0
        %4406 = vmatpush1.msra.mxu0 0.0
        %4407 = vmatprep.subr.mxu0 0.0
        %4408 = vmatpush1.msra.mxu0 0.0
        %4409 = vmatprep.subr.mxu0 0.0
        %4410 = vmatpush1.msra.mxu0 0.0
        %4411 = vmatprep.subr.mxu0 0.0
        %4412 = vmatpush1.msra.mxu0 0.0
        %4413 = vmatprep.subr.mxu0 0.0
        %4414 = vmatpush1.msra.mxu0 0.0
        %4415 = vmatprep.subr.mxu0 0.0
        %4416 = vmatpush1.msra.mxu0 0.0
        %4417 = vmatprep.subr.mxu0 0.0
        %4418 = vmatpush1.msra.mxu0 0.0
        %4419 = vmatprep.subr.mxu0 0.0
        %4420 = vmatpush1.msra.mxu0 0.0
        %4421 = vmatprep.subr.mxu0 0.0
        %4422 = vmatpush1.msra.mxu0 0.0
        %4423 = vmatprep.subr.mxu0 0.0
        %4424 = vmatpush1.msra.mxu0 0.0
        %4425 = vmatprep.subr.mxu0 0.0
        %4426 = vmatpush1.msra.mxu0 0.0
        %4427 = vmatprep.subr.mxu0 0.0
        %4428 = vmatpush1.msra.mxu0 0.0
        %4429 = vmatprep.subr.mxu0 0.0
        %4430 = vmatpush1.msra.mxu0 0.0
        %4431 = vmatprep.subr.mxu0 0.0
        %4432 = vmatpush1.msra.mxu0 0.0
        %4433 = vmatprep.subr.mxu0 0.0
        %4434 = vmatpush1.msra.mxu0 0.0
        %4435 = vmatprep.subr.mxu0 0.0
        %4436 = vmatpush1.msra.mxu0 0.0
        %4437 = vmatprep.subr.mxu0 0.0
        %4438 = vmatpush1.msra.mxu0 0.0
        %4439 = vmatprep.subr.mxu0 0.0
        %4440 = vmatpush1.msra.mxu0 0.0
        %4441 = vmatprep.subr.mxu0 0.0
        %4442 = vmatpush1.msra.mxu0 0.0
        %4443 = vmatprep.subr.mxu0 0.0
        %4444 = vmatpush1.msra.mxu0 0.0
        %4445 = vmatprep.subr.mxu0 0.0
        %4446 = vmatpush1.msra.mxu0 0.0
        %4447 = vmatprep.subr.mxu0 0.0
        %4448 = vmatpush1.msra.mxu0 0.0
        %4449 = vmatprep.subr.mxu0 0.0
        %4450 = vmatpush1.msra.mxu0 0.0
        %4451 = vmatprep.subr.mxu0 0.0
        %4452 = vmatpush1.msra.mxu0 0.0
        %4453 = vmatprep.subr.mxu0 0.0
        %4454 = vmatpush1.msra.mxu0 0.0
        %4455 = vmatprep.subr.mxu0 0.0
        %4456 = vmatpush1.msra.mxu0 0.0
        %4457 = vmatprep.subr.mxu0 0.0
        %4458 = vmatpush1.msra.mxu0 0.0
        %4459 = vmatprep.subr.mxu0 0.0
        %4460 = vmatpush1.msra.mxu0 0.0
        %4461 = vmatprep.mubr.f32.mxu0 0.0
        %4462 = vmatmul.mubr.f32.gmra.mrb[0].mxu0 %v4324
        %v4463 = vpop.f32.mrb[0].mxu0
        %v4464 = vadd.f32 0.0, %v4463
        %v4465 = vpop.f32.mrb[0].mxu0
        %v4466 = vadd.f32 0.0, %v4465
        %4467 = vdwg.mxu0
        %4468 = vmatprep.subr.mxu0 %v860
        %4469 = vmatpush1.msra.mxu0 %v859
        %4470 = vmatprep.subr.mxu0 %v868
        %4471 = vmatpush1.msra.mxu0 %v867
        %4472 = vmatprep.subr.mxu0 %v876
        %4473 = vmatpush1.msra.mxu0 %v875
        %4474 = vmatprep.subr.mxu0 %v884
        %4475 = vmatpush1.msra.mxu0 %v883
        %4476 = vmatprep.subr.mxu0 0.0
        %4477 = vmatpush1.msra.mxu0 0.0
        %4478 = vmatprep.subr.mxu0 0.0
        %4479 = vmatpush1.msra.mxu0 0.0
        %4480 = vmatprep.subr.mxu0 0.0
        %4481 = vmatpush1.msra.mxu0 0.0
        %4482 = vmatprep.subr.mxu0 0.0
        %4483 = vmatpush1.msra.mxu0 0.0
        %4484 = vmatprep.subr.mxu0 0.0
        %4485 = vmatpush1.msra.mxu0 0.0
        %4486 = vmatprep.subr.mxu0 0.0
        %4487 = vmatpush1.msra.mxu0 0.0
        %4488 = vmatprep.subr.mxu0 0.0
        %4489 = vmatpush1.msra.mxu0 0.0
        %4490 = vmatprep.subr.mxu0 0.0
        %4491 = vmatpush1.msra.mxu0 0.0
        %4492 = vmatprep.subr.mxu0 0.0
        %4493 = vmatpush1.msra.mxu0 0.0
        %4494 = vmatprep.subr.mxu0 0.0
        %4495 = vmatpush1.msra.mxu0 0.0
        %4496 = vmatprep.subr.mxu0 0.0
        %4497 = vmatpush1.msra.mxu0 0.0
        %4498 = vmatprep.subr.mxu0 0.0
        %4499 = vmatpush1.msra.mxu0 0.0
        %4500 = vmatprep.subr.mxu0 0.0
        %4501 = vmatpush1.msra.mxu0 0.0
        %4502 = vmatprep.subr.mxu0 0.0
        %4503 = vmatpush1.msra.mxu0 0.0
        %4504 = vmatprep.subr.mxu0 0.0
        %4505 = vmatpush1.msra.mxu0 0.0
        %4506 = vmatprep.subr.mxu0 0.0
        %4507 = vmatpush1.msra.mxu0 0.0
        %4508 = vmatprep.subr.mxu0 0.0
        %4509 = vmatpush1.msra.mxu0 0.0
        %4510 = vmatprep.subr.mxu0 0.0
        %4511 = vmatpush1.msra.mxu0 0.0
        %4512 = vmatprep.subr.mxu0 0.0
        %4513 = vmatpush1.msra.mxu0 0.0
        %4514 = vmatprep.subr.mxu0 0.0
        %4515 = vmatpush1.msra.mxu0 0.0
        %4516 = vmatprep.subr.mxu0 0.0
        %4517 = vmatpush1.msra.mxu0 0.0
        %4518 = vmatprep.subr.mxu0 0.0
        %4519 = vmatpush1.msra.mxu0 0.0
        %4520 = vmatprep.subr.mxu0 0.0
        %4521 = vmatpush1.msra.mxu0 0.0
        %4522 = vmatprep.subr.mxu0 0.0
        %4523 = vmatpush1.msra.mxu0 0.0
        %4524 = vmatprep.subr.mxu0 0.0
        %4525 = vmatpush1.msra.mxu0 0.0
        %4526 = vmatprep.subr.mxu0 0.0
        %4527 = vmatpush1.msra.mxu0 0.0
        %4528 = vmatprep.subr.mxu0 0.0
        %4529 = vmatpush1.msra.mxu0 0.0
        %4530 = vmatprep.subr.mxu0 0.0
        %4531 = vmatpush1.msra.mxu0 0.0
        %4532 = vmatprep.mubr.f32.mxu0 0.0
        %4533 = vmatmul.mubr.f32.gmra.mrb[0].mxu0 %v4324
        %v4534 = vpop.f32.mrb[0].mxu0
        %v4535 = vadd.f32 0.0, %v4534
        %v4536 = vpop.f32.mrb[0].mxu0
        %v4537 = vadd.f32 0.0, %v4536
        %4538 = vdwg.mxu0
        %4539 = vmatprep.subr.mxu0 %v862
        %4540 = vmatpush1.msra.mxu0 %v861
        %4541 = vmatprep.subr.mxu0 %v870
        %4542 = vmatpush1.msra.mxu0 %v869
        %4543 = vmatprep.subr.mxu0 %v878
        %4544 = vmatpush1.msra.mxu0 %v877
        %4545 = vmatprep.subr.mxu0 %v886
        %4546 = vmatpush1.msra.mxu0 %v885
        %4547 = vmatprep.subr.mxu0 0.0
        %4548 = vmatpush1.msra.mxu0 0.0
        %4549 = vmatprep.subr.mxu0 0.0
        %4550 = vmatpush1.msra.mxu0 0.0
        %4551 = vmatprep.subr.mxu0 0.0
        %4552 = vmatpush1.msra.mxu0 0.0
        %4553 = vmatprep.subr.mxu0 0.0
        %4554 = vmatpush1.msra.mxu0 0.0
        %4555 = vmatprep.subr.mxu0 0.0
        %4556 = vmatpush1.msra.mxu0 0.0
        %4557 = vmatprep.subr.mxu0 0.0
        %4558 = vmatpush1.msra.mxu0 0.0
        %4559 = vmatprep.subr.mxu0 0.0
        %4560 = vmatpush1.msra.mxu0 0.0
        %4561 = vmatprep.subr.mxu0 0.0
        %4562 = vmatpush1.msra.mxu0 0.0
        %4563 = vmatprep.subr.mxu0 0.0
        %4564 = vmatpush1.msra.mxu0 0.0
        %4565 = vmatprep.subr.mxu0 0.0
        %4566 = vmatpush1.msra.mxu0 0.0
        %4567 = vmatprep.subr.mxu0 0.0
        %4568 = vmatpush1.msra.mxu0 0.0
        %4569 = vmatprep.subr.mxu0 0.0
        %4570 = vmatpush1.msra.mxu0 0.0
        %4571 = vmatprep.subr.mxu0 0.0
        %4572 = vmatpush1.msra.mxu0 0.0
        %4573 = vmatprep.subr.mxu0 0.0
        %4574 = vmatpush1.msra.mxu0 0.0
        %4575 = vmatprep.subr.mxu0 0.0
        %4576 = vmatpush1.msra.mxu0 0.0
        %4577 = vmatprep.subr.mxu0 0.0
        %4578 = vmatpush1.msra.mxu0 0.0
        %4579 = vmatprep.subr.mxu0 0.0
        %4580 = vmatpush1.msra.mxu0 0.0
        %4581 = vmatprep.subr.mxu0 0.0
        %4582 = vmatpush1.msra.mxu0 0.0
        %4583 = vmatprep.subr.mxu0 0.0
        %4584 = vmatpush1.msra.mxu0 0.0
        %4585 = vmatprep.subr.mxu0 0.0
        %4586 = vmatpush1.msra.mxu0 0.0
        %4587 = vmatprep.subr.mxu0 0.0
        %4588 = vmatpush1.msra.mxu0 0.0
        %4589 = vmatprep.subr.mxu0 0.0
        %4590 = vmatpush1.msra.mxu0 0.0
        %4591 = vmatprep.subr.mxu0 0.0
        %4592 = vmatpush1.msra.mxu0 0.0
        %4593 = vmatprep.subr.mxu0 0.0
        %4594 = vmatpush1.msra.mxu0 0.0
        %4595 = vmatprep.subr.mxu0 0.0
        %4596 = vmatpush1.msra.mxu0 0.0
        %4597 = vmatprep.subr.mxu0 0.0
        %4598 = vmatpush1.msra.mxu0 0.0
        %4599 = vmatprep.subr.mxu0 0.0
        %4600 = vmatpush1.msra.mxu0 0.0
        %4601 = vmatprep.subr.mxu0 0.0
        %4602 = vmatpush1.msra.mxu0 0.0
        %4603 = vmatprep.mubr.f32.mxu0 0.0
        %4604 = vmatmul.mubr.f32.gmra.mrb[0].mxu0 %v4324
        %v4605 = vpop.f32.mrb[0].mxu0
        %v4606 = vadd.f32 0.0, %v4605
        %v4607 = vpop.f32.mrb[0].mxu0
        %v4608 = vadd.f32 0.0, %v4607
        %4609 = vdwg.mxu0
        %4610 = vmatprep.subr.mxu0 %v4308
        %4611 = vmatpush1.xpose.msra.mxu0 %v4307
        %4612 = vmatprep.subr.mxu0 %v4316
        %4613 = vmatpush1.xpose.msra.mxu0 %v4315
        %4614 = vmatprep.subr.mxu0 0.0
        %4615 = vmatpush1.xpose.msra.mxu0 0.0
        %4616 = vmatprep.subr.mxu0 0.0
        %4617 = vmatpush1.xpose.msra.mxu0 0.0
        %4618 = vmatprep.subr.mxu0 0.0
        %4619 = vmatpush1.xpose.msra.mxu0 0.0
        %4620 = vmatprep.subr.mxu0 0.0
        %4621 = vmatpush1.xpose.msra.mxu0 0.0
        %4622 = vmatprep.subr.mxu0 0.0
        %4623 = vmatpush1.xpose.msra.mxu0 0.0
        %4624 = vmatprep.subr.mxu0 0.0
        %4625 = vmatpush1.xpose.msra.mxu0 0.0
        %4626 = vmatprep.subr.mxu0 0.0
        %4627 = vmatpush1.xpose.msra.mxu0 0.0
        %4628 = vmatprep.subr.mxu0 0.0
        %4629 = vmatpush1.xpose.msra.mxu0 0.0
        %4630 = vmatprep.subr.mxu0 0.0
        %4631 = vmatpush1.xpose.msra.mxu0 0.0
        %4632 = vmatprep.subr.mxu0 0.0
        %4633 = vmatpush1.xpose.msra.mxu0 0.0
        %4634 = vmatprep.subr.mxu0 0.0
        %4635 = vmatpush1.xpose.msra.mxu0 0.0
        %4636 = vmatprep.subr.mxu0 0.0
        %4637 = vmatpush1.xpose.msra.mxu0 0.0
        %4638 = vmatprep.subr.mxu0 0.0
        %4639 = vmatpush1.xpose.msra.mxu0 0.0
        %4640 = vmatprep.subr.mxu0 0.0
        %4641 = vmatpush1.xpose.msra.mxu0 0.0
        %4642 = vmatprep.subr.mxu0 0.0
        %4643 = vmatpush1.xpose.msra.mxu0 0.0
        %4644 = vmatprep.subr.mxu0 0.0
        %4645 = vmatpush1.xpose.msra.mxu0 0.0
        %4646 = vmatprep.subr.mxu0 0.0
        %4647 = vmatpush1.xpose.msra.mxu0 0.0
        %4648 = vmatprep.subr.mxu0 0.0
        %4649 = vmatpush1.xpose.msra.mxu0 0.0
        %4650 = vmatprep.subr.mxu0 0.0
        %4651 = vmatpush1.xpose.msra.mxu0 0.0
        %4652 = vmatprep.subr.mxu0 0.0
        %4653 = vmatpush1.xpose.msra.mxu0 0.0
        %4654 = vmatprep.subr.mxu0 0.0
        %4655 = vmatpush1.xpose.msra.mxu0 0.0
        %4656 = vmatprep.subr.mxu0 0.0
        %4657 = vmatpush1.xpose.msra.mxu0 0.0
        %4658 = vmatprep.subr.mxu0 0.0
        %4659 = vmatpush1.xpose.msra.mxu0 0.0
        %4660 = vmatprep.subr.mxu0 0.0
        %4661 = vmatpush1.xpose.msra.mxu0 0.0
        %4662 = vmatprep.subr.mxu0 0.0
        %4663 = vmatpush1.xpose.msra.mxu0 0.0
        %4664 = vmatprep.subr.mxu0 0.0
        %4665 = vmatpush1.xpose.msra.mxu0 0.0
        %4666 = vmatprep.subr.mxu0 0.0
        %4667 = vmatpush1.xpose.msra.mxu0 0.0
        %4668 = vmatprep.subr.mxu0 0.0
        %4669 = vmatpush1.xpose.msra.mxu0 0.0
        %4670 = vmatprep.subr.mxu0 0.0
        %4671 = vmatpush1.xpose.msra.mxu0 0.0
        %4672 = vmatprep.subr.mxu0 0.0
        %4673 = vmatpush1.xpose.msra.mxu0 0.0
        %4674 = vmatprep.mubr.f32.mxu0 %v4395
        %4675 = vmatmul.mubr.f32.gmra.mrb[0].mxu0 %v4393
        %v4676 = vpop.f32.mrb[0].mxu0
        %v4677 = vadd.f32 0.0, %v4676
        %v4678 = vpop.f32.mrb[0].mxu0
        %4679 = vdwg.mxu0
        %4680 = vmatprep.subr.mxu0 %v4310
        %4681 = vmatpush1.xpose.msra.mxu0 %v4309
        %4682 = vmatprep.subr.mxu0 %v4318
        %4683 = vmatpush1.xpose.msra.mxu0 %v4317
        %4684 = vmatprep.subr.mxu0 0.0
        %4685 = vmatpush1.xpose.msra.mxu0 0.0
        %4686 = vmatprep.subr.mxu0 0.0
        %4687 = vmatpush1.xpose.msra.mxu0 0.0
        %4688 = vmatprep.subr.mxu0 0.0
        %4689 = vmatpush1.xpose.msra.mxu0 0.0
        %4690 = vmatprep.subr.mxu0 0.0
        %4691 = vmatpush1.xpose.msra.mxu0 0.0
        %4692 = vmatprep.subr.mxu0 0.0
        %4693 = vmatpush1.xpose.msra.mxu0 0.0
        %4694 = vmatprep.subr.mxu0 0.0
        %4695 = vmatpush1.xpose.msra.mxu0 0.0
        %4696 = vmatprep.subr.mxu0 0.0
        %4697 = vmatpush1.xpose.msra.mxu0 0.0
        %4698 = vmatprep.subr.mxu0 0.0
        %4699 = vmatpush1.xpose.msra.mxu0 0.0
        %4700 = vmatprep.subr.mxu0 0.0
        %4701 = vmatpush1.xpose.msra.mxu0 0.0
        %4702 = vmatprep.subr.mxu0 0.0
        %4703 = vmatpush1.xpose.msra.mxu0 0.0
        %4704 = vmatprep.subr.mxu0 0.0
        %4705 = vmatpush1.xpose.msra.mxu0 0.0
        %4706 = vmatprep.subr.mxu0 0.0
        %4707 = vmatpush1.xpose.msra.mxu0 0.0
        %4708 = vmatprep.subr.mxu0 0.0
        %4709 = vmatpush1.xpose.msra.mxu0 0.0
        %4710 = vmatprep.subr.mxu0 0.0
        %4711 = vmatpush1.xpose.msra.mxu0 0.0
        %4712 = vmatprep.subr.mxu0 0.0
        %4713 = vmatpush1.xpose.msra.mxu0 0.0
        %4714 = vmatprep.subr.mxu0 0.0
        %4715 = vmatpush1.xpose.msra.mxu0 0.0
        %4716 = vmatprep.subr.mxu0 0.0
        %4717 = vmatpush1.xpose.msra.mxu0 0.0
        %4718 = vmatprep.subr.mxu0 0.0
        %4719 = vmatpush1.xpose.msra.mxu0 0.0
        %4720 = vmatprep.subr.mxu0 0.0
        %4721 = vmatpush1.xpose.msra.mxu0 0.0
        %4722 = vmatprep.subr.mxu0 0.0
        %4723 = vmatpush1.xpose.msra.mxu0 0.0
        %4724 = vmatprep.subr.mxu0 0.0
        %4725 = vmatpush1.xpose.msra.mxu0 0.0
        %4726 = vmatprep.subr.mxu0 0.0
        %4727 = vmatpush1.xpose.msra.mxu0 0.0
        %4728 = vmatprep.subr.mxu0 0.0
        %4729 = vmatpush1.xpose.msra.mxu0 0.0
        %4730 = vmatprep.subr.mxu0 0.0
        %4731 = vmatpush1.xpose.msra.mxu0 0.0
        %4732 = vmatprep.subr.mxu0 0.0
        %4733 = vmatpush1.xpose.msra.mxu0 0.0
        %4734 = vmatprep.subr.mxu0 0.0
        %4735 = vmatpush1.xpose.msra.mxu0 0.0
        %4736 = vmatprep.subr.mxu0 0.0
        %4737 = vmatpush1.xpose.msra.mxu0 0.0
        %4738 = vmatprep.subr.mxu0 0.0
        %4739 = vmatpush1.xpose.msra.mxu0 0.0
        %4740 = vmatprep.subr.mxu0 0.0
        %4741 = vmatpush1.xpose.msra.mxu0 0.0
        %4742 = vmatprep.subr.mxu0 0.0
        %4743 = vmatpush1.xpose.msra.mxu0 0.0
        %4744 = vmatprep.mubr.f32.mxu0 %v4466
        %4745 = vmatmul.mubr.f32.gmra.mrb[0].mxu0 %v4464
        %v4746 = vpop.f32.mrb[0].mxu0
        %v4747 = vadd.f32 %v4677, %v4746
        %v4748 = vpop.f32.mrb[0].mxu0
        %4749 = vdwg.mxu0
        %4750 = vmatprep.subr.mxu0 %v4312
        %4751 = vmatpush1.xpose.msra.mxu0 %v4311
        %4752 = vmatprep.subr.mxu0 %v4320
        %4753 = vmatpush1.xpose.msra.mxu0 %v4319
        %4754 = vmatprep.subr.mxu0 0.0
        %4755 = vmatpush1.xpose.msra.mxu0 0.0
        %4756 = vmatprep.subr.mxu0 0.0
        %4757 = vmatpush1.xpose.msra.mxu0 0.0
        %4758 = vmatprep.subr.mxu0 0.0
        %4759 = vmatpush1.xpose.msra.mxu0 0.0
        %4760 = vmatprep.subr.mxu0 0.0
        %4761 = vmatpush1.xpose.msra.mxu0 0.0
        %4762 = vmatprep.subr.mxu0 0.0
        %4763 = vmatpush1.xpose.msra.mxu0 0.0
        %4764 = vmatprep.subr.mxu0 0.0
        %4765 = vmatpush1.xpose.msra.mxu0 0.0
        %4766 = vmatprep.subr.mxu0 0.0
        %4767 = vmatpush1.xpose.msra.mxu0 0.0
        %4768 = vmatprep.subr.mxu0 0.0
        %4769 = vmatpush1.xpose.msra.mxu0 0.0
        %4770 = vmatprep.subr.mxu0 0.0
        %4771 = vmatpush1.xpose.msra.mxu0 0.0
        %4772 = vmatprep.subr.mxu0 0.0
        %4773 = vmatpush1.xpose.msra.mxu0 0.0
        %4774 = vmatprep.subr.mxu0 0.0
        %4775 = vmatpush1.xpose.msra.mxu0 0.0
        %4776 = vmatprep.subr.mxu0 0.0
        %4777 = vmatpush1.xpose.msra.mxu0 0.0
        %4778 = vmatprep.subr.mxu0 0.0
        %4779 = vmatpush1.xpose.msra.mxu0 0.0
        %4780 = vmatprep.subr.mxu0 0.0
        %4781 = vmatpush1.xpose.msra.mxu0 0.0
        %4782 = vmatprep.subr.mxu0 0.0
        %4783 = vmatpush1.xpose.msra.mxu0 0.0
        %4784 = vmatprep.subr.mxu0 0.0
        %4785 = vmatpush1.xpose.msra.mxu0 0.0
        %4786 = vmatprep.subr.mxu0 0.0
        %4787 = vmatpush1.xpose.msra.mxu0 0.0
        %4788 = vmatprep.subr.mxu0 0.0
        %4789 = vmatpush1.xpose.msra.mxu0 0.0
        %4790 = vmatprep.subr.mxu0 0.0
        %4791 = vmatpush1.xpose.msra.mxu0 0.0
        %4792 = vmatprep.subr.mxu0 0.0
        %4793 = vmatpush1.xpose.msra.mxu0 0.0
        %4794 = vmatprep.subr.mxu0 0.0
        %4795 = vmatpush1.xpose.msra.mxu0 0.0
        %4796 = vmatprep.subr.mxu0 0.0
        %4797 = vmatpush1.xpose.msra.mxu0 0.0
        %4798 = vmatprep.subr.mxu0 0.0
        %4799 = vmatpush1.xpose.msra.mxu0 0.0
        %4800 = vmatprep.subr.mxu0 0.0
        %4801 = vmatpush1.xpose.msra.mxu0 0.0
        %4802 = vmatprep.subr.mxu0 0.0
        %4803 = vmatpush1.xpose.msra.mxu0 0.0
        %4804 = vmatprep.subr.mxu0 0.0
        %4805 = vmatpush1.xpose.msra.mxu0 0.0
        %4806 = vmatprep.subr.mxu0 0.0
        %4807 = vmatpush1.xpose.msra.mxu0 0.0
        %4808 = vmatprep.subr.mxu0 0.0
        %4809 = vmatpush1.xpose.msra.mxu0 0.0
        %4810 = vmatprep.subr.mxu0 0.0
        %4811 = vmatpush1.xpose.msra.mxu0 0.0
        %4812 = vmatprep.subr.mxu0 0.0
        %4813 = vmatpush1.xpose.msra.mxu0 0.0
        %4814 = vmatprep.mubr.f32.mxu0 %v4537
        %4815 = vmatmul.mubr.f32.gmra.mrb[0].mxu0 %v4535
        %v4816 = vpop.f32.mrb[0].mxu0
        %v4817 = vadd.f32 %v4747, %v4816
        %v4818 = vpop.f32.mrb[0].mxu0
        %4819 = vdwg.mxu0
        %4820 = vmatprep.subr.mxu0 %v4314
        %4821 = vmatpush1.xpose.msra.mxu0 %v4313
        %4822 = vmatprep.subr.mxu0 %v4322
        %4823 = vmatpush1.xpose.msra.mxu0 %v4321
        %4824 = vmatprep.subr.mxu0 0.0
        %4825 = vmatpush1.xpose.msra.mxu0 0.0
        %4826 = vmatprep.subr.mxu0 0.0
        %4827 = vmatpush1.xpose.msra.mxu0 0.0
        %4828 = vmatprep.subr.mxu0 0.0
        %4829 = vmatpush1.xpose.msra.mxu0 0.0
        %4830 = vmatprep.subr.mxu0 0.0
        %4831 = vmatpush1.xpose.msra.mxu0 0.0
        %4832 = vmatprep.subr.mxu0 0.0
        %4833 = vmatpush1.xpose.msra.mxu0 0.0
        %4834 = vmatprep.subr.mxu0 0.0
        %4835 = vmatpush1.xpose.msra.mxu0 0.0
        %4836 = vmatprep.subr.mxu0 0.0
        %4837 = vmatpush1.xpose.msra.mxu0 0.0
        %4838 = vmatprep.subr.mxu0 0.0
        %4839 = vmatpush1.xpose.msra.mxu0 0.0
        %4840 = vmatprep.subr.mxu0 0.0
        %4841 = vmatpush1.xpose.msra.mxu0 0.0
        %4842 = vmatprep.subr.mxu0 0.0
        %4843 = vmatpush1.xpose.msra.mxu0 0.0
        %4844 = vmatprep.subr.mxu0 0.0
        %4845 = vmatpush1.xpose.msra.mxu0 0.0
        %4846 = vmatprep.subr.mxu0 0.0
        %4847 = vmatpush1.xpose.msra.mxu0 0.0
        %4848 = vmatprep.subr.mxu0 0.0
        %4849 = vmatpush1.xpose.msra.mxu0 0.0
        %4850 = vmatprep.subr.mxu0 0.0
        %4851 = vmatpush1.xpose.msra.mxu0 0.0
        %4852 = vmatprep.subr.mxu0 0.0
        %4853 = vmatpush1.xpose.msra.mxu0 0.0
        %4854 = vmatprep.subr.mxu0 0.0
        %4855 = vmatpush1.xpose.msra.mxu0 0.0
        %4856 = vmatprep.subr.mxu0 0.0
        %4857 = vmatpush1.xpose.msra.mxu0 0.0
        %4858 = vmatprep.subr.mxu0 0.0
        %4859 = vmatpush1.xpose.msra.mxu0 0.0
        %4860 = vmatprep.subr.mxu0 0.0
        %4861 = vmatpush1.xpose.msra.mxu0 0.0
        %4862 = vmatprep.subr.mxu0 0.0
        %4863 = vmatpush1.xpose.msra.mxu0 0.0
        %4864 = vmatprep.subr.mxu0 0.0
        %4865 = vmatpush1.xpose.msra.mxu0 0.0
        %4866 = vmatprep.subr.mxu0 0.0
        %4867 = vmatpush1.xpose.msra.mxu0 0.0
        %4868 = vmatprep.subr.mxu0 0.0
        %4869 = vmatpush1.xpose.msra.mxu0 0.0
        %4870 = vmatprep.subr.mxu0 0.0
        %4871 = vmatpush1.xpose.msra.mxu0 0.0
        %4872 = vmatprep.subr.mxu0 0.0
        %4873 = vmatpush1.xpose.msra.mxu0 0.0
        %4874 = vmatprep.subr.mxu0 0.0
        %4875 = vmatpush1.xpose.msra.mxu0 0.0
        %4876 = vmatprep.subr.mxu0 0.0
        %4877 = vmatpush1.xpose.msra.mxu0 0.0
        %4878 = vmatprep.subr.mxu0 0.0
        %4879 = vmatpush1.xpose.msra.mxu0 0.0
        %4880 = vmatprep.subr.mxu0 0.0
        %4881 = vmatpush1.xpose.msra.mxu0 0.0
        %4882 = vmatprep.subr.mxu0 0.0
        %4883 = vmatpush1.xpose.msra.mxu0 0.0
        %4884 = vmatprep.mubr.f32.mxu0 %v4608
        %4885 = vmatmul.mubr.f32.gmra.mrb[0].mxu0 %v4606
        %v4886 = vpop.f32.mrb[0].mxu0
        %v4887 = vadd.f32 %v4817, %v4886
        %v4888 = vpop.f32.mrb[0].mxu0
        %4889 = vdwg.mxu0
        %v4891 = vrot.slane %v4887, 1
        %v4892 = vsel %vm1870, %v4891, 0
        %4894 = vmatprep.subr.mxu0 0.0
        %4895 = vmatpush1.msra.mxu0 %v948
        %4896 = vmatprep.subr.mxu0 0.0
        %4897 = vmatpush1.msra.mxu0 %v949
        %4898 = vmatprep.subr.mxu0 0.0
        %4899 = vmatpush1.msra.mxu0 0.0
        %4900 = vmatprep.subr.mxu0 0.0
        %4901 = vmatpush1.msra.mxu0 0.0
        %4902 = vmatprep.subr.mxu0 0.0
        %4903 = vmatpush1.msra.mxu0 0.0
        %4904 = vmatprep.subr.mxu0 0.0
        %4905 = vmatpush1.msra.mxu0 0.0
        %4906 = vmatprep.subr.mxu0 0.0
        %4907 = vmatpush1.msra.mxu0 0.0
        %4908 = vmatprep.subr.mxu0 0.0
        %4909 = vmatpush1.msra.mxu0 0.0
        %4910 = vmatprep.subr.mxu0 0.0
        %4911 = vmatpush1.msra.mxu0 0.0
        %4912 = vmatprep.subr.mxu0 0.0
        %4913 = vmatpush1.msra.mxu0 0.0
        %4914 = vmatprep.subr.mxu0 0.0
        %4915 = vmatpush1.msra.mxu0 0.0
        %4916 = vmatprep.subr.mxu0 0.0
        %4917 = vmatpush1.msra.mxu0 0.0
        %4918 = vmatprep.subr.mxu0 0.0
        %4919 = vmatpush1.msra.mxu0 0.0
        %4920 = vmatprep.subr.mxu0 0.0
        %4921 = vmatpush1.msra.mxu0 0.0
        %4922 = vmatprep.subr.mxu0 0.0
        %4923 = vmatpush1.msra.mxu0 0.0
        %4924 = vmatprep.subr.mxu0 0.0
        %4925 = vmatpush1.msra.mxu0 0.0
        %4926 = vmatprep.subr.mxu0 0.0
        %4927 = vmatpush1.msra.mxu0 0.0
        %4928 = vmatprep.subr.mxu0 0.0
        %4929 = vmatpush1.msra.mxu0 0.0
        %4930 = vmatprep.subr.mxu0 0.0
        %4931 = vmatpush1.msra.mxu0 0.0
        %4932 = vmatprep.subr.mxu0 0.0
        %4933 = vmatpush1.msra.mxu0 0.0
        %4934 = vmatprep.subr.mxu0 0.0
        %4935 = vmatpush1.msra.mxu0 0.0
        %4936 = vmatprep.subr.mxu0 0.0
        %4937 = vmatpush1.msra.mxu0 0.0
        %4938 = vmatprep.subr.mxu0 0.0
        %4939 = vmatpush1.msra.mxu0 0.0
        %4940 = vmatprep.subr.mxu0 0.0
        %4941 = vmatpush1.msra.mxu0 0.0
        %4942 = vmatprep.subr.mxu0 0.0
        %4943 = vmatpush1.msra.mxu0 0.0
        %4944 = vmatprep.subr.mxu0 0.0
        %4945 = vmatpush1.msra.mxu0 0.0
        %4946 = vmatprep.subr.mxu0 0.0
        %4947 = vmatpush1.msra.mxu0 0.0
        %4948 = vmatprep.subr.mxu0 0.0
        %4949 = vmatpush1.msra.mxu0 0.0
        %4950 = vmatprep.subr.mxu0 0.0
        %4951 = vmatpush1.msra.mxu0 0.0
        %4952 = vmatprep.subr.mxu0 0.0
        %4953 = vmatpush1.msra.mxu0 0.0
        %4954 = vmatprep.subr.mxu0 0.0
        %4955 = vmatpush1.msra.mxu0 0.0
        %4956 = vmatprep.subr.mxu0 0.0
        %4957 = vmatpush1.msra.mxu0 0.0
        %4958 = vmatprep.mubr.f32.mxu0 0.0
        %4959 = vmatmul.mubr.f32.gmra.mrb[0].mxu0 %v4892
        %v4960 = vpop.f32.mrb[0].mxu0
        %v4961 = vadd.f32 0.0, %v4960
        %v4962 = vpop.f32.mrb[0].mxu0
        %4963 = vdwg.mxu0
        %v4964 = vsel %vm1870, %v4887, 0
        %4966 = vmatprep.subr.mxu0 0.0
        %4967 = vmatpush1.msra.mxu0 %v946
        %4968 = vmatprep.subr.mxu0 0.0
        %4969 = vmatpush1.msra.mxu0 %v947
        %4970 = vmatprep.subr.mxu0 0.0
        %4971 = vmatpush1.msra.mxu0 0.0
        %4972 = vmatprep.subr.mxu0 0.0
        %4973 = vmatpush1.msra.mxu0 0.0
        %4974 = vmatprep.subr.mxu0 0.0
        %4975 = vmatpush1.msra.mxu0 0.0
        %4976 = vmatprep.subr.mxu0 0.0
        %4977 = vmatpush1.msra.mxu0 0.0
        %4978 = vmatprep.subr.mxu0 0.0
        %4979 = vmatpush1.msra.mxu0 0.0
        %4980 = vmatprep.subr.mxu0 0.0
        %4981 = vmatpush1.msra.mxu0 0.0
        %4982 = vmatprep.subr.mxu0 0.0
        %4983 = vmatpush1.msra.mxu0 0.0
        %4984 = vmatprep.subr.mxu0 0.0
        %4985 = vmatpush1.msra.mxu0 0.0
        %4986 = vmatprep.subr.mxu0 0.0
        %4987 = vmatpush1.msra.mxu0 0.0
        %4988 = vmatprep.subr.mxu0 0.0
        %4989 = vmatpush1.msra.mxu0 0.0
        %4990 = vmatprep.subr.mxu0 0.0
        %4991 = vmatpush1.msra.mxu0 0.0
        %4992 = vmatprep.subr.mxu0 0.0
        %4993 = vmatpush1.msra.mxu0 0.0
        %4994 = vmatprep.subr.mxu0 0.0
        %4995 = vmatpush1.msra.mxu0 0.0
        %4996 = vmatprep.subr.mxu0 0.0
        %4997 = vmatpush1.msra.mxu0 0.0
        %4998 = vmatprep.subr.mxu0 0.0
        %4999 = vmatpush1.msra.mxu0 0.0
        %5000 = vmatprep.subr.mxu0 0.0
        %5001 = vmatpush1.msra.mxu0 0.0
        %5002 = vmatprep.subr.mxu0 0.0
        %5003 = vmatpush1.msra.mxu0 0.0
        %5004 = vmatprep.subr.mxu0 0.0
        %5005 = vmatpush1.msra.mxu0 0.0
        %5006 = vmatprep.subr.mxu0 0.0
        %5007 = vmatpush1.msra.mxu0 0.0
        %5008 = vmatprep.subr.mxu0 0.0
        %5009 = vmatpush1.msra.mxu0 0.0
        %5010 = vmatprep.subr.mxu0 0.0
        %5011 = vmatpush1.msra.mxu0 0.0
        %5012 = vmatprep.subr.mxu0 0.0
        %5013 = vmatpush1.msra.mxu0 0.0
        %5014 = vmatprep.subr.mxu0 0.0
        %5015 = vmatpush1.msra.mxu0 0.0
        %5016 = vmatprep.subr.mxu0 0.0
        %5017 = vmatpush1.msra.mxu0 0.0
        %5018 = vmatprep.subr.mxu0 0.0
        %5019 = vmatpush1.msra.mxu0 0.0
        %5020 = vmatprep.subr.mxu0 0.0
        %5021 = vmatpush1.msra.mxu0 0.0
        %5022 = vmatprep.subr.mxu0 0.0
        %5023 = vmatpush1.msra.mxu0 0.0
        %5024 = vmatprep.subr.mxu0 0.0
        %5025 = vmatpush1.msra.mxu0 0.0
        %5026 = vmatprep.subr.mxu0 0.0
        %5027 = vmatpush1.msra.mxu0 0.0
        %5028 = vmatprep.subr.mxu0 0.0
        %5029 = vmatpush1.msra.mxu0 0.0
        %5030 = vmatprep.mubr.f32.mxu0 0.0
        %5031 = vmatmul.mubr.f32.gmra.mrb[0].mxu0 %v4964
        %v5032 = vpop.f32.mrb[0].mxu0
        %v5033 = vadd.f32 %v4961, %v5032
        %v5034 = vpop.f32.mrb[0].mxu0
        %5035 = vdwg.mxu0
        %v5036 = vrot.slane %v4887, 2
        %v5037 = vsel %vm1870, %v5036, 0
        %5039 = vmatprep.subr.mxu0 0.0
        %5040 = vmatpush1.msra.mxu0 %v950
        %5041 = vmatprep.subr.mxu0 0.0
        %5042 = vmatpush1.msra.mxu0 %v951
        %5043 = vmatprep.subr.mxu0 0.0
        %5044 = vmatpush1.msra.mxu0 0.0
        %5045 = vmatprep.subr.mxu0 0.0
        %5046 = vmatpush1.msra.mxu0 0.0
        %5047 = vmatprep.subr.mxu0 0.0
        %5048 = vmatpush1.msra.mxu0 0.0
        %5049 = vmatprep.subr.mxu0 0.0
        %5050 = vmatpush1.msra.mxu0 0.0
        %5051 = vmatprep.subr.mxu0 0.0
        %5052 = vmatpush1.msra.mxu0 0.0
        %5053 = vmatprep.subr.mxu0 0.0
        %5054 = vmatpush1.msra.mxu0 0.0
        %5055 = vmatprep.subr.mxu0 0.0
        %5056 = vmatpush1.msra.mxu0 0.0
        %5057 = vmatprep.subr.mxu0 0.0
        %5058 = vmatpush1.msra.mxu0 0.0
        %5059 = vmatprep.subr.mxu0 0.0
        %5060 = vmatpush1.msra.mxu0 0.0
        %5061 = vmatprep.subr.mxu0 0.0
        %5062 = vmatpush1.msra.mxu0 0.0
        %5063 = vmatprep.subr.mxu0 0.0
        %5064 = vmatpush1.msra.mxu0 0.0
        %5065 = vmatprep.subr.mxu0 0.0
        %5066 = vmatpush1.msra.mxu0 0.0
        %5067 = vmatprep.subr.mxu0 0.0
        %5068 = vmatpush1.msra.mxu0 0.0
        %5069 = vmatprep.subr.mxu0 0.0
        %5070 = vmatpush1.msra.mxu0 0.0
        %5071 = vmatprep.subr.mxu0 0.0
        %5072 = vmatpush1.msra.mxu0 0.0
        %5073 = vmatprep.subr.mxu0 0.0
        %5074 = vmatpush1.msra.mxu0 0.0
        %5075 = vmatprep.subr.mxu0 0.0
        %5076 = vmatpush1.msra.mxu0 0.0
        %5077 = vmatprep.subr.mxu0 0.0
        %5078 = vmatpush1.msra.mxu0 0.0
        %5079 = vmatprep.subr.mxu0 0.0
        %5080 = vmatpush1.msra.mxu0 0.0
        %5081 = vmatprep.subr.mxu0 0.0
        %5082 = vmatpush1.msra.mxu0 0.0
        %5083 = vmatprep.subr.mxu0 0.0
        %5084 = vmatpush1.msra.mxu0 0.0
        %5085 = vmatprep.subr.mxu0 0.0
        %5086 = vmatpush1.msra.mxu0 0.0
        %5087 = vmatprep.subr.mxu0 0.0
        %5088 = vmatpush1.msra.mxu0 0.0
        %5089 = vmatprep.subr.mxu0 0.0
        %5090 = vmatpush1.msra.mxu0 0.0
        %5091 = vmatprep.subr.mxu0 0.0
        %5092 = vmatpush1.msra.mxu0 0.0
        %5093 = vmatprep.subr.mxu0 0.0
        %5094 = vmatpush1.msra.mxu0 0.0
        %5095 = vmatprep.subr.mxu0 0.0
        %5096 = vmatpush1.msra.mxu0 0.0
        %5097 = vmatprep.subr.mxu0 0.0
        %5098 = vmatpush1.msra.mxu0 0.0
        %5099 = vmatprep.subr.mxu0 0.0
        %5100 = vmatpush1.msra.mxu0 0.0
        %5101 = vmatprep.subr.mxu0 0.0
        %5102 = vmatpush1.msra.mxu0 0.0
        %5103 = vmatprep.mubr.f32.mxu0 0.0
        %5104 = vmatmul.mubr.f32.gmra.mrb[0].mxu0 %v5037
        %v5105 = vpop.f32.mrb[0].mxu0
        %v5106 = vadd.f32 0.0, %v5105
        %v5107 = vpop.f32.mrb[0].mxu0
        %5108 = vdwg.mxu0
        %v5109 = vadd.f32 %v5033, %v5106
        %v5110 = vrot.slane %v4887, 3
        %v5111 = vsel %vm1870, %v5110, 0
        %5113 = vmatprep.subr.mxu0 0.0
        %5114 = vmatpush1.msra.mxu0 %v952
        %5115 = vmatprep.subr.mxu0 0.0
        %5116 = vmatpush1.msra.mxu0 %v953
        %5117 = vmatprep.subr.mxu0 0.0
        %5118 = vmatpush1.msra.mxu0 0.0
        %5119 = vmatprep.subr.mxu0 0.0
        %5120 = vmatpush1.msra.mxu0 0.0
        %5121 = vmatprep.subr.mxu0 0.0
        %5122 = vmatpush1.msra.mxu0 0.0
        %5123 = vmatprep.subr.mxu0 0.0
        %5124 = vmatpush1.msra.mxu0 0.0
        %5125 = vmatprep.subr.mxu0 0.0
        %5126 = vmatpush1.msra.mxu0 0.0
        %5127 = vmatprep.subr.mxu0 0.0
        %5128 = vmatpush1.msra.mxu0 0.0
        %5129 = vmatprep.subr.mxu0 0.0
        %5130 = vmatpush1.msra.mxu0 0.0
        %5131 = vmatprep.subr.mxu0 0.0
        %5132 = vmatpush1.msra.mxu0 0.0
        %5133 = vmatprep.subr.mxu0 0.0
        %5134 = vmatpush1.msra.mxu0 0.0
        %5135 = vmatprep.subr.mxu0 0.0
        %5136 = vmatpush1.msra.mxu0 0.0
        %5137 = vmatprep.subr.mxu0 0.0
        %5138 = vmatpush1.msra.mxu0 0.0
        %5139 = vmatprep.subr.mxu0 0.0
        %5140 = vmatpush1.msra.mxu0 0.0
        %5141 = vmatprep.subr.mxu0 0.0
        %5142 = vmatpush1.msra.mxu0 0.0
        %5143 = vmatprep.subr.mxu0 0.0
        %5144 = vmatpush1.msra.mxu0 0.0
        %5145 = vmatprep.subr.mxu0 0.0
        %5146 = vmatpush1.msra.mxu0 0.0
        %5147 = vmatprep.subr.mxu0 0.0
        %5148 = vmatpush1.msra.mxu0 0.0
        %5149 = vmatprep.subr.mxu0 0.0
        %5150 = vmatpush1.msra.mxu0 0.0
        %5151 = vmatprep.subr.mxu0 0.0
        %5152 = vmatpush1.msra.mxu0 0.0
        %5153 = vmatprep.subr.mxu0 0.0
        %5154 = vmatpush1.msra.mxu0 0.0
        %5155 = vmatprep.subr.mxu0 0.0
        %5156 = vmatpush1.msra.mxu0 0.0
        %5157 = vmatprep.subr.mxu0 0.0
        %5158 = vmatpush1.msra.mxu0 0.0
        %5159 = vmatprep.subr.mxu0 0.0
        %5160 = vmatpush1.msra.mxu0 0.0
        %5161 = vmatprep.subr.mxu0 0.0
        %5162 = vmatpush1.msra.mxu0 0.0
        %5163 = vmatprep.subr.mxu0 0.0
        %5164 = vmatpush1.msra.mxu0 0.0
        %5165 = vmatprep.subr.mxu0 0.0
        %5166 = vmatpush1.msra.mxu0 0.0
        %5167 = vmatprep.subr.mxu0 0.0
        %5168 = vmatpush1.msra.mxu0 0.0
        %5169 = vmatprep.subr.mxu0 0.0
        %5170 = vmatpush1.msra.mxu0 0.0
        %5171 = vmatprep.subr.mxu0 0.0
        %5172 = vmatpush1.msra.mxu0 0.0
        %5173 = vmatprep.subr.mxu0 0.0
        %5174 = vmatpush1.msra.mxu0 0.0
        %5175 = vmatprep.subr.mxu0 0.0
        %5176 = vmatpush1.msra.mxu0 0.0
        %5177 = vmatprep.mubr.f32.mxu0 0.0
        %5178 = vmatmul.mubr.f32.gmra.mrb[0].mxu0 %v5111
        %v5179 = vpop.f32.mrb[0].mxu0
        %v5180 = vadd.f32 0.0, %v5179
        %v5181 = vpop.f32.mrb[0].mxu0
        %5182 = vdwg.mxu0
        %v5183 = vadd.f32 %v5109, %v5180
        %5184 = vmatprep.subr.mxu0 0.0
        %5185 = vmatpush1.msra.mxu0 %v954
        %5186 = vmatprep.subr.mxu0 0.0
        %5187 = vmatpush1.msra.mxu0 %v955
        %5188 = vmatprep.subr.mxu0 0.0
        %5189 = vmatpush1.msra.mxu0 %v956
        %5190 = vmatprep.subr.mxu0 0.0
        %5191 = vmatpush1.msra.mxu0 %v957
        %5192 = vmatprep.subr.mxu0 0.0
        %5193 = vmatpush1.msra.mxu0 0.0
        %5194 = vmatprep.subr.mxu0 0.0
        %5195 = vmatpush1.msra.mxu0 0.0
        %5196 = vmatprep.subr.mxu0 0.0
        %5197 = vmatpush1.msra.mxu0 0.0
        %5198 = vmatprep.subr.mxu0 0.0
        %5199 = vmatpush1.msra.mxu0 0.0
        %5200 = vmatprep.subr.mxu0 0.0
        %5201 = vmatpush1.msra.mxu0 0.0
        %5202 = vmatprep.subr.mxu0 0.0
        %5203 = vmatpush1.msra.mxu0 0.0
        %5204 = vmatprep.subr.mxu0 0.0
        %5205 = vmatpush1.msra.mxu0 0.0
        %5206 = vmatprep.subr.mxu0 0.0
        %5207 = vmatpush1.msra.mxu0 0.0
        %5208 = vmatprep.subr.mxu0 0.0
        %5209 = vmatpush1.msra.mxu0 0.0
        %5210 = vmatprep.subr.mxu0 0.0
        %5211 = vmatpush1.msra.mxu0 0.0
        %5212 = vmatprep.subr.mxu0 0.0
        %5213 = vmatpush1.msra.mxu0 0.0
        %5214 = vmatprep.subr.mxu0 0.0
        %5215 = vmatpush1.msra.mxu0 0.0
        %5216 = vmatprep.subr.mxu0 0.0
        %5217 = vmatpush1.msra.mxu0 0.0
        %5218 = vmatprep.subr.mxu0 0.0
        %5219 = vmatpush1.msra.mxu0 0.0
        %5220 = vmatprep.subr.mxu0 0.0
        %5221 = vmatpush1.msra.mxu0 0.0
        %5222 = vmatprep.subr.mxu0 0.0
        %5223 = vmatpush1.msra.mxu0 0.0
        %5224 = vmatprep.subr.mxu0 0.0
        %5225 = vmatpush1.msra.mxu0 0.0
        %5226 = vmatprep.subr.mxu0 0.0
        %5227 = vmatpush1.msra.mxu0 0.0
        %5228 = vmatprep.subr.mxu0 0.0
        %5229 = vmatpush1.msra.mxu0 0.0
        %5230 = vmatprep.subr.mxu0 0.0
        %5231 = vmatpush1.msra.mxu0 0.0
        %5232 = vmatprep.subr.mxu0 0.0
        %5233 = vmatpush1.msra.mxu0 0.0
        %5234 = vmatprep.subr.mxu0 0.0
        %5235 = vmatpush1.msra.mxu0 0.0
        %5236 = vmatprep.subr.mxu0 0.0
        %5237 = vmatpush1.msra.mxu0 0.0
        %5238 = vmatprep.subr.mxu0 0.0
        %5239 = vmatpush1.msra.mxu0 0.0
        %5240 = vmatprep.subr.mxu0 0.0
        %5241 = vmatpush1.msra.mxu0 0.0
        %5242 = vmatprep.subr.mxu0 0.0
        %5243 = vmatpush1.msra.mxu0 0.0
        %5244 = vmatprep.subr.mxu0 0.0
        %5245 = vmatpush1.msra.mxu0 0.0
        %5246 = vmatprep.subr.mxu0 0.0
        %5247 = vmatpush1.msra.mxu0 0.0
        %5248 = vmatprep.mubr.f32.mxu0 0.0
        %5249 = vmatmul.mubr.f32.gmra.mrb[0].mxu0 %v2527
        %v5250 = vpop.f32.mrb[0].mxu0
        %v5251 = vadd.f32 0.0, %v5250
        %v5252 = vpop.f32.mrb[0].mxu0
        %5253 = vdwg.mxu0
        %v5254 = vadd.f32 %v5183, %v5251
        %v5255 = vadd.f32 %v5254, %v958
        %v5256 = vxor.u32 %v5255, 2147483648
        %v5257 = vmul.f32 %v5256, 1.442695
        %v5258 = vpow.pop %v5257
        %v5259 = vadd.f32 %v5258, 1.0
        %v5260 = vrcp.pop %v5259
        %v5261 = vmul.f32 1.0, %v5260
        %v5262 = vtanh.pop %v5255
        %v5263 = vmul.f32 %v5261, %v2255
        %5265 = vrot.lane.b32.xlu0 %v5262, 64
        %v5266 = vpop.permute.xlu0 %5265
        %v5268 = vmul.f32 %v5261, %v5266
        %5270 = vrot.lane.b32.xlu0 %v5268, 32
        %v5271 = vpop.permute.xlu0 %5270
        %v5273 = vadd.f32 %v5263, %v5271
        %v5274 = vtanh.pop %v5273
        %5276 = vrot.lane.b32.xlu0 %v5274, 64
        %v5277 = vpop.permute.xlu0 %5276
        %v5279 = vmul.f32 %v5261, %v5277
        %5281 = vrot.lane.b32.xlu0 %v5279, 32
        %v5282 = vpop.permute.xlu0 %5281
        %v5283 = vsel %vm1300, %v5282, 0
        %5285 = vmatprep.subr.mxu0 0.0
        %5286 = vmatpush1.msra.mxu0 %v966
        %5287 = vmatprep.subr.mxu0 0.0
        %5288 = vmatpush1.msra.mxu0 %v967
        %5289 = vmatprep.subr.mxu0 0.0
        %5290 = vmatpush1.msra.mxu0 %v968
        %5291 = vmatprep.subr.mxu0 0.0
        %5292 = vmatpush1.msra.mxu0 %v969
        %5293 = vmatprep.subr.mxu0 0.0
        %5294 = vmatpush1.msra.mxu0 0.0
        %5295 = vmatprep.subr.mxu0 0.0
        %5296 = vmatpush1.msra.mxu0 0.0
        %5297 = vmatprep.subr.mxu0 0.0
        %5298 = vmatpush1.msra.mxu0 0.0
        %5299 = vmatprep.subr.mxu0 0.0
        %5300 = vmatpush1.msra.mxu0 0.0
        %5301 = vmatprep.subr.mxu0 0.0
        %5302 = vmatpush1.msra.mxu0 0.0
        %5303 = vmatprep.subr.mxu0 0.0
        %5304 = vmatpush1.msra.mxu0 0.0
        %5305 = vmatprep.subr.mxu0 0.0
        %5306 = vmatpush1.msra.mxu0 0.0
        %5307 = vmatprep.subr.mxu0 0.0
        %5308 = vmatpush1.msra.mxu0 0.0
        %5309 = vmatprep.subr.mxu0 0.0
        %5310 = vmatpush1.msra.mxu0 0.0
        %5311 = vmatprep.subr.mxu0 0.0
        %5312 = vmatpush1.msra.mxu0 0.0
        %5313 = vmatprep.subr.mxu0 0.0
        %5314 = vmatpush1.msra.mxu0 0.0
        %5315 = vmatprep.subr.mxu0 0.0
        %5316 = vmatpush1.msra.mxu0 0.0
        %5317 = vmatprep.subr.mxu0 0.0
        %5318 = vmatpush1.msra.mxu0 0.0
        %5319 = vmatprep.subr.mxu0 0.0
        %5320 = vmatpush1.msra.mxu0 0.0
        %5321 = vmatprep.subr.mxu0 0.0
        %5322 = vmatpush1.msra.mxu0 0.0
        %5323 = vmatprep.subr.mxu0 0.0
        %5324 = vmatpush1.msra.mxu0 0.0
        %5325 = vmatprep.subr.mxu0 0.0
        %5326 = vmatpush1.msra.mxu0 0.0
        %5327 = vmatprep.subr.mxu0 0.0
        %5328 = vmatpush1.msra.mxu0 0.0
        %5329 = vmatprep.subr.mxu0 0.0
        %5330 = vmatpush1.msra.mxu0 0.0
        %5331 = vmatprep.subr.mxu0 0.0
        %5332 = vmatpush1.msra.mxu0 0.0
        %5333 = vmatprep.subr.mxu0 0.0
        %5334 = vmatpush1.msra.mxu0 0.0
        %5335 = vmatprep.subr.mxu0 0.0
        %5336 = vmatpush1.msra.mxu0 0.0
        %5337 = vmatprep.subr.mxu0 0.0
        %5338 = vmatpush1.msra.mxu0 0.0
        %5339 = vmatprep.subr.mxu0 0.0
        %5340 = vmatpush1.msra.mxu0 0.0
        %5341 = vmatprep.subr.mxu0 0.0
        %5342 = vmatpush1.msra.mxu0 0.0
        %5343 = vmatprep.subr.mxu0 0.0
        %5344 = vmatpush1.msra.mxu0 0.0
        %5345 = vmatprep.subr.mxu0 0.0
        %5346 = vmatpush1.msra.mxu0 0.0
        %5347 = vmatprep.subr.mxu0 0.0
        %5348 = vmatpush1.msra.mxu0 0.0
        %5349 = vmatprep.mubr.f32.mxu0 0.0
        %5350 = vmatmul.mubr.f32.gmra.mrb[0].mxu0 %v5283
        %v5351 = vpop.f32.mrb[0].mxu0
        %v5352 = vadd.f32 %v970, %v5351
        %v5353 = vpop.f32.mrb[0].mxu0
        %5354 = vdwg.mxu0
        %v5355 = vmul.f32 %v5352, 1.442695
        %v5356 = vpow.pop %v5355
        %v5357 = vld [vmem:[%s854 + $0x1] sm:$0x1]
        %5359 = vrot.lane.b32.xlu0 %v5356, 118
        %v5360 = vpop.permute.xlu0 %5359
        %v5362 = vmul.f32 %v5357, %v5360
        %v5363 = vadd.f32 %v5352, %v5362
        %5364 = vmatprep.subr.mxu0 0.0
        %5365 = vmatpush1.msra.mxu0 %v961
        %5366 = vmatprep.subr.mxu0 0.0
        %5367 = vmatpush1.msra.mxu0 %v962
        %5368 = vmatprep.subr.mxu0 0.0
        %5369 = vmatpush1.msra.mxu0 %v963
        %5370 = vmatprep.subr.mxu0 0.0
        %5371 = vmatpush1.msra.mxu0 %v964
        %5372 = vmatprep.subr.mxu0 0.0
        %5373 = vmatpush1.msra.mxu0 0.0
        %5374 = vmatprep.subr.mxu0 0.0
        %5375 = vmatpush1.msra.mxu0 0.0
        %5376 = vmatprep.subr.mxu0 0.0
        %5377 = vmatpush1.msra.mxu0 0.0
        %5378 = vmatprep.subr.mxu0 0.0
        %5379 = vmatpush1.msra.mxu0 0.0
        %5380 = vmatprep.subr.mxu0 0.0
        %5381 = vmatpush1.msra.mxu0 0.0
        %5382 = vmatprep.subr.mxu0 0.0
        %5383 = vmatpush1.msra.mxu0 0.0
        %5384 = vmatprep.subr.mxu0 0.0
        %5385 = vmatpush1.msra.mxu0 0.0
        %5386 = vmatprep.subr.mxu0 0.0
        %5387 = vmatpush1.msra.mxu0 0.0
        %5388 = vmatprep.subr.mxu0 0.0
        %5389 = vmatpush1.msra.mxu0 0.0
        %5390 = vmatprep.subr.mxu0 0.0
        %5391 = vmatpush1.msra.mxu0 0.0
        %5392 = vmatprep.subr.mxu0 0.0
        %5393 = vmatpush1.msra.mxu0 0.0
        %5394 = vmatprep.subr.mxu0 0.0
        %5395 = vmatpush1.msra.mxu0 0.0
        %5396 = vmatprep.subr.mxu0 0.0
        %5397 = vmatpush1.msra.mxu0 0.0
        %5398 = vmatprep.subr.mxu0 0.0
        %5399 = vmatpush1.msra.mxu0 0.0
        %5400 = vmatprep.subr.mxu0 0.0
        %5401 = vmatpush1.msra.mxu0 0.0
        %5402 = vmatprep.subr.mxu0 0.0
        %5403 = vmatpush1.msra.mxu0 0.0
        %5404 = vmatprep.subr.mxu0 0.0
        %5405 = vmatpush1.msra.mxu0 0.0
        %5406 = vmatprep.subr.mxu0 0.0
        %5407 = vmatpush1.msra.mxu0 0.0
        %5408 = vmatprep.subr.mxu0 0.0
        %5409 = vmatpush1.msra.mxu0 0.0
        %5410 = vmatprep.subr.mxu0 0.0
        %5411 = vmatpush1.msra.mxu0 0.0
        %5412 = vmatprep.subr.mxu0 0.0
        %5413 = vmatpush1.msra.mxu0 0.0
        %5414 = vmatprep.subr.mxu0 0.0
        %5415 = vmatpush1.msra.mxu0 0.0
        %5416 = vmatprep.subr.mxu0 0.0
        %5417 = vmatpush1.msra.mxu0 0.0
        %5418 = vmatprep.subr.mxu0 0.0
        %5419 = vmatpush1.msra.mxu0 0.0
        %5420 = vmatprep.subr.mxu0 0.0
        %5421 = vmatpush1.msra.mxu0 0.0
        %5422 = vmatprep.subr.mxu0 0.0
        %5423 = vmatpush1.msra.mxu0 0.0
        %5424 = vmatprep.subr.mxu0 0.0
        %5425 = vmatpush1.msra.mxu0 0.0
        %5426 = vmatprep.subr.mxu0 0.0
        %5427 = vmatpush1.msra.mxu0 0.0
        %5428 = vmatprep.mubr.f32.mxu0 0.0
        %5429 = vmatmul.mubr.f32.gmra.mrb[0].mxu0 %v2527
        %v5430 = vpop.f32.mrb[0].mxu0
        %v5431 = vadd.f32 0.0, %v5430
        %v5432 = vpop.f32.mrb[0].mxu0
        %5433 = vdwg.mxu0
        %v5435 = vsel %vm2416, %v5363, 0
        %5437 = vmatprep.subr.mxu0 0.0
        %5438 = vmatpush1.msra.mxu0 %v959
        %5439 = vmatprep.subr.mxu0 0.0
        %5440 = vmatpush1.msra.mxu0 %v2422
        %5441 = vmatprep.subr.mxu0 0.0
        %5442 = vmatpush1.msra.mxu0 0.0
        %5443 = vmatprep.subr.mxu0 0.0
        %5444 = vmatpush1.msra.mxu0 0.0
        %5445 = vmatprep.subr.mxu0 0.0
        %5446 = vmatpush1.msra.mxu0 0.0
        %5447 = vmatprep.subr.mxu0 0.0
        %5448 = vmatpush1.msra.mxu0 0.0
        %5449 = vmatprep.subr.mxu0 0.0
        %5450 = vmatpush1.msra.mxu0 0.0
        %5451 = vmatprep.subr.mxu0 0.0
        %5452 = vmatpush1.msra.mxu0 0.0
        %5453 = vmatprep.subr.mxu0 0.0
        %5454 = vmatpush1.msra.mxu0 0.0
        %5455 = vmatprep.subr.mxu0 0.0
        %5456 = vmatpush1.msra.mxu0 0.0
        %5457 = vmatprep.subr.mxu0 0.0
        %5458 = vmatpush1.msra.mxu0 0.0
        %5459 = vmatprep.subr.mxu0 0.0
        %5460 = vmatpush1.msra.mxu0 0.0
        %5461 = vmatprep.subr.mxu0 0.0
        %5462 = vmatpush1.msra.mxu0 0.0
        %5463 = vmatprep.subr.mxu0 0.0
        %5464 = vmatpush1.msra.mxu0 0.0
        %5465 = vmatprep.subr.mxu0 0.0
        %5466 = vmatpush1.msra.mxu0 0.0
        %5467 = vmatprep.subr.mxu0 0.0
        %5468 = vmatpush1.msra.mxu0 0.0
        %5469 = vmatprep.subr.mxu0 0.0
        %5470 = vmatpush1.msra.mxu0 0.0
        %5471 = vmatprep.subr.mxu0 0.0
        %5472 = vmatpush1.msra.mxu0 0.0
        %5473 = vmatprep.subr.mxu0 0.0
        %5474 = vmatpush1.msra.mxu0 0.0
        %5475 = vmatprep.subr.mxu0 0.0
        %5476 = vmatpush1.msra.mxu0 0.0
        %5477 = vmatprep.subr.mxu0 0.0
        %5478 = vmatpush1.msra.mxu0 0.0
        %5479 = vmatprep.subr.mxu0 0.0
        %5480 = vmatpush1.msra.mxu0 0.0
        %5481 = vmatprep.subr.mxu0 0.0
        %5482 = vmatpush1.msra.mxu0 0.0
        %5483 = vmatprep.subr.mxu0 0.0
        %5484 = vmatpush1.msra.mxu0 0.0
        %5485 = vmatprep.subr.mxu0 0.0
        %5486 = vmatpush1.msra.mxu0 0.0
        %5487 = vmatprep.subr.mxu0 0.0
        %5488 = vmatpush1.msra.mxu0 0.0
        %5489 = vmatprep.subr.mxu0 0.0
        %5490 = vmatpush1.msra.mxu0 0.0
        %5491 = vmatprep.subr.mxu0 0.0
        %5492 = vmatpush1.msra.mxu0 0.0
        %5493 = vmatprep.subr.mxu0 0.0
        %5494 = vmatpush1.msra.mxu0 0.0
        %5495 = vmatprep.subr.mxu0 0.0
        %5496 = vmatpush1.msra.mxu0 0.0
        %5497 = vmatprep.subr.mxu0 0.0
        %5498 = vmatpush1.msra.mxu0 0.0
        %5499 = vmatprep.subr.mxu0 0.0
        %5500 = vmatpush1.msra.mxu0 0.0
        %5501 = vmatprep.mubr.f32.mxu0 0.0
        %5502 = vmatmul.mubr.f32.gmra.mrb[0].mxu0 %v5435
        %v5503 = vpop.f32.mrb[0].mxu0
        %v5504 = vadd.f32 %v5431, %v5503
        %v5505 = vpop.f32.mrb[0].mxu0
        %5506 = vdwg.mxu0
        %v5507 = vadd.f32 %v5504, %v965
        %v5508 = vxor.u32 %v5507, 2147483648
        %v5509 = vmul.f32 %v5508, 1.442695
        %v5510 = vpow.pop %v5509
        %v5511 = vadd.f32 %v5510, 1.0
        %v5512 = vrcp.pop %v5511
        %v5513 = vmul.f32 1.0, %v5512
        %v5514 = vtanh.pop %v5507
        %v5515 = vmul.f32 %v5513, %v2512
        %5517 = vrot.lane.b32.xlu0 %v5514, 64
        %v5518 = vpop.permute.xlu0 %5517
        %v5520 = vmul.f32 %v5513, %v5518
        %5522 = vrot.lane.b32.xlu0 %v5520, 32
        %v5523 = vpop.permute.xlu0 %5522
        %v5525 = vadd.f32 %v5515, %v5523
        %v5526 = vtanh.pop %v5525
        %5528 = vrot.lane.b32.xlu0 %v5526, 64
        %v5529 = vpop.permute.xlu0 %5528
        %v5531 = vmul.f32 %v5513, %v5529
        %5533 = vrot.lane.b32.xlu0 %v5531, 32
        %v5534 = vpop.permute.xlu0 %5533
        %v5535 = vsel %vm1300, %v5534, 0
        %5537 = vmatprep.subr.mxu0 %v972
        %5538 = vmatpush1.msra.mxu0 %v971
        %5539 = vmatprep.subr.mxu0 %v974
        %5540 = vmatpush1.msra.mxu0 %v973
        %5541 = vmatprep.subr.mxu0 %v976
        %5542 = vmatpush1.msra.mxu0 %v975
        %5543 = vmatprep.subr.mxu0 %v978
        %5544 = vmatpush1.msra.mxu0 %v977
        %5545 = vmatprep.subr.mxu0 0.0
        %5546 = vmatpush1.msra.mxu0 0.0
        %5547 = vmatprep.subr.mxu0 0.0
        %5548 = vmatpush1.msra.mxu0 0.0
        %5549 = vmatprep.subr.mxu0 0.0
        %5550 = vmatpush1.msra.mxu0 0.0
        %5551 = vmatprep.subr.mxu0 0.0
        %5552 = vmatpush1.msra.mxu0 0.0
        %5553 = vmatprep.subr.mxu0 0.0
        %5554 = vmatpush1.msra.mxu0 0.0
        %5555 = vmatprep.subr.mxu0 0.0
        %5556 = vmatpush1.msra.mxu0 0.0
        %5557 = vmatprep.subr.mxu0 0.0
        %5558 = vmatpush1.msra.mxu0 0.0
        %5559 = vmatprep.subr.mxu0 0.0
        %5560 = vmatpush1.msra.mxu0 0.0
        %5561 = vmatprep.subr.mxu0 0.0
        %5562 = vmatpush1.msra.mxu0 0.0
        %5563 = vmatprep.subr.mxu0 0.0
        %5564 = vmatpush1.msra.mxu0 0.0
        %5565 = vmatprep.subr.mxu0 0.0
        %5566 = vmatpush1.msra.mxu0 0.0
        %5567 = vmatprep.subr.mxu0 0.0
        %5568 = vmatpush1.msra.mxu0 0.0
        %5569 = vmatprep.subr.mxu0 0.0
        %5570 = vmatpush1.msra.mxu0 0.0
        %5571 = vmatprep.subr.mxu0 0.0
        %5572 = vmatpush1.msra.mxu0 0.0
        %5573 = vmatprep.subr.mxu0 0.0
        %5574 = vmatpush1.msra.mxu0 0.0
        %5575 = vmatprep.subr.mxu0 0.0
        %5576 = vmatpush1.msra.mxu0 0.0
        %5577 = vmatprep.subr.mxu0 0.0
        %5578 = vmatpush1.msra.mxu0 0.0
        %5579 = vmatprep.subr.mxu0 0.0
        %5580 = vmatpush1.msra.mxu0 0.0
        %5581 = vmatprep.subr.mxu0 0.0
        %5582 = vmatpush1.msra.mxu0 0.0
        %5583 = vmatprep.subr.mxu0 0.0
        %5584 = vmatpush1.msra.mxu0 0.0
        %5585 = vmatprep.subr.mxu0 0.0
        %5586 = vmatpush1.msra.mxu0 0.0
        %5587 = vmatprep.subr.mxu0 0.0
        %5588 = vmatpush1.msra.mxu0 0.0
        %5589 = vmatprep.subr.mxu0 0.0
        %5590 = vmatpush1.msra.mxu0 0.0
        %5591 = vmatprep.subr.mxu0 0.0
        %5592 = vmatpush1.msra.mxu0 0.0
        %5593 = vmatprep.subr.mxu0 0.0
        %5594 = vmatpush1.msra.mxu0 0.0
        %5595 = vmatprep.subr.mxu0 0.0
        %5596 = vmatpush1.msra.mxu0 0.0
        %5597 = vmatprep.subr.mxu0 0.0
        %5598 = vmatpush1.msra.mxu0 0.0
        %5599 = vmatprep.subr.mxu0 0.0
        %5600 = vmatpush1.msra.mxu0 0.0
        %5601 = vmatprep.mubr.f32.mxu0 0.0
        %5602 = vmatmul.mubr.f32.gmra.mrb[0].mxu0 %v5535
        %v5603 = vpop.f32.mrb[0].mxu0
        %v5604 = vadd.f32 %v984, %v5603
        %v5605 = vpop.f32.mrb[0].mxu0
        %v5606 = vadd.f32 %v2525, %v5605
        %5607 = vdwg.mxu0
        %v5608 = vadd.f32 %v5606, 1e-09
        %v5609 = vrcp.pop %v5608
        %v5610 = vmul.f32 1.0, %v5609
        %v5611 = vsub.f32 0.0, %v5606
        %5613 = vrot.lane.b32.xlu0 %v5608, 1
        %v5614 = vpop.permute.xlu0 %5613
        %v5616 = vrcp.pop %v5614
        %v5617 = vmul.f32 %v5611, %v5616
        %5618 = vrot.lane.b32.xlu0 %v5608, 2
        %v5619 = vpop.permute.xlu0 %5618
        %v5621 = vrcp.pop %v5619
        %v5622 = vmul.f32 %v5611, %v5621
        %5623 = vrot.lane.b32.xlu0 %v5608, 3
        %v5624 = vpop.permute.xlu0 %5623
        %v5626 = vrcp.pop %v5624
        %v5627 = vmul.f32 %v5611, %v5626
        %5629 = vset.pattern.permute.xlu0 1
        %5630 = vperm.xlu0 %5629, %v5610
        %v5631 = vpop.permute.xlu0 %5630
        %v5633 = vmul.f32 %v5631, %v2629
        %v5634 = vmul.f32 %v5631, %v2633
        %v5635 = vmul.f32 %v5631, %v2637
        %v5636 = vmul.f32 %v5631, %v2641
        %v5637 = vmul.f32 %v5627, 2.5
        %5639 = vset.pattern.permute.xlu0 4
        %5640 = vperm.xlu0 %5639, %v5637
        %v5641 = vpop.permute.xlu0 %5640
        %v5643 = vadd.f32 %v5633, %v5641
        %v5644 = vadd.f32 %v5634, %v5641
        %v5645 = vadd.f32 %v5635, %v5641
        %v5646 = vadd.f32 %v5636, %v5641
        %v5647 = vlaneseq
        %v5648 = vshrl.u32 %v5647, 7
        %v5649 = vsub.s32 0, %v5648
        %v5650 = vrot.slane %v5643, %v5649
        %v5651 = vlaneseq
        %v5652 = vshrl.u32 %v5651, 7
        %v5653 = vsub.s32 0, %v5652
        %v5654 = vrot.slane %v5644, %v5653
        %v5655 = vlaneseq
        %v5656 = vshrl.u32 %v5655, 7
        %v5657 = vsub.s32 0, %v5656
        %v5658 = vrot.slane %v5645, %v5657
        %v5659 = vlaneseq
        %v5660 = vshrl.u32 %v5659, 7
        %v5661 = vsub.s32 0, %v5660
        %v5662 = vrot.slane %v5646, %v5661
        %v5663 = vadd.f32 %v5650, %v2679
        %v5664 = vadd.f32 %v5654, %v2679
        %v5665 = vadd.f32 %v5658, %v2679
        %v5666 = vadd.f32 %v5662, %v2679
        %v5667 = vadd.f32 %v5650, %v2684
        %v5668 = vadd.f32 %v5654, %v2684
        %v5669 = vadd.f32 %v5658, %v2684
        %v5670 = vadd.f32 %v5662, %v2684
        %v5671 = vadd.f32 %v5650, %v2689
        %v5672 = vadd.f32 %v5654, %v2689
        %v5673 = vadd.f32 %v5658, %v2689
        %v5674 = vadd.f32 %v5662, %v2689
        %v5675 = vadd.f32 %v5650, %v2694
        %v5676 = vadd.f32 %v5654, %v2694
        %v5677 = vadd.f32 %v5658, %v2694
        %v5678 = vadd.f32 %v5662, %v2694
        %v5679 = vadd.f32 %v5650, %v2699
        %v5680 = vadd.f32 %v5654, %v2699
        %v5681 = vadd.f32 %v5658, %v2699
        %v5682 = vadd.f32 %v5662, %v2699
        %v5683 = vadd.f32 %v5650, %v2704
        %v5684 = vadd.f32 %v5654, %v2704
        %v5685 = vadd.f32 %v5658, %v2704
        %v5686 = vadd.f32 %v5662, %v2704
        %v5687 = vadd.f32 %v5650, %v2709
        %v5688 = vadd.f32 %v5654, %v2709
        %v5689 = vadd.f32 %v5658, %v2709
        %v5690 = vadd.f32 %v5662, %v2709
        %v5691 = vadd.f32 %v5650, %v2714
        %v5692 = vadd.f32 %v5654, %v2714
        %v5693 = vadd.f32 %v5658, %v2714
        %v5694 = vadd.f32 %v5662, %v2714
        %v5695 = vadd.f32 %v5650, %v2719
        %v5696 = vadd.f32 %v5654, %v2719
        %v5697 = vadd.f32 %v5658, %v2719
        %v5698 = vadd.f32 %v5662, %v2719
        %v5699 = vadd.f32 %v5650, %v2724
        %v5700 = vadd.f32 %v5654, %v2724
        %v5701 = vadd.f32 %v5658, %v2724
        %v5702 = vadd.f32 %v5662, %v2724
        %v5703 = vadd.f32 %v5650, %v2729
        %v5704 = vadd.f32 %v5654, %v2729
        %v5705 = vadd.f32 %v5658, %v2729
        %v5706 = vadd.f32 %v5662, %v2729
        %v5707 = vadd.f32 %v5650, %v2734
        %v5708 = vadd.f32 %v5654, %v2734
        %v5709 = vadd.f32 %v5658, %v2734
        %v5710 = vadd.f32 %v5662, %v2734
        %v5711 = vadd.f32 %v5650, %v2739
        %v5712 = vadd.f32 %v5654, %v2739
        %v5713 = vadd.f32 %v5658, %v2739
        %v5714 = vadd.f32 %v5662, %v2739
        %v5715 = vadd.f32 %v5650, %v2744
        %v5716 = vadd.f32 %v5654, %v2744
        %v5717 = vadd.f32 %v5658, %v2744
        %v5718 = vadd.f32 %v5662, %v2744
        %v5719 = vadd.f32 %v5650, %v2749
        %v5720 = vadd.f32 %v5654, %v2749
        %v5721 = vadd.f32 %v5658, %v2749
        %v5722 = vadd.f32 %v5662, %v2749
        %v5723 = vadd.f32 %v5650, %v2754
        %v5724 = vadd.f32 %v5654, %v2754
        %v5725 = vadd.f32 %v5658, %v2754
        %v5726 = vadd.f32 %v5662, %v2754
        %v5727 = vand.u32 2147483647, %v5663
        %v5728 = vand.u32 2147483647, %v5664
        %v5729 = vand.u32 2147483647, %v5665
        %v5730 = vand.u32 2147483647, %v5666
        %v5731 = vand.u32 2147483647, %v5667
        %v5732 = vand.u32 2147483647, %v5668
        %v5733 = vand.u32 2147483647, %v5669
        %v5734 = vand.u32 2147483647, %v5670
        %v5735 = vand.u32 2147483647, %v5671
        %v5736 = vand.u32 2147483647, %v5672
        %v5737 = vand.u32 2147483647, %v5673
        %v5738 = vand.u32 2147483647, %v5674
        %v5739 = vand.u32 2147483647, %v5675
        %v5740 = vand.u32 2147483647, %v5676
        %v5741 = vand.u32 2147483647, %v5677
        %v5742 = vand.u32 2147483647, %v5678
        %v5743 = vand.u32 2147483647, %v5679
        %v5744 = vand.u32 2147483647, %v5680
        %v5745 = vand.u32 2147483647, %v5681
        %v5746 = vand.u32 2147483647, %v5682
        %v5747 = vand.u32 2147483647, %v5683
        %v5748 = vand.u32 2147483647, %v5684
        %v5749 = vand.u32 2147483647, %v5685
        %v5750 = vand.u32 2147483647, %v5686
        %v5751 = vand.u32 2147483647, %v5687
        %v5752 = vand.u32 2147483647, %v5688
        %v5753 = vand.u32 2147483647, %v5689
        %v5754 = vand.u32 2147483647, %v5690
        %v5755 = vand.u32 2147483647, %v5691
        %v5756 = vand.u32 2147483647, %v5692
        %v5757 = vand.u32 2147483647, %v5693
        %v5758 = vand.u32 2147483647, %v5694
        %v5759 = vand.u32 2147483647, %v5695
        %v5760 = vand.u32 2147483647, %v5696
        %v5761 = vand.u32 2147483647, %v5697
        %v5762 = vand.u32 2147483647, %v5698
        %v5763 = vand.u32 2147483647, %v5699
        %v5764 = vand.u32 2147483647, %v5700
        %v5765 = vand.u32 2147483647, %v5701
        %v5766 = vand.u32 2147483647, %v5702
        %v5767 = vand.u32 2147483647, %v5703
        %v5768 = vand.u32 2147483647, %v5704
        %v5769 = vand.u32 2147483647, %v5705
        %v5770 = vand.u32 2147483647, %v5706
        %v5771 = vand.u32 2147483647, %v5707
        %v5772 = vand.u32 2147483647, %v5708
        %v5773 = vand.u32 2147483647, %v5709
        %v5774 = vand.u32 2147483647, %v5710
        %v5775 = vand.u32 2147483647, %v5711
        %v5776 = vand.u32 2147483647, %v5712
        %v5777 = vand.u32 2147483647, %v5713
        %v5778 = vand.u32 2147483647, %v5714
        %v5779 = vand.u32 2147483647, %v5715
        %v5780 = vand.u32 2147483647, %v5716
        %v5781 = vand.u32 2147483647, %v5717
        %v5782 = vand.u32 2147483647, %v5718
        %v5783 = vand.u32 2147483647, %v5719
        %v5784 = vand.u32 2147483647, %v5720
        %v5785 = vand.u32 2147483647, %v5721
        %v5786 = vand.u32 2147483647, %v5722
        %v5787 = vand.u32 2147483647, %v5723
        %v5788 = vand.u32 2147483647, %v5724
        %v5789 = vand.u32 2147483647, %v5725
        %v5790 = vand.u32 2147483647, %v5726
        %v5791 = vsub.f32 1.0, %v5727
        %v5792 = vsub.f32 1.0, %v5728
        %v5793 = vsub.f32 1.0, %v5729
        %v5794 = vsub.f32 1.0, %v5730
        %v5795 = vsub.f32 1.0, %v5731
        %v5796 = vsub.f32 1.0, %v5732
        %v5797 = vsub.f32 1.0, %v5733
        %v5798 = vsub.f32 1.0, %v5734
        %v5799 = vsub.f32 1.0, %v5735
        %v5800 = vsub.f32 1.0, %v5736
        %v5801 = vsub.f32 1.0, %v5737
        %v5802 = vsub.f32 1.0, %v5738
        %v5803 = vsub.f32 1.0, %v5739
        %v5804 = vsub.f32 1.0, %v5740
        %v5805 = vsub.f32 1.0, %v5741
        %v5806 = vsub.f32 1.0, %v5742
        %v5807 = vsub.f32 1.0, %v5743
        %v5808 = vsub.f32 1.0, %v5744
        %v5809 = vsub.f32 1.0, %v5745
        %v5810 = vsub.f32 1.0, %v5746
        %v5811 = vsub.f32 1.0, %v5747
        %v5812 = vsub.f32 1.0, %v5748
        %v5813 = vsub.f32 1.0, %v5749
        %v5814 = vsub.f32 1.0, %v5750
        %v5815 = vsub.f32 1.0, %v5751
        %v5816 = vsub.f32 1.0, %v5752
        %v5817 = vsub.f32 1.0, %v5753
        %v5818 = vsub.f32 1.0, %v5754
        %v5819 = vsub.f32 1.0, %v5755
        %v5820 = vsub.f32 1.0, %v5756
        %v5821 = vsub.f32 1.0, %v5757
        %v5822 = vsub.f32 1.0, %v5758
        %v5823 = vsub.f32 1.0, %v5759
        %v5824 = vsub.f32 1.0, %v5760
        %v5825 = vsub.f32 1.0, %v5761
        %v5826 = vsub.f32 1.0, %v5762
        %v5827 = vsub.f32 1.0, %v5763
        %v5828 = vsub.f32 1.0, %v5764
        %v5829 = vsub.f32 1.0, %v5765
        %v5830 = vsub.f32 1.0, %v5766
        %v5831 = vsub.f32 1.0, %v5767
        %v5832 = vsub.f32 1.0, %v5768
        %v5833 = vsub.f32 1.0, %v5769
        %v5834 = vsub.f32 1.0, %v5770
        %v5835 = vsub.f32 1.0, %v5771
        %v5836 = vsub.f32 1.0, %v5772
        %v5837 = vsub.f32 1.0, %v5773
        %v5838 = vsub.f32 1.0, %v5774
        %v5839 = vsub.f32 1.0, %v5775
        %v5840 = vsub.f32 1.0, %v5776
        %v5841 = vsub.f32 1.0, %v5777
        %v5842 = vsub.f32 1.0, %v5778
        %v5843 = vsub.f32 1.0, %v5779
        %v5844 = vsub.f32 1.0, %v5780
        %v5845 = vsub.f32 1.0, %v5781
        %v5846 = vsub.f32 1.0, %v5782
        %v5847 = vsub.f32 1.0, %v5783
        %v5848 = vsub.f32 1.0, %v5784
        %v5849 = vsub.f32 1.0, %v5785
        %v5850 = vsub.f32 1.0, %v5786
        %v5851 = vsub.f32 1.0, %v5787
        %v5852 = vsub.f32 1.0, %v5788
        %v5853 = vsub.f32 1.0, %v5789
        %v5854 = vsub.f32 1.0, %v5790
        %v5855 = vmax.f32 %v5791, 0.0
        %v5856 = vmax.f32 %v5792, 0.0
        %v5857 = vmax.f32 %v5793, 0.0
        %v5858 = vmax.f32 %v5794, 0.0
        %v5859 = vmax.f32 %v5795, 0.0
        %v5860 = vmax.f32 %v5796, 0.0
        %v5861 = vmax.f32 %v5797, 0.0
        %v5862 = vmax.f32 %v5798, 0.0
        %v5863 = vmax.f32 %v5799, 0.0
        %v5864 = vmax.f32 %v5800, 0.0
        %v5865 = vmax.f32 %v5801, 0.0
        %v5866 = vmax.f32 %v5802, 0.0
        %v5867 = vmax.f32 %v5803, 0.0
        %v5868 = vmax.f32 %v5804, 0.0
        %v5869 = vmax.f32 %v5805, 0.0
        %v5870 = vmax.f32 %v5806, 0.0
        %v5871 = vmax.f32 %v5807, 0.0
        %v5872 = vmax.f32 %v5808, 0.0
        %v5873 = vmax.f32 %v5809, 0.0
        %v5874 = vmax.f32 %v5810, 0.0
        %v5875 = vmax.f32 %v5811, 0.0
        %v5876 = vmax.f32 %v5812, 0.0
        %v5877 = vmax.f32 %v5813, 0.0
        %v5878 = vmax.f32 %v5814, 0.0
        %v5879 = vmax.f32 %v5815, 0.0
        %v5880 = vmax.f32 %v5816, 0.0
        %v5881 = vmax.f32 %v5817, 0.0
        %v5882 = vmax.f32 %v5818, 0.0
        %v5883 = vmax.f32 %v5819, 0.0
        %v5884 = vmax.f32 %v5820, 0.0
        %v5885 = vmax.f32 %v5821, 0.0
        %v5886 = vmax.f32 %v5822, 0.0
        %v5887 = vmax.f32 %v5823, 0.0
        %v5888 = vmax.f32 %v5824, 0.0
        %v5889 = vmax.f32 %v5825, 0.0
        %v5890 = vmax.f32 %v5826, 0.0
        %v5891 = vmax.f32 %v5827, 0.0
        %v5892 = vmax.f32 %v5828, 0.0
        %v5893 = vmax.f32 %v5829, 0.0
        %v5894 = vmax.f32 %v5830, 0.0
        %v5895 = vmax.f32 %v5831, 0.0
        %v5896 = vmax.f32 %v5832, 0.0
        %v5897 = vmax.f32 %v5833, 0.0
        %v5898 = vmax.f32 %v5834, 0.0
        %v5899 = vmax.f32 %v5835, 0.0
        %v5900 = vmax.f32 %v5836, 0.0
        %v5901 = vmax.f32 %v5837, 0.0
        %v5902 = vmax.f32 %v5838, 0.0
        %v5903 = vmax.f32 %v5839, 0.0
        %v5904 = vmax.f32 %v5840, 0.0
        %v5905 = vmax.f32 %v5841, 0.0
        %v5906 = vmax.f32 %v5842, 0.0
        %v5907 = vmax.f32 %v5843, 0.0
        %v5908 = vmax.f32 %v5844, 0.0
        %v5909 = vmax.f32 %v5845, 0.0
        %v5910 = vmax.f32 %v5846, 0.0
        %v5911 = vmax.f32 %v5847, 0.0
        %v5912 = vmax.f32 %v5848, 0.0
        %v5913 = vmax.f32 %v5849, 0.0
        %v5914 = vmax.f32 %v5850, 0.0
        %v5915 = vmax.f32 %v5851, 0.0
        %v5916 = vmax.f32 %v5852, 0.0
        %v5917 = vmax.f32 %v5853, 0.0
        %v5918 = vmax.f32 %v5854, 0.0
        %v5919 = vmul.f32 %v5631, %v3016
        %v5920 = vmul.f32 %v5631, %v3020
        %v5921 = vmul.f32 %v5631, %v3024
        %v5922 = vmul.f32 %v5631, %v3028
        %v5923 = vmul.f32 %v5622, 2.5
        %5925 = vset.pattern.permute.xlu0 3
        %5926 = vperm.xlu0 %5925, %v5923
        %v5927 = vpop.permute.xlu0 %5926
        %v5929 = vadd.f32 %v5919, %v5927
        %v5930 = vadd.f32 %v5920, %v5927
        %v5931 = vadd.f32 %v5921, %v5927
        %v5932 = vadd.f32 %v5922, %v5927
        %v5933 = vlaneseq
        %v5934 = vshrl.u32 %v5933, 7
        %v5935 = vsub.s32 0, %v5934
        %v5936 = vrot.slane %v5929, %v5935
        %v5937 = vlaneseq
        %v5938 = vshrl.u32 %v5937, 7
        %v5939 = vsub.s32 0, %v5938
        %v5940 = vrot.slane %v5930, %v5939
        %v5941 = vlaneseq
        %v5942 = vshrl.u32 %v5941, 7
        %v5943 = vsub.s32 0, %v5942
        %v5944 = vrot.slane %v5931, %v5943
        %v5945 = vlaneseq
        %v5946 = vshrl.u32 %v5945, 7
        %v5947 = vsub.s32 0, %v5946
        %v5948 = vrot.slane %v5932, %v5947
        %v5949 = vadd.f32 %v5936, %v3066
        %v5950 = vadd.f32 %v5940, %v3066
        %v5951 = vadd.f32 %v5944, %v3066
        %v5952 = vadd.f32 %v5948, %v3066
        %v5953 = vadd.f32 %v5936, %v3071
        %v5954 = vadd.f32 %v5940, %v3071
        %v5955 = vadd.f32 %v5944, %v3071
        %v5956 = vadd.f32 %v5948, %v3071
        %v5957 = vadd.f32 %v5936, %v3076
        %v5958 = vadd.f32 %v5940, %v3076
        %v5959 = vadd.f32 %v5944, %v3076
        %v5960 = vadd.f32 %v5948, %v3076
        %v5961 = vadd.f32 %v5936, %v3081
        %v5962 = vadd.f32 %v5940, %v3081
        %v5963 = vadd.f32 %v5944, %v3081
        %v5964 = vadd.f32 %v5948, %v3081
        %v5965 = vadd.f32 %v5936, %v3086
        %v5966 = vadd.f32 %v5940, %v3086
        %v5967 = vadd.f32 %v5944, %v3086
        %v5968 = vadd.f32 %v5948, %v3086
        %v5969 = vadd.f32 %v5936, %v3091
        %v5970 = vadd.f32 %v5940, %v3091
        %v5971 = vadd.f32 %v5944, %v3091
        %v5972 = vadd.f32 %v5948, %v3091
        %v5973 = vadd.f32 %v5936, %v3096
        %v5974 = vadd.f32 %v5940, %v3096
        %v5975 = vadd.f32 %v5944, %v3096
        %v5976 = vadd.f32 %v5948, %v3096
        %v5977 = vadd.f32 %v5936, %v3101
        %v5978 = vadd.f32 %v5940, %v3101
        %v5979 = vadd.f32 %v5944, %v3101
        %v5980 = vadd.f32 %v5948, %v3101
        %v5981 = vadd.f32 %v5936, %v3106
        %v5982 = vadd.f32 %v5940, %v3106
        %v5983 = vadd.f32 %v5944, %v3106
        %v5984 = vadd.f32 %v5948, %v3106
        %v5985 = vadd.f32 %v5936, %v3111
        %v5986 = vadd.f32 %v5940, %v3111
        %v5987 = vadd.f32 %v5944, %v3111
        %v5988 = vadd.f32 %v5948, %v3111
        %v5989 = vadd.f32 %v5936, %v3116
        %v5990 = vadd.f32 %v5940, %v3116
        %v5991 = vadd.f32 %v5944, %v3116
        %v5992 = vadd.f32 %v5948, %v3116
        %v5993 = vadd.f32 %v5936, %v3121
        %v5994 = vadd.f32 %v5940, %v3121
        %v5995 = vadd.f32 %v5944, %v3121
        %v5996 = vadd.f32 %v5948, %v3121
        %v5997 = vadd.f32 %v5936, %v3126
        %v5998 = vadd.f32 %v5940, %v3126
        %v5999 = vadd.f32 %v5944, %v3126
        %v6000 = vadd.f32 %v5948, %v3126
        %v6001 = vadd.f32 %v5936, %v3131
        %v6002 = vadd.f32 %v5940, %v3131
        %v6003 = vadd.f32 %v5944, %v3131
        %v6004 = vadd.f32 %v5948, %v3131
        %v6005 = vadd.f32 %v5936, %v3136
        %v6006 = vadd.f32 %v5940, %v3136
        %v6007 = vadd.f32 %v5944, %v3136
        %v6008 = vadd.f32 %v5948, %v3136
        %v6009 = vadd.f32 %v5936, %v3141
        %v6010 = vadd.f32 %v5940, %v3141
        %v6011 = vadd.f32 %v5944, %v3141
        %v6012 = vadd.f32 %v5948, %v3141
        %v6013 = vand.u32 2147483647, %v5949
        %v6014 = vand.u32 2147483647, %v5950
        %v6015 = vand.u32 2147483647, %v5951
        %v6016 = vand.u32 2147483647, %v5952
        %v6017 = vand.u32 2147483647, %v5953
        %v6018 = vand.u32 2147483647, %v5954
        %v6019 = vand.u32 2147483647, %v5955
        %v6020 = vand.u32 2147483647, %v5956
        %v6021 = vand.u32 2147483647, %v5957
        %v6022 = vand.u32 2147483647, %v5958
        %v6023 = vand.u32 2147483647, %v5959
        %v6024 = vand.u32 2147483647, %v5960
        %v6025 = vand.u32 2147483647, %v5961
        %v6026 = vand.u32 2147483647, %v5962
        %v6027 = vand.u32 2147483647, %v5963
        %v6028 = vand.u32 2147483647, %v5964
        %v6029 = vand.u32 2147483647, %v5965
        %v6030 = vand.u32 2147483647, %v5966
        %v6031 = vand.u32 2147483647, %v5967
        %v6032 = vand.u32 2147483647, %v5968
        %v6033 = vand.u32 2147483647, %v5969
        %v6034 = vand.u32 2147483647, %v5970
        %v6035 = vand.u32 2147483647, %v5971
        %v6036 = vand.u32 2147483647, %v5972
        %v6037 = vand.u32 2147483647, %v5973
        %v6038 = vand.u32 2147483647, %v5974
        %v6039 = vand.u32 2147483647, %v5975
        %v6040 = vand.u32 2147483647, %v5976
        %v6041 = vand.u32 2147483647, %v5977
        %v6042 = vand.u32 2147483647, %v5978
        %v6043 = vand.u32 2147483647, %v5979
        %v6044 = vand.u32 2147483647, %v5980
        %v6045 = vand.u32 2147483647, %v5981
        %v6046 = vand.u32 2147483647, %v5982
        %v6047 = vand.u32 2147483647, %v5983
        %v6048 = vand.u32 2147483647, %v5984
        %v6049 = vand.u32 2147483647, %v5985
        %v6050 = vand.u32 2147483647, %v5986
        %v6051 = vand.u32 2147483647, %v5987
        %v6052 = vand.u32 2147483647, %v5988
        %v6053 = vand.u32 2147483647, %v5989
        %v6054 = vand.u32 2147483647, %v5990
        %v6055 = vand.u32 2147483647, %v5991
        %v6056 = vand.u32 2147483647, %v5992
        %v6057 = vand.u32 2147483647, %v5993
        %v6058 = vand.u32 2147483647, %v5994
        %v6059 = vand.u32 2147483647, %v5995
        %v6060 = vand.u32 2147483647, %v5996
        %v6061 = vand.u32 2147483647, %v5997
        %v6062 = vand.u32 2147483647, %v5998
        %v6063 = vand.u32 2147483647, %v5999
        %v6064 = vand.u32 2147483647, %v6000
        %v6065 = vand.u32 2147483647, %v6001
        %v6066 = vand.u32 2147483647, %v6002
        %v6067 = vand.u32 2147483647, %v6003
        %v6068 = vand.u32 2147483647, %v6004
        %v6069 = vand.u32 2147483647, %v6005
        %v6070 = vand.u32 2147483647, %v6006
        %v6071 = vand.u32 2147483647, %v6007
        %v6072 = vand.u32 2147483647, %v6008
        %v6073 = vand.u32 2147483647, %v6009
        %v6074 = vand.u32 2147483647, %v6010
        %v6075 = vand.u32 2147483647, %v6011
        %v6076 = vand.u32 2147483647, %v6012
        %v6077 = vsub.f32 1.0, %v6013
        %v6078 = vsub.f32 1.0, %v6014
        %v6079 = vsub.f32 1.0, %v6015
        %v6080 = vsub.f32 1.0, %v6016
        %v6081 = vsub.f32 1.0, %v6017
        %v6082 = vsub.f32 1.0, %v6018
        %v6083 = vsub.f32 1.0, %v6019
        %v6084 = vsub.f32 1.0, %v6020
        %v6085 = vsub.f32 1.0, %v6021
        %v6086 = vsub.f32 1.0, %v6022
        %v6087 = vsub.f32 1.0, %v6023
        %v6088 = vsub.f32 1.0, %v6024
        %v6089 = vsub.f32 1.0, %v6025
        %v6090 = vsub.f32 1.0, %v6026
        %v6091 = vsub.f32 1.0, %v6027
        %v6092 = vsub.f32 1.0, %v6028
        %v6093 = vsub.f32 1.0, %v6029
        %v6094 = vsub.f32 1.0, %v6030
        %v6095 = vsub.f32 1.0, %v6031
        %v6096 = vsub.f32 1.0, %v6032
        %v6097 = vsub.f32 1.0, %v6033
        %v6098 = vsub.f32 1.0, %v6034
        %v6099 = vsub.f32 1.0, %v6035
        %v6100 = vsub.f32 1.0, %v6036
        %v6101 = vsub.f32 1.0, %v6037
        %v6102 = vsub.f32 1.0, %v6038
        %v6103 = vsub.f32 1.0, %v6039
        %v6104 = vsub.f32 1.0, %v6040
        %v6105 = vsub.f32 1.0, %v6041
        %v6106 = vsub.f32 1.0, %v6042
        %v6107 = vsub.f32 1.0, %v6043
        %v6108 = vsub.f32 1.0, %v6044
        %v6109 = vsub.f32 1.0, %v6045
        %v6110 = vsub.f32 1.0, %v6046
        %v6111 = vsub.f32 1.0, %v6047
        %v6112 = vsub.f32 1.0, %v6048
        %v6113 = vsub.f32 1.0, %v6049
        %v6114 = vsub.f32 1.0, %v6050
        %v6115 = vsub.f32 1.0, %v6051
        %v6116 = vsub.f32 1.0, %v6052
        %v6117 = vsub.f32 1.0, %v6053
        %v6118 = vsub.f32 1.0, %v6054
        %v6119 = vsub.f32 1.0, %v6055
        %v6120 = vsub.f32 1.0, %v6056
        %v6121 = vsub.f32 1.0, %v6057
        %v6122 = vsub.f32 1.0, %v6058
        %v6123 = vsub.f32 1.0, %v6059
        %v6124 = vsub.f32 1.0, %v6060
        %v6125 = vsub.f32 1.0, %v6061
        %v6126 = vsub.f32 1.0, %v6062
        %v6127 = vsub.f32 1.0, %v6063
        %v6128 = vsub.f32 1.0, %v6064
        %v6129 = vsub.f32 1.0, %v6065
        %v6130 = vsub.f32 1.0, %v6066
        %v6131 = vsub.f32 1.0, %v6067
        %v6132 = vsub.f32 1.0, %v6068
        %v6133 = vsub.f32 1.0, %v6069
        %v6134 = vsub.f32 1.0, %v6070
        %v6135 = vsub.f32 1.0, %v6071
        %v6136 = vsub.f32 1.0, %v6072
        %v6137 = vsub.f32 1.0, %v6073
        %v6138 = vsub.f32 1.0, %v6074
        %v6139 = vsub.f32 1.0, %v6075
        %v6140 = vsub.f32 1.0, %v6076
        %v6141 = vmax.f32 %v6077, 0.0
        %v6142 = vmax.f32 %v6078, 0.0
        %v6143 = vmax.f32 %v6079, 0.0
        %v6144 = vmax.f32 %v6080, 0.0
        %v6145 = vmax.f32 %v6081, 0.0
        %v6146 = vmax.f32 %v6082, 0.0
        %v6147 = vmax.f32 %v6083, 0.0
        %v6148 = vmax.f32 %v6084, 0.0
        %v6149 = vmax.f32 %v6085, 0.0
        %v6150 = vmax.f32 %v6086, 0.0
        %v6151 = vmax.f32 %v6087, 0.0
        %v6152 = vmax.f32 %v6088, 0.0
        %v6153 = vmax.f32 %v6089, 0.0
        %v6154 = vmax.f32 %v6090, 0.0
        %v6155 = vmax.f32 %v6091, 0.0
        %v6156 = vmax.f32 %v6092, 0.0
        %v6157 = vmax.f32 %v6093, 0.0
        %v6158 = vmax.f32 %v6094, 0.0
        %v6159 = vmax.f32 %v6095, 0.0
        %v6160 = vmax.f32 %v6096, 0.0
        %v6161 = vmax.f32 %v6097, 0.0
        %v6162 = vmax.f32 %v6098, 0.0
        %v6163 = vmax.f32 %v6099, 0.0
        %v6164 = vmax.f32 %v6100, 0.0
        %v6165 = vmax.f32 %v6101, 0.0
        %v6166 = vmax.f32 %v6102, 0.0
        %v6167 = vmax.f32 %v6103, 0.0
        %v6168 = vmax.f32 %v6104, 0.0
        %v6169 = vmax.f32 %v6105, 0.0
        %v6170 = vmax.f32 %v6106, 0.0
        %v6171 = vmax.f32 %v6107, 0.0
        %v6172 = vmax.f32 %v6108, 0.0
        %v6173 = vmax.f32 %v6109, 0.0
        %v6174 = vmax.f32 %v6110, 0.0
        %v6175 = vmax.f32 %v6111, 0.0
        %v6176 = vmax.f32 %v6112, 0.0
        %v6177 = vmax.f32 %v6113, 0.0
        %v6178 = vmax.f32 %v6114, 0.0
        %v6179 = vmax.f32 %v6115, 0.0
        %v6180 = vmax.f32 %v6116, 0.0
        %v6181 = vmax.f32 %v6117, 0.0
        %v6182 = vmax.f32 %v6118, 0.0
        %v6183 = vmax.f32 %v6119, 0.0
        %v6184 = vmax.f32 %v6120, 0.0
        %v6185 = vmax.f32 %v6121, 0.0
        %v6186 = vmax.f32 %v6122, 0.0
        %v6187 = vmax.f32 %v6123, 0.0
        %v6188 = vmax.f32 %v6124, 0.0
        %v6189 = vmax.f32 %v6125, 0.0
        %v6190 = vmax.f32 %v6126, 0.0
        %v6191 = vmax.f32 %v6127, 0.0
        %v6192 = vmax.f32 %v6128, 0.0
        %v6193 = vmax.f32 %v6129, 0.0
        %v6194 = vmax.f32 %v6130, 0.0
        %v6195 = vmax.f32 %v6131, 0.0
        %v6196 = vmax.f32 %v6132, 0.0
        %v6197 = vmax.f32 %v6133, 0.0
        %v6198 = vmax.f32 %v6134, 0.0
        %v6199 = vmax.f32 %v6135, 0.0
        %v6200 = vmax.f32 %v6136, 0.0
        %v6201 = vmax.f32 %v6137, 0.0
        %v6202 = vmax.f32 %v6138, 0.0
        %v6203 = vmax.f32 %v6139, 0.0
        %v6204 = vmax.f32 %v6140, 0.0
        %v6205 = vmul.f32 %v5855, %v6141
        %v6206 = vmul.f32 %v5856, %v6142
        %v6207 = vmul.f32 %v5857, %v6143
        %v6208 = vmul.f32 %v5858, %v6144
        %v6209 = vmul.f32 %v5859, %v6145
        %v6210 = vmul.f32 %v5860, %v6146
        %v6211 = vmul.f32 %v5861, %v6147
        %v6212 = vmul.f32 %v5862, %v6148
        %v6213 = vmul.f32 %v5863, %v6149
        %v6214 = vmul.f32 %v5864, %v6150
        %v6215 = vmul.f32 %v5865, %v6151
        %v6216 = vmul.f32 %v5866, %v6152
        %v6217 = vmul.f32 %v5867, %v6153
        %v6218 = vmul.f32 %v5868, %v6154
        %v6219 = vmul.f32 %v5869, %v6155
        %v6220 = vmul.f32 %v5870, %v6156
        %v6221 = vmul.f32 %v5871, %v6157
        %v6222 = vmul.f32 %v5872, %v6158
        %v6223 = vmul.f32 %v5873, %v6159
        %v6224 = vmul.f32 %v5874, %v6160
        %v6225 = vmul.f32 %v5875, %v6161
        %v6226 = vmul.f32 %v5876, %v6162
        %v6227 = vmul.f32 %v5877, %v6163
        %v6228 = vmul.f32 %v5878, %v6164
        %v6229 = vmul.f32 %v5879, %v6165
        %v6230 = vmul.f32 %v5880, %v6166
        %v6231 = vmul.f32 %v5881, %v6167
        %v6232 = vmul.f32 %v5882, %v6168
        %v6233 = vmul.f32 %v5883, %v6169
        %v6234 = vmul.f32 %v5884, %v6170
        %v6235 = vmul.f32 %v5885, %v6171
        %v6236 = vmul.f32 %v5886, %v6172
        %v6237 = vmul.f32 %v5887, %v6173
        %v6238 = vmul.f32 %v5888, %v6174
        %v6239 = vmul.f32 %v5889, %v6175
        %v6240 = vmul.f32 %v5890, %v6176
        %v6241 = vmul.f32 %v5891, %v6177
        %v6242 = vmul.f32 %v5892, %v6178
        %v6243 = vmul.f32 %v5893, %v6179
        %v6244 = vmul.f32 %v5894, %v6180
        %v6245 = vmul.f32 %v5895, %v6181
        %v6246 = vmul.f32 %v5896, %v6182
        %v6247 = vmul.f32 %v5897, %v6183
        %v6248 = vmul.f32 %v5898, %v6184
        %v6249 = vmul.f32 %v5899, %v6185
        %v6250 = vmul.f32 %v5900, %v6186
        %v6251 = vmul.f32 %v5901, %v6187
        %v6252 = vmul.f32 %v5902, %v6188
        %v6253 = vmul.f32 %v5903, %v6189
        %v6254 = vmul.f32 %v5904, %v6190
        %v6255 = vmul.f32 %v5905, %v6191
        %v6256 = vmul.f32 %v5906, %v6192
        %v6257 = vmul.f32 %v5907, %v6193
        %v6258 = vmul.f32 %v5908, %v6194
        %v6259 = vmul.f32 %v5909, %v6195
        %v6260 = vmul.f32 %v5910, %v6196
        %v6261 = vmul.f32 %v5911, %v6197
        %v6262 = vmul.f32 %v5912, %v6198
        %v6263 = vmul.f32 %v5913, %v6199
        %v6264 = vmul.f32 %v5914, %v6200
        %v6265 = vmul.f32 %v5915, %v6201
        %v6266 = vmul.f32 %v5916, %v6202
        %v6267 = vmul.f32 %v5917, %v6203
        %v6268 = vmul.f32 %v5918, %v6204
        %v6269 = vmul.f32 %v5631, %v3467
        %v6270 = vmul.f32 %v5631, %v3471
        %v6271 = vmul.f32 %v5631, %v3475
        %v6272 = vmul.f32 %v5631, %v3479
        %v6273 = vmul.f32 %v5617, 2.5
        %6275 = vset.pattern.permute.xlu0 2
        %6276 = vperm.xlu0 %6275, %v6273
        %v6277 = vpop.permute.xlu0 %6276
        %v6279 = vadd.f32 %v6269, %v6277
        %v6280 = vadd.f32 %v6270, %v6277
        %v6281 = vadd.f32 %v6271, %v6277
        %v6282 = vadd.f32 %v6272, %v6277
        %v6283 = vlaneseq
        %v6284 = vshrl.u32 %v6283, 7
        %v6285 = vsub.s32 0, %v6284
        %v6286 = vrot.slane %v6279, %v6285
        %v6287 = vlaneseq
        %v6288 = vshrl.u32 %v6287, 7
        %v6289 = vsub.s32 0, %v6288
        %v6290 = vrot.slane %v6280, %v6289
        %v6291 = vlaneseq
        %v6292 = vshrl.u32 %v6291, 7
        %v6293 = vsub.s32 0, %v6292
        %v6294 = vrot.slane %v6281, %v6293
        %v6295 = vlaneseq
        %v6296 = vshrl.u32 %v6295, 7
        %v6297 = vsub.s32 0, %v6296
        %v6298 = vrot.slane %v6282, %v6297
        %v6299 = vadd.f32 %v6286, %v3517
        %v6300 = vadd.f32 %v6290, %v3517
        %v6301 = vadd.f32 %v6294, %v3517
        %v6302 = vadd.f32 %v6298, %v3517
        %v6303 = vadd.f32 %v6286, %v3522
        %v6304 = vadd.f32 %v6290, %v3522
        %v6305 = vadd.f32 %v6294, %v3522
        %v6306 = vadd.f32 %v6298, %v3522
        %v6307 = vadd.f32 %v6286, %v3527
        %v6308 = vadd.f32 %v6290, %v3527
        %v6309 = vadd.f32 %v6294, %v3527
        %v6310 = vadd.f32 %v6298, %v3527
        %v6311 = vadd.f32 %v6286, %v3532
        %v6312 = vadd.f32 %v6290, %v3532
        %v6313 = vadd.f32 %v6294, %v3532
        %v6314 = vadd.f32 %v6298, %v3532
        %v6315 = vadd.f32 %v6286, %v3537
        %v6316 = vadd.f32 %v6290, %v3537
        %v6317 = vadd.f32 %v6294, %v3537
        %v6318 = vadd.f32 %v6298, %v3537
        %v6319 = vadd.f32 %v6286, %v3542
        %v6320 = vadd.f32 %v6290, %v3542
        %v6321 = vadd.f32 %v6294, %v3542
        %v6322 = vadd.f32 %v6298, %v3542
        %v6323 = vadd.f32 %v6286, %v3547
        %v6324 = vadd.f32 %v6290, %v3547
        %v6325 = vadd.f32 %v6294, %v3547
        %v6326 = vadd.f32 %v6298, %v3547
        %v6327 = vadd.f32 %v6286, %v3552
        %v6328 = vadd.f32 %v6290, %v3552
        %v6329 = vadd.f32 %v6294, %v3552
        %v6330 = vadd.f32 %v6298, %v3552
        %v6331 = vadd.f32 %v6286, %v3557
        %v6332 = vadd.f32 %v6290, %v3557
        %v6333 = vadd.f32 %v6294, %v3557
        %v6334 = vadd.f32 %v6298, %v3557
        %v6335 = vadd.f32 %v6286, %v3562
        %v6336 = vadd.f32 %v6290, %v3562
        %v6337 = vadd.f32 %v6294, %v3562
        %v6338 = vadd.f32 %v6298, %v3562
        %v6339 = vadd.f32 %v6286, %v3567
        %v6340 = vadd.f32 %v6290, %v3567
        %v6341 = vadd.f32 %v6294, %v3567
        %v6342 = vadd.f32 %v6298, %v3567
        %v6343 = vadd.f32 %v6286, %v3572
        %v6344 = vadd.f32 %v6290, %v3572
        %v6345 = vadd.f32 %v6294, %v3572
        %v6346 = vadd.f32 %v6298, %v3572
        %v6347 = vadd.f32 %v6286, %v3577
        %v6348 = vadd.f32 %v6290, %v3577
        %v6349 = vadd.f32 %v6294, %v3577
        %v6350 = vadd.f32 %v6298, %v3577
        %v6351 = vadd.f32 %v6286, %v3582
        %v6352 = vadd.f32 %v6290, %v3582
        %v6353 = vadd.f32 %v6294, %v3582
        %v6354 = vadd.f32 %v6298, %v3582
        %v6355 = vadd.f32 %v6286, %v3587
        %v6356 = vadd.f32 %v6290, %v3587
        %v6357 = vadd.f32 %v6294, %v3587
        %v6358 = vadd.f32 %v6298, %v3587
        %v6359 = vadd.f32 %v6286, %v3592
        %v6360 = vadd.f32 %v6290, %v3592
        %v6361 = vadd.f32 %v6294, %v3592
        %v6362 = vadd.f32 %v6298, %v3592
        %v6363 = vand.u32 2147483647, %v6299
        %v6364 = vand.u32 2147483647, %v6300
        %v6365 = vand.u32 2147483647, %v6301
        %v6366 = vand.u32 2147483647, %v6302
        %v6367 = vand.u32 2147483647, %v6303
        %v6368 = vand.u32 2147483647, %v6304
        %v6369 = vand.u32 2147483647, %v6305
        %v6370 = vand.u32 2147483647, %v6306
        %v6371 = vand.u32 2147483647, %v6307
        %v6372 = vand.u32 2147483647, %v6308
        %v6373 = vand.u32 2147483647, %v6309
        %v6374 = vand.u32 2147483647, %v6310
        %v6375 = vand.u32 2147483647, %v6311
        %v6376 = vand.u32 2147483647, %v6312
        %v6377 = vand.u32 2147483647, %v6313
        %v6378 = vand.u32 2147483647, %v6314
        %v6379 = vand.u32 2147483647, %v6315
        %v6380 = vand.u32 2147483647, %v6316
        %v6381 = vand.u32 2147483647, %v6317
        %v6382 = vand.u32 2147483647, %v6318
        %v6383 = vand.u32 2147483647, %v6319
        %v6384 = vand.u32 2147483647, %v6320
        %v6385 = vand.u32 2147483647, %v6321
        %v6386 = vand.u32 2147483647, %v6322
        %v6387 = vand.u32 2147483647, %v6323
        %v6388 = vand.u32 2147483647, %v6324
        %v6389 = vand.u32 2147483647, %v6325
        %v6390 = vand.u32 2147483647, %v6326
        %v6391 = vand.u32 2147483647, %v6327
        %v6392 = vand.u32 2147483647, %v6328
        %v6393 = vand.u32 2147483647, %v6329
        %v6394 = vand.u32 2147483647, %v6330
        %v6395 = vand.u32 2147483647, %v6331
        %v6396 = vand.u32 2147483647, %v6332
        %v6397 = vand.u32 2147483647, %v6333
        %v6398 = vand.u32 2147483647, %v6334
        %v6399 = vand.u32 2147483647, %v6335
        %v6400 = vand.u32 2147483647, %v6336
        %v6401 = vand.u32 2147483647, %v6337
        %v6402 = vand.u32 2147483647, %v6338
        %v6403 = vand.u32 2147483647, %v6339
        %v6404 = vand.u32 2147483647, %v6340
        %v6405 = vand.u32 2147483647, %v6341
        %v6406 = vand.u32 2147483647, %v6342
        %v6407 = vand.u32 2147483647, %v6343
        %v6408 = vand.u32 2147483647, %v6344
        %v6409 = vand.u32 2147483647, %v6345
        %v6410 = vand.u32 2147483647, %v6346
        %v6411 = vand.u32 2147483647, %v6347
        %v6412 = vand.u32 2147483647, %v6348
        %v6413 = vand.u32 2147483647, %v6349
        %v6414 = vand.u32 2147483647, %v6350
        %v6415 = vand.u32 2147483647, %v6351
        %v6416 = vand.u32 2147483647, %v6352
        %v6417 = vand.u32 2147483647, %v6353
        %v6418 = vand.u32 2147483647, %v6354
        %v6419 = vand.u32 2147483647, %v6355
        %v6420 = vand.u32 2147483647, %v6356
        %v6421 = vand.u32 2147483647, %v6357
        %v6422 = vand.u32 2147483647, %v6358
        %v6423 = vand.u32 2147483647, %v6359
        %v6424 = vand.u32 2147483647, %v6360
        %v6425 = vand.u32 2147483647, %v6361
        %v6426 = vand.u32 2147483647, %v6362
        %v6427 = vsub.f32 1.0, %v6363
        %v6428 = vsub.f32 1.0, %v6364
        %v6429 = vsub.f32 1.0, %v6365
        %v6430 = vsub.f32 1.0, %v6366
        %v6431 = vsub.f32 1.0, %v6367
        %v6432 = vsub.f32 1.0, %v6368
        %v6433 = vsub.f32 1.0, %v6369
        %v6434 = vsub.f32 1.0, %v6370
        %v6435 = vsub.f32 1.0, %v6371
        %v6436 = vsub.f32 1.0, %v6372
        %v6437 = vsub.f32 1.0, %v6373
        %v6438 = vsub.f32 1.0, %v6374
        %v6439 = vsub.f32 1.0, %v6375
        %v6440 = vsub.f32 1.0, %v6376
        %v6441 = vsub.f32 1.0, %v6377
        %v6442 = vsub.f32 1.0, %v6378
        %v6443 = vsub.f32 1.0, %v6379
        %v6444 = vsub.f32 1.0, %v6380
        %v6445 = vsub.f32 1.0, %v6381
        %v6446 = vsub.f32 1.0, %v6382
        %v6447 = vsub.f32 1.0, %v6383
        %v6448 = vsub.f32 1.0, %v6384
        %v6449 = vsub.f32 1.0, %v6385
        %v6450 = vsub.f32 1.0, %v6386
        %v6451 = vsub.f32 1.0, %v6387
        %v6452 = vsub.f32 1.0, %v6388
        %v6453 = vsub.f32 1.0, %v6389
        %v6454 = vsub.f32 1.0, %v6390
        %v6455 = vsub.f32 1.0, %v6391
        %v6456 = vsub.f32 1.0, %v6392
        %v6457 = vsub.f32 1.0, %v6393
        %v6458 = vsub.f32 1.0, %v6394
        %v6459 = vsub.f32 1.0, %v6395
        %v6460 = vsub.f32 1.0, %v6396
        %v6461 = vsub.f32 1.0, %v6397
        %v6462 = vsub.f32 1.0, %v6398
        %v6463 = vsub.f32 1.0, %v6399
        %v6464 = vsub.f32 1.0, %v6400
        %v6465 = vsub.f32 1.0, %v6401
        %v6466 = vsub.f32 1.0, %v6402
        %v6467 = vsub.f32 1.0, %v6403
        %v6468 = vsub.f32 1.0, %v6404
        %v6469 = vsub.f32 1.0, %v6405
        %v6470 = vsub.f32 1.0, %v6406
        %v6471 = vsub.f32 1.0, %v6407
        %v6472 = vsub.f32 1.0, %v6408
        %v6473 = vsub.f32 1.0, %v6409
        %v6474 = vsub.f32 1.0, %v6410
        %v6475 = vsub.f32 1.0, %v6411
        %v6476 = vsub.f32 1.0, %v6412
        %v6477 = vsub.f32 1.0, %v6413
        %v6478 = vsub.f32 1.0, %v6414
        %v6479 = vsub.f32 1.0, %v6415
        %v6480 = vsub.f32 1.0, %v6416
        %v6481 = vsub.f32 1.0, %v6417
        %v6482 = vsub.f32 1.0, %v6418
        %v6483 = vsub.f32 1.0, %v6419
        %v6484 = vsub.f32 1.0, %v6420
        %v6485 = vsub.f32 1.0, %v6421
        %v6486 = vsub.f32 1.0, %v6422
        %v6487 = vsub.f32 1.0, %v6423
        %v6488 = vsub.f32 1.0, %v6424
        %v6489 = vsub.f32 1.0, %v6425
        %v6490 = vsub.f32 1.0, %v6426
        %v6491 = vmax.f32 %v6427, 0.0
        %v6492 = vmax.f32 %v6428, 0.0
        %v6493 = vmax.f32 %v6429, 0.0
        %v6494 = vmax.f32 %v6430, 0.0
        %v6495 = vmax.f32 %v6431, 0.0
        %v6496 = vmax.f32 %v6432, 0.0
        %v6497 = vmax.f32 %v6433, 0.0
        %v6498 = vmax.f32 %v6434, 0.0
        %v6499 = vmax.f32 %v6435, 0.0
        %v6500 = vmax.f32 %v6436, 0.0
        %v6501 = vmax.f32 %v6437, 0.0
        %v6502 = vmax.f32 %v6438, 0.0
        %v6503 = vmax.f32 %v6439, 0.0
        %v6504 = vmax.f32 %v6440, 0.0
        %v6505 = vmax.f32 %v6441, 0.0
        %v6506 = vmax.f32 %v6442, 0.0
        %v6507 = vmax.f32 %v6443, 0.0
        %v6508 = vmax.f32 %v6444, 0.0
        %v6509 = vmax.f32 %v6445, 0.0
        %v6510 = vmax.f32 %v6446, 0.0
        %v6511 = vmax.f32 %v6447, 0.0
        %v6512 = vmax.f32 %v6448, 0.0
        %v6513 = vmax.f32 %v6449, 0.0
        %v6514 = vmax.f32 %v6450, 0.0
        %v6515 = vmax.f32 %v6451, 0.0
        %v6516 = vmax.f32 %v6452, 0.0
        %v6517 = vmax.f32 %v6453, 0.0
        %v6518 = vmax.f32 %v6454, 0.0
        %v6519 = vmax.f32 %v6455, 0.0
        %v6520 = vmax.f32 %v6456, 0.0
        %v6521 = vmax.f32 %v6457, 0.0
        %v6522 = vmax.f32 %v6458, 0.0
        %v6523 = vmax.f32 %v6459, 0.0
        %v6524 = vmax.f32 %v6460, 0.0
        %v6525 = vmax.f32 %v6461, 0.0
        %v6526 = vmax.f32 %v6462, 0.0
        %v6527 = vmax.f32 %v6463, 0.0
        %v6528 = vmax.f32 %v6464, 0.0
        %v6529 = vmax.f32 %v6465, 0.0
        %v6530 = vmax.f32 %v6466, 0.0
        %v6531 = vmax.f32 %v6467, 0.0
        %v6532 = vmax.f32 %v6468, 0.0
        %v6533 = vmax.f32 %v6469, 0.0
        %v6534 = vmax.f32 %v6470, 0.0
        %v6535 = vmax.f32 %v6471, 0.0
        %v6536 = vmax.f32 %v6472, 0.0
        %v6537 = vmax.f32 %v6473, 0.0
        %v6538 = vmax.f32 %v6474, 0.0
        %v6539 = vmax.f32 %v6475, 0.0
        %v6540 = vmax.f32 %v6476, 0.0
        %v6541 = vmax.f32 %v6477, 0.0
        %v6542 = vmax.f32 %v6478, 0.0
        %v6543 = vmax.f32 %v6479, 0.0
        %v6544 = vmax.f32 %v6480, 0.0
        %v6545 = vmax.f32 %v6481, 0.0
        %v6546 = vmax.f32 %v6482, 0.0
        %v6547 = vmax.f32 %v6483, 0.0
        %v6548 = vmax.f32 %v6484, 0.0
        %v6549 = vmax.f32 %v6485, 0.0
        %v6550 = vmax.f32 %v6486, 0.0
        %v6551 = vmax.f32 %v6487, 0.0
        %v6552 = vmax.f32 %v6488, 0.0
        %v6553 = vmax.f32 %v6489, 0.0
        %v6554 = vmax.f32 %v6490, 0.0
        %v6555 = vmul.f32 %v6205, %v6491
        %v6556 = vmul.f32 %v6206, %v6492
        %v6557 = vmul.f32 %v6207, %v6493
        %v6558 = vmul.f32 %v6208, %v6494
        %v6559 = vmul.f32 %v6209, %v6495
        %v6560 = vmul.f32 %v6210, %v6496
        %v6561 = vmul.f32 %v6211, %v6497
        %v6562 = vmul.f32 %v6212, %v6498
        %v6563 = vmul.f32 %v6213, %v6499
        %v6564 = vmul.f32 %v6214, %v6500
        %v6565 = vmul.f32 %v6215, %v6501
        %v6566 = vmul.f32 %v6216, %v6502
        %v6567 = vmul.f32 %v6217, %v6503
        %v6568 = vmul.f32 %v6218, %v6504
        %v6569 = vmul.f32 %v6219, %v6505
        %v6570 = vmul.f32 %v6220, %v6506
        %v6571 = vmul.f32 %v6221, %v6507
        %v6572 = vmul.f32 %v6222, %v6508
        %v6573 = vmul.f32 %v6223, %v6509
        %v6574 = vmul.f32 %v6224, %v6510
        %v6575 = vmul.f32 %v6225, %v6511
        %v6576 = vmul.f32 %v6226, %v6512
        %v6577 = vmul.f32 %v6227, %v6513
        %v6578 = vmul.f32 %v6228, %v6514
        %v6579 = vmul.f32 %v6229, %v6515
        %v6580 = vmul.f32 %v6230, %v6516
        %v6581 = vmul.f32 %v6231, %v6517
        %v6582 = vmul.f32 %v6232, %v6518
        %v6583 = vmul.f32 %v6233, %v6519
        %v6584 = vmul.f32 %v6234, %v6520
        %v6585 = vmul.f32 %v6235, %v6521
        %v6586 = vmul.f32 %v6236, %v6522
        %v6587 = vmul.f32 %v6237, %v6523
        %v6588 = vmul.f32 %v6238, %v6524
        %v6589 = vmul.f32 %v6239, %v6525
        %v6590 = vmul.f32 %v6240, %v6526
        %v6591 = vmul.f32 %v6241, %v6527
        %v6592 = vmul.f32 %v6242, %v6528
        %v6593 = vmul.f32 %v6243, %v6529
        %v6594 = vmul.f32 %v6244, %v6530
        %v6595 = vmul.f32 %v6245, %v6531
        %v6596 = vmul.f32 %v6246, %v6532
        %v6597 = vmul.f32 %v6247, %v6533
        %v6598 = vmul.f32 %v6248, %v6534
        %v6599 = vmul.f32 %v6249, %v6535
        %v6600 = vmul.f32 %v6250, %v6536
        %v6601 = vmul.f32 %v6251, %v6537
        %v6602 = vmul.f32 %v6252, %v6538
        %v6603 = vmul.f32 %v6253, %v6539
        %v6604 = vmul.f32 %v6254, %v6540
        %v6605 = vmul.f32 %v6255, %v6541
        %v6606 = vmul.f32 %v6256, %v6542
        %v6607 = vmul.f32 %v6257, %v6543
        %v6608 = vmul.f32 %v6258, %v6544
        %v6609 = vmul.f32 %v6259, %v6545
        %v6610 = vmul.f32 %v6260, %v6546
        %v6611 = vmul.f32 %v6261, %v6547
        %v6612 = vmul.f32 %v6262, %v6548
        %v6613 = vmul.f32 %v6263, %v6549
        %v6614 = vmul.f32 %v6264, %v6550
        %v6615 = vmul.f32 %v6265, %v6551
        %v6616 = vmul.f32 %v6266, %v6552
        %v6617 = vmul.f32 %v6267, %v6553
        %v6618 = vmul.f32 %v6268, %v6554
        %v6620 = vsel %vm3914, %v5604, 0
        %v6623 = vsel %vm3918, %v6615, 0
        %v6626 = vsel %vm3918, %v6616, 0
        %v6629 = vsel %vm3918, %v6617, 0
        %v6632 = vsel %vm3918, %v6618, 0
        %6634 = vmatprep.subr.mxu0 %v6556
        %6635 = vmatpush1.msra.mxu0 %v6555
        %6636 = vmatprep.subr.mxu0 %v6560
        %6637 = vmatpush1.msra.mxu0 %v6559
        %6638 = vmatprep.subr.mxu0 %v6564
        %6639 = vmatpush1.msra.mxu0 %v6563
        %6640 = vmatprep.subr.mxu0 %v6568
        %6641 = vmatpush1.msra.mxu0 %v6567
        %6642 = vmatprep.subr.mxu0 %v6572
        %6643 = vmatpush1.msra.mxu0 %v6571
        %6644 = vmatprep.subr.mxu0 %v6576
        %6645 = vmatpush1.msra.mxu0 %v6575
        %6646 = vmatprep.subr.mxu0 %v6580
        %6647 = vmatpush1.msra.mxu0 %v6579
        %6648 = vmatprep.subr.mxu0 %v6584
        %6649 = vmatpush1.msra.mxu0 %v6583
        %6650 = vmatprep.subr.mxu0 %v6588
        %6651 = vmatpush1.msra.mxu0 %v6587
        %6652 = vmatprep.subr.mxu0 %v6592
        %6653 = vmatpush1.msra.mxu0 %v6591
        %6654 = vmatprep.subr.mxu0 %v6596
        %6655 = vmatpush1.msra.mxu0 %v6595
        %6656 = vmatprep.subr.mxu0 %v6600
        %6657 = vmatpush1.msra.mxu0 %v6599
        %6658 = vmatprep.subr.mxu0 %v6604
        %6659 = vmatpush1.msra.mxu0 %v6603
        %6660 = vmatprep.subr.mxu0 %v6608
        %6661 = vmatpush1.msra.mxu0 %v6607
        %6662 = vmatprep.subr.mxu0 %v6612
        %6663 = vmatpush1.msra.mxu0 %v6611
        %6664 = vmatprep.subr.mxu0 %v6626
        %6665 = vmatpush1.msra.mxu0 %v6623
        %6666 = vmatprep.subr.mxu0 0.0
        %6667 = vmatpush1.msra.mxu0 0.0
        %6668 = vmatprep.subr.mxu0 0.0
        %6669 = vmatpush1.msra.mxu0 0.0
        %6670 = vmatprep.subr.mxu0 0.0
        %6671 = vmatpush1.msra.mxu0 0.0
        %6672 = vmatprep.subr.mxu0 0.0
        %6673 = vmatpush1.msra.mxu0 0.0
        %6674 = vmatprep.subr.mxu0 0.0
        %6675 = vmatpush1.msra.mxu0 0.0
        %6676 = vmatprep.subr.mxu0 0.0
        %6677 = vmatpush1.msra.mxu0 0.0
        %6678 = vmatprep.subr.mxu0 0.0
        %6679 = vmatpush1.msra.mxu0 0.0
        %6680 = vmatprep.subr.mxu0 0.0
        %6681 = vmatpush1.msra.mxu0 0.0
        %6682 = vmatprep.subr.mxu0 0.0
        %6683 = vmatpush1.msra.mxu0 0.0
        %6684 = vmatprep.subr.mxu0 0.0
        %6685 = vmatpush1.msra.mxu0 0.0
        %6686 = vmatprep.subr.mxu0 0.0
        %6687 = vmatpush1.msra.mxu0 0.0
        %6688 = vmatprep.subr.mxu0 0.0
        %6689 = vmatpush1.msra.mxu0 0.0
        %6690 = vmatprep.subr.mxu0 0.0
        %6691 = vmatpush1.msra.mxu0 0.0
        %6692 = vmatprep.subr.mxu0 0.0
        %6693 = vmatpush1.msra.mxu0 0.0
        %6694 = vmatprep.subr.mxu0 0.0
        %6695 = vmatpush1.msra.mxu0 0.0
        %6696 = vmatprep.subr.mxu0 0.0
        %6697 = vmatpush1.msra.mxu0 0.0
        %6698 = vmatprep.mubr.f32.mxu0 0.0
        %6699 = vmatmul.mubr.f32.gmra.mrb[0].mxu0 %v6620
        %v6700 = vpop.f32.mrb[0].mxu0
        %v6701 = vadd.f32 0.0, %v6700
        %v6702 = vpop.f32.mrb[0].mxu0
        %v6703 = vadd.f32 0.0, %v6702
        %6704 = vdwg.mxu0
        %6705 = vmatprep.subr.mxu0 %v6558
        %6706 = vmatpush1.msra.mxu0 %v6557
        %6707 = vmatprep.subr.mxu0 %v6562
        %6708 = vmatpush1.msra.mxu0 %v6561
        %6709 = vmatprep.subr.mxu0 %v6566
        %6710 = vmatpush1.msra.mxu0 %v6565
        %6711 = vmatprep.subr.mxu0 %v6570
        %6712 = vmatpush1.msra.mxu0 %v6569
        %6713 = vmatprep.subr.mxu0 %v6574
        %6714 = vmatpush1.msra.mxu0 %v6573
        %6715 = vmatprep.subr.mxu0 %v6578
        %6716 = vmatpush1.msra.mxu0 %v6577
        %6717 = vmatprep.subr.mxu0 %v6582
        %6718 = vmatpush1.msra.mxu0 %v6581
        %6719 = vmatprep.subr.mxu0 %v6586
        %6720 = vmatpush1.msra.mxu0 %v6585
        %6721 = vmatprep.subr.mxu0 %v6590
        %6722 = vmatpush1.msra.mxu0 %v6589
        %6723 = vmatprep.subr.mxu0 %v6594
        %6724 = vmatpush1.msra.mxu0 %v6593
        %6725 = vmatprep.subr.mxu0 %v6598
        %6726 = vmatpush1.msra.mxu0 %v6597
        %6727 = vmatprep.subr.mxu0 %v6602
        %6728 = vmatpush1.msra.mxu0 %v6601
        %6729 = vmatprep.subr.mxu0 %v6606
        %6730 = vmatpush1.msra.mxu0 %v6605
        %6731 = vmatprep.subr.mxu0 %v6610
        %6732 = vmatpush1.msra.mxu0 %v6609
        %6733 = vmatprep.subr.mxu0 %v6614
        %6734 = vmatpush1.msra.mxu0 %v6613
        %6735 = vmatprep.subr.mxu0 %v6632
        %6736 = vmatpush1.msra.mxu0 %v6629
        %6737 = vmatprep.subr.mxu0 0.0
        %6738 = vmatpush1.msra.mxu0 0.0
        %6739 = vmatprep.subr.mxu0 0.0
        %6740 = vmatpush1.msra.mxu0 0.0
        %6741 = vmatprep.subr.mxu0 0.0
        %6742 = vmatpush1.msra.mxu0 0.0
        %6743 = vmatprep.subr.mxu0 0.0
        %6744 = vmatpush1.msra.mxu0 0.0
        %6745 = vmatprep.subr.mxu0 0.0
        %6746 = vmatpush1.msra.mxu0 0.0
        %6747 = vmatprep.subr.mxu0 0.0
        %6748 = vmatpush1.msra.mxu0 0.0
        %6749 = vmatprep.subr.mxu0 0.0
        %6750 = vmatpush1.msra.mxu0 0.0
        %6751 = vmatprep.subr.mxu0 0.0
        %6752 = vmatpush1.msra.mxu0 0.0
        %6753 = vmatprep.subr.mxu0 0.0
        %6754 = vmatpush1.msra.mxu0 0.0
        %6755 = vmatprep.subr.mxu0 0.0
        %6756 = vmatpush1.msra.mxu0 0.0
        %6757 = vmatprep.subr.mxu0 0.0
        %6758 = vmatpush1.msra.mxu0 0.0
        %6759 = vmatprep.subr.mxu0 0.0
        %6760 = vmatpush1.msra.mxu0 0.0
        %6761 = vmatprep.subr.mxu0 0.0
        %6762 = vmatpush1.msra.mxu0 0.0
        %6763 = vmatprep.subr.mxu0 0.0
        %6764 = vmatpush1.msra.mxu0 0.0
        %6765 = vmatprep.subr.mxu0 0.0
        %6766 = vmatpush1.msra.mxu0 0.0
        %6767 = vmatprep.subr.mxu0 0.0
        %6768 = vmatpush1.msra.mxu0 0.0
        %6769 = vmatprep.mubr.f32.mxu0 0.0
        %6770 = vmatmul.mubr.f32.gmra.mrb[0].mxu0 %v6620
        %v6771 = vpop.f32.mrb[0].mxu0
        %v6772 = vadd.f32 0.0, %v6771
        %v6773 = vpop.f32.mrb[0].mxu0
        %v6774 = vadd.f32 0.0, %v6773
        %6775 = vdwg.mxu0
        %v6776 = vadd.f32 %v3998, %v6701
        %v6777 = vadd.f32 %v4000, %v6703
        %v6778 = vadd.f32 %v4069, %v6772
        %v6779 = vadd.f32 %v4071, %v6774
        %v6784 = vcombine.low %v6776, %v6777
        %v6785 = vcombine.low %v6778, %v6779
        %v6787 = vunpack.c.l.s4 1966171168
        %v6788 = vunpack.c.0.s8 %v6787
        %v6789 = vlaneseq
        %v6790 = vshrl.u32 %v6789, 7
        %v6791 = vsub.s32 %v6788, %v6790
        %v6792 = vrot.slane %v6784, %v6791
        %v6794 = vunpack.c.l.s4 1966171168
        %v6795 = vunpack.c.0.s8 %v6794
        %v6796 = vlaneseq
        %v6797 = vshrl.u32 %v6796, 7
        %v6798 = vsub.s32 %v6795, %v6797
        %v6799 = vrot.slane %v6785, %v6798
        %v6800 = vcombine.low %v6792, %v6799
        %v6802 = vunpack.c.l.s4 1966171168
        %v6803 = vunpack.c.0.s8 %v6802
        %v6804 = vlaneseq
        %v6805 = vshrl.u32 %v6804, 7
        %v6806 = vsub.s32 %v6803, %v6805
        %v6807 = vrot.slane %v6800, %v6806
        %s6809 = scalar_lea.vmem %s829, 1 [#allocation5]
        %6810 = vst.msk [vmem:[%s6809] ss:$2 sm:$0xf] %vm4105, %v6807
        %6811 = vst.msk [vmem:[%s836 + $0x1] sm:$0x1] %vm4107, %v5352
        %6813 = vrot.lane.b32.xlu0 %v5352, 118
        %v6814 = vpop.permute.xlu0 %6813
        %6816 = vst.msk [vmem:[%s843 + $0x1] sm:$0x1] %vm4107, %v6814
        %6817 = vst.msk [vmem:[%s850 + $0x1] sm:$0x1] %vm4107, %v5360
        %s6818 = sand.u32 %s551, 1
        %s6819 = scalar_lea.sflag [#allocation4], %s6818
        %s6820 = sand.u32 %s551, 1
        %s6821 = smul.addr %s6820, 8
        %s6822 = scalar_lea.vmem [#allocation5], %s6821
        %s6823 = sand.u32 %s50, 1
        %s6824 = scalar_lea.sflag [#allocation7], %s6823
        %s6825 = sand.u32 %s577, 1
        %s6826 = smul.addr %s6825, 2
        %s6827 = scalar_lea.vmem [#allocation6], %s6826
        %s6828 = sand.u32 %s50, 1
        %s6829 = scalar_lea.sflag [#allocation7], %s6828
        %s6830 = sand.u32 %s603, 1
        %s6831 = smul.addr %s6830, 2
        %s6832 = scalar_lea.vmem [#allocation8], %s6831
        %s6833 = sand.u32 %s629, 1
        %s6834 = scalar_lea.sflag [#allocation10], %s6833
        %s6835 = sand.u32 %s629, 1
        %s6836 = smul.addr %s6835, 2
        %s6837 = scalar_lea.vmem [#allocation9], %s6836
        // Predicated region
        $region117: #{tpu_custom_call.1} parent=111 // pred_check
          %p6838 = pneg %p561
        $region118: #{tpu_custom_call.1} parent=111 // pred_check_branch
          %6840 = sbr.rel (%p6838) target = $region120
        $region119: #{tpu_custom_call.1} parent=111 // pred_region
          %s6842 = ssub.s32 128, 128
          %6843 = vsyncadd %s6819, %s6842
          %s6844 = smul.addr %s50, 4
          %s6845 = smul.addr %s6844, 32
          %s6846 = scalar_lea.hbm %s23, %s6845
          %s6848 = sshll.u32 %s6822, 4
          %s6849 = int_to_ptr.vmem [resolvable:$true] %s6848
          %6851 = dma.vmem_to_hbm [thread:$0]  %s6849, 128, %s6846, %s6819
        $region120: #{tpu_custom_call.1} parent=111 // pred_fallthru
          _
        // Predicated region
        $region121: #{tpu_custom_call.1} parent=111 // pred_check
          %p6852 = pneg %p587
        $region122: #{tpu_custom_call.1} parent=111 // pred_check_branch
          %6854 = sbr.rel (%p6852) target = $region124
        $region123: #{tpu_custom_call.1} parent=111 // pred_region
          %s6856 = ssub.s32 32, 32
          %6857 = vsyncadd %s6824, %s6856
          %s6858 = smul.addr %s50, 32
          %s6859 = scalar_lea.hbm %s24, %s6858
          %s6861 = sshll.u32 %s6827, 4
          %s6862 = int_to_ptr.vmem [resolvable:$true] %s6861
          %6864 = dma.vmem_to_hbm [thread:$0]  %s6862, 32, %s6859, %s6824
        $region124: #{tpu_custom_call.1} parent=111 // pred_fallthru
          _
        // Predicated region
        $region125: #{tpu_custom_call.1} parent=111 // pred_check
          %p6865 = pneg %p613
        $region126: #{tpu_custom_call.1} parent=111 // pred_check_branch
          %6867 = sbr.rel (%p6865) target = $region128
        $region127: #{tpu_custom_call.1} parent=111 // pred_region
          %s6869 = ssub.s32 32, 32
          %6870 = vsyncadd %s6829, %s6869
          %s6871 = smul.addr %s50, 32
          %s6872 = scalar_lea.hbm %s25, %s6871
          %s6874 = sshll.u32 %s6832, 4
          %s6875 = int_to_ptr.vmem [resolvable:$true] %s6874
          %6877 = dma.vmem_to_hbm [thread:$0]  %s6875, 32, %s6872, %s6829
        $region128: #{tpu_custom_call.1} parent=111 // pred_fallthru
          _
        // Predicated region
        $region129: #{tpu_custom_call.1} parent=111 // pred_check
          %p6878 = pneg %p639
        $region130: #{tpu_custom_call.1} parent=111 // pred_check_branch
          %6880 = sbr.rel (%p6878) target = $region132
        $region131: #{tpu_custom_call.1} parent=111 // pred_region
          %s6882 = ssub.s32 32, 32
          %6883 = vsyncadd %s6834, %s6882
          %s6884 = smul.addr %s50, 32
          %s6885 = scalar_lea.hbm %s26, %s6884
          %s6887 = sshll.u32 %s6837, 4
          %s6888 = int_to_ptr.vmem [resolvable:$true] %s6887
          %6890 = dma.vmem_to_hbm [thread:$0]  %s6888, 32, %s6885, %s6834
        $region132: #{tpu_custom_call.1} parent=111 // pred_fallthru
          _
      $region112: #{tpu_custom_call.1} parent=5 // pred_fallthru
        _
      %p6891 = scmp.le.s32.totalorder 2, %s45
      // Predicated region
      $region133: #{tpu_custom_call.1} parent=5 // pred_check
        %p6892 = pneg %p6891
      $region134: #{tpu_custom_call.1} parent=5 // pred_check_branch
        %6894 = sbr.rel (%p6892) target = $region136
      $region135: #{tpu_custom_call.1} parent=5 // pred_region
        %s6895 = ssub.s32 %s45, 2
        // Predicated region
        $region137: #{tpu_custom_call.1} parent=135 // pred_check
          %p6896 = pneg %p567
        $region138: #{tpu_custom_call.1} parent=135 // pred_check_branch
          %6898 = sbr.rel (%p6896) target = $region140
        $region139: #{tpu_custom_call.1} parent=135 // pred_region
          %s6899 = sand.u32 %s552, 1
          %s6900 = scalar_lea.sflag [#allocation4], %s6899
          %s6901 = sand.u32 %s552, 1
          %s6902 = smul.addr %s6901, 8
          %s6903 = scalar_lea.vmem [#allocation5], %s6902
          %6904 = dma.done %s6900, 128
        $region140: #{tpu_custom_call.1} parent=135 // pred_fallthru
          _
        // Predicated region
        $region141: #{tpu_custom_call.1} parent=135 // pred_check
          %p6905 = pneg %p593
        $region142: #{tpu_custom_call.1} parent=135 // pred_check_branch
          %6907 = sbr.rel (%p6905) target = $region144
        $region143: #{tpu_custom_call.1} parent=135 // pred_region
          %s6908 = sand.u32 %s51, 1
          %s6909 = scalar_lea.sflag [#allocation7], %s6908
          %s6910 = sand.u32 %s578, 1
          %s6911 = smul.addr %s6910, 2
          %s6912 = scalar_lea.vmem [#allocation6], %s6911
          %6913 = dma.done %s6909, 32
        $region144: #{tpu_custom_call.1} parent=135 // pred_fallthru
          _
        // Predicated region
        $region145: #{tpu_custom_call.1} parent=135 // pred_check
          %p6914 = pneg %p619
        $region146: #{tpu_custom_call.1} parent=135 // pred_check_branch
          %6916 = sbr.rel (%p6914) target = $region148
        $region147: #{tpu_custom_call.1} parent=135 // pred_region
          %s6917 = sand.u32 %s51, 1
          %s6918 = scalar_lea.sflag [#allocation7], %s6917
          %s6919 = sand.u32 %s604, 1
          %s6920 = smul.addr %s6919, 2
          %s6921 = scalar_lea.vmem [#allocation8], %s6920
          %6922 = dma.done %s6918, 32
        $region148: #{tpu_custom_call.1} parent=135 // pred_fallthru
          _
        // Predicated region
        $region149: #{tpu_custom_call.1} parent=135 // pred_check
          %p6923 = pneg %p645
        $region150: #{tpu_custom_call.1} parent=135 // pred_check_branch
          %6925 = sbr.rel (%p6923) target = $region152
        $region151: #{tpu_custom_call.1} parent=135 // pred_region
          %s6926 = sand.u32 %s630, 1
          %s6927 = scalar_lea.sflag [#allocation10], %s6926
          %s6928 = sand.u32 %s630, 1
          %s6929 = smul.addr %s6928, 2
          %s6930 = scalar_lea.vmem [#allocation9], %s6929
          %6931 = dma.done %s6927, 32
        $region152: #{tpu_custom_call.1} parent=135 // pred_fallthru
          _
      $region136: #{tpu_custom_call.1} parent=5 // pred_fallthru
        _
    $region6: #{tpu_custom_call.1} parent=1 // loop_footer
      %s49 = sadd.s32 1, %s45
    $region7: #{tpu_custom_call.1} parent=1 // loop_footer_branch
      %44 = sbr.rel target = $region3
    $region8: #{tpu_custom_call.1} parent=1 // loop_exit
      _
    %6932 = vsyncpa [#allocation3], 1
    %s6933 = scalar_lea.sflag [#allocation3], 1
    %6934 = vsyncpa %s6933, 1
    %6935 = vsyncpa [#allocation4], 1
    %s6936 = scalar_lea.sflag [#allocation4], 1
    %6937 = vsyncpa %s6936, 1
    %6938 = vsyncpa [#allocation7], 1
    %s6939 = scalar_lea.sflag [#allocation7], 1
    %6940 = vsyncpa %s6939, 1
    %6941 = vsyncpa [#allocation10], 1
    %s6942 = scalar_lea.sflag [#allocation10], 1
    %6943 = vsyncpa %s6942, 1

</llo_original>
